<compile_context>
chip_gen: v7x
topology: tpu7x:2x2x1
jax: 0.10.0
libtpu: 0.0.40
codegen_flags: <defaults>
</compile_context>

<pallas_src>
import functools

import numpy as np
import jax
import jax.numpy as jnp
from jax.experimental import pallas as pl
from jax.experimental.pallas import tpu as pltpu

DESC_DIM = 128
HIDDEN = 32


# ----------------------------------------------------------------------------
# VMEM sizing helpers (adapt tile sizes to the chip generation, e.g. v7x 64MiB)
# ----------------------------------------------------------------------------
def _vmem_limit_bytes():
    try:
        cap = pltpu.get_tpu_info().vmem_capacity_bytes
    except Exception:
        cap = 64 * 1024 * 1024
    return int(min(cap * 3 // 4, 96 * 1024 * 1024))


def _pick_row_tile(Hp, Wp, *, planes=16):
    """Largest multiple-of-8 divisor of Hp whose working set fits the budget,
    preferring >= 4 grid steps so the grid shards across 2 TCs (v7x)."""
    budget = min(_vmem_limit_bytes() // 8, 12 * 1024 * 1024)
    divs = [t for t in range(8, Hp + 1, 8) if Hp % t == 0]
    if not divs:
        return Hp
    fits = [t for t in divs if planes * (t + 4) * (Wp + 4) * 4 <= budget] or [divs[0]]
    for min_steps in (4, 2, 1):
        pref = [t for t in fits if Hp // t >= min_steps]
        if pref:
            return max(pref)
    return fits[0]


# ----------------------------------------------------------------------------
# Dense pass: heatmap only (conv1 + ReLU + conv2-heat), channel-major on VPU
# ----------------------------------------------------------------------------
def _heatmap_kernel(img_ref, w1_ref, b1_ref, w2h_ref, b2h_ref, heat_ref,
                    *, tile_h, Wp, H, W):
    th2 = tile_h + 2          # h1 rows needed (1-row halo each side for conv2)
    Wq = Wp + 2               # h1 cols needed (1-col halo each side for conv2)
    row0 = pl.multiple_of(pl.program_id(0) * tile_h, 8)

    # Image slab with a 2-pixel halo (conv padding pre-baked as zeros), f32.
    x = img_ref[pl.ds(row0, tile_h + 4), :]              # (tile_h+4, Wp+4)
    xs = [x[dy:dy + th2, dx:dx + Wq] for dy in range(3) for dx in range(3)]

    # Channel-major conv1 + ReLU (lanes = Wq, full lane occupancy for wide
    # images), immediately followed by that channel's conv2-heat contribution.
    # The conv2 column shifts are deferred: accumulate per column-offset into
    # g[dx] so only 3 lane-shifted slices are needed per tile (not 9/channel),
    # and only one (th2, Wq) h1 plane is live at a time.
    g = [jnp.zeros((tile_h, Wq), jnp.float32) for _ in range(3)]
    for c in range(HIDDEN):
        acc = xs[0] * w1_ref[0, c]
        for t in range(1, 9):
            acc = acc + xs[t] * w1_ref[t, c]
        h1c = jnp.maximum(acc + b1_ref[c], 0.0)           # (th2, Wq)
        rows = [h1c[dy:dy + tile_h, :] for dy in range(3)]
        for dx in range(3):
            gx = g[dx]
            for dy in range(3):
                gx = gx + rows[dy] * w2h_ref[dy * 3 + dx, c]
            g[dx] = gx
    heat = g[0][:, 0:Wp] + g[1][:, 1:1 + Wp] + g[2][:, 2:2 + Wp] + b2h_ref[0]

    # Keep the heatmap lane-dense: mask the divisibility-padding region to
    # -inf here instead of cropping + re-padding outside the kernel.
    ys = row0 + jax.lax.broadcasted_iota(jnp.int32, (tile_h, Wp), 0)
    xs_i = jax.lax.broadcasted_iota(jnp.int32, (tile_h, Wp), 1)
    valid = (ys < H) & (xs_i < W)
    heat_ref[...] = jnp.where(valid, heat, -jnp.inf)


def dense_heatmap(img_pad, params, *, Hp, Wp, H, W):
    """img_pad: (Hp+4, Wp+4) f32 (zero halo of 2).  Returns (Hp, Wp) heatmap
    with the region outside [0,H)x[0,W) set to -inf."""
    tile_h = _pick_row_tile(Hp, Wp)
    kernel = functools.partial(_heatmap_kernel, tile_h=tile_h, Wp=Wp, H=H, W=W)
    smem = pl.BlockSpec(memory_space=pltpu.MemorySpace.SMEM)
    return pl.pallas_call(
        kernel,
        out_shape=jax.ShapeDtypeStruct((Hp, Wp), jnp.float32),
        grid=(Hp // tile_h,),
        in_specs=[
            # Full (small, 1-channel, f32) padded image stays VMEM-resident.
            # TODO(synk): switch to a halo-tiled manual-DMA image input for
            # multi-megapixel images (resident image breaks earliest on v7x's
            # 64 MiB VMEM).
            pl.BlockSpec((Hp + 4, Wp + 4), lambda i: (0, 0)),
            smem,   # w1  (9, 32)
            smem,   # b1  (32,)
            smem,   # w2h (9, 32)
            smem,   # b2h (1,)
        ],
        out_specs=pl.BlockSpec((tile_h, Wp), lambda i: (i, 0)),
        compiler_params=pltpu.CompilerParams(
            dimension_semantics=("parallel",),
            vmem_limit_bytes=_vmem_limit_bytes()),
    )(img_pad, params["w1"], params["b1"], params["w2h"], params["b2h"])


# ----------------------------------------------------------------------------
# NMS kernel (separable window max, index-free first-max tie-break)
# ----------------------------------------------------------------------------
def _nms_kernel(hp_ref, o_ref, *, tile_h, Wp, r, cutoff):
    # Matches F.max_pool2d(..., return_indices=True) semantics: a pixel
    # survives iff it is the FIRST (smallest flat-index) maximum of its own
    # window and exceeds the cutoff.  Separable form: strictly greater than
    # every "earlier" neighbor (all rows above + left cols of its own row) and
    # >= every "later" neighbor.
    row0 = pl.multiple_of(pl.program_id(0) * tile_h, 8)
    slab = hp_ref[pl.ds(row0, tile_h + 2 * r), :]          # (tile_h+2r, Wp+2r)
    sx = [slab[:, dx:dx + Wp] for dx in range(2 * r + 1)]  # lane-aligned views
    center = sx[r][r:r + tile_h, :]

    cmax = sx[0]
    for dx in range(1, 2 * r + 1):
        cmax = jnp.maximum(cmax, sx[dx])                   # per-row window max

    earlier = sx[0][r:r + tile_h, :]
    for dx in range(1, r):
        earlier = jnp.maximum(earlier, sx[dx][r:r + tile_h, :])
    for dy in range(r):
        earlier = jnp.maximum(earlier, cmax[dy:dy + tile_h, :])

    later = sx[r + 1][r:r + tile_h, :]
    for dx in range(r + 2, 2 * r + 1):
        later = jnp.maximum(later, sx[dx][r:r + tile_h, :])
    for dy in range(r + 1, 2 * r + 1):
        later = jnp.maximum(later, cmax[dy:dy + tile_h, :])

    ok = (center > cutoff) & (center > earlier) & (center >= later)
    o_ref[...] = jnp.where(ok, center, -jnp.inf)


def nms_masked_scores(heat, window, cutoff):
    """Heatmap where NMS-selected keypoints keep their score, -inf elsewhere."""
    assert window % 2 == 1 and window >= 3
    Hp, Wp = heat.shape
    r = window // 2
    hp = jnp.pad(heat, ((r, r), (r, r)), constant_values=-jnp.inf)
    tile_h = _pick_row_tile(Hp, Wp, planes=10)
    kernel = functools.partial(_nms_kernel, tile_h=tile_h, Wp=Wp, r=r,
                               cutoff=cutoff)
    return pl.pallas_call(
        kernel,
        out_shape=jax.ShapeDtypeStruct((Hp, Wp), jnp.float32),
        grid=(Hp // tile_h,),
        in_specs=[pl.BlockSpec((Hp + 2 * r, Wp + 2 * r), lambda i: (0, 0))],
        out_specs=pl.BlockSpec((tile_h, Wp), lambda i: (i, 0)),
        compiler_params=pltpu.CompilerParams(
            dimension_semantics=("parallel",),
            vmem_limit_bytes=_vmem_limit_bytes()),
    )(hp)


# ----------------------------------------------------------------------------
# Sparse pass: descriptors only at the selected keypoints (one K=288 MXU dot,
# fused L2 normalization)
# ----------------------------------------------------------------------------
def _sparse_desc_kernel(patch_ref, w1e_ref, b1e_ref, w2d_ref, b2d_ref, o_ref):
    h1 = jnp.maximum(
        jnp.dot(patch_ref[...], w1e_ref[...],
                preferred_element_type=jnp.float32) + b1e_ref[...], 0.0)
    d = jnp.dot(h1, w2d_ref[...],
                preferred_element_type=jnp.float32) + b2d_ref[...]
    ss = jnp.sum(d * d, axis=-1, keepdims=True)
    # F.normalize(dim=-1, eps=1e-12): x / max(||x||, 1e-12) == x*rsqrt(max(ss,1e-24))
    o_ref[...] = d * jax.lax.rsqrt(jnp.maximum(ss, 1e-24))


def sparse_descriptors(patches, params):
    """patches: (n, 32) f32 (5x5 image patches, row-major, zero-padded cols)."""
    n = patches.shape[0]
    return pl.pallas_call(
        _sparse_desc_kernel,
        out_shape=jax.ShapeDtypeStruct((n, DESC_DIM), jnp.float32),
        grid=(1,),
        in_specs=[
            pl.BlockSpec((n, 32), lambda i: (0, 0)),
            pl.BlockSpec((32, 9 * HIDDEN), lambda i: (0, 0)),
            pl.BlockSpec((1, 9 * HIDDEN), lambda i: (0, 0)),
            pl.BlockSpec((9 * HIDDEN, DESC_DIM), lambda i: (0, 0)),
            pl.BlockSpec((1, DESC_DIM), lambda i: (0, 0)),
        ],
        out_specs=pl.BlockSpec((n, DESC_DIM), lambda i: (0, 0)),
    )(patches, params["w1e"], params["b1e"], params["w2d"], params["b2d"])


# ----------------------------------------------------------------------------
# Parameter setup & forward pass
# ----------------------------------------------------------------------------
def init_params(key):
    k1, k2, k3, k4 = jax.random.split(key, 4)
    # PyTorch-convention conv weights (Cout, Cin, kh, kw), deterministic init.
    w1 = jax.random.normal(k1, (HIDDEN, 1, 3, 3), jnp.float32) * 0.5
    b1 = jax.random.normal(k2, (HIDDEN,), jnp.float32) * 0.1
    w2 = jax.random.normal(k3, (DESC_DIM + 1, HIDDEN, 3, 3), jnp.float32) * 0.1
    b2 = jax.random.normal(k4, (DESC_DIM + 1,), jnp.float32) * 0.1

    # Tap-major layouts (tap index t = kh*3 + kw).
    w1_taps = jnp.transpose(w1, (2, 3, 1, 0)).reshape(9, HIDDEN)            # (9, 32)
    w2d_288 = jnp.transpose(w2[:DESC_DIM], (2, 3, 1, 0)).reshape(9 * HIDDEN,
                                                                 DESC_DIM)  # (288, 128)
    w2h_taps = jnp.transpose(w2[DESC_DIM], (1, 2, 0)).reshape(9, HIDDEN)    # (9, 32)

    # conv1 "expansion" matrix for the sparse pass: maps a 5x5 (row-major,
    # padded to 32) image patch to the 9 inner-3x3-position x 32-channel
    # hidden pre-activations.
    w1_np = np.asarray(w1_taps, np.float32)
    w1e = np.zeros((32, 9 * HIDDEN), np.float32)
    for i in range(3):
        for j in range(3):
            col = (i * 3 + j) * HIDDEN
            for dy in range(3):
                for dx in range(3):
                    w1e[(i + dy) * 5 + (j + dx), col:col + HIDDEN] = w1_np[dy * 3 + dx]
    b1e = np.tile(np.asarray(b1, np.float32), 9).reshape(1, 9 * HIDDEN)

    return dict(
        w1=w1_taps.astype(jnp.float32),                        # (9, 32)
        b1=b1.astype(jnp.float32),                             # (32,)
        w2h=w2h_taps.astype(jnp.float32),                      # (9, 32)
        b2h=b2[DESC_DIM].reshape(1).astype(jnp.float32),       # (1,)
        w1e=jnp.asarray(w1e),                                  # (32, 288)
        b1e=jnp.asarray(b1e),                                  # (1, 288)
        w2d=w2d_288.astype(jnp.float32),                       # (288, 128)
        b2d=b2[:DESC_DIM].reshape(1, DESC_DIM).astype(jnp.float32),
    )


def disk_forward(image, params, *, max_num_keypoints=32, nms_window=5,
                 detection_threshold=0.0):
    """image: (1, 1, H, W) NCHW float32 -> (keypoints, scores, descriptors)."""
    B, C, H, W = image.shape
    assert B == 1 and C == 1

    # pad_if_not_divisible (to a multiple of 16).
    pd_h = (16 - H % 16) % 16
    pd_w = (16 - W % 16) % 16
    Hp, Wp = H + pd_h, W + pd_w

    # 2-pixel zero halo: 1 pixel per conv's padding=1.  Image stays f32.
    img_pad = jnp.pad(image[0, 0].astype(jnp.float32),
                      ((2, 2 + pd_h), (2, 2 + pd_w)))

    # Dense pass: heatmap only (pad region already -inf-masked, lane-dense).
    heat = dense_heatmap(img_pad, params, Hp=Hp, Wp=Wp, H=H, W=W)

    # NMS + keypoint extraction.
    # TODO(synk): torch.nonzero yields a data-dependent keypoint count; JAX
    # needs static shapes, so we always emit max_num_keypoints via top_k and
    # unused slots carry -inf scores.
    masked = nms_masked_scores(heat, nms_window, detection_threshold)
    scores, flat_idx = jax.lax.top_k(masked.reshape(-1), max_num_keypoints)
    ky = flat_idx // Wp
    kx = flat_idx % Wp
    keypoints = jnp.stack([kx, ky], axis=-1).astype(jnp.int32)   # (n, 2), xy

    # Sparse second pass: gather 5x5 image patches at the keypoints (tiny XLA
    # gather) and compute + normalize descriptors in a single small kernel.
    off = jnp.arange(5)
    patches = img_pad[ky[:, None, None] + off[None, :, None],
                      kx[:, None, None] + off[None, None, :]]    # (n, 5, 5)
    n = max_num_keypoints
    n_pad = (-n) % 8
    patches = jnp.pad(patches.reshape(n, 25), ((0, n_pad), (0, 32 - 25)))
    desc = sparse_descriptors(patches, params)[:n]

    return keypoints[None], scores[None], desc[None]


if __name__ == "__main__":
    key = jax.random.PRNGKey(0)
    pkey, ikey = jax.random.split(key)
    params = init_params(pkey)
    image = jax.random.uniform(ikey, (1, 1, 24, 24), dtype=jnp.float32)

    kpts, scores, desc = disk_forward(image, params, max_num_keypoints=32,
                                      nms_window=5, detection_threshold=0.0)
    jax.block_until_ready((kpts, scores, desc))

    assert kpts.shape == (1, 32, 2)
    assert scores.shape == (1, 32)
    assert desc.shape == (1, 32, DESC_DIM)

    # ---------------- self-check vs a plain-jnp reference -------------------
    H, W = 24, 24
    Hp = Wp = 32
    img_pad = jnp.pad(image[0, 0], ((2, 2 + Hp - H), (2, 2 + Wp - W)))
    H2, W2 = Hp + 2, Wp + 2
    h1 = jnp.zeros((H2, W2, HIDDEN), jnp.float32)
    for t in range(9):
        dy, dx = divmod(t, 3)
        h1 = h1 + img_pad[dy:dy + H2, dx:dx + W2, None] * params["w1"][t][None, None, :]
    h1 = jnp.maximum(h1 + params["b1"][None, None, :], 0.0)
    heat_ref = jnp.zeros((Hp, Wp), jnp.float32)
    desc_ref = jnp.zeros((Hp, Wp, DESC_DIM), jnp.float32)
    w2d_t = params["w2d"].reshape(9, HIDDEN, DESC_DIM)
    for t in range(9):
        dy, dx = divmod(t, 3)
        h1s = h1[dy:dy + Hp, dx:dx + Wp, :]
        heat_ref = heat_ref + jnp.sum(h1s * params["w2h"][t][None, None, :], -1)
        desc_ref = desc_ref + jnp.einsum("hwc,cd->hwd", h1s, w2d_t[t],
                                         precision=jax.lax.Precision.HIGHEST)
    heat_ref = heat_ref + params["b2h"][0]
    desc_ref = desc_ref + params["b2d"][0][None, None, :]
    desc_ref = desc_ref / jnp.maximum(
        jnp.linalg.norm(desc_ref, axis=-1, keepdims=True), 1e-12)

    heat_kernel = dense_heatmap(img_pad, params, Hp=Hp, Wp=Wp, H=H, W=W)
    np.testing.assert_allclose(np.asarray(heat_kernel[:H, :W]),
                               np.asarray(heat_ref[:H, :W]),
                               rtol=1e-4, atol=1e-4)

    # NMS reference (first max in window scan order), on the same heatmap.
    r = 2
    hv = heat_kernel[:H, :W]
    hp_r = jnp.pad(hv, ((r, r), (r, r)), constant_values=-jnp.inf)
    stack = jnp.stack([hp_r[dy:dy + H, dx:dx + W]
                       for dy in range(5) for dx in range(5)], 0)
    is_kpt = (jnp.argmax(stack, 0) == (r * 5 + r)) & (hv > 0.0)
    nms_ref = jnp.where(is_kpt, hv, -jnp.inf)
    nms_out = nms_masked_scores(heat_kernel, 5, 0.0)
    np.testing.assert_allclose(np.asarray(nms_out[:H, :W]),
                               np.asarray(nms_ref), rtol=1e-4, atol=1e-4)

    # Descriptor check at the selected keypoints.
    ky = np.asarray(kpts[0, :, 1])
    kx = np.asarray(kpts[0, :, 0])
    np.testing.assert_allclose(np.asarray(desc[0]),
                               np.asarray(desc_ref)[ky, kx, :],
                               rtol=1e-3, atol=1e-3)

    print("KERNEL_OK")
</pallas_src>

<mosaic_0001>
module attributes {stable_mosaic.version = 11 : i64} {
  func.func @_heatmap_kernel(%arg0: i32, %arg1: memref<36x36xf32, #tpu.memory_space<vmem>>, %arg2: memref<9x32xf32, #tpu.memory_space<smem>>, %arg3: memref<32xf32, #tpu.memory_space<smem>>, %arg4: memref<9x32xf32, #tpu.memory_space<smem>>, %arg5: memref<1xf32, #tpu.memory_space<smem>>, %arg6: memref<8x32xf32, #tpu.memory_space<vmem>>) attributes {dimension_semantics = [#tpu.dimension_semantics<parallel>], iteration_bounds = array<i64: 4>, scalar_prefetch = 0 : i64, scratch_operands = 0 : i64, tpu.core_type = #tpu.core_type<tc>, window_params = [{pipeline_mode = #tpu.pipeline_mode<synchronous>, transform_indices = @transform_0, window_bounds = array<i64: 36, 36>}, {transform_indices = @transform_1, window_bounds = array<i64: 9, 32>}, {transform_indices = @transform_2, window_bounds = array<i64: 32>}, {transform_indices = @transform_3, window_bounds = array<i64: 9, 32>}, {transform_indices = @transform_4, window_bounds = array<i64: 1>}, {transform_indices = @transform_5, window_bounds = array<i64: 8, 32>}]} {
    %c8_i32 = arith.constant 8 : i32
    %0 = arith.muli %arg0, %c8_i32 : i32
    %1 = tpu.assume_multiple %0, 8 : i32
    %2 = arith.index_cast %1 : i32 to index
    %c0 = arith.constant 0 : index
    %3 = vector.load %arg1[%2, %c0] : memref<36x36xf32, #tpu.memory_space<vmem>>, vector<12x36xf32>
    %4 = vector.extract_strided_slice %3 {offsets = [0, 0], sizes = [10, 34], strides = [1, 1]} : vector<12x36xf32> to vector<10x34xf32>
    %5 = vector.extract_strided_slice %3 {offsets = [0, 1], sizes = [10, 34], strides = [1, 1]} : vector<12x36xf32> to vector<10x34xf32>
    %6 = vector.extract_strided_slice %3 {offsets = [0, 2], sizes = [10, 34], strides = [1, 1]} : vector<12x36xf32> to vector<10x34xf32>
    %7 = vector.extract_strided_slice %3 {offsets = [1, 0], sizes = [10, 34], strides = [1, 1]} : vector<12x36xf32> to vector<10x34xf32>
    %8 = vector.extract_strided_slice %3 {offsets = [1, 1], sizes = [10, 34], strides = [1, 1]} : vector<12x36xf32> to vector<10x34xf32>
    %9 = vector.extract_strided_slice %3 {offsets = [1, 2], sizes = [10, 34], strides = [1, 1]} : vector<12x36xf32> to vector<10x34xf32>
    %10 = vector.extract_strided_slice %3 {offsets = [2, 0], sizes = [10, 34], strides = [1, 1]} : vector<12x36xf32> to vector<10x34xf32>
    %11 = vector.extract_strided_slice %3 {offsets = [2, 1], sizes = [10, 34], strides = [1, 1]} : vector<12x36xf32> to vector<10x34xf32>
    %12 = vector.extract_strided_slice %3 {offsets = [2, 2], sizes = [10, 34], strides = [1, 1]} : vector<12x36xf32> to vector<10x34xf32>
    %cst = arith.constant 0.000000e+00 : f32
    %13 = vector.broadcast %cst : f32 to vector<8x34xf32>
    %cst_0 = arith.constant 0.000000e+00 : f32
    %14 = vector.broadcast %cst_0 : f32 to vector<8x34xf32>
    %cst_1 = arith.constant 0.000000e+00 : f32
    %15 = vector.broadcast %cst_1 : f32 to vector<8x34xf32>
    %c0_2 = arith.constant 0 : index
    %c0_3 = arith.constant 0 : index
    %16 = memref.load %arg2[%c0_2, %c0_3] : memref<9x32xf32, #tpu.memory_space<smem>>
    %17 = vector.broadcast %16 : f32 to vector<10x34xf32>
    %18 = arith.mulf %4, %17 : vector<10x34xf32>
    %c1 = arith.constant 1 : index
    %c0_4 = arith.constant 0 : index
    %19 = memref.load %arg2[%c1, %c0_4] : memref<9x32xf32, #tpu.memory_space<smem>>
    %20 = vector.broadcast %19 : f32 to vector<10x34xf32>
    %21 = arith.mulf %5, %20 : vector<10x34xf32>
    %22 = arith.addf %18, %21 : vector<10x34xf32>
    %c2 = arith.constant 2 : index
    %c0_5 = arith.constant 0 : index
    %23 = memref.load %arg2[%c2, %c0_5] : memref<9x32xf32, #tpu.memory_space<smem>>
    %24 = vector.broadcast %23 : f32 to vector<10x34xf32>
    %25 = arith.mulf %6, %24 : vector<10x34xf32>
    %26 = arith.addf %22, %25 : vector<10x34xf32>
    %c3 = arith.constant 3 : index
    %c0_6 = arith.constant 0 : index
    %27 = memref.load %arg2[%c3, %c0_6] : memref<9x32xf32, #tpu.memory_space<smem>>
    %28 = vector.broadcast %27 : f32 to vector<10x34xf32>
    %29 = arith.mulf %7, %28 : vector<10x34xf32>
    %30 = arith.addf %26, %29 : vector<10x34xf32>
    %c4 = arith.constant 4 : index
    %c0_7 = arith.constant 0 : index
    %31 = memref.load %arg2[%c4, %c0_7] : memref<9x32xf32, #tpu.memory_space<smem>>
    %32 = vector.broadcast %31 : f32 to vector<10x34xf32>
    %33 = arith.mulf %8, %32 : vector<10x34xf32>
    %34 = arith.addf %30, %33 : vector<10x34xf32>
    %c5 = arith.constant 5 : index
    %c0_8 = arith.constant 0 : index
    %35 = memref.load %arg2[%c5, %c0_8] : memref<9x32xf32, #tpu.memory_space<smem>>
    %36 = vector.broadcast %35 : f32 to vector<10x34xf32>
    %37 = arith.mulf %9, %36 : vector<10x34xf32>
    %38 = arith.addf %34, %37 : vector<10x34xf32>
    %c6 = arith.constant 6 : index
    %c0_9 = arith.constant 0 : index
    %39 = memref.load %arg2[%c6, %c0_9] : memref<9x32xf32, #tpu.memory_space<smem>>
    %40 = vector.broadcast %39 : f32 to vector<10x34xf32>
    %41 = arith.mulf %10, %40 : vector<10x34xf32>
    %42 = arith.addf %38, %41 : vector<10x34xf32>
    %c7 = arith.constant 7 : index
    %c0_10 = arith.constant 0 : index
    %43 = memref.load %arg2[%c7, %c0_10] : memref<9x32xf32, #tpu.memory_space<smem>>
    %44 = vector.broadcast %43 : f32 to vector<10x34xf32>
    %45 = arith.mulf %11, %44 : vector<10x34xf32>
    %46 = arith.addf %42, %45 : vector<10x34xf32>
    %c8 = arith.constant 8 : index
    %c0_11 = arith.constant 0 : index
    %47 = memref.load %arg2[%c8, %c0_11] : memref<9x32xf32, #tpu.memory_space<smem>>
    %48 = vector.broadcast %47 : f32 to vector<10x34xf32>
    %49 = arith.mulf %12, %48 : vector<10x34xf32>
    %50 = arith.addf %46, %49 : vector<10x34xf32>
    %c0_12 = arith.constant 0 : index
    %51 = memref.load %arg3[%c0_12] : memref<32xf32, #tpu.memory_space<smem>>
    %52 = vector.broadcast %51 : f32 to vector<10x34xf32>
    %53 = arith.addf %50, %52 : vector<10x34xf32>
    %cst_13 = arith.constant 0.000000e+00 : f32
    %54 = vector.broadcast %cst_13 : f32 to vector<10x34xf32>
    %55 = arith.maximumf %53, %54 : vector<10x34xf32>
    %56 = vector.extract_strided_slice %55 {offsets = [0, 0], sizes = [8, 34], strides = [1, 1]} : vector<10x34xf32> to vector<8x34xf32>
    %57 = vector.extract_strided_slice %55 {offsets = [1, 0], sizes = [8, 34], strides = [1, 1]} : vector<10x34xf32> to vector<8x34xf32>
    %58 = vector.extract_strided_slice %55 {offsets = [2, 0], sizes = [8, 34], strides = [1, 1]} : vector<10x34xf32> to vector<8x34xf32>
    %c0_14 = arith.constant 0 : index
    %c0_15 = arith.constant 0 : index
    %59 = memref.load %arg4[%c0_14, %c0_15] : memref<9x32xf32, #tpu.memory_space<smem>>
    %60 = vector.broadcast %59 : f32 to vector<8x34xf32>
    %61 = arith.mulf %56, %60 : vector<8x34xf32>
    %62 = arith.addf %13, %61 : vector<8x34xf32>
    %c3_16 = arith.constant 3 : index
    %c0_17 = arith.constant 0 : index
    %63 = memref.load %arg4[%c3_16, %c0_17] : memref<9x32xf32, #tpu.memory_space<smem>>
    %64 = vector.broadcast %63 : f32 to vector<8x34xf32>
    %65 = arith.mulf %57, %64 : vector<8x34xf32>
    %66 = arith.addf %62, %65 : vector<8x34xf32>
    %c6_18 = arith.constant 6 : index
    %c0_19 = arith.constant 0 : index
    %67 = memref.load %arg4[%c6_18, %c0_19] : memref<9x32xf32, #tpu.memory_space<smem>>
    %68 = vector.broadcast %67 : f32 to vector<8x34xf32>
    %69 = arith.mulf %58, %68 : vector<8x34xf32>
    %70 = arith.addf %66, %69 : vector<8x34xf32>
    %c1_20 = arith.constant 1 : index
    %c0_21 = arith.constant 0 : index
    %71 = memref.load %arg4[%c1_20, %c0_21] : memref<9x32xf32, #tpu.memory_space<smem>>
    %72 = vector.broadcast %71 : f32 to vector<8x34xf32>
    %73 = arith.mulf %56, %72 : vector<8x34xf32>
    %74 = arith.addf %14, %73 : vector<8x34xf32>
    %c4_22 = arith.constant 4 : index
    %c0_23 = arith.constant 0 : index
    %75 = memref.load %arg4[%c4_22, %c0_23] : memref<9x32xf32, #tpu.memory_space<smem>>
    %76 = vector.broadcast %75 : f32 to vector<8x34xf32>
    %77 = arith.mulf %57, %76 : vector<8x34xf32>
    %78 = arith.addf %74, %77 : vector<8x34xf32>
    %c7_24 = arith.constant 7 : index
    %c0_25 = arith.constant 0 : index
    %79 = memref.load %arg4[%c7_24, %c0_25] : memref<9x32xf32, #tpu.memory_space<smem>>
    %80 = vector.broadcast %79 : f32 to vector<8x34xf32>
    %81 = arith.mulf %58, %80 : vector<8x34xf32>
    %82 = arith.addf %78, %81 : vector<8x34xf32>
    %c2_26 = arith.constant 2 : index
    %c0_27 = arith.constant 0 : index
    %83 = memref.load %arg4[%c2_26, %c0_27] : memref<9x32xf32, #tpu.memory_space<smem>>
    %84 = vector.broadcast %83 : f32 to vector<8x34xf32>
    %85 = arith.mulf %56, %84 : vector<8x34xf32>
    %86 = arith.addf %15, %85 : vector<8x34xf32>
    %c5_28 = arith.constant 5 : index
    %c0_29 = arith.constant 0 : index
    %87 = memref.load %arg4[%c5_28, %c0_29] : memref<9x32xf32, #tpu.memory_space<smem>>
    %88 = vector.broadcast %87 : f32 to vector<8x34xf32>
    %89 = arith.mulf %57, %88 : vector<8x34xf32>
    %90 = arith.addf %86, %89 : vector<8x34xf32>
    %c8_30 = arith.constant 8 : index
    %c0_31 = arith.constant 0 : index
    %91 = memref.load %arg4[%c8_30, %c0_31] : memref<9x32xf32, #tpu.memory_space<smem>>
    %92 = vector.broadcast %91 : f32 to vector<8x34xf32>
    %93 = arith.mulf %58, %92 : vector<8x34xf32>
    %94 = arith.addf %90, %93 : vector<8x34xf32>
    %c0_32 = arith.constant 0 : index
    %c1_33 = arith.constant 1 : index
    %95 = memref.load %arg2[%c0_32, %c1_33] : memref<9x32xf32, #tpu.memory_space<smem>>
    %96 = vector.broadcast %95 : f32 to vector<10x34xf32>
    %97 = arith.mulf %4, %96 : vector<10x34xf32>
    %c1_34 = arith.constant 1 : index
    %c1_35 = arith.constant 1 : index
    %98 = memref.load %arg2[%c1_34, %c1_35] : memref<9x32xf32, #tpu.memory_space<smem>>
    %99 = vector.broadcast %98 : f32 to vector<10x34xf32>
    %100 = arith.mulf %5, %99 : vector<10x34xf32>
    %101 = arith.addf %97, %100 : vector<10x34xf32>
    %c2_36 = arith.constant 2 : index
    %c1_37 = arith.constant 1 : index
    %102 = memref.load %arg2[%c2_36, %c1_37] : memref<9x32xf32, #tpu.memory_space<smem>>
    %103 = vector.broadcast %102 : f32 to vector<10x34xf32>
    %104 = arith.mulf %6, %103 : vector<10x34xf32>
    %105 = arith.addf %101, %104 : vector<10x34xf32>
    %c3_38 = arith.constant 3 : index
    %c1_39 = arith.constant 1 : index
    %106 = memref.load %arg2[%c3_38, %c1_39] : memref<9x32xf32, #tpu.memory_space<smem>>
    %107 = vector.broadcast %106 : f32 to vector<10x34xf32>
    %108 = arith.mulf %7, %107 : vector<10x34xf32>
    %109 = arith.addf %105, %108 : vector<10x34xf32>
    %c4_40 = arith.constant 4 : index
    %c1_41 = arith.constant 1 : index
    %110 = memref.load %arg2[%c4_40, %c1_41] : memref<9x32xf32, #tpu.memory_space<smem>>
    %111 = vector.broadcast %110 : f32 to vector<10x34xf32>
    %112 = arith.mulf %8, %111 : vector<10x34xf32>
    %113 = arith.addf %109, %112 : vector<10x34xf32>
    %c5_42 = arith.constant 5 : index
    %c1_43 = arith.constant 1 : index
    %114 = memref.load %arg2[%c5_42, %c1_43] : memref<9x32xf32, #tpu.memory_space<smem>>
    %115 = vector.broadcast %114 : f32 to vector<10x34xf32>
    %116 = arith.mulf %9, %115 : vector<10x34xf32>
    %117 = arith.addf %113, %116 : vector<10x34xf32>
    %c6_44 = arith.constant 6 : index
    %c1_45 = arith.constant 1 : index
    %118 = memref.load %arg2[%c6_44, %c1_45] : memref<9x32xf32, #tpu.memory_space<smem>>
    %119 = vector.broadcast %118 : f32 to vector<10x34xf32>
    %120 = arith.mulf %10, %119 : vector<10x34xf32>
    %121 = arith.addf %117, %120 : vector<10x34xf32>
    %c7_46 = arith.constant 7 : index
    %c1_47 = arith.constant 1 : index
    %122 = memref.load %arg2[%c7_46, %c1_47] : memref<9x32xf32, #tpu.memory_space<smem>>
    %123 = vector.broadcast %122 : f32 to vector<10x34xf32>
    %124 = arith.mulf %11, %123 : vector<10x34xf32>
    %125 = arith.addf %121, %124 : vector<10x34xf32>
    %c8_48 = arith.constant 8 : index
    %c1_49 = arith.constant 1 : index
    %126 = memref.load %arg2[%c8_48, %c1_49] : memref<9x32xf32, #tpu.memory_space<smem>>
    %127 = vector.broadcast %126 : f32 to vector<10x34xf32>
    %128 = arith.mulf %12, %127 : vector<10x34xf32>
    %129 = arith.addf %125, %128 : vector<10x34xf32>
    %c1_50 = arith.constant 1 : index
    %130 = memref.load %arg3[%c1_50] : memref<32xf32, #tpu.memory_space<smem>>
    %131 = vector.broadcast %130 : f32 to vector<10x34xf32>
    %132 = arith.addf %129, %131 : vector<10x34xf32>
    %cst_51 = arith.constant 0.000000e+00 : f32
    %133 = vector.broadcast %cst_51 : f32 to vector<10x34xf32>
    %134 = arith.maximumf %132, %133 : vector<10x34xf32>
    %135 = vector.extract_strided_slice %134 {offsets = [0, 0], sizes = [8, 34], strides = [1, 1]} : vector<10x34xf32> to vector<8x34xf32>
    %136 = vector.extract_strided_slice %134 {offsets = [1, 0], sizes = [8, 34], strides = [1, 1]} : vector<10x34xf32> to vector<8x34xf32>
    %137 = vector.extract_strided_slice %134 {offsets = [2, 0], sizes = [8, 34], strides = [1, 1]} : vector<10x34xf32> to vector<8x34xf32>
    %c0_52 = arith.constant 0 : index
    %c1_53 = arith.constant 1 : index
    %138 = memref.load %arg4[%c0_52, %c1_53] : memref<9x32xf32, #tpu.memory_space<smem>>
    %139 = vector.broadcast %138 : f32 to vector<8x34xf32>
    %140 = arith.mulf %135, %139 : vector<8x34xf32>
    %141 = arith.addf %70, %140 : vector<8x34xf32>
    %c3_54 = arith.constant 3 : index
    %c1_55 = arith.constant 1 : index
    %142 = memref.load %arg4[%c3_54, %c1_55] : memref<9x32xf32, #tpu.memory_space<smem>>
    %143 = vector.broadcast %142 : f32 to vector<8x34xf32>
    %144 = arith.mulf %136, %143 : vector<8x34xf32>
    %145 = arith.addf %141, %144 : vector<8x34xf32>
    %c6_56 = arith.constant 6 : index
    %c1_57 = arith.constant 1 : index
    %146 = memref.load %arg4[%c6_56, %c1_57] : memref<9x32xf32, #tpu.memory_space<smem>>
    %147 = vector.broadcast %146 : f32 to vector<8x34xf32>
    %148 = arith.mulf %137, %147 : vector<8x34xf32>
    %149 = arith.addf %145, %148 : vector<8x34xf32>
    %c1_58 = arith.constant 1 : index
    %c1_59 = arith.constant 1 : index
    %150 = memref.load %arg4[%c1_58, %c1_59] : memref<9x32xf32, #tpu.memory_space<smem>>
    %151 = vector.broadcast %150 : f32 to vector<8x34xf32>
    %152 = arith.mulf %135, %151 : vector<8x34xf32>
    %153 = arith.addf %82, %152 : vector<8x34xf32>
    %c4_60 = arith.constant 4 : index
    %c1_61 = arith.constant 1 : index
    %154 = memref.load %arg4[%c4_60, %c1_61] : memref<9x32xf32, #tpu.memory_space<smem>>
    %155 = vector.broadcast %154 : f32 to vector<8x34xf32>
    %156 = arith.mulf %136, %155 : vector<8x34xf32>
    %157 = arith.addf %153, %156 : vector<8x34xf32>
    %c7_62 = arith.constant 7 : index
    %c1_63 = arith.constant 1 : index
    %158 = memref.load %arg4[%c7_62, %c1_63] : memref<9x32xf32, #tpu.memory_space<smem>>
    %159 = vector.broadcast %158 : f32 to vector<8x34xf32>
    %160 = arith.mulf %137, %159 : vector<8x34xf32>
    %161 = arith.addf %157, %160 : vector<8x34xf32>
    %c2_64 = arith.constant 2 : index
    %c1_65 = arith.constant 1 : index
    %162 = memref.load %arg4[%c2_64, %c1_65] : memref<9x32xf32, #tpu.memory_space<smem>>
    %163 = vector.broadcast %162 : f32 to vector<8x34xf32>
    %164 = arith.mulf %135, %163 : vector<8x34xf32>
    %165 = arith.addf %94, %164 : vector<8x34xf32>
    %c5_66 = arith.constant 5 : index
    %c1_67 = arith.constant 1 : index
    %166 = memref.load %arg4[%c5_66, %c1_67] : memref<9x32xf32, #tpu.memory_space<smem>>
    %167 = vector.broadcast %166 : f32 to vector<8x34xf32>
    %168 = arith.mulf %136, %167 : vector<8x34xf32>
    %169 = arith.addf %165, %168 : vector<8x34xf32>
    %c8_68 = arith.constant 8 : index
    %c1_69 = arith.constant 1 : index
    %170 = memref.load %arg4[%c8_68, %c1_69] : memref<9x32xf32, #tpu.memory_space<smem>>
    %171 = vector.broadcast %170 : f32 to vector<8x34xf32>
    %172 = arith.mulf %137, %171 : vector<8x34xf32>
    %173 = arith.addf %169, %172 : vector<8x34xf32>
    %c0_70 = arith.constant 0 : index
    %c2_71 = arith.constant 2 : index
    %174 = memref.load %arg2[%c0_70, %c2_71] : memref<9x32xf32, #tpu.memory_space<smem>>
    %175 = vector.broadcast %174 : f32 to vector<10x34xf32>
    %176 = arith.mulf %4, %175 : vector<10x34xf32>
    %c1_72 = arith.constant 1 : index
    %c2_73 = arith.constant 2 : index
    %177 = memref.load %arg2[%c1_72, %c2_73] : memref<9x32xf32, #tpu.memory_space<smem>>
    %178 = vector.broadcast %177 : f32 to vector<10x34xf32>
    %179 = arith.mulf %5, %178 : vector<10x34xf32>
    %180 = arith.addf %176, %179 : vector<10x34xf32>
    %c2_74 = arith.constant 2 : index
    %c2_75 = arith.constant 2 : index
    %181 = memref.load %arg2[%c2_74, %c2_75] : memref<9x32xf32, #tpu.memory_space<smem>>
    %182 = vector.broadcast %181 : f32 to vector<10x34xf32>
    %183 = arith.mulf %6, %182 : vector<10x34xf32>
    %184 = arith.addf %180, %183 : vector<10x34xf32>
    %c3_76 = arith.constant 3 : index
    %c2_77 = arith.constant 2 : index
    %185 = memref.load %arg2[%c3_76, %c2_77] : memref<9x32xf32, #tpu.memory_space<smem>>
    %186 = vector.broadcast %185 : f32 to vector<10x34xf32>
    %187 = arith.mulf %7, %186 : vector<10x34xf32>
    %188 = arith.addf %184, %187 : vector<10x34xf32>
    %c4_78 = arith.constant 4 : index
    %c2_79 = arith.constant 2 : index
    %189 = memref.load %arg2[%c4_78, %c2_79] : memref<9x32xf32, #tpu.memory_space<smem>>
    %190 = vector.broadcast %189 : f32 to vector<10x34xf32>
    %191 = arith.mulf %8, %190 : vector<10x34xf32>
    %192 = arith.addf %188, %191 : vector<10x34xf32>
    %c5_80 = arith.constant 5 : index
    %c2_81 = arith.constant 2 : index
    %193 = memref.load %arg2[%c5_80, %c2_81] : memref<9x32xf32, #tpu.memory_space<smem>>
    %194 = vector.broadcast %193 : f32 to vector<10x34xf32>
    %195 = arith.mulf %9, %194 : vector<10x34xf32>
    %196 = arith.addf %192, %195 : vector<10x34xf32>
    %c6_82 = arith.constant 6 : index
    %c2_83 = arith.constant 2 : index
    %197 = memref.load %arg2[%c6_82, %c2_83] : memref<9x32xf32, #tpu.memory_space<smem>>
    %198 = vector.broadcast %197 : f32 to vector<10x34xf32>
    %199 = arith.mulf %10, %198 : vector<10x34xf32>
    %200 = arith.addf %196, %199 : vector<10x34xf32>
    %c7_84 = arith.constant 7 : index
    %c2_85 = arith.constant 2 : index
    %201 = memref.load %arg2[%c7_84, %c2_85] : memref<9x32xf32, #tpu.memory_space<smem>>
    %202 = vector.broadcast %201 : f32 to vector<10x34xf32>
    %203 = arith.mulf %11, %202 : vector<10x34xf32>
    %204 = arith.addf %200, %203 : vector<10x34xf32>
    %c8_86 = arith.constant 8 : index
    %c2_87 = arith.constant 2 : index
    %205 = memref.load %arg2[%c8_86, %c2_87] : memref<9x32xf32, #tpu.memory_space<smem>>
    %206 = vector.broadcast %205 : f32 to vector<10x34xf32>
    %207 = arith.mulf %12, %206 : vector<10x34xf32>
    %208 = arith.addf %204, %207 : vector<10x34xf32>
    %c2_88 = arith.constant 2 : index
    %209 = memref.load %arg3[%c2_88] : memref<32xf32, #tpu.memory_space<smem>>
    %210 = vector.broadcast %209 : f32 to vector<10x34xf32>
    %211 = arith.addf %208, %210 : vector<10x34xf32>
    %cst_89 = arith.constant 0.000000e+00 : f32
    %212 = vector.broadcast %cst_89 : f32 to vector<10x34xf32>
    %213 = arith.maximumf %211, %212 : vector<10x34xf32>
    %214 = vector.extract_strided_slice %213 {offsets = [0, 0], sizes = [8, 34], strides = [1, 1]} : vector<10x34xf32> to vector<8x34xf32>
    %215 = vector.extract_strided_slice %213 {offsets = [1, 0], sizes = [8, 34], strides = [1, 1]} : vector<10x34xf32> to vector<8x34xf32>
    %216 = vector.extract_strided_slice %213 {offsets = [2, 0], sizes = [8, 34], strides = [1, 1]} : vector<10x34xf32> to vector<8x34xf32>
    %c0_90 = arith.constant 0 : index
    %c2_91 = arith.constant 2 : index
    %217 = memref.load %arg4[%c0_90, %c2_91] : memref<9x32xf32, #tpu.memory_space<smem>>
    %218 = vector.broadcast %217 : f32 to vector<8x34xf32>
    %219 = arith.mulf %214, %218 : vector<8x34xf32>
    %220 = arith.addf %149, %219 : vector<8x34xf32>
    %c3_92 = arith.constant 3 : index
    %c2_93 = arith.constant 2 : index
    %221 = memref.load %arg4[%c3_92, %c2_93] : memref<9x32xf32, #tpu.memory_space<smem>>
    %222 = vector.broadcast %221 : f32 to vector<8x34xf32>
    %223 = arith.mulf %215, %222 : vector<8x34xf32>
    %224 = arith.addf %220, %223 : vector<8x34xf32>
    %c6_94 = arith.constant 6 : index
    %c2_95 = arith.constant 2 : index
    %225 = memref.load %arg4[%c6_94, %c2_95] : memref<9x32xf32, #tpu.memory_space<smem>>
    %226 = vector.broadcast %225 : f32 to vector<8x34xf32>
    %227 = arith.mulf %216, %226 : vector<8x34xf32>
    %228 = arith.addf %224, %227 : vector<8x34xf32>
    %c1_96 = arith.constant 1 : index
    %c2_97 = arith.constant 2 : index
    %229 = memref.load %arg4[%c1_96, %c2_97] : memref<9x32xf32, #tpu.memory_space<smem>>
    %230 = vector.broadcast %229 : f32 to vector<8x34xf32>
    %231 = arith.mulf %214, %230 : vector<8x34xf32>
    %232 = arith.addf %161, %231 : vector<8x34xf32>
    %c4_98 = arith.constant 4 : index
    %c2_99 = arith.constant 2 : index
    %233 = memref.load %arg4[%c4_98, %c2_99] : memref<9x32xf32, #tpu.memory_space<smem>>
    %234 = vector.broadcast %233 : f32 to vector<8x34xf32>
    %235 = arith.mulf %215, %234 : vector<8x34xf32>
    %236 = arith.addf %232, %235 : vector<8x34xf32>
    %c7_100 = arith.constant 7 : index
    %c2_101 = arith.constant 2 : index
    %237 = memref.load %arg4[%c7_100, %c2_101] : memref<9x32xf32, #tpu.memory_space<smem>>
    %238 = vector.broadcast %237 : f32 to vector<8x34xf32>
    %239 = arith.mulf %216, %238 : vector<8x34xf32>
    %240 = arith.addf %236, %239 : vector<8x34xf32>
    %c2_102 = arith.constant 2 : index
    %c2_103 = arith.constant 2 : index
    %241 = memref.load %arg4[%c2_102, %c2_103] : memref<9x32xf32, #tpu.memory_space<smem>>
    %242 = vector.broadcast %241 : f32 to vector<8x34xf32>
    %243 = arith.mulf %214, %242 : vector<8x34xf32>
    %244 = arith.addf %173, %243 : vector<8x34xf32>
    %c5_104 = arith.constant 5 : index
    %c2_105 = arith.constant 2 : index
    %245 = memref.load %arg4[%c5_104, %c2_105] : memref<9x32xf32, #tpu.memory_space<smem>>
    %246 = vector.broadcast %245 : f32 to vector<8x34xf32>
    %247 = arith.mulf %215, %246 : vector<8x34xf32>
    %248 = arith.addf %244, %247 : vector<8x34xf32>
    %c8_106 = arith.constant 8 : index
    %c2_107 = arith.constant 2 : index
    %249 = memref.load %arg4[%c8_106, %c2_107] : memref<9x32xf32, #tpu.memory_space<smem>>
    %250 = vector.broadcast %249 : f32 to vector<8x34xf32>
    %251 = arith.mulf %216, %250 : vector<8x34xf32>
    %252 = arith.addf %248, %251 : vector<8x34xf32>
    %c0_108 = arith.constant 0 : index
    %c3_109 = arith.constant 3 : index
    %253 = memref.load %arg2[%c0_108, %c3_109] : memref<9x32xf32, #tpu.memory_space<smem>>
    %254 = vector.broadcast %253 : f32 to vector<10x34xf32>
    %255 = arith.mulf %4, %254 : vector<10x34xf32>
    %c1_110 = arith.constant 1 : index
    %c3_111 = arith.constant 3 : index
    %256 = memref.load %arg2[%c1_110, %c3_111] : memref<9x32xf32, #tpu.memory_space<smem>>
    %257 = vector.broadcast %256 : f32 to vector<10x34xf32>
    %258 = arith.mulf %5, %257 : vector<10x34xf32>
    %259 = arith.addf %255, %258 : vector<10x34xf32>
    %c2_112 = arith.constant 2 : index
    %c3_113 = arith.constant 3 : index
    %260 = memref.load %arg2[%c2_112, %c3_113] : memref<9x32xf32, #tpu.memory_space<smem>>
    %261 = vector.broadcast %260 : f32 to vector<10x34xf32>
    %262 = arith.mulf %6, %261 : vector<10x34xf32>
    %263 = arith.addf %259, %262 : vector<10x34xf32>
    %c3_114 = arith.constant 3 : index
    %c3_115 = arith.constant 3 : index
    %264 = memref.load %arg2[%c3_114, %c3_115] : memref<9x32xf32, #tpu.memory_space<smem>>
    %265 = vector.broadcast %264 : f32 to vector<10x34xf32>
    %266 = arith.mulf %7, %265 : vector<10x34xf32>
    %267 = arith.addf %263, %266 : vector<10x34xf32>
    %c4_116 = arith.constant 4 : index
    %c3_117 = arith.constant 3 : index
    %268 = memref.load %arg2[%c4_116, %c3_117] : memref<9x32xf32, #tpu.memory_space<smem>>
    %269 = vector.broadcast %268 : f32 to vector<10x34xf32>
    %270 = arith.mulf %8, %269 : vector<10x34xf32>
    %271 = arith.addf %267, %270 : vector<10x34xf32>
    %c5_118 = arith.constant 5 : index
    %c3_119 = arith.constant 3 : index
    %272 = memref.load %arg2[%c5_118, %c3_119] : memref<9x32xf32, #tpu.memory_space<smem>>
    %273 = vector.broadcast %272 : f32 to vector<10x34xf32>
    %274 = arith.mulf %9, %273 : vector<10x34xf32>
    %275 = arith.addf %271, %274 : vector<10x34xf32>
    %c6_120 = arith.constant 6 : index
    %c3_121 = arith.constant 3 : index
    %276 = memref.load %arg2[%c6_120, %c3_121] : memref<9x32xf32, #tpu.memory_space<smem>>
    %277 = vector.broadcast %276 : f32 to vector<10x34xf32>
    %278 = arith.mulf %10, %277 : vector<10x34xf32>
    %279 = arith.addf %275, %278 : vector<10x34xf32>
    %c7_122 = arith.constant 7 : index
    %c3_123 = arith.constant 3 : index
    %280 = memref.load %arg2[%c7_122, %c3_123] : memref<9x32xf32, #tpu.memory_space<smem>>
    %281 = vector.broadcast %280 : f32 to vector<10x34xf32>
    %282 = arith.mulf %11, %281 : vector<10x34xf32>
    %283 = arith.addf %279, %282 : vector<10x34xf32>
    %c8_124 = arith.constant 8 : index
    %c3_125 = arith.constant 3 : index
    %284 = memref.load %arg2[%c8_124, %c3_125] : memref<9x32xf32, #tpu.memory_space<smem>>
    %285 = vector.broadcast %284 : f32 to vector<10x34xf32>
    %286 = arith.mulf %12, %285 : vector<10x34xf32>
    %287 = arith.addf %283, %286 : vector<10x34xf32>
    %c3_126 = arith.constant 3 : index
    %288 = memref.load %arg3[%c3_126] : memref<32xf32, #tpu.memory_space<smem>>
    %289 = vector.broadcast %288 : f32 to vector<10x34xf32>
    %290 = arith.addf %287, %289 : vector<10x34xf32>
    %cst_127 = arith.constant 0.000000e+00 : f32
    %291 = vector.broadcast %cst_127 : f32 to vector<10x34xf32>
    %292 = arith.maximumf %290, %291 : vector<10x34xf32>
    %293 = vector.extract_strided_slice %292 {offsets = [0, 0], sizes = [8, 34], strides = [1, 1]} : vector<10x34xf32> to vector<8x34xf32>
    %294 = vector.extract_strided_slice %292 {offsets = [1, 0], sizes = [8, 34], strides = [1, 1]} : vector<10x34xf32> to vector<8x34xf32>
    %295 = vector.extract_strided_slice %292 {offsets = [2, 0], sizes = [8, 34], strides = [1, 1]} : vector<10x34xf32> to vector<8x34xf32>
    %c0_128 = arith.constant 0 : index
    %c3_129 = arith.constant 3 : index
    %296 = memref.load %arg4[%c0_128, %c3_129] : memref<9x32xf32, #tpu.memory_space<smem>>
    %297 = vector.broadcast %296 : f32 to vector<8x34xf32>
    %298 = arith.mulf %293, %297 : vector<8x34xf32>
    %299 = arith.addf %228, %298 : vector<8x34xf32>
    %c3_130 = arith.constant 3 : index
    %c3_131 = arith.constant 3 : index
    %300 = memref.load %arg4[%c3_130, %c3_131] : memref<9x32xf32, #tpu.memory_space<smem>>
    %301 = vector.broadcast %300 : f32 to vector<8x34xf32>
    %302 = arith.mulf %294, %301 : vector<8x34xf32>
    %303 = arith.addf %299, %302 : vector<8x34xf32>
    %c6_132 = arith.constant 6 : index
    %c3_133 = arith.constant 3 : index
    %304 = memref.load %arg4[%c6_132, %c3_133] : memref<9x32xf32, #tpu.memory_space<smem>>
    %305 = vector.broadcast %304 : f32 to vector<8x34xf32>
    %306 = arith.mulf %295, %305 : vector<8x34xf32>
    %307 = arith.addf %303, %306 : vector<8x34xf32>
    %c1_134 = arith.constant 1 : index
    %c3_135 = arith.constant 3 : index
    %308 = memref.load %arg4[%c1_134, %c3_135] : memref<9x32xf32, #tpu.memory_space<smem>>
    %309 = vector.broadcast %308 : f32 to vector<8x34xf32>
    %310 = arith.mulf %293, %309 : vector<8x34xf32>
    %311 = arith.addf %240, %310 : vector<8x34xf32>
    %c4_136 = arith.constant 4 : index
    %c3_137 = arith.constant 3 : index
    %312 = memref.load %arg4[%c4_136, %c3_137] : memref<9x32xf32, #tpu.memory_space<smem>>
    %313 = vector.broadcast %312 : f32 to vector<8x34xf32>
    %314 = arith.mulf %294, %313 : vector<8x34xf32>
    %315 = arith.addf %311, %314 : vector<8x34xf32>
    %c7_138 = arith.constant 7 : index
    %c3_139 = arith.constant 3 : index
    %316 = memref.load %arg4[%c7_138, %c3_139] : memref<9x32xf32, #tpu.memory_space<smem>>
    %317 = vector.broadcast %316 : f32 to vector<8x34xf32>
    %318 = arith.mulf %295, %317 : vector<8x34xf32>
    %319 = arith.addf %315, %318 : vector<8x34xf32>
    %c2_140 = arith.constant 2 : index
    %c3_141 = arith.constant 3 : index
    %320 = memref.load %arg4[%c2_140, %c3_141] : memref<9x32xf32, #tpu.memory_space<smem>>
    %321 = vector.broadcast %320 : f32 to vector<8x34xf32>
    %322 = arith.mulf %293, %321 : vector<8x34xf32>
    %323 = arith.addf %252, %322 : vector<8x34xf32>
    %c5_142 = arith.constant 5 : index
    %c3_143 = arith.constant 3 : index
    %324 = memref.load %arg4[%c5_142, %c3_143] : memref<9x32xf32, #tpu.memory_space<smem>>
    %325 = vector.broadcast %324 : f32 to vector<8x34xf32>
    %326 = arith.mulf %294, %325 : vector<8x34xf32>
    %327 = arith.addf %323, %326 : vector<8x34xf32>
    %c8_144 = arith.constant 8 : index
    %c3_145 = arith.constant 3 : index
    %328 = memref.load %arg4[%c8_144, %c3_145] : memref<9x32xf32, #tpu.memory_space<smem>>
    %329 = vector.broadcast %328 : f32 to vector<8x34xf32>
    %330 = arith.mulf %295, %329 : vector<8x34xf32>
    %331 = arith.addf %327, %330 : vector<8x34xf32>
    %c0_146 = arith.constant 0 : index
    %c4_147 = arith.constant 4 : index
    %332 = memref.load %arg2[%c0_146, %c4_147] : memref<9x32xf32, #tpu.memory_space<smem>>
    %333 = vector.broadcast %332 : f32 to vector<10x34xf32>
    %334 = arith.mulf %4, %333 : vector<10x34xf32>
    %c1_148 = arith.constant 1 : index
    %c4_149 = arith.constant 4 : index
    %335 = memref.load %arg2[%c1_148, %c4_149] : memref<9x32xf32, #tpu.memory_space<smem>>
    %336 = vector.broadcast %335 : f32 to vector<10x34xf32>
    %337 = arith.mulf %5, %336 : vector<10x34xf32>
    %338 = arith.addf %334, %337 : vector<10x34xf32>
    %c2_150 = arith.constant 2 : index
    %c4_151 = arith.constant 4 : index
    %339 = memref.load %arg2[%c2_150, %c4_151] : memref<9x32xf32, #tpu.memory_space<smem>>
    %340 = vector.broadcast %339 : f32 to vector<10x34xf32>
    %341 = arith.mulf %6, %340 : vector<10x34xf32>
    %342 = arith.addf %338, %341 : vector<10x34xf32>
    %c3_152 = arith.constant 3 : index
    %c4_153 = arith.constant 4 : index
    %343 = memref.load %arg2[%c3_152, %c4_153] : memref<9x32xf32, #tpu.memory_space<smem>>
    %344 = vector.broadcast %343 : f32 to vector<10x34xf32>
    %345 = arith.mulf %7, %344 : vector<10x34xf32>
    %346 = arith.addf %342, %345 : vector<10x34xf32>
    %c4_154 = arith.constant 4 : index
    %c4_155 = arith.constant 4 : index
    %347 = memref.load %arg2[%c4_154, %c4_155] : memref<9x32xf32, #tpu.memory_space<smem>>
    %348 = vector.broadcast %347 : f32 to vector<10x34xf32>
    %349 = arith.mulf %8, %348 : vector<10x34xf32>
    %350 = arith.addf %346, %349 : vector<10x34xf32>
    %c5_156 = arith.constant 5 : index
    %c4_157 = arith.constant 4 : index
    %351 = memref.load %arg2[%c5_156, %c4_157] : memref<9x32xf32, #tpu.memory_space<smem>>
    %352 = vector.broadcast %351 : f32 to vector<10x34xf32>
    %353 = arith.mulf %9, %352 : vector<10x34xf32>
    %354 = arith.addf %350, %353 : vector<10x34xf32>
    %c6_158 = arith.constant 6 : index
    %c4_159 = arith.constant 4 : index
    %355 = memref.load %arg2[%c6_158, %c4_159] : memref<9x32xf32, #tpu.memory_space<smem>>
    %356 = vector.broadcast %355 : f32 to vector<10x34xf32>
    %357 = arith.mulf %10, %356 : vector<10x34xf32>
    %358 = arith.addf %354, %357 : vector<10x34xf32>
    %c7_160 = arith.constant 7 : index
    %c4_161 = arith.constant 4 : index
    %359 = memref.load %arg2[%c7_160, %c4_161] : memref<9x32xf32, #tpu.memory_space<smem>>
    %360 = vector.broadcast %359 : f32 to vector<10x34xf32>
    %361 = arith.mulf %11, %360 : vector<10x34xf32>
    %362 = arith.addf %358, %361 : vector<10x34xf32>
    %c8_162 = arith.constant 8 : index
    %c4_163 = arith.constant 4 : index
    %363 = memref.load %arg2[%c8_162, %c4_163] : memref<9x32xf32, #tpu.memory_space<smem>>
    %364 = vector.broadcast %363 : f32 to vector<10x34xf32>
    %365 = arith.mulf %12, %364 : vector<10x34xf32>
    %366 = arith.addf %362, %365 : vector<10x34xf32>
    %c4_164 = arith.constant 4 : index
    %367 = memref.load %arg3[%c4_164] : memref<32xf32, #tpu.memory_space<smem>>
    %368 = vector.broadcast %367 : f32 to vector<10x34xf32>
    %369 = arith.addf %366, %368 : vector<10x34xf32>
    %cst_165 = arith.constant 0.000000e+00 : f32
    %370 = vector.broadcast %cst_165 : f32 to vector<10x34xf32>
    %371 = arith.maximumf %369, %370 : vector<10x34xf32>
    %372 = vector.extract_strided_slice %371 {offsets = [0, 0], sizes = [8, 34], strides = [1, 1]} : vector<10x34xf32> to vector<8x34xf32>
    %373 = vector.extract_strided_slice %371 {offsets = [1, 0], sizes = [8, 34], strides = [1, 1]} : vector<10x34xf32> to vector<8x34xf32>
    %374 = vector.extract_strided_slice %371 {offsets = [2, 0], sizes = [8, 34], strides = [1, 1]} : vector<10x34xf32> to vector<8x34xf32>
    %c0_166 = arith.constant 0 : index
    %c4_167 = arith.constant 4 : index
    %375 = memref.load %arg4[%c0_166, %c4_167] : memref<9x32xf32, #tpu.memory_space<smem>>
    %376 = vector.broadcast %375 : f32 to vector<8x34xf32>
    %377 = arith.mulf %372, %376 : vector<8x34xf32>
    %378 = arith.addf %307, %377 : vector<8x34xf32>
    %c3_168 = arith.constant 3 : index
    %c4_169 = arith.constant 4 : index
    %379 = memref.load %arg4[%c3_168, %c4_169] : memref<9x32xf32, #tpu.memory_space<smem>>
    %380 = vector.broadcast %379 : f32 to vector<8x34xf32>
    %381 = arith.mulf %373, %380 : vector<8x34xf32>
    %382 = arith.addf %378, %381 : vector<8x34xf32>
    %c6_170 = arith.constant 6 : index
    %c4_171 = arith.constant 4 : index
    %383 = memref.load %arg4[%c6_170, %c4_171] : memref<9x32xf32, #tpu.memory_space<smem>>
    %384 = vector.broadcast %383 : f32 to vector<8x34xf32>
    %385 = arith.mulf %374, %384 : vector<8x34xf32>
    %386 = arith.addf %382, %385 : vector<8x34xf32>
    %c1_172 = arith.constant 1 : index
    %c4_173 = arith.constant 4 : index
    %387 = memref.load %arg4[%c1_172, %c4_173] : memref<9x32xf32, #tpu.memory_space<smem>>
    %388 = vector.broadcast %387 : f32 to vector<8x34xf32>
    %389 = arith.mulf %372, %388 : vector<8x34xf32>
    %390 = arith.addf %319, %389 : vector<8x34xf32>
    %c4_174 = arith.constant 4 : index
    %c4_175 = arith.constant 4 : index
    %391 = memref.load %arg4[%c4_174, %c4_175] : memref<9x32xf32, #tpu.memory_space<smem>>
    %392 = vector.broadcast %391 : f32 to vector<8x34xf32>
    %393 = arith.mulf %373, %392 : vector<8x34xf32>
    %394 = arith.addf %390, %393 : vector<8x34xf32>
    %c7_176 = arith.constant 7 : index
    %c4_177 = arith.constant 4 : index
    %395 = memref.load %arg4[%c7_176, %c4_177] : memref<9x32xf32, #tpu.memory_space<smem>>
    %396 = vector.broadcast %395 : f32 to vector<8x34xf32>
    %397 = arith.mulf %374, %396 : vector<8x34xf32>
    %398 = arith.addf %394, %397 : vector<8x34xf32>
    %c2_178 = arith.constant 2 : index
    %c4_179 = arith.constant 4 : index
    %399 = memref.load %arg4[%c2_178, %c4_179] : memref<9x32xf32, #tpu.memory_space<smem>>
    %400 = vector.broadcast %399 : f32 to vector<8x34xf32>
    %401 = arith.mulf %372, %400 : vector<8x34xf32>
    %402 = arith.addf %331, %401 : vector<8x34xf32>
    %c5_180 = arith.constant 5 : index
    %c4_181 = arith.constant 4 : index
    %403 = memref.load %arg4[%c5_180, %c4_181] : memref<9x32xf32, #tpu.memory_space<smem>>
    %404 = vector.broadcast %403 : f32 to vector<8x34xf32>
    %405 = arith.mulf %373, %404 : vector<8x34xf32>
    %406 = arith.addf %402, %405 : vector<8x34xf32>
    %c8_182 = arith.constant 8 : index
    %c4_183 = arith.constant 4 : index
    %407 = memref.load %arg4[%c8_182, %c4_183] : memref<9x32xf32, #tpu.memory_space<smem>>
    %408 = vector.broadcast %407 : f32 to vector<8x34xf32>
    %409 = arith.mulf %374, %408 : vector<8x34xf32>
    %410 = arith.addf %406, %409 : vector<8x34xf32>
    %c0_184 = arith.constant 0 : index
    %c5_185 = arith.constant 5 : index
    %411 = memref.load %arg2[%c0_184, %c5_185] : memref<9x32xf32, #tpu.memory_space<smem>>
    %412 = vector.broadcast %411 : f32 to vector<10x34xf32>
    %413 = arith.mulf %4, %412 : vector<10x34xf32>
    %c1_186 = arith.constant 1 : index
    %c5_187 = arith.constant 5 : index
    %414 = memref.load %arg2[%c1_186, %c5_187] : memref<9x32xf32, #tpu.memory_space<smem>>
    %415 = vector.broadcast %414 : f32 to vector<10x34xf32>
    %416 = arith.mulf %5, %415 : vector<10x34xf32>
    %417 = arith.addf %413, %416 : vector<10x34xf32>
    %c2_188 = arith.constant 2 : index
    %c5_189 = arith.constant 5 : index
    %418 = memref.load %arg2[%c2_188, %c5_189] : memref<9x32xf32, #tpu.memory_space<smem>>
    %419 = vector.broadcast %418 : f32 to vector<10x34xf32>
    %420 = arith.mulf %6, %419 : vector<10x34xf32>
    %421 = arith.addf %417, %420 : vector<10x34xf32>
    %c3_190 = arith.constant 3 : index
    %c5_191 = arith.constant 5 : index
    %422 = memref.load %arg2[%c3_190, %c5_191] : memref<9x32xf32, #tpu.memory_space<smem>>
    %423 = vector.broadcast %422 : f32 to vector<10x34xf32>
    %424 = arith.mulf %7, %423 : vector<10x34xf32>
    %425 = arith.addf %421, %424 : vector<10x34xf32>
    %c4_192 = arith.constant 4 : index
    %c5_193 = arith.constant 5 : index
    %426 = memref.load %arg2[%c4_192, %c5_193] : memref<9x32xf32, #tpu.memory_space<smem>>
    %427 = vector.broadcast %426 : f32 to vector<10x34xf32>
    %428 = arith.mulf %8, %427 : vector<10x34xf32>
    %429 = arith.addf %425, %428 : vector<10x34xf32>
    %c5_194 = arith.constant 5 : index
    %c5_195 = arith.constant 5 : index
    %430 = memref.load %arg2[%c5_194, %c5_195] : memref<9x32xf32, #tpu.memory_space<smem>>
    %431 = vector.broadcast %430 : f32 to vector<10x34xf32>
    %432 = arith.mulf %9, %431 : vector<10x34xf32>
    %433 = arith.addf %429, %432 : vector<10x34xf32>
    %c6_196 = arith.constant 6 : index
    %c5_197 = arith.constant 5 : index
    %434 = memref.load %arg2[%c6_196, %c5_197] : memref<9x32xf32, #tpu.memory_space<smem>>
    %435 = vector.broadcast %434 : f32 to vector<10x34xf32>
    %436 = arith.mulf %10, %435 : vector<10x34xf32>
    %437 = arith.addf %433, %436 : vector<10x34xf32>
    %c7_198 = arith.constant 7 : index
    %c5_199 = arith.constant 5 : index
    %438 = memref.load %arg2[%c7_198, %c5_199] : memref<9x32xf32, #tpu.memory_space<smem>>
    %439 = vector.broadcast %438 : f32 to vector<10x34xf32>
    %440 = arith.mulf %11, %439 : vector<10x34xf32>
    %441 = arith.addf %437, %440 : vector<10x34xf32>
    %c8_200 = arith.constant 8 : index
    %c5_201 = arith.constant 5 : index
    %442 = memref.load %arg2[%c8_200, %c5_201] : memref<9x32xf32, #tpu.memory_space<smem>>
    %443 = vector.broadcast %442 : f32 to vector<10x34xf32>
    %444 = arith.mulf %12, %443 : vector<10x34xf32>
    %445 = arith.addf %441, %444 : vector<10x34xf32>
    %c5_202 = arith.constant 5 : index
    %446 = memref.load %arg3[%c5_202] : memref<32xf32, #tpu.memory_space<smem>>
    %447 = vector.broadcast %446 : f32 to vector<10x34xf32>
    %448 = arith.addf %445, %447 : vector<10x34xf32>
    %cst_203 = arith.constant 0.000000e+00 : f32
    %449 = vector.broadcast %cst_203 : f32 to vector<10x34xf32>
    %450 = arith.maximumf %448, %449 : vector<10x34xf32>
    %451 = vector.extract_strided_slice %450 {offsets = [0, 0], sizes = [8, 34], strides = [1, 1]} : vector<10x34xf32> to vector<8x34xf32>
    %452 = vector.extract_strided_slice %450 {offsets = [1, 0], sizes = [8, 34], strides = [1, 1]} : vector<10x34xf32> to vector<8x34xf32>
    %453 = vector.extract_strided_slice %450 {offsets = [2, 0], sizes = [8, 34], strides = [1, 1]} : vector<10x34xf32> to vector<8x34xf32>
    %c0_204 = arith.constant 0 : index
    %c5_205 = arith.constant 5 : index
    %454 = memref.load %arg4[%c0_204, %c5_205] : memref<9x32xf32, #tpu.memory_space<smem>>
    %455 = vector.broadcast %454 : f32 to vector<8x34xf32>
    %456 = arith.mulf %451, %455 : vector<8x34xf32>
    %457 = arith.addf %386, %456 : vector<8x34xf32>
    %c3_206 = arith.constant 3 : index
    %c5_207 = arith.constant 5 : index
    %458 = memref.load %arg4[%c3_206, %c5_207] : memref<9x32xf32, #tpu.memory_space<smem>>
    %459 = vector.broadcast %458 : f32 to vector<8x34xf32>
    %460 = arith.mulf %452, %459 : vector<8x34xf32>
    %461 = arith.addf %457, %460 : vector<8x34xf32>
    %c6_208 = arith.constant 6 : index
    %c5_209 = arith.constant 5 : index
    %462 = memref.load %arg4[%c6_208, %c5_209] : memref<9x32xf32, #tpu.memory_space<smem>>
    %463 = vector.broadcast %462 : f32 to vector<8x34xf32>
    %464 = arith.mulf %453, %463 : vector<8x34xf32>
    %465 = arith.addf %461, %464 : vector<8x34xf32>
    %c1_210 = arith.constant 1 : index
    %c5_211 = arith.constant 5 : index
    %466 = memref.load %arg4[%c1_210, %c5_211] : memref<9x32xf32, #tpu.memory_space<smem>>
    %467 = vector.broadcast %466 : f32 to vector<8x34xf32>
    %468 = arith.mulf %451, %467 : vector<8x34xf32>
    %469 = arith.addf %398, %468 : vector<8x34xf32>
    %c4_212 = arith.constant 4 : index
    %c5_213 = arith.constant 5 : index
    %470 = memref.load %arg4[%c4_212, %c5_213] : memref<9x32xf32, #tpu.memory_space<smem>>
    %471 = vector.broadcast %470 : f32 to vector<8x34xf32>
    %472 = arith.mulf %452, %471 : vector<8x34xf32>
    %473 = arith.addf %469, %472 : vector<8x34xf32>
    %c7_214 = arith.constant 7 : index
    %c5_215 = arith.constant 5 : index
    %474 = memref.load %arg4[%c7_214, %c5_215] : memref<9x32xf32, #tpu.memory_space<smem>>
    %475 = vector.broadcast %474 : f32 to vector<8x34xf32>
    %476 = arith.mulf %453, %475 : vector<8x34xf32>
    %477 = arith.addf %473, %476 : vector<8x34xf32>
    %c2_216 = arith.constant 2 : index
    %c5_217 = arith.constant 5 : index
    %478 = memref.load %arg4[%c2_216, %c5_217] : memref<9x32xf32, #tpu.memory_space<smem>>
    %479 = vector.broadcast %478 : f32 to vector<8x34xf32>
    %480 = arith.mulf %451, %479 : vector<8x34xf32>
    %481 = arith.addf %410, %480 : vector<8x34xf32>
    %c5_218 = arith.constant 5 : index
    %c5_219 = arith.constant 5 : index
    %482 = memref.load %arg4[%c5_218, %c5_219] : memref<9x32xf32, #tpu.memory_space<smem>>
    %483 = vector.broadcast %482 : f32 to vector<8x34xf32>
    %484 = arith.mulf %452, %483 : vector<8x34xf32>
    %485 = arith.addf %481, %484 : vector<8x34xf32>
    %c8_220 = arith.constant 8 : index
    %c5_221 = arith.constant 5 : index
    %486 = memref.load %arg4[%c8_220, %c5_221] : memref<9x32xf32, #tpu.memory_space<smem>>
    %487 = vector.broadcast %486 : f32 to vector<8x34xf32>
    %488 = arith.mulf %453, %487 : vector<8x34xf32>
    %489 = arith.addf %485, %488 : vector<8x34xf32>
    %c0_222 = arith.constant 0 : index
    %c6_223 = arith.constant 6 : index
    %490 = memref.load %arg2[%c0_222, %c6_223] : memref<9x32xf32, #tpu.memory_space<smem>>
    %491 = vector.broadcast %490 : f32 to vector<10x34xf32>
    %492 = arith.mulf %4, %491 : vector<10x34xf32>
    %c1_224 = arith.constant 1 : index
    %c6_225 = arith.constant 6 : index
    %493 = memref.load %arg2[%c1_224, %c6_225] : memref<9x32xf32, #tpu.memory_space<smem>>
    %494 = vector.broadcast %493 : f32 to vector<10x34xf32>
    %495 = arith.mulf %5, %494 : vector<10x34xf32>
    %496 = arith.addf %492, %495 : vector<10x34xf32>
    %c2_226 = arith.constant 2 : index
    %c6_227 = arith.constant 6 : index
    %497 = memref.load %arg2[%c2_226, %c6_227] : memref<9x32xf32, #tpu.memory_space<smem>>
    %498 = vector.broadcast %497 : f32 to vector<10x34xf32>
    %499 = arith.mulf %6, %498 : vector<10x34xf32>
    %500 = arith.addf %496, %499 : vector<10x34xf32>
    %c3_228 = arith.constant 3 : index
    %c6_229 = arith.constant 6 : index
    %501 = memref.load %arg2[%c3_228, %c6_229] : memref<9x32xf32, #tpu.memory_space<smem>>
    %502 = vector.broadcast %501 : f32 to vector<10x34xf32>
    %503 = arith.mulf %7, %502 : vector<10x34xf32>
    %504 = arith.addf %500, %503 : vector<10x34xf32>
    %c4_230 = arith.constant 4 : index
    %c6_231 = arith.constant 6 : index
    %505 = memref.load %arg2[%c4_230, %c6_231] : memref<9x32xf32, #tpu.memory_space<smem>>
    %506 = vector.broadcast %505 : f32 to vector<10x34xf32>
    %507 = arith.mulf %8, %506 : vector<10x34xf32>
    %508 = arith.addf %504, %507 : vector<10x34xf32>
    %c5_232 = arith.constant 5 : index
    %c6_233 = arith.constant 6 : index
    %509 = memref.load %arg2[%c5_232, %c6_233] : memref<9x32xf32, #tpu.memory_space<smem>>
    %510 = vector.broadcast %509 : f32 to vector<10x34xf32>
    %511 = arith.mulf %9, %510 : vector<10x34xf32>
    %512 = arith.addf %508, %511 : vector<10x34xf32>
    %c6_234 = arith.constant 6 : index
    %c6_235 = arith.constant 6 : index
    %513 = memref.load %arg2[%c6_234, %c6_235] : memref<9x32xf32, #tpu.memory_space<smem>>
    %514 = vector.broadcast %513 : f32 to vector<10x34xf32>
    %515 = arith.mulf %10, %514 : vector<10x34xf32>
    %516 = arith.addf %512, %515 : vector<10x34xf32>
    %c7_236 = arith.constant 7 : index
    %c6_237 = arith.constant 6 : index
    %517 = memref.load %arg2[%c7_236, %c6_237] : memref<9x32xf32, #tpu.memory_space<smem>>
    %518 = vector.broadcast %517 : f32 to vector<10x34xf32>
    %519 = arith.mulf %11, %518 : vector<10x34xf32>
    %520 = arith.addf %516, %519 : vector<10x34xf32>
    %c8_238 = arith.constant 8 : index
    %c6_239 = arith.constant 6 : index
    %521 = memref.load %arg2[%c8_238, %c6_239] : memref<9x32xf32, #tpu.memory_space<smem>>
    %522 = vector.broadcast %521 : f32 to vector<10x34xf32>
    %523 = arith.mulf %12, %522 : vector<10x34xf32>
    %524 = arith.addf %520, %523 : vector<10x34xf32>
    %c6_240 = arith.constant 6 : index
    %525 = memref.load %arg3[%c6_240] : memref<32xf32, #tpu.memory_space<smem>>
    %526 = vector.broadcast %525 : f32 to vector<10x34xf32>
    %527 = arith.addf %524, %526 : vector<10x34xf32>
    %cst_241 = arith.constant 0.000000e+00 : f32
    %528 = vector.broadcast %cst_241 : f32 to vector<10x34xf32>
    %529 = arith.maximumf %527, %528 : vector<10x34xf32>
    %530 = vector.extract_strided_slice %529 {offsets = [0, 0], sizes = [8, 34], strides = [1, 1]} : vector<10x34xf32> to vector<8x34xf32>
    %531 = vector.extract_strided_slice %529 {offsets = [1, 0], sizes = [8, 34], strides = [1, 1]} : vector<10x34xf32> to vector<8x34xf32>
    %532 = vector.extract_strided_slice %529 {offsets = [2, 0], sizes = [8, 34], strides = [1, 1]} : vector<10x34xf32> to vector<8x34xf32>
    %c0_242 = arith.constant 0 : index
    %c6_243 = arith.constant 6 : index
    %533 = memref.load %arg4[%c0_242, %c6_243] : memref<9x32xf32, #tpu.memory_space<smem>>
    %534 = vector.broadcast %533 : f32 to vector<8x34xf32>
    %535 = arith.mulf %530, %534 : vector<8x34xf32>
    %536 = arith.addf %465, %535 : vector<8x34xf32>
    %c3_244 = arith.constant 3 : index
    %c6_245 = arith.constant 6 : index
    %537 = memref.load %arg4[%c3_244, %c6_245] : memref<9x32xf32, #tpu.memory_space<smem>>
    %538 = vector.broadcast %537 : f32 to vector<8x34xf32>
    %539 = arith.mulf %531, %538 : vector<8x34xf32>
    %540 = arith.addf %536, %539 : vector<8x34xf32>
    %c6_246 = arith.constant 6 : index
    %c6_247 = arith.constant 6 : index
    %541 = memref.load %arg4[%c6_246, %c6_247] : memref<9x32xf32, #tpu.memory_space<smem>>
    %542 = vector.broadcast %541 : f32 to vector<8x34xf32>
    %543 = arith.mulf %532, %542 : vector<8x34xf32>
    %544 = arith.addf %540, %543 : vector<8x34xf32>
    %c1_248 = arith.constant 1 : index
    %c6_249 = arith.constant 6 : index
    %545 = memref.load %arg4[%c1_248, %c6_249] : memref<9x32xf32, #tpu.memory_space<smem>>
    %546 = vector.broadcast %545 : f32 to vector<8x34xf32>
    %547 = arith.mulf %530, %546 : vector<8x34xf32>
    %548 = arith.addf %477, %547 : vector<8x34xf32>
    %c4_250 = arith.constant 4 : index
    %c6_251 = arith.constant 6 : index
    %549 = memref.load %arg4[%c4_250, %c6_251] : memref<9x32xf32, #tpu.memory_space<smem>>
    %550 = vector.broadcast %549 : f32 to vector<8x34xf32>
    %551 = arith.mulf %531, %550 : vector<8x34xf32>
    %552 = arith.addf %548, %551 : vector<8x34xf32>
    %c7_252 = arith.constant 7 : index
    %c6_253 = arith.constant 6 : index
    %553 = memref.load %arg4[%c7_252, %c6_253] : memref<9x32xf32, #tpu.memory_space<smem>>
    %554 = vector.broadcast %553 : f32 to vector<8x34xf32>
    %555 = arith.mulf %532, %554 : vector<8x34xf32>
    %556 = arith.addf %552, %555 : vector<8x34xf32>
    %c2_254 = arith.constant 2 : index
    %c6_255 = arith.constant 6 : index
    %557 = memref.load %arg4[%c2_254, %c6_255] : memref<9x32xf32, #tpu.memory_space<smem>>
    %558 = vector.broadcast %557 : f32 to vector<8x34xf32>
    %559 = arith.mulf %530, %558 : vector<8x34xf32>
    %560 = arith.addf %489, %559 : vector<8x34xf32>
    %c5_256 = arith.constant 5 : index
    %c6_257 = arith.constant 6 : index
    %561 = memref.load %arg4[%c5_256, %c6_257] : memref<9x32xf32, #tpu.memory_space<smem>>
    %562 = vector.broadcast %561 : f32 to vector<8x34xf32>
    %563 = arith.mulf %531, %562 : vector<8x34xf32>
    %564 = arith.addf %560, %563 : vector<8x34xf32>
    %c8_258 = arith.constant 8 : index
    %c6_259 = arith.constant 6 : index
    %565 = memref.load %arg4[%c8_258, %c6_259] : memref<9x32xf32, #tpu.memory_space<smem>>
    %566 = vector.broadcast %565 : f32 to vector<8x34xf32>
    %567 = arith.mulf %532, %566 : vector<8x34xf32>
    %568 = arith.addf %564, %567 : vector<8x34xf32>
    %c0_260 = arith.constant 0 : index
    %c7_261 = arith.constant 7 : index
    %569 = memref.load %arg2[%c0_260, %c7_261] : memref<9x32xf32, #tpu.memory_space<smem>>
    %570 = vector.broadcast %569 : f32 to vector<10x34xf32>
    %571 = arith.mulf %4, %570 : vector<10x34xf32>
    %c1_262 = arith.constant 1 : index
    %c7_263 = arith.constant 7 : index
    %572 = memref.load %arg2[%c1_262, %c7_263] : memref<9x32xf32, #tpu.memory_space<smem>>
    %573 = vector.broadcast %572 : f32 to vector<10x34xf32>
    %574 = arith.mulf %5, %573 : vector<10x34xf32>
    %575 = arith.addf %571, %574 : vector<10x34xf32>
    %c2_264 = arith.constant 2 : index
    %c7_265 = arith.constant 7 : index
    %576 = memref.load %arg2[%c2_264, %c7_265] : memref<9x32xf32, #tpu.memory_space<smem>>
    %577 = vector.broadcast %576 : f32 to vector<10x34xf32>
    %578 = arith.mulf %6, %577 : vector<10x34xf32>
    %579 = arith.addf %575, %578 : vector<10x34xf32>
    %c3_266 = arith.constant 3 : index
    %c7_267 = arith.constant 7 : index
    %580 = memref.load %arg2[%c3_266, %c7_267] : memref<9x32xf32, #tpu.memory_space<smem>>
    %581 = vector.broadcast %580 : f32 to vector<10x34xf32>
    %582 = arith.mulf %7, %581 : vector<10x34xf32>
    %583 = arith.addf %579, %582 : vector<10x34xf32>
    %c4_268 = arith.constant 4 : index
    %c7_269 = arith.constant 7 : index
    %584 = memref.load %arg2[%c4_268, %c7_269] : memref<9x32xf32, #tpu.memory_space<smem>>
    %585 = vector.broadcast %584 : f32 to vector<10x34xf32>
    %586 = arith.mulf %8, %585 : vector<10x34xf32>
    %587 = arith.addf %583, %586 : vector<10x34xf32>
    %c5_270 = arith.constant 5 : index
    %c7_271 = arith.constant 7 : index
    %588 = memref.load %arg2[%c5_270, %c7_271] : memref<9x32xf32, #tpu.memory_space<smem>>
    %589 = vector.broadcast %588 : f32 to vector<10x34xf32>
    %590 = arith.mulf %9, %589 : vector<10x34xf32>
    %591 = arith.addf %587, %590 : vector<10x34xf32>
    %c6_272 = arith.constant 6 : index
    %c7_273 = arith.constant 7 : index
    %592 = memref.load %arg2[%c6_272, %c7_273] : memref<9x32xf32, #tpu.memory_space<smem>>
    %593 = vector.broadcast %592 : f32 to vector<10x34xf32>
    %594 = arith.mulf %10, %593 : vector<10x34xf32>
    %595 = arith.addf %591, %594 : vector<10x34xf32>
    %c7_274 = arith.constant 7 : index
    %c7_275 = arith.constant 7 : index
    %596 = memref.load %arg2[%c7_274, %c7_275] : memref<9x32xf32, #tpu.memory_space<smem>>
    %597 = vector.broadcast %596 : f32 to vector<10x34xf32>
    %598 = arith.mulf %11, %597 : vector<10x34xf32>
    %599 = arith.addf %595, %598 : vector<10x34xf32>
    %c8_276 = arith.constant 8 : index
    %c7_277 = arith.constant 7 : index
    %600 = memref.load %arg2[%c8_276, %c7_277] : memref<9x32xf32, #tpu.memory_space<smem>>
    %601 = vector.broadcast %600 : f32 to vector<10x34xf32>
    %602 = arith.mulf %12, %601 : vector<10x34xf32>
    %603 = arith.addf %599, %602 : vector<10x34xf32>
    %c7_278 = arith.constant 7 : index
    %604 = memref.load %arg3[%c7_278] : memref<32xf32, #tpu.memory_space<smem>>
    %605 = vector.broadcast %604 : f32 to vector<10x34xf32>
    %606 = arith.addf %603, %605 : vector<10x34xf32>
    %cst_279 = arith.constant 0.000000e+00 : f32
    %607 = vector.broadcast %cst_279 : f32 to vector<10x34xf32>
    %608 = arith.maximumf %606, %607 : vector<10x34xf32>
    %609 = vector.extract_strided_slice %608 {offsets = [0, 0], sizes = [8, 34], strides = [1, 1]} : vector<10x34xf32> to vector<8x34xf32>
    %610 = vector.extract_strided_slice %608 {offsets = [1, 0], sizes = [8, 34], strides = [1, 1]} : vector<10x34xf32> to vector<8x34xf32>
    %611 = vector.extract_strided_slice %608 {offsets = [2, 0], sizes = [8, 34], strides = [1, 1]} : vector<10x34xf32> to vector<8x34xf32>
    %c0_280 = arith.constant 0 : index
    %c7_281 = arith.constant 7 : index
    %612 = memref.load %arg4[%c0_280, %c7_281] : memref<9x32xf32, #tpu.memory_space<smem>>
    %613 = vector.broadcast %612 : f32 to vector<8x34xf32>
    %614 = arith.mulf %609, %613 : vector<8x34xf32>
    %615 = arith.addf %544, %614 : vector<8x34xf32>
    %c3_282 = arith.constant 3 : index
    %c7_283 = arith.constant 7 : index
    %616 = memref.load %arg4[%c3_282, %c7_283] : memref<9x32xf32, #tpu.memory_space<smem>>
    %617 = vector.broadcast %616 : f32 to vector<8x34xf32>
    %618 = arith.mulf %610, %617 : vector<8x34xf32>
    %619 = arith.addf %615, %618 : vector<8x34xf32>
    %c6_284 = arith.constant 6 : index
    %c7_285 = arith.constant 7 : index
    %620 = memref.load %arg4[%c6_284, %c7_285] : memref<9x32xf32, #tpu.memory_space<smem>>
    %621 = vector.broadcast %620 : f32 to vector<8x34xf32>
    %622 = arith.mulf %611, %621 : vector<8x34xf32>
    %623 = arith.addf %619, %622 : vector<8x34xf32>
    %c1_286 = arith.constant 1 : index
    %c7_287 = arith.constant 7 : index
    %624 = memref.load %arg4[%c1_286, %c7_287] : memref<9x32xf32, #tpu.memory_space<smem>>
    %625 = vector.broadcast %624 : f32 to vector<8x34xf32>
    %626 = arith.mulf %609, %625 : vector<8x34xf32>
    %627 = arith.addf %556, %626 : vector<8x34xf32>
    %c4_288 = arith.constant 4 : index
    %c7_289 = arith.constant 7 : index
    %628 = memref.load %arg4[%c4_288, %c7_289] : memref<9x32xf32, #tpu.memory_space<smem>>
    %629 = vector.broadcast %628 : f32 to vector<8x34xf32>
    %630 = arith.mulf %610, %629 : vector<8x34xf32>
    %631 = arith.addf %627, %630 : vector<8x34xf32>
    %c7_290 = arith.constant 7 : index
    %c7_291 = arith.constant 7 : index
    %632 = memref.load %arg4[%c7_290, %c7_291] : memref<9x32xf32, #tpu.memory_space<smem>>
    %633 = vector.broadcast %632 : f32 to vector<8x34xf32>
    %634 = arith.mulf %611, %633 : vector<8x34xf32>
    %635 = arith.addf %631, %634 : vector<8x34xf32>
    %c2_292 = arith.constant 2 : index
    %c7_293 = arith.constant 7 : index
    %636 = memref.load %arg4[%c2_292, %c7_293] : memref<9x32xf32, #tpu.memory_space<smem>>
    %637 = vector.broadcast %636 : f32 to vector<8x34xf32>
    %638 = arith.mulf %609, %637 : vector<8x34xf32>
    %639 = arith.addf %568, %638 : vector<8x34xf32>
    %c5_294 = arith.constant 5 : index
    %c7_295 = arith.constant 7 : index
    %640 = memref.load %arg4[%c5_294, %c7_295] : memref<9x32xf32, #tpu.memory_space<smem>>
    %641 = vector.broadcast %640 : f32 to vector<8x34xf32>
    %642 = arith.mulf %610, %641 : vector<8x34xf32>
    %643 = arith.addf %639, %642 : vector<8x34xf32>
    %c8_296 = arith.constant 8 : index
    %c7_297 = arith.constant 7 : index
    %644 = memref.load %arg4[%c8_296, %c7_297] : memref<9x32xf32, #tpu.memory_space<smem>>
    %645 = vector.broadcast %644 : f32 to vector<8x34xf32>
    %646 = arith.mulf %611, %645 : vector<8x34xf32>
    %647 = arith.addf %643, %646 : vector<8x34xf32>
    %c0_298 = arith.constant 0 : index
    %c8_299 = arith.constant 8 : index
    %648 = memref.load %arg2[%c0_298, %c8_299] : memref<9x32xf32, #tpu.memory_space<smem>>
    %649 = vector.broadcast %648 : f32 to vector<10x34xf32>
    %650 = arith.mulf %4, %649 : vector<10x34xf32>
    %c1_300 = arith.constant 1 : index
    %c8_301 = arith.constant 8 : index
    %651 = memref.load %arg2[%c1_300, %c8_301] : memref<9x32xf32, #tpu.memory_space<smem>>
    %652 = vector.broadcast %651 : f32 to vector<10x34xf32>
    %653 = arith.mulf %5, %652 : vector<10x34xf32>
    %654 = arith.addf %650, %653 : vector<10x34xf32>
    %c2_302 = arith.constant 2 : index
    %c8_303 = arith.constant 8 : index
    %655 = memref.load %arg2[%c2_302, %c8_303] : memref<9x32xf32, #tpu.memory_space<smem>>
    %656 = vector.broadcast %655 : f32 to vector<10x34xf32>
    %657 = arith.mulf %6, %656 : vector<10x34xf32>
    %658 = arith.addf %654, %657 : vector<10x34xf32>
    %c3_304 = arith.constant 3 : index
    %c8_305 = arith.constant 8 : index
    %659 = memref.load %arg2[%c3_304, %c8_305] : memref<9x32xf32, #tpu.memory_space<smem>>
    %660 = vector.broadcast %659 : f32 to vector<10x34xf32>
    %661 = arith.mulf %7, %660 : vector<10x34xf32>
    %662 = arith.addf %658, %661 : vector<10x34xf32>
    %c4_306 = arith.constant 4 : index
    %c8_307 = arith.constant 8 : index
    %663 = memref.load %arg2[%c4_306, %c8_307] : memref<9x32xf32, #tpu.memory_space<smem>>
    %664 = vector.broadcast %663 : f32 to vector<10x34xf32>
    %665 = arith.mulf %8, %664 : vector<10x34xf32>
    %666 = arith.addf %662, %665 : vector<10x34xf32>
    %c5_308 = arith.constant 5 : index
    %c8_309 = arith.constant 8 : index
    %667 = memref.load %arg2[%c5_308, %c8_309] : memref<9x32xf32, #tpu.memory_space<smem>>
    %668 = vector.broadcast %667 : f32 to vector<10x34xf32>
    %669 = arith.mulf %9, %668 : vector<10x34xf32>
    %670 = arith.addf %666, %669 : vector<10x34xf32>
    %c6_310 = arith.constant 6 : index
    %c8_311 = arith.constant 8 : index
    %671 = memref.load %arg2[%c6_310, %c8_311] : memref<9x32xf32, #tpu.memory_space<smem>>
    %672 = vector.broadcast %671 : f32 to vector<10x34xf32>
    %673 = arith.mulf %10, %672 : vector<10x34xf32>
    %674 = arith.addf %670, %673 : vector<10x34xf32>
    %c7_312 = arith.constant 7 : index
    %c8_313 = arith.constant 8 : index
    %675 = memref.load %arg2[%c7_312, %c8_313] : memref<9x32xf32, #tpu.memory_space<smem>>
    %676 = vector.broadcast %675 : f32 to vector<10x34xf32>
    %677 = arith.mulf %11, %676 : vector<10x34xf32>
    %678 = arith.addf %674, %677 : vector<10x34xf32>
    %c8_314 = arith.constant 8 : index
    %c8_315 = arith.constant 8 : index
    %679 = memref.load %arg2[%c8_314, %c8_315] : memref<9x32xf32, #tpu.memory_space<smem>>
    %680 = vector.broadcast %679 : f32 to vector<10x34xf32>
    %681 = arith.mulf %12, %680 : vector<10x34xf32>
    %682 = arith.addf %678, %681 : vector<10x34xf32>
    %c8_316 = arith.constant 8 : index
    %683 = memref.load %arg3[%c8_316] : memref<32xf32, #tpu.memory_space<smem>>
    %684 = vector.broadcast %683 : f32 to vector<10x34xf32>
    %685 = arith.addf %682, %684 : vector<10x34xf32>
    %cst_317 = arith.constant 0.000000e+00 : f32
    %686 = vector.broadcast %cst_317 : f32 to vector<10x34xf32>
    %687 = arith.maximumf %685, %686 : vector<10x34xf32>
    %688 = vector.extract_strided_slice %687 {offsets = [0, 0], sizes = [8, 34], strides = [1, 1]} : vector<10x34xf32> to vector<8x34xf32>
    %689 = vector.extract_strided_slice %687 {offsets = [1, 0], sizes = [8, 34], strides = [1, 1]} : vector<10x34xf32> to vector<8x34xf32>
    %690 = vector.extract_strided_slice %687 {offsets = [2, 0], sizes = [8, 34], strides = [1, 1]} : vector<10x34xf32> to vector<8x34xf32>
    %c0_318 = arith.constant 0 : index
    %c8_319 = arith.constant 8 : index
    %691 = memref.load %arg4[%c0_318, %c8_319] : memref<9x32xf32, #tpu.memory_space<smem>>
    %692 = vector.broadcast %691 : f32 to vector<8x34xf32>
    %693 = arith.mulf %688, %692 : vector<8x34xf32>
    %694 = arith.addf %623, %693 : vector<8x34xf32>
    %c3_320 = arith.constant 3 : index
    %c8_321 = arith.constant 8 : index
    %695 = memref.load %arg4[%c3_320, %c8_321] : memref<9x32xf32, #tpu.memory_space<smem>>
    %696 = vector.broadcast %695 : f32 to vector<8x34xf32>
    %697 = arith.mulf %689, %696 : vector<8x34xf32>
    %698 = arith.addf %694, %697 : vector<8x34xf32>
    %c6_322 = arith.constant 6 : index
    %c8_323 = arith.constant 8 : index
    %699 = memref.load %arg4[%c6_322, %c8_323] : memref<9x32xf32, #tpu.memory_space<smem>>
    %700 = vector.broadcast %699 : f32 to vector<8x34xf32>
    %701 = arith.mulf %690, %700 : vector<8x34xf32>
    %702 = arith.addf %698, %701 : vector<8x34xf32>
    %c1_324 = arith.constant 1 : index
    %c8_325 = arith.constant 8 : index
    %703 = memref.load %arg4[%c1_324, %c8_325] : memref<9x32xf32, #tpu.memory_space<smem>>
    %704 = vector.broadcast %703 : f32 to vector<8x34xf32>
    %705 = arith.mulf %688, %704 : vector<8x34xf32>
    %706 = arith.addf %635, %705 : vector<8x34xf32>
    %c4_326 = arith.constant 4 : index
    %c8_327 = arith.constant 8 : index
    %707 = memref.load %arg4[%c4_326, %c8_327] : memref<9x32xf32, #tpu.memory_space<smem>>
    %708 = vector.broadcast %707 : f32 to vector<8x34xf32>
    %709 = arith.mulf %689, %708 : vector<8x34xf32>
    %710 = arith.addf %706, %709 : vector<8x34xf32>
    %c7_328 = arith.constant 7 : index
    %c8_329 = arith.constant 8 : index
    %711 = memref.load %arg4[%c7_328, %c8_329] : memref<9x32xf32, #tpu.memory_space<smem>>
    %712 = vector.broadcast %711 : f32 to vector<8x34xf32>
    %713 = arith.mulf %690, %712 : vector<8x34xf32>
    %714 = arith.addf %710, %713 : vector<8x34xf32>
    %c2_330 = arith.constant 2 : index
    %c8_331 = arith.constant 8 : index
    %715 = memref.load %arg4[%c2_330, %c8_331] : memref<9x32xf32, #tpu.memory_space<smem>>
    %716 = vector.broadcast %715 : f32 to vector<8x34xf32>
    %717 = arith.mulf %688, %716 : vector<8x34xf32>
    %718 = arith.addf %647, %717 : vector<8x34xf32>
    %c5_332 = arith.constant 5 : index
    %c8_333 = arith.constant 8 : index
    %719 = memref.load %arg4[%c5_332, %c8_333] : memref<9x32xf32, #tpu.memory_space<smem>>
    %720 = vector.broadcast %719 : f32 to vector<8x34xf32>
    %721 = arith.mulf %689, %720 : vector<8x34xf32>
    %722 = arith.addf %718, %721 : vector<8x34xf32>
    %c8_334 = arith.constant 8 : index
    %c8_335 = arith.constant 8 : index
    %723 = memref.load %arg4[%c8_334, %c8_335] : memref<9x32xf32, #tpu.memory_space<smem>>
    %724 = vector.broadcast %723 : f32 to vector<8x34xf32>
    %725 = arith.mulf %690, %724 : vector<8x34xf32>
    %726 = arith.addf %722, %725 : vector<8x34xf32>
    %c0_336 = arith.constant 0 : index
    %c9 = arith.constant 9 : index
    %727 = memref.load %arg2[%c0_336, %c9] : memref<9x32xf32, #tpu.memory_space<smem>>
    %728 = vector.broadcast %727 : f32 to vector<10x34xf32>
    %729 = arith.mulf %4, %728 : vector<10x34xf32>
    %c1_337 = arith.constant 1 : index
    %c9_338 = arith.constant 9 : index
    %730 = memref.load %arg2[%c1_337, %c9_338] : memref<9x32xf32, #tpu.memory_space<smem>>
    %731 = vector.broadcast %730 : f32 to vector<10x34xf32>
    %732 = arith.mulf %5, %731 : vector<10x34xf32>
    %733 = arith.addf %729, %732 : vector<10x34xf32>
    %c2_339 = arith.constant 2 : index
    %c9_340 = arith.constant 9 : index
    %734 = memref.load %arg2[%c2_339, %c9_340] : memref<9x32xf32, #tpu.memory_space<smem>>
    %735 = vector.broadcast %734 : f32 to vector<10x34xf32>
    %736 = arith.mulf %6, %735 : vector<10x34xf32>
    %737 = arith.addf %733, %736 : vector<10x34xf32>
    %c3_341 = arith.constant 3 : index
    %c9_342 = arith.constant 9 : index
    %738 = memref.load %arg2[%c3_341, %c9_342] : memref<9x32xf32, #tpu.memory_space<smem>>
    %739 = vector.broadcast %738 : f32 to vector<10x34xf32>
    %740 = arith.mulf %7, %739 : vector<10x34xf32>
    %741 = arith.addf %737, %740 : vector<10x34xf32>
    %c4_343 = arith.constant 4 : index
    %c9_344 = arith.constant 9 : index
    %742 = memref.load %arg2[%c4_343, %c9_344] : memref<9x32xf32, #tpu.memory_space<smem>>
    %743 = vector.broadcast %742 : f32 to vector<10x34xf32>
    %744 = arith.mulf %8, %743 : vector<10x34xf32>
    %745 = arith.addf %741, %744 : vector<10x34xf32>
    %c5_345 = arith.constant 5 : index
    %c9_346 = arith.constant 9 : index
    %746 = memref.load %arg2[%c5_345, %c9_346] : memref<9x32xf32, #tpu.memory_space<smem>>
    %747 = vector.broadcast %746 : f32 to vector<10x34xf32>
    %748 = arith.mulf %9, %747 : vector<10x34xf32>
    %749 = arith.addf %745, %748 : vector<10x34xf32>
    %c6_347 = arith.constant 6 : index
    %c9_348 = arith.constant 9 : index
    %750 = memref.load %arg2[%c6_347, %c9_348] : memref<9x32xf32, #tpu.memory_space<smem>>
    %751 = vector.broadcast %750 : f32 to vector<10x34xf32>
    %752 = arith.mulf %10, %751 : vector<10x34xf32>
    %753 = arith.addf %749, %752 : vector<10x34xf32>
    %c7_349 = arith.constant 7 : index
    %c9_350 = arith.constant 9 : index
    %754 = memref.load %arg2[%c7_349, %c9_350] : memref<9x32xf32, #tpu.memory_space<smem>>
    %755 = vector.broadcast %754 : f32 to vector<10x34xf32>
    %756 = arith.mulf %11, %755 : vector<10x34xf32>
    %757 = arith.addf %753, %756 : vector<10x34xf32>
    %c8_351 = arith.constant 8 : index
    %c9_352 = arith.constant 9 : index
    %758 = memref.load %arg2[%c8_351, %c9_352] : memref<9x32xf32, #tpu.memory_space<smem>>
    %759 = vector.broadcast %758 : f32 to vector<10x34xf32>
    %760 = arith.mulf %12, %759 : vector<10x34xf32>
    %761 = arith.addf %757, %760 : vector<10x34xf32>
    %c9_353 = arith.constant 9 : index
    %762 = memref.load %arg3[%c9_353] : memref<32xf32, #tpu.memory_space<smem>>
    %763 = vector.broadcast %762 : f32 to vector<10x34xf32>
    %764 = arith.addf %761, %763 : vector<10x34xf32>
    %cst_354 = arith.constant 0.000000e+00 : f32
    %765 = vector.broadcast %cst_354 : f32 to vector<10x34xf32>
    %766 = arith.maximumf %764, %765 : vector<10x34xf32>
    %767 = vector.extract_strided_slice %766 {offsets = [0, 0], sizes = [8, 34], strides = [1, 1]} : vector<10x34xf32> to vector<8x34xf32>
    %768 = vector.extract_strided_slice %766 {offsets = [1, 0], sizes = [8, 34], strides = [1, 1]} : vector<10x34xf32> to vector<8x34xf32>
    %769 = vector.extract_strided_slice %766 {offsets = [2, 0], sizes = [8, 34], strides = [1, 1]} : vector<10x34xf32> to vector<8x34xf32>
    %c0_355 = arith.constant 0 : index
    %c9_356 = arith.constant 9 : index
    %770 = memref.load %arg4[%c0_355, %c9_356] : memref<9x32xf32, #tpu.memory_space<smem>>
    %771 = vector.broadcast %770 : f32 to vector<8x34xf32>
    %772 = arith.mulf %767, %771 : vector<8x34xf32>
    %773 = arith.addf %702, %772 : vector<8x34xf32>
    %c3_357 = arith.constant 3 : index
    %c9_358 = arith.constant 9 : index
    %774 = memref.load %arg4[%c3_357, %c9_358] : memref<9x32xf32, #tpu.memory_space<smem>>
    %775 = vector.broadcast %774 : f32 to vector<8x34xf32>
    %776 = arith.mulf %768, %775 : vector<8x34xf32>
    %777 = arith.addf %773, %776 : vector<8x34xf32>
    %c6_359 = arith.constant 6 : index
    %c9_360 = arith.constant 9 : index
    %778 = memref.load %arg4[%c6_359, %c9_360] : memref<9x32xf32, #tpu.memory_space<smem>>
    %779 = vector.broadcast %778 : f32 to vector<8x34xf32>
    %780 = arith.mulf %769, %779 : vector<8x34xf32>
    %781 = arith.addf %777, %780 : vector<8x34xf32>
    %c1_361 = arith.constant 1 : index
    %c9_362 = arith.constant 9 : index
    %782 = memref.load %arg4[%c1_361, %c9_362] : memref<9x32xf32, #tpu.memory_space<smem>>
    %783 = vector.broadcast %782 : f32 to vector<8x34xf32>
    %784 = arith.mulf %767, %783 : vector<8x34xf32>
    %785 = arith.addf %714, %784 : vector<8x34xf32>
    %c4_363 = arith.constant 4 : index
    %c9_364 = arith.constant 9 : index
    %786 = memref.load %arg4[%c4_363, %c9_364] : memref<9x32xf32, #tpu.memory_space<smem>>
    %787 = vector.broadcast %786 : f32 to vector<8x34xf32>
    %788 = arith.mulf %768, %787 : vector<8x34xf32>
    %789 = arith.addf %785, %788 : vector<8x34xf32>
    %c7_365 = arith.constant 7 : index
    %c9_366 = arith.constant 9 : index
    %790 = memref.load %arg4[%c7_365, %c9_366] : memref<9x32xf32, #tpu.memory_space<smem>>
    %791 = vector.broadcast %790 : f32 to vector<8x34xf32>
    %792 = arith.mulf %769, %791 : vector<8x34xf32>
    %793 = arith.addf %789, %792 : vector<8x34xf32>
    %c2_367 = arith.constant 2 : index
    %c9_368 = arith.constant 9 : index
    %794 = memref.load %arg4[%c2_367, %c9_368] : memref<9x32xf32, #tpu.memory_space<smem>>
    %795 = vector.broadcast %794 : f32 to vector<8x34xf32>
    %796 = arith.mulf %767, %795 : vector<8x34xf32>
    %797 = arith.addf %726, %796 : vector<8x34xf32>
    %c5_369 = arith.constant 5 : index
    %c9_370 = arith.constant 9 : index
    %798 = memref.load %arg4[%c5_369, %c9_370] : memref<9x32xf32, #tpu.memory_space<smem>>
    %799 = vector.broadcast %798 : f32 to vector<8x34xf32>
    %800 = arith.mulf %768, %799 : vector<8x34xf32>
    %801 = arith.addf %797, %800 : vector<8x34xf32>
    %c8_371 = arith.constant 8 : index
    %c9_372 = arith.constant 9 : index
    %802 = memref.load %arg4[%c8_371, %c9_372] : memref<9x32xf32, #tpu.memory_space<smem>>
    %803 = vector.broadcast %802 : f32 to vector<8x34xf32>
    %804 = arith.mulf %769, %803 : vector<8x34xf32>
    %805 = arith.addf %801, %804 : vector<8x34xf32>
    %c0_373 = arith.constant 0 : index
    %c10 = arith.constant 10 : index
    %806 = memref.load %arg2[%c0_373, %c10] : memref<9x32xf32, #tpu.memory_space<smem>>
    %807 = vector.broadcast %806 : f32 to vector<10x34xf32>
    %808 = arith.mulf %4, %807 : vector<10x34xf32>
    %c1_374 = arith.constant 1 : index
    %c10_375 = arith.constant 10 : index
    %809 = memref.load %arg2[%c1_374, %c10_375] : memref<9x32xf32, #tpu.memory_space<smem>>
    %810 = vector.broadcast %809 : f32 to vector<10x34xf32>
    %811 = arith.mulf %5, %810 : vector<10x34xf32>
    %812 = arith.addf %808, %811 : vector<10x34xf32>
    %c2_376 = arith.constant 2 : index
    %c10_377 = arith.constant 10 : index
    %813 = memref.load %arg2[%c2_376, %c10_377] : memref<9x32xf32, #tpu.memory_space<smem>>
    %814 = vector.broadcast %813 : f32 to vector<10x34xf32>
    %815 = arith.mulf %6, %814 : vector<10x34xf32>
    %816 = arith.addf %812, %815 : vector<10x34xf32>
    %c3_378 = arith.constant 3 : index
    %c10_379 = arith.constant 10 : index
    %817 = memref.load %arg2[%c3_378, %c10_379] : memref<9x32xf32, #tpu.memory_space<smem>>
    %818 = vector.broadcast %817 : f32 to vector<10x34xf32>
    %819 = arith.mulf %7, %818 : vector<10x34xf32>
    %820 = arith.addf %816, %819 : vector<10x34xf32>
    %c4_380 = arith.constant 4 : index
    %c10_381 = arith.constant 10 : index
    %821 = memref.load %arg2[%c4_380, %c10_381] : memref<9x32xf32, #tpu.memory_space<smem>>
    %822 = vector.broadcast %821 : f32 to vector<10x34xf32>
    %823 = arith.mulf %8, %822 : vector<10x34xf32>
    %824 = arith.addf %820, %823 : vector<10x34xf32>
    %c5_382 = arith.constant 5 : index
    %c10_383 = arith.constant 10 : index
    %825 = memref.load %arg2[%c5_382, %c10_383] : memref<9x32xf32, #tpu.memory_space<smem>>
    %826 = vector.broadcast %825 : f32 to vector<10x34xf32>
    %827 = arith.mulf %9, %826 : vector<10x34xf32>
    %828 = arith.addf %824, %827 : vector<10x34xf32>
    %c6_384 = arith.constant 6 : index
    %c10_385 = arith.constant 10 : index
    %829 = memref.load %arg2[%c6_384, %c10_385] : memref<9x32xf32, #tpu.memory_space<smem>>
    %830 = vector.broadcast %829 : f32 to vector<10x34xf32>
    %831 = arith.mulf %10, %830 : vector<10x34xf32>
    %832 = arith.addf %828, %831 : vector<10x34xf32>
    %c7_386 = arith.constant 7 : index
    %c10_387 = arith.constant 10 : index
    %833 = memref.load %arg2[%c7_386, %c10_387] : memref<9x32xf32, #tpu.memory_space<smem>>
    %834 = vector.broadcast %833 : f32 to vector<10x34xf32>
    %835 = arith.mulf %11, %834 : vector<10x34xf32>
    %836 = arith.addf %832, %835 : vector<10x34xf32>
    %c8_388 = arith.constant 8 : index
    %c10_389 = arith.constant 10 : index
    %837 = memref.load %arg2[%c8_388, %c10_389] : memref<9x32xf32, #tpu.memory_space<smem>>
    %838 = vector.broadcast %837 : f32 to vector<10x34xf32>
    %839 = arith.mulf %12, %838 : vector<10x34xf32>
    %840 = arith.addf %836, %839 : vector<10x34xf32>
    %c10_390 = arith.constant 10 : index
    %841 = memref.load %arg3[%c10_390] : memref<32xf32, #tpu.memory_space<smem>>
    %842 = vector.broadcast %841 : f32 to vector<10x34xf32>
    %843 = arith.addf %840, %842 : vector<10x34xf32>
    %cst_391 = arith.constant 0.000000e+00 : f32
    %844 = vector.broadcast %cst_391 : f32 to vector<10x34xf32>
    %845 = arith.maximumf %843, %844 : vector<10x34xf32>
    %846 = vector.extract_strided_slice %845 {offsets = [0, 0], sizes = [8, 34], strides = [1, 1]} : vector<10x34xf32> to vector<8x34xf32>
    %847 = vector.extract_strided_slice %845 {offsets = [1, 0], sizes = [8, 34], strides = [1, 1]} : vector<10x34xf32> to vector<8x34xf32>
    %848 = vector.extract_strided_slice %845 {offsets = [2, 0], sizes = [8, 34], strides = [1, 1]} : vector<10x34xf32> to vector<8x34xf32>
    %c0_392 = arith.constant 0 : index
    %c10_393 = arith.constant 10 : index
    %849 = memref.load %arg4[%c0_392, %c10_393] : memref<9x32xf32, #tpu.memory_space<smem>>
    %850 = vector.broadcast %849 : f32 to vector<8x34xf32>
    %851 = arith.mulf %846, %850 : vector<8x34xf32>
    %852 = arith.addf %781, %851 : vector<8x34xf32>
    %c3_394 = arith.constant 3 : index
    %c10_395 = arith.constant 10 : index
    %853 = memref.load %arg4[%c3_394, %c10_395] : memref<9x32xf32, #tpu.memory_space<smem>>
    %854 = vector.broadcast %853 : f32 to vector<8x34xf32>
    %855 = arith.mulf %847, %854 : vector<8x34xf32>
    %856 = arith.addf %852, %855 : vector<8x34xf32>
    %c6_396 = arith.constant 6 : index
    %c10_397 = arith.constant 10 : index
    %857 = memref.load %arg4[%c6_396, %c10_397] : memref<9x32xf32, #tpu.memory_space<smem>>
    %858 = vector.broadcast %857 : f32 to vector<8x34xf32>
    %859 = arith.mulf %848, %858 : vector<8x34xf32>
    %860 = arith.addf %856, %859 : vector<8x34xf32>
    %c1_398 = arith.constant 1 : index
    %c10_399 = arith.constant 10 : index
    %861 = memref.load %arg4[%c1_398, %c10_399] : memref<9x32xf32, #tpu.memory_space<smem>>
    %862 = vector.broadcast %861 : f32 to vector<8x34xf32>
    %863 = arith.mulf %846, %862 : vector<8x34xf32>
    %864 = arith.addf %793, %863 : vector<8x34xf32>
    %c4_400 = arith.constant 4 : index
    %c10_401 = arith.constant 10 : index
    %865 = memref.load %arg4[%c4_400, %c10_401] : memref<9x32xf32, #tpu.memory_space<smem>>
    %866 = vector.broadcast %865 : f32 to vector<8x34xf32>
    %867 = arith.mulf %847, %866 : vector<8x34xf32>
    %868 = arith.addf %864, %867 : vector<8x34xf32>
    %c7_402 = arith.constant 7 : index
    %c10_403 = arith.constant 10 : index
    %869 = memref.load %arg4[%c7_402, %c10_403] : memref<9x32xf32, #tpu.memory_space<smem>>
    %870 = vector.broadcast %869 : f32 to vector<8x34xf32>
    %871 = arith.mulf %848, %870 : vector<8x34xf32>
    %872 = arith.addf %868, %871 : vector<8x34xf32>
    %c2_404 = arith.constant 2 : index
    %c10_405 = arith.constant 10 : index
    %873 = memref.load %arg4[%c2_404, %c10_405] : memref<9x32xf32, #tpu.memory_space<smem>>
    %874 = vector.broadcast %873 : f32 to vector<8x34xf32>
    %875 = arith.mulf %846, %874 : vector<8x34xf32>
    %876 = arith.addf %805, %875 : vector<8x34xf32>
    %c5_406 = arith.constant 5 : index
    %c10_407 = arith.constant 10 : index
    %877 = memref.load %arg4[%c5_406, %c10_407] : memref<9x32xf32, #tpu.memory_space<smem>>
    %878 = vector.broadcast %877 : f32 to vector<8x34xf32>
    %879 = arith.mulf %847, %878 : vector<8x34xf32>
    %880 = arith.addf %876, %879 : vector<8x34xf32>
    %c8_408 = arith.constant 8 : index
    %c10_409 = arith.constant 10 : index
    %881 = memref.load %arg4[%c8_408, %c10_409] : memref<9x32xf32, #tpu.memory_space<smem>>
    %882 = vector.broadcast %881 : f32 to vector<8x34xf32>
    %883 = arith.mulf %848, %882 : vector<8x34xf32>
    %884 = arith.addf %880, %883 : vector<8x34xf32>
    %c0_410 = arith.constant 0 : index
    %c11 = arith.constant 11 : index
    %885 = memref.load %arg2[%c0_410, %c11] : memref<9x32xf32, #tpu.memory_space<smem>>
    %886 = vector.broadcast %885 : f32 to vector<10x34xf32>
    %887 = arith.mulf %4, %886 : vector<10x34xf32>
    %c1_411 = arith.constant 1 : index
    %c11_412 = arith.constant 11 : index
    %888 = memref.load %arg2[%c1_411, %c11_412] : memref<9x32xf32, #tpu.memory_space<smem>>
    %889 = vector.broadcast %888 : f32 to vector<10x34xf32>
    %890 = arith.mulf %5, %889 : vector<10x34xf32>
    %891 = arith.addf %887, %890 : vector<10x34xf32>
    %c2_413 = arith.constant 2 : index
    %c11_414 = arith.constant 11 : index
    %892 = memref.load %arg2[%c2_413, %c11_414] : memref<9x32xf32, #tpu.memory_space<smem>>
    %893 = vector.broadcast %892 : f32 to vector<10x34xf32>
    %894 = arith.mulf %6, %893 : vector<10x34xf32>
    %895 = arith.addf %891, %894 : vector<10x34xf32>
    %c3_415 = arith.constant 3 : index
    %c11_416 = arith.constant 11 : index
    %896 = memref.load %arg2[%c3_415, %c11_416] : memref<9x32xf32, #tpu.memory_space<smem>>
    %897 = vector.broadcast %896 : f32 to vector<10x34xf32>
    %898 = arith.mulf %7, %897 : vector<10x34xf32>
    %899 = arith.addf %895, %898 : vector<10x34xf32>
    %c4_417 = arith.constant 4 : index
    %c11_418 = arith.constant 11 : index
    %900 = memref.load %arg2[%c4_417, %c11_418] : memref<9x32xf32, #tpu.memory_space<smem>>
    %901 = vector.broadcast %900 : f32 to vector<10x34xf32>
    %902 = arith.mulf %8, %901 : vector<10x34xf32>
    %903 = arith.addf %899, %902 : vector<10x34xf32>
    %c5_419 = arith.constant 5 : index
    %c11_420 = arith.constant 11 : index
    %904 = memref.load %arg2[%c5_419, %c11_420] : memref<9x32xf32, #tpu.memory_space<smem>>
    %905 = vector.broadcast %904 : f32 to vector<10x34xf32>
    %906 = arith.mulf %9, %905 : vector<10x34xf32>
    %907 = arith.addf %903, %906 : vector<10x34xf32>
    %c6_421 = arith.constant 6 : index
    %c11_422 = arith.constant 11 : index
    %908 = memref.load %arg2[%c6_421, %c11_422] : memref<9x32xf32, #tpu.memory_space<smem>>
    %909 = vector.broadcast %908 : f32 to vector<10x34xf32>
    %910 = arith.mulf %10, %909 : vector<10x34xf32>
    %911 = arith.addf %907, %910 : vector<10x34xf32>
    %c7_423 = arith.constant 7 : index
    %c11_424 = arith.constant 11 : index
    %912 = memref.load %arg2[%c7_423, %c11_424] : memref<9x32xf32, #tpu.memory_space<smem>>
    %913 = vector.broadcast %912 : f32 to vector<10x34xf32>
    %914 = arith.mulf %11, %913 : vector<10x34xf32>
    %915 = arith.addf %911, %914 : vector<10x34xf32>
    %c8_425 = arith.constant 8 : index
    %c11_426 = arith.constant 11 : index
    %916 = memref.load %arg2[%c8_425, %c11_426] : memref<9x32xf32, #tpu.memory_space<smem>>
    %917 = vector.broadcast %916 : f32 to vector<10x34xf32>
    %918 = arith.mulf %12, %917 : vector<10x34xf32>
    %919 = arith.addf %915, %918 : vector<10x34xf32>
    %c11_427 = arith.constant 11 : index
    %920 = memref.load %arg3[%c11_427] : memref<32xf32, #tpu.memory_space<smem>>
    %921 = vector.broadcast %920 : f32 to vector<10x34xf32>
    %922 = arith.addf %919, %921 : vector<10x34xf32>
    %cst_428 = arith.constant 0.000000e+00 : f32
    %923 = vector.broadcast %cst_428 : f32 to vector<10x34xf32>
    %924 = arith.maximumf %922, %923 : vector<10x34xf32>
    %925 = vector.extract_strided_slice %924 {offsets = [0, 0], sizes = [8, 34], strides = [1, 1]} : vector<10x34xf32> to vector<8x34xf32>
    %926 = vector.extract_strided_slice %924 {offsets = [1, 0], sizes = [8, 34], strides = [1, 1]} : vector<10x34xf32> to vector<8x34xf32>
    %927 = vector.extract_strided_slice %924 {offsets = [2, 0], sizes = [8, 34], strides = [1, 1]} : vector<10x34xf32> to vector<8x34xf32>
    %c0_429 = arith.constant 0 : index
    %c11_430 = arith.constant 11 : index
    %928 = memref.load %arg4[%c0_429, %c11_430] : memref<9x32xf32, #tpu.memory_space<smem>>
    %929 = vector.broadcast %928 : f32 to vector<8x34xf32>
    %930 = arith.mulf %925, %929 : vector<8x34xf32>
    %931 = arith.addf %860, %930 : vector<8x34xf32>
    %c3_431 = arith.constant 3 : index
    %c11_432 = arith.constant 11 : index
    %932 = memref.load %arg4[%c3_431, %c11_432] : memref<9x32xf32, #tpu.memory_space<smem>>
    %933 = vector.broadcast %932 : f32 to vector<8x34xf32>
    %934 = arith.mulf %926, %933 : vector<8x34xf32>
    %935 = arith.addf %931, %934 : vector<8x34xf32>
    %c6_433 = arith.constant 6 : index
    %c11_434 = arith.constant 11 : index
    %936 = memref.load %arg4[%c6_433, %c11_434] : memref<9x32xf32, #tpu.memory_space<smem>>
    %937 = vector.broadcast %936 : f32 to vector<8x34xf32>
    %938 = arith.mulf %927, %937 : vector<8x34xf32>
    %939 = arith.addf %935, %938 : vector<8x34xf32>
    %c1_435 = arith.constant 1 : index
    %c11_436 = arith.constant 11 : index
    %940 = memref.load %arg4[%c1_435, %c11_436] : memref<9x32xf32, #tpu.memory_space<smem>>
    %941 = vector.broadcast %940 : f32 to vector<8x34xf32>
    %942 = arith.mulf %925, %941 : vector<8x34xf32>
    %943 = arith.addf %872, %942 : vector<8x34xf32>
    %c4_437 = arith.constant 4 : index
    %c11_438 = arith.constant 11 : index
    %944 = memref.load %arg4[%c4_437, %c11_438] : memref<9x32xf32, #tpu.memory_space<smem>>
    %945 = vector.broadcast %944 : f32 to vector<8x34xf32>
    %946 = arith.mulf %926, %945 : vector<8x34xf32>
    %947 = arith.addf %943, %946 : vector<8x34xf32>
    %c7_439 = arith.constant 7 : index
    %c11_440 = arith.constant 11 : index
    %948 = memref.load %arg4[%c7_439, %c11_440] : memref<9x32xf32, #tpu.memory_space<smem>>
    %949 = vector.broadcast %948 : f32 to vector<8x34xf32>
    %950 = arith.mulf %927, %949 : vector<8x34xf32>
    %951 = arith.addf %947, %950 : vector<8x34xf32>
    %c2_441 = arith.constant 2 : index
    %c11_442 = arith.constant 11 : index
    %952 = memref.load %arg4[%c2_441, %c11_442] : memref<9x32xf32, #tpu.memory_space<smem>>
    %953 = vector.broadcast %952 : f32 to vector<8x34xf32>
    %954 = arith.mulf %925, %953 : vector<8x34xf32>
    %955 = arith.addf %884, %954 : vector<8x34xf32>
    %c5_443 = arith.constant 5 : index
    %c11_444 = arith.constant 11 : index
    %956 = memref.load %arg4[%c5_443, %c11_444] : memref<9x32xf32, #tpu.memory_space<smem>>
    %957 = vector.broadcast %956 : f32 to vector<8x34xf32>
    %958 = arith.mulf %926, %957 : vector<8x34xf32>
    %959 = arith.addf %955, %958 : vector<8x34xf32>
    %c8_445 = arith.constant 8 : index
    %c11_446 = arith.constant 11 : index
    %960 = memref.load %arg4[%c8_445, %c11_446] : memref<9x32xf32, #tpu.memory_space<smem>>
    %961 = vector.broadcast %960 : f32 to vector<8x34xf32>
    %962 = arith.mulf %927, %961 : vector<8x34xf32>
    %963 = arith.addf %959, %962 : vector<8x34xf32>
    %c0_447 = arith.constant 0 : index
    %c12 = arith.constant 12 : index
    %964 = memref.load %arg2[%c0_447, %c12] : memref<9x32xf32, #tpu.memory_space<smem>>
    %965 = vector.broadcast %964 : f32 to vector<10x34xf32>
    %966 = arith.mulf %4, %965 : vector<10x34xf32>
    %c1_448 = arith.constant 1 : index
    %c12_449 = arith.constant 12 : index
    %967 = memref.load %arg2[%c1_448, %c12_449] : memref<9x32xf32, #tpu.memory_space<smem>>
    %968 = vector.broadcast %967 : f32 to vector<10x34xf32>
    %969 = arith.mulf %5, %968 : vector<10x34xf32>
    %970 = arith.addf %966, %969 : vector<10x34xf32>
    %c2_450 = arith.constant 2 : index
    %c12_451 = arith.constant 12 : index
    %971 = memref.load %arg2[%c2_450, %c12_451] : memref<9x32xf32, #tpu.memory_space<smem>>
    %972 = vector.broadcast %971 : f32 to vector<10x34xf32>
    %973 = arith.mulf %6, %972 : vector<10x34xf32>
    %974 = arith.addf %970, %973 : vector<10x34xf32>
    %c3_452 = arith.constant 3 : index
    %c12_453 = arith.constant 12 : index
    %975 = memref.load %arg2[%c3_452, %c12_453] : memref<9x32xf32, #tpu.memory_space<smem>>
    %976 = vector.broadcast %975 : f32 to vector<10x34xf32>
    %977 = arith.mulf %7, %976 : vector<10x34xf32>
    %978 = arith.addf %974, %977 : vector<10x34xf32>
    %c4_454 = arith.constant 4 : index
    %c12_455 = arith.constant 12 : index
    %979 = memref.load %arg2[%c4_454, %c12_455] : memref<9x32xf32, #tpu.memory_space<smem>>
    %980 = vector.broadcast %979 : f32 to vector<10x34xf32>
    %981 = arith.mulf %8, %980 : vector<10x34xf32>
    %982 = arith.addf %978, %981 : vector<10x34xf32>
    %c5_456 = arith.constant 5 : index
    %c12_457 = arith.constant 12 : index
    %983 = memref.load %arg2[%c5_456, %c12_457] : memref<9x32xf32, #tpu.memory_space<smem>>
    %984 = vector.broadcast %983 : f32 to vector<10x34xf32>
    %985 = arith.mulf %9, %984 : vector<10x34xf32>
    %986 = arith.addf %982, %985 : vector<10x34xf32>
    %c6_458 = arith.constant 6 : index
    %c12_459 = arith.constant 12 : index
    %987 = memref.load %arg2[%c6_458, %c12_459] : memref<9x32xf32, #tpu.memory_space<smem>>
    %988 = vector.broadcast %987 : f32 to vector<10x34xf32>
    %989 = arith.mulf %10, %988 : vector<10x34xf32>
    %990 = arith.addf %986, %989 : vector<10x34xf32>
    %c7_460 = arith.constant 7 : index
    %c12_461 = arith.constant 12 : index
    %991 = memref.load %arg2[%c7_460, %c12_461] : memref<9x32xf32, #tpu.memory_space<smem>>
    %992 = vector.broadcast %991 : f32 to vector<10x34xf32>
    %993 = arith.mulf %11, %992 : vector<10x34xf32>
    %994 = arith.addf %990, %993 : vector<10x34xf32>
    %c8_462 = arith.constant 8 : index
    %c12_463 = arith.constant 12 : index
    %995 = memref.load %arg2[%c8_462, %c12_463] : memref<9x32xf32, #tpu.memory_space<smem>>
    %996 = vector.broadcast %995 : f32 to vector<10x34xf32>
    %997 = arith.mulf %12, %996 : vector<10x34xf32>
    %998 = arith.addf %994, %997 : vector<10x34xf32>
    %c12_464 = arith.constant 12 : index
    %999 = memref.load %arg3[%c12_464] : memref<32xf32, #tpu.memory_space<smem>>
    %1000 = vector.broadcast %999 : f32 to vector<10x34xf32>
    %1001 = arith.addf %998, %1000 : vector<10x34xf32>
    %cst_465 = arith.constant 0.000000e+00 : f32
    %1002 = vector.broadcast %cst_465 : f32 to vector<10x34xf32>
    %1003 = arith.maximumf %1001, %1002 : vector<10x34xf32>
    %1004 = vector.extract_strided_slice %1003 {offsets = [0, 0], sizes = [8, 34], strides = [1, 1]} : vector<10x34xf32> to vector<8x34xf32>
    %1005 = vector.extract_strided_slice %1003 {offsets = [1, 0], sizes = [8, 34], strides = [1, 1]} : vector<10x34xf32> to vector<8x34xf32>
    %1006 = vector.extract_strided_slice %1003 {offsets = [2, 0], sizes = [8, 34], strides = [1, 1]} : vector<10x34xf32> to vector<8x34xf32>
    %c0_466 = arith.constant 0 : index
    %c12_467 = arith.constant 12 : index
    %1007 = memref.load %arg4[%c0_466, %c12_467] : memref<9x32xf32, #tpu.memory_space<smem>>
    %1008 = vector.broadcast %1007 : f32 to vector<8x34xf32>
    %1009 = arith.mulf %1004, %1008 : vector<8x34xf32>
    %1010 = arith.addf %939, %1009 : vector<8x34xf32>
    %c3_468 = arith.constant 3 : index
    %c12_469 = arith.constant 12 : index
    %1011 = memref.load %arg4[%c3_468, %c12_469] : memref<9x32xf32, #tpu.memory_space<smem>>
    %1012 = vector.broadcast %1011 : f32 to vector<8x34xf32>
    %1013 = arith.mulf %1005, %1012 : vector<8x34xf32>
    %1014 = arith.addf %1010, %1013 : vector<8x34xf32>
    %c6_470 = arith.constant 6 : index
    %c12_471 = arith.constant 12 : index
    %1015 = memref.load %arg4[%c6_470, %c12_471] : memref<9x32xf32, #tpu.memory_space<smem>>
    %1016 = vector.broadcast %1015 : f32 to vector<8x34xf32>
    %1017 = arith.mulf %1006, %1016 : vector<8x34xf32>
    %1018 = arith.addf %1014, %1017 : vector<8x34xf32>
    %c1_472 = arith.constant 1 : index
    %c12_473 = arith.constant 12 : index
    %1019 = memref.load %arg4[%c1_472, %c12_473] : memref<9x32xf32, #tpu.memory_space<smem>>
    %1020 = vector.broadcast %1019 : f32 to vector<8x34xf32>
    %1021 = arith.mulf %1004, %1020 : vector<8x34xf32>
    %1022 = arith.addf %951, %1021 : vector<8x34xf32>
    %c4_474 = arith.constant 4 : index
    %c12_475 = arith.constant 12 : index
    %1023 = memref.load %arg4[%c4_474, %c12_475] : memref<9x32xf32, #tpu.memory_space<smem>>
    %1024 = vector.broadcast %1023 : f32 to vector<8x34xf32>
    %1025 = arith.mulf %1005, %1024 : vector<8x34xf32>
    %1026 = arith.addf %1022, %1025 : vector<8x34xf32>
    %c7_476 = arith.constant 7 : index
    %c12_477 = arith.constant 12 : index
    %1027 = memref.load %arg4[%c7_476, %c12_477] : memref<9x32xf32, #tpu.memory_space<smem>>
    %1028 = vector.broadcast %1027 : f32 to vector<8x34xf32>
    %1029 = arith.mulf %1006, %1028 : vector<8x34xf32>
    %1030 = arith.addf %1026, %1029 : vector<8x34xf32>
    %c2_478 = arith.constant 2 : index
    %c12_479 = arith.constant 12 : index
    %1031 = memref.load %arg4[%c2_478, %c12_479] : memref<9x32xf32, #tpu.memory_space<smem>>
    %1032 = vector.broadcast %1031 : f32 to vector<8x34xf32>
    %1033 = arith.mulf %1004, %1032 : vector<8x34xf32>
    %1034 = arith.addf %963, %1033 : vector<8x34xf32>
    %c5_480 = arith.constant 5 : index
    %c12_481 = arith.constant 12 : index
    %1035 = memref.load %arg4[%c5_480, %c12_481] : memref<9x32xf32, #tpu.memory_space<smem>>
    %1036 = vector.broadcast %1035 : f32 to vector<8x34xf32>
    %1037 = arith.mulf %1005, %1036 : vector<8x34xf32>
    %1038 = arith.addf %1034, %1037 : vector<8x34xf32>
    %c8_482 = arith.constant 8 : index
    %c12_483 = arith.constant 12 : index
    %1039 = memref.load %arg4[%c8_482, %c12_483] : memref<9x32xf32, #tpu.memory_space<smem>>
    %1040 = vector.broadcast %1039 : f32 to vector<8x34xf32>
    %1041 = arith.mulf %1006, %1040 : vector<8x34xf32>
    %1042 = arith.addf %1038, %1041 : vector<8x34xf32>
    %c0_484 = arith.constant 0 : index
    %c13 = arith.constant 13 : index
    %1043 = memref.load %arg2[%c0_484, %c13] : memref<9x32xf32, #tpu.memory_space<smem>>
    %1044 = vector.broadcast %1043 : f32 to vector<10x34xf32>
    %1045 = arith.mulf %4, %1044 : vector<10x34xf32>
    %c1_485 = arith.constant 1 : index
    %c13_486 = arith.constant 13 : index
    %1046 = memref.load %arg2[%c1_485, %c13_486] : memref<9x32xf32, #tpu.memory_space<smem>>
    %1047 = vector.broadcast %1046 : f32 to vector<10x34xf32>
    %1048 = arith.mulf %5, %1047 : vector<10x34xf32>
    %1049 = arith.addf %1045, %1048 : vector<10x34xf32>
    %c2_487 = arith.constant 2 : index
    %c13_488 = arith.constant 13 : index
    %1050 = memref.load %arg2[%c2_487, %c13_488] : memref<9x32xf32, #tpu.memory_space<smem>>
    %1051 = vector.broadcast %1050 : f32 to vector<10x34xf32>
    %1052 = arith.mulf %6, %1051 : vector<10x34xf32>
    %1053 = arith.addf %1049, %1052 : vector<10x34xf32>
    %c3_489 = arith.constant 3 : index
    %c13_490 = arith.constant 13 : index
    %1054 = memref.load %arg2[%c3_489, %c13_490] : memref<9x32xf32, #tpu.memory_space<smem>>
    %1055 = vector.broadcast %1054 : f32 to vector<10x34xf32>
    %1056 = arith.mulf %7, %1055 : vector<10x34xf32>
    %1057 = arith.addf %1053, %1056 : vector<10x34xf32>
    %c4_491 = arith.constant 4 : index
    %c13_492 = arith.constant 13 : index
    %1058 = memref.load %arg2[%c4_491, %c13_492] : memref<9x32xf32, #tpu.memory_space<smem>>
    %1059 = vector.broadcast %1058 : f32 to vector<10x34xf32>
    %1060 = arith.mulf %8, %1059 : vector<10x34xf32>
    %1061 = arith.addf %1057, %1060 : vector<10x34xf32>
    %c5_493 = arith.constant 5 : index
    %c13_494 = arith.constant 13 : index
    %1062 = memref.load %arg2[%c5_493, %c13_494] : memref<9x32xf32, #tpu.memory_space<smem>>
    %1063 = vector.broadcast %1062 : f32 to vector<10x34xf32>
    %1064 = arith.mulf %9, %1063 : vector<10x34xf32>
    %1065 = arith.addf %1061, %1064 : vector<10x34xf32>
    %c6_495 = arith.constant 6 : index
    %c13_496 = arith.constant 13 : index
    %1066 = memref.load %arg2[%c6_495, %c13_496] : memref<9x32xf32, #tpu.memory_space<smem>>
    %1067 = vector.broadcast %1066 : f32 to vector<10x34xf32>
    %1068 = arith.mulf %10, %1067 : vector<10x34xf32>
    %1069 = arith.addf %1065, %1068 : vector<10x34xf32>
    %c7_497 = arith.constant 7 : index
    %c13_498 = arith.constant 13 : index
    %1070 = memref.load %arg2[%c7_497, %c13_498] : memref<9x32xf32, #tpu.memory_space<smem>>
    %1071 = vector.broadcast %1070 : f32 to vector<10x34xf32>
    %1072 = arith.mulf %11, %1071 : vector<10x34xf32>
    %1073 = arith.addf %1069, %1072 : vector<10x34xf32>
    %c8_499 = arith.constant 8 : index
    %c13_500 = arith.constant 13 : index
    %1074 = memref.load %arg2[%c8_499, %c13_500] : memref<9x32xf32, #tpu.memory_space<smem>>
    %1075 = vector.broadcast %1074 : f32 to vector<10x34xf32>
    %1076 = arith.mulf %12, %1075 : vector<10x34xf32>
    %1077 = arith.addf %1073, %1076 : vector<10x34xf32>
    %c13_501 = arith.constant 13 : index
    %1078 = memref.load %arg3[%c13_501] : memref<32xf32, #tpu.memory_space<smem>>
    %1079 = vector.broadcast %1078 : f32 to vector<10x34xf32>
    %1080 = arith.addf %1077, %1079 : vector<10x34xf32>
    %cst_502 = arith.constant 0.000000e+00 : f32
    %1081 = vector.broadcast %cst_502 : f32 to vector<10x34xf32>
    %1082 = arith.maximumf %1080, %1081 : vector<10x34xf32>
    %1083 = vector.extract_strided_slice %1082 {offsets = [0, 0], sizes = [8, 34], strides = [1, 1]} : vector<10x34xf32> to vector<8x34xf32>
    %1084 = vector.extract_strided_slice %1082 {offsets = [1, 0], sizes = [8, 34], strides = [1, 1]} : vector<10x34xf32> to vector<8x34xf32>
    %1085 = vector.extract_strided_slice %1082 {offsets = [2, 0], sizes = [8, 34], strides = [1, 1]} : vector<10x34xf32> to vector<8x34xf32>
    %c0_503 = arith.constant 0 : index
    %c13_504 = arith.constant 13 : index
    %1086 = memref.load %arg4[%c0_503, %c13_504] : memref<9x32xf32, #tpu.memory_space<smem>>
    %1087 = vector.broadcast %1086 : f32 to vector<8x34xf32>
    %1088 = arith.mulf %1083, %1087 : vector<8x34xf32>
    %1089 = arith.addf %1018, %1088 : vector<8x34xf32>
    %c3_505 = arith.constant 3 : index
    %c13_506 = arith.constant 13 : index
    %1090 = memref.load %arg4[%c3_505, %c13_506] : memref<9x32xf32, #tpu.memory_space<smem>>
    %1091 = vector.broadcast %1090 : f32 to vector<8x34xf32>
    %1092 = arith.mulf %1084, %1091 : vector<8x34xf32>
    %1093 = arith.addf %1089, %1092 : vector<8x34xf32>
    %c6_507 = arith.constant 6 : index
    %c13_508 = arith.constant 13 : index
    %1094 = memref.load %arg4[%c6_507, %c13_508] : memref<9x32xf32, #tpu.memory_space<smem>>
    %1095 = vector.broadcast %1094 : f32 to vector<8x34xf32>
    %1096 = arith.mulf %1085, %1095 : vector<8x34xf32>
    %1097 = arith.addf %1093, %1096 : vector<8x34xf32>
    %c1_509 = arith.constant 1 : index
    %c13_510 = arith.constant 13 : index
    %1098 = memref.load %arg4[%c1_509, %c13_510] : memref<9x32xf32, #tpu.memory_space<smem>>
    %1099 = vector.broadcast %1098 : f32 to vector<8x34xf32>
    %1100 = arith.mulf %1083, %1099 : vector<8x34xf32>
    %1101 = arith.addf %1030, %1100 : vector<8x34xf32>
    %c4_511 = arith.constant 4 : index
    %c13_512 = arith.constant 13 : index
    %1102 = memref.load %arg4[%c4_511, %c13_512] : memref<9x32xf32, #tpu.memory_space<smem>>
    %1103 = vector.broadcast %1102 : f32 to vector<8x34xf32>
    %1104 = arith.mulf %1084, %1103 : vector<8x34xf32>
    %1105 = arith.addf %1101, %1104 : vector<8x34xf32>
    %c7_513 = arith.constant 7 : index
    %c13_514 = arith.constant 13 : index
    %1106 = memref.load %arg4[%c7_513, %c13_514] : memref<9x32xf32, #tpu.memory_space<smem>>
    %1107 = vector.broadcast %1106 : f32 to vector<8x34xf32>
    %1108 = arith.mulf %1085, %1107 : vector<8x34xf32>
    %1109 = arith.addf %1105, %1108 : vector<8x34xf32>
    %c2_515 = arith.constant 2 : index
    %c13_516 = arith.constant 13 : index
    %1110 = memref.load %arg4[%c2_515, %c13_516] : memref<9x32xf32, #tpu.memory_space<smem>>
    %1111 = vector.broadcast %1110 : f32 to vector<8x34xf32>
    %1112 = arith.mulf %1083, %1111 : vector<8x34xf32>
    %1113 = arith.addf %1042, %1112 : vector<8x34xf32>
    %c5_517 = arith.constant 5 : index
    %c13_518 = arith.constant 13 : index
    %1114 = memref.load %arg4[%c5_517, %c13_518] : memref<9x32xf32, #tpu.memory_space<smem>>
    %1115 = vector.broadcast %1114 : f32 to vector<8x34xf32>
    %1116 = arith.mulf %1084, %1115 : vector<8x34xf32>
    %1117 = arith.addf %1113, %1116 : vector<8x34xf32>
    %c8_519 = arith.constant 8 : index
    %c13_520 = arith.constant 13 : index
    %1118 = memref.load %arg4[%c8_519, %c13_520] : memref<9x32xf32, #tpu.memory_space<smem>>
    %1119 = vector.broadcast %1118 : f32 to vector<8x34xf32>
    %1120 = arith.mulf %1085, %1119 : vector<8x34xf32>
    %1121 = arith.addf %1117, %1120 : vector<8x34xf32>
    %c0_521 = arith.constant 0 : index
    %c14 = arith.constant 14 : index
    %1122 = memref.load %arg2[%c0_521, %c14] : memref<9x32xf32, #tpu.memory_space<smem>>
    %1123 = vector.broadcast %1122 : f32 to vector<10x34xf32>
    %1124 = arith.mulf %4, %1123 : vector<10x34xf32>
    %c1_522 = arith.constant 1 : index
    %c14_523 = arith.constant 14 : index
    %1125 = memref.load %arg2[%c1_522, %c14_523] : memref<9x32xf32, #tpu.memory_space<smem>>
    %1126 = vector.broadcast %1125 : f32 to vector<10x34xf32>
    %1127 = arith.mulf %5, %1126 : vector<10x34xf32>
    %1128 = arith.addf %1124, %1127 : vector<10x34xf32>
    %c2_524 = arith.constant 2 : index
    %c14_525 = arith.constant 14 : index
    %1129 = memref.load %arg2[%c2_524, %c14_525] : memref<9x32xf32, #tpu.memory_space<smem>>
    %1130 = vector.broadcast %1129 : f32 to vector<10x34xf32>
    %1131 = arith.mulf %6, %1130 : vector<10x34xf32>
    %1132 = arith.addf %1128, %1131 : vector<10x34xf32>
    %c3_526 = arith.constant 3 : index
    %c14_527 = arith.constant 14 : index
    %1133 = memref.load %arg2[%c3_526, %c14_527] : memref<9x32xf32, #tpu.memory_space<smem>>
    %1134 = vector.broadcast %1133 : f32 to vector<10x34xf32>
    %1135 = arith.mulf %7, %1134 : vector<10x34xf32>
    %1136 = arith.addf %1132, %1135 : vector<10x34xf32>
    %c4_528 = arith.constant 4 : index
    %c14_529 = arith.constant 14 : index
    %1137 = memref.load %arg2[%c4_528, %c14_529] : memref<9x32xf32, #tpu.memory_space<smem>>
    %1138 = vector.broadcast %1137 : f32 to vector<10x34xf32>
    %1139 = arith.mulf %8, %1138 : vector<10x34xf32>
    %1140 = arith.addf %1136, %1139 : vector<10x34xf32>
    %c5_530 = arith.constant 5 : index
    %c14_531 = arith.constant 14 : index
    %1141 = memref.load %arg2[%c5_530, %c14_531] : memref<9x32xf32, #tpu.memory_space<smem>>
    %1142 = vector.broadcast %1141 : f32 to vector<10x34xf32>
    %1143 = arith.mulf %9, %1142 : vector<10x34xf32>
    %1144 = arith.addf %1140, %1143 : vector<10x34xf32>
    %c6_532 = arith.constant 6 : index
    %c14_533 = arith.constant 14 : index
    %1145 = memref.load %arg2[%c6_532, %c14_533] : memref<9x32xf32, #tpu.memory_space<smem>>
    %1146 = vector.broadcast %1145 : f32 to vector<10x34xf32>
    %1147 = arith.mulf %10, %1146 : vector<10x34xf32>
    %1148 = arith.addf %1144, %1147 : vector<10x34xf32>
    %c7_534 = arith.constant 7 : index
    %c14_535 = arith.constant 14 : index
    %1149 = memref.load %arg2[%c7_534, %c14_535] : memref<9x32xf32, #tpu.memory_space<smem>>
    %1150 = vector.broadcast %1149 : f32 to vector<10x34xf32>
    %1151 = arith.mulf %11, %1150 : vector<10x34xf32>
    %1152 = arith.addf %1148, %1151 : vector<10x34xf32>
    %c8_536 = arith.constant 8 : index
    %c14_537 = arith.constant 14 : index
    %1153 = memref.load %arg2[%c8_536, %c14_537] : memref<9x32xf32, #tpu.memory_space<smem>>
    %1154 = vector.broadcast %1153 : f32 to vector<10x34xf32>
    %1155 = arith.mulf %12, %1154 : vector<10x34xf32>
    %1156 = arith.addf %1152, %1155 : vector<10x34xf32>
    %c14_538 = arith.constant 14 : index
    %1157 = memref.load %arg3[%c14_538] : memref<32xf32, #tpu.memory_space<smem>>
    %1158 = vector.broadcast %1157 : f32 to vector<10x34xf32>
    %1159 = arith.addf %1156, %1158 : vector<10x34xf32>
    %cst_539 = arith.constant 0.000000e+00 : f32
    %1160 = vector.broadcast %cst_539 : f32 to vector<10x34xf32>
    %1161 = arith.maximumf %1159, %1160 : vector<10x34xf32>
    %1162 = vector.extract_strided_slice %1161 {offsets = [0, 0], sizes = [8, 34], strides = [1, 1]} : vector<10x34xf32> to vector<8x34xf32>
    %1163 = vector.extract_strided_slice %1161 {offsets = [1, 0], sizes = [8, 34], strides = [1, 1]} : vector<10x34xf32> to vector<8x34xf32>
    %1164 = vector.extract_strided_slice %1161 {offsets = [2, 0], sizes = [8, 34], strides = [1, 1]} : vector<10x34xf32> to vector<8x34xf32>
    %c0_540 = arith.constant 0 : index
    %c14_541 = arith.constant 14 : index
    %1165 = memref.load %arg4[%c0_540, %c14_541] : memref<9x32xf32, #tpu.memory_space<smem>>
    %1166 = vector.broadcast %1165 : f32 to vector<8x34xf32>
    %1167 = arith.mulf %1162, %1166 : vector<8x34xf32>
    %1168 = arith.addf %1097, %1167 : vector<8x34xf32>
    %c3_542 = arith.constant 3 : index
    %c14_543 = arith.constant 14 : index
    %1169 = memref.load %arg4[%c3_542, %c14_543] : memref<9x32xf32, #tpu.memory_space<smem>>
    %1170 = vector.broadcast %1169 : f32 to vector<8x34xf32>
    %1171 = arith.mulf %1163, %1170 : vector<8x34xf32>
    %1172 = arith.addf %1168, %1171 : vector<8x34xf32>
    %c6_544 = arith.constant 6 : index
    %c14_545 = arith.constant 14 : index
    %1173 = memref.load %arg4[%c6_544, %c14_545] : memref<9x32xf32, #tpu.memory_space<smem>>
    %1174 = vector.broadcast %1173 : f32 to vector<8x34xf32>
    %1175 = arith.mulf %1164, %1174 : vector<8x34xf32>
    %1176 = arith.addf %1172, %1175 : vector<8x34xf32>
    %c1_546 = arith.constant 1 : index
    %c14_547 = arith.constant 14 : index
    %1177 = memref.load %arg4[%c1_546, %c14_547] : memref<9x32xf32, #tpu.memory_space<smem>>
    %1178 = vector.broadcast %1177 : f32 to vector<8x34xf32>
    %1179 = arith.mulf %1162, %1178 : vector<8x34xf32>
    %1180 = arith.addf %1109, %1179 : vector<8x34xf32>
    %c4_548 = arith.constant 4 : index
    %c14_549 = arith.constant 14 : index
    %1181 = memref.load %arg4[%c4_548, %c14_549] : memref<9x32xf32, #tpu.memory_space<smem>>
    %1182 = vector.broadcast %1181 : f32 to vector<8x34xf32>
    %1183 = arith.mulf %1163, %1182 : vector<8x34xf32>
    %1184 = arith.addf %1180, %1183 : vector<8x34xf32>
    %c7_550 = arith.constant 7 : index
    %c14_551 = arith.constant 14 : index
    %1185 = memref.load %arg4[%c7_550, %c14_551] : memref<9x32xf32, #tpu.memory_space<smem>>
    %1186 = vector.broadcast %1185 : f32 to vector<8x34xf32>
    %1187 = arith.mulf %1164, %1186 : vector<8x34xf32>
    %1188 = arith.addf %1184, %1187 : vector<8x34xf32>
    %c2_552 = arith.constant 2 : index
    %c14_553 = arith.constant 14 : index
    %1189 = memref.load %arg4[%c2_552, %c14_553] : memref<9x32xf32, #tpu.memory_space<smem>>
    %1190 = vector.broadcast %1189 : f32 to vector<8x34xf32>
    %1191 = arith.mulf %1162, %1190 : vector<8x34xf32>
    %1192 = arith.addf %1121, %1191 : vector<8x34xf32>
    %c5_554 = arith.constant 5 : index
    %c14_555 = arith.constant 14 : index
    %1193 = memref.load %arg4[%c5_554, %c14_555] : memref<9x32xf32, #tpu.memory_space<smem>>
    %1194 = vector.broadcast %1193 : f32 to vector<8x34xf32>
    %1195 = arith.mulf %1163, %1194 : vector<8x34xf32>
    %1196 = arith.addf %1192, %1195 : vector<8x34xf32>
    %c8_556 = arith.constant 8 : index
    %c14_557 = arith.constant 14 : index
    %1197 = memref.load %arg4[%c8_556, %c14_557] : memref<9x32xf32, #tpu.memory_space<smem>>
    %1198 = vector.broadcast %1197 : f32 to vector<8x34xf32>
    %1199 = arith.mulf %1164, %1198 : vector<8x34xf32>
    %1200 = arith.addf %1196, %1199 : vector<8x34xf32>
    %c0_558 = arith.constant 0 : index
    %c15 = arith.constant 15 : index
    %1201 = memref.load %arg2[%c0_558, %c15] : memref<9x32xf32, #tpu.memory_space<smem>>
    %1202 = vector.broadcast %1201 : f32 to vector<10x34xf32>
    %1203 = arith.mulf %4, %1202 : vector<10x34xf32>
    %c1_559 = arith.constant 1 : index
    %c15_560 = arith.constant 15 : index
    %1204 = memref.load %arg2[%c1_559, %c15_560] : memref<9x32xf32, #tpu.memory_space<smem>>
    %1205 = vector.broadcast %1204 : f32 to vector<10x34xf32>
    %1206 = arith.mulf %5, %1205 : vector<10x34xf32>
    %1207 = arith.addf %1203, %1206 : vector<10x34xf32>
    %c2_561 = arith.constant 2 : index
    %c15_562 = arith.constant 15 : index
    %1208 = memref.load %arg2[%c2_561, %c15_562] : memref<9x32xf32, #tpu.memory_space<smem>>
    %1209 = vector.broadcast %1208 : f32 to vector<10x34xf32>
    %1210 = arith.mulf %6, %1209 : vector<10x34xf32>
    %1211 = arith.addf %1207, %1210 : vector<10x34xf32>
    %c3_563 = arith.constant 3 : index
    %c15_564 = arith.constant 15 : index
    %1212 = memref.load %arg2[%c3_563, %c15_564] : memref<9x32xf32, #tpu.memory_space<smem>>
    %1213 = vector.broadcast %1212 : f32 to vector<10x34xf32>
    %1214 = arith.mulf %7, %1213 : vector<10x34xf32>
    %1215 = arith.addf %1211, %1214 : vector<10x34xf32>
    %c4_565 = arith.constant 4 : index
    %c15_566 = arith.constant 15 : index
    %1216 = memref.load %arg2[%c4_565, %c15_566] : memref<9x32xf32, #tpu.memory_space<smem>>
    %1217 = vector.broadcast %1216 : f32 to vector<10x34xf32>
    %1218 = arith.mulf %8, %1217 : vector<10x34xf32>
    %1219 = arith.addf %1215, %1218 : vector<10x34xf32>
    %c5_567 = arith.constant 5 : index
    %c15_568 = arith.constant 15 : index
    %1220 = memref.load %arg2[%c5_567, %c15_568] : memref<9x32xf32, #tpu.memory_space<smem>>
    %1221 = vector.broadcast %1220 : f32 to vector<10x34xf32>
    %1222 = arith.mulf %9, %1221 : vector<10x34xf32>
    %1223 = arith.addf %1219, %1222 : vector<10x34xf32>
    %c6_569 = arith.constant 6 : index
    %c15_570 = arith.constant 15 : index
    %1224 = memref.load %arg2[%c6_569, %c15_570] : memref<9x32xf32, #tpu.memory_space<smem>>
    %1225 = vector.broadcast %1224 : f32 to vector<10x34xf32>
    %1226 = arith.mulf %10, %1225 : vector<10x34xf32>
    %1227 = arith.addf %1223, %1226 : vector<10x34xf32>
    %c7_571 = arith.constant 7 : index
    %c15_572 = arith.constant 15 : index
    %1228 = memref.load %arg2[%c7_571, %c15_572] : memref<9x32xf32, #tpu.memory_space<smem>>
    %1229 = vector.broadcast %1228 : f32 to vector<10x34xf32>
    %1230 = arith.mulf %11, %1229 : vector<10x34xf32>
    %1231 = arith.addf %1227, %1230 : vector<10x34xf32>
    %c8_573 = arith.constant 8 : index
    %c15_574 = arith.constant 15 : index
    %1232 = memref.load %arg2[%c8_573, %c15_574] : memref<9x32xf32, #tpu.memory_space<smem>>
    %1233 = vector.broadcast %1232 : f32 to vector<10x34xf32>
    %1234 = arith.mulf %12, %1233 : vector<10x34xf32>
    %1235 = arith.addf %1231, %1234 : vector<10x34xf32>
    %c15_575 = arith.constant 15 : index
    %1236 = memref.load %arg3[%c15_575] : memref<32xf32, #tpu.memory_space<smem>>
    %1237 = vector.broadcast %1236 : f32 to vector<10x34xf32>
    %1238 = arith.addf %1235, %1237 : vector<10x34xf32>
    %cst_576 = arith.constant 0.000000e+00 : f32
    %1239 = vector.broadcast %cst_576 : f32 to vector<10x34xf32>
    %1240 = arith.maximumf %1238, %1239 : vector<10x34xf32>
    %1241 = vector.extract_strided_slice %1240 {offsets = [0, 0], sizes = [8, 34], strides = [1, 1]} : vector<10x34xf32> to vector<8x34xf32>
    %1242 = vector.extract_strided_slice %1240 {offsets = [1, 0], sizes = [8, 34], strides = [1, 1]} : vector<10x34xf32> to vector<8x34xf32>
    %1243 = vector.extract_strided_slice %1240 {offsets = [2, 0], sizes = [8, 34], strides = [1, 1]} : vector<10x34xf32> to vector<8x34xf32>
    %c0_577 = arith.constant 0 : index
    %c15_578 = arith.constant 15 : index
    %1244 = memref.load %arg4[%c0_577, %c15_578] : memref<9x32xf32, #tpu.memory_space<smem>>
    %1245 = vector.broadcast %1244 : f32 to vector<8x34xf32>
    %1246 = arith.mulf %1241, %1245 : vector<8x34xf32>
    %1247 = arith.addf %1176, %1246 : vector<8x34xf32>
    %c3_579 = arith.constant 3 : index
    %c15_580 = arith.constant 15 : index
    %1248 = memref.load %arg4[%c3_579, %c15_580] : memref<9x32xf32, #tpu.memory_space<smem>>
    %1249 = vector.broadcast %1248 : f32 to vector<8x34xf32>
    %1250 = arith.mulf %1242, %1249 : vector<8x34xf32>
    %1251 = arith.addf %1247, %1250 : vector<8x34xf32>
    %c6_581 = arith.constant 6 : index
    %c15_582 = arith.constant 15 : index
    %1252 = memref.load %arg4[%c6_581, %c15_582] : memref<9x32xf32, #tpu.memory_space<smem>>
    %1253 = vector.broadcast %1252 : f32 to vector<8x34xf32>
    %1254 = arith.mulf %1243, %1253 : vector<8x34xf32>
    %1255 = arith.addf %1251, %1254 : vector<8x34xf32>
    %c1_583 = arith.constant 1 : index
    %c15_584 = arith.constant 15 : index
    %1256 = memref.load %arg4[%c1_583, %c15_584] : memref<9x32xf32, #tpu.memory_space<smem>>
    %1257 = vector.broadcast %1256 : f32 to vector<8x34xf32>
    %1258 = arith.mulf %1241, %1257 : vector<8x34xf32>
    %1259 = arith.addf %1188, %1258 : vector<8x34xf32>
    %c4_585 = arith.constant 4 : index
    %c15_586 = arith.constant 15 : index
    %1260 = memref.load %arg4[%c4_585, %c15_586] : memref<9x32xf32, #tpu.memory_space<smem>>
    %1261 = vector.broadcast %1260 : f32 to vector<8x34xf32>
    %1262 = arith.mulf %1242, %1261 : vector<8x34xf32>
    %1263 = arith.addf %1259, %1262 : vector<8x34xf32>
    %c7_587 = arith.constant 7 : index
    %c15_588 = arith.constant 15 : index
    %1264 = memref.load %arg4[%c7_587, %c15_588] : memref<9x32xf32, #tpu.memory_space<smem>>
    %1265 = vector.broadcast %1264 : f32 to vector<8x34xf32>
    %1266 = arith.mulf %1243, %1265 : vector<8x34xf32>
    %1267 = arith.addf %1263, %1266 : vector<8x34xf32>
    %c2_589 = arith.constant 2 : index
    %c15_590 = arith.constant 15 : index
    %1268 = memref.load %arg4[%c2_589, %c15_590] : memref<9x32xf32, #tpu.memory_space<smem>>
    %1269 = vector.broadcast %1268 : f32 to vector<8x34xf32>
    %1270 = arith.mulf %1241, %1269 : vector<8x34xf32>
    %1271 = arith.addf %1200, %1270 : vector<8x34xf32>
    %c5_591 = arith.constant 5 : index
    %c15_592 = arith.constant 15 : index
    %1272 = memref.load %arg4[%c5_591, %c15_592] : memref<9x32xf32, #tpu.memory_space<smem>>
    %1273 = vector.broadcast %1272 : f32 to vector<8x34xf32>
    %1274 = arith.mulf %1242, %1273 : vector<8x34xf32>
    %1275 = arith.addf %1271, %1274 : vector<8x34xf32>
    %c8_593 = arith.constant 8 : index
    %c15_594 = arith.constant 15 : index
    %1276 = memref.load %arg4[%c8_593, %c15_594] : memref<9x32xf32, #tpu.memory_space<smem>>
    %1277 = vector.broadcast %1276 : f32 to vector<8x34xf32>
    %1278 = arith.mulf %1243, %1277 : vector<8x34xf32>
    %1279 = arith.addf %1275, %1278 : vector<8x34xf32>
    %c0_595 = arith.constant 0 : index
    %c16 = arith.constant 16 : index
    %1280 = memref.load %arg2[%c0_595, %c16] : memref<9x32xf32, #tpu.memory_space<smem>>
    %1281 = vector.broadcast %1280 : f32 to vector<10x34xf32>
    %1282 = arith.mulf %4, %1281 : vector<10x34xf32>
    %c1_596 = arith.constant 1 : index
    %c16_597 = arith.constant 16 : index
    %1283 = memref.load %arg2[%c1_596, %c16_597] : memref<9x32xf32, #tpu.memory_space<smem>>
    %1284 = vector.broadcast %1283 : f32 to vector<10x34xf32>
    %1285 = arith.mulf %5, %1284 : vector<10x34xf32>
    %1286 = arith.addf %1282, %1285 : vector<10x34xf32>
    %c2_598 = arith.constant 2 : index
    %c16_599 = arith.constant 16 : index
    %1287 = memref.load %arg2[%c2_598, %c16_599] : memref<9x32xf32, #tpu.memory_space<smem>>
    %1288 = vector.broadcast %1287 : f32 to vector<10x34xf32>
    %1289 = arith.mulf %6, %1288 : vector<10x34xf32>
    %1290 = arith.addf %1286, %1289 : vector<10x34xf32>
    %c3_600 = arith.constant 3 : index
    %c16_601 = arith.constant 16 : index
    %1291 = memref.load %arg2[%c3_600, %c16_601] : memref<9x32xf32, #tpu.memory_space<smem>>
    %1292 = vector.broadcast %1291 : f32 to vector<10x34xf32>
    %1293 = arith.mulf %7, %1292 : vector<10x34xf32>
    %1294 = arith.addf %1290, %1293 : vector<10x34xf32>
    %c4_602 = arith.constant 4 : index
    %c16_603 = arith.constant 16 : index
    %1295 = memref.load %arg2[%c4_602, %c16_603] : memref<9x32xf32, #tpu.memory_space<smem>>
    %1296 = vector.broadcast %1295 : f32 to vector<10x34xf32>
    %1297 = arith.mulf %8, %1296 : vector<10x34xf32>
    %1298 = arith.addf %1294, %1297 : vector<10x34xf32>
    %c5_604 = arith.constant 5 : index
    %c16_605 = arith.constant 16 : index
    %1299 = memref.load %arg2[%c5_604, %c16_605] : memref<9x32xf32, #tpu.memory_space<smem>>
    %1300 = vector.broadcast %1299 : f32 to vector<10x34xf32>
    %1301 = arith.mulf %9, %1300 : vector<10x34xf32>
    %1302 = arith.addf %1298, %1301 : vector<10x34xf32>
    %c6_606 = arith.constant 6 : index
    %c16_607 = arith.constant 16 : index
    %1303 = memref.load %arg2[%c6_606, %c16_607] : memref<9x32xf32, #tpu.memory_space<smem>>
    %1304 = vector.broadcast %1303 : f32 to vector<10x34xf32>
    %1305 = arith.mulf %10, %1304 : vector<10x34xf32>
    %1306 = arith.addf %1302, %1305 : vector<10x34xf32>
    %c7_608 = arith.constant 7 : index
    %c16_609 = arith.constant 16 : index
    %1307 = memref.load %arg2[%c7_608, %c16_609] : memref<9x32xf32, #tpu.memory_space<smem>>
    %1308 = vector.broadcast %1307 : f32 to vector<10x34xf32>
    %1309 = arith.mulf %11, %1308 : vector<10x34xf32>
    %1310 = arith.addf %1306, %1309 : vector<10x34xf32>
    %c8_610 = arith.constant 8 : index
    %c16_611 = arith.constant 16 : index
    %1311 = memref.load %arg2[%c8_610, %c16_611] : memref<9x32xf32, #tpu.memory_space<smem>>
    %1312 = vector.broadcast %1311 : f32 to vector<10x34xf32>
    %1313 = arith.mulf %12, %1312 : vector<10x34xf32>
    %1314 = arith.addf %1310, %1313 : vector<10x34xf32>
    %c16_612 = arith.constant 16 : index
    %1315 = memref.load %arg3[%c16_612] : memref<32xf32, #tpu.memory_space<smem>>
    %1316 = vector.broadcast %1315 : f32 to vector<10x34xf32>
    %1317 = arith.addf %1314, %1316 : vector<10x34xf32>
    %cst_613 = arith.constant 0.000000e+00 : f32
    %1318 = vector.broadcast %cst_613 : f32 to vector<10x34xf32>
    %1319 = arith.maximumf %1317, %1318 : vector<10x34xf32>
    %1320 = vector.extract_strided_slice %1319 {offsets = [0, 0], sizes = [8, 34], strides = [1, 1]} : vector<10x34xf32> to vector<8x34xf32>
    %1321 = vector.extract_strided_slice %1319 {offsets = [1, 0], sizes = [8, 34], strides = [1, 1]} : vector<10x34xf32> to vector<8x34xf32>
    %1322 = vector.extract_strided_slice %1319 {offsets = [2, 0], sizes = [8, 34], strides = [1, 1]} : vector<10x34xf32> to vector<8x34xf32>
    %c0_614 = arith.constant 0 : index
    %c16_615 = arith.constant 16 : index
    %1323 = memref.load %arg4[%c0_614, %c16_615] : memref<9x32xf32, #tpu.memory_space<smem>>
    %1324 = vector.broadcast %1323 : f32 to vector<8x34xf32>
    %1325 = arith.mulf %1320, %1324 : vector<8x34xf32>
    %1326 = arith.addf %1255, %1325 : vector<8x34xf32>
    %c3_616 = arith.constant 3 : index
    %c16_617 = arith.constant 16 : index
    %1327 = memref.load %arg4[%c3_616, %c16_617] : memref<9x32xf32, #tpu.memory_space<smem>>
    %1328 = vector.broadcast %1327 : f32 to vector<8x34xf32>
    %1329 = arith.mulf %1321, %1328 : vector<8x34xf32>
    %1330 = arith.addf %1326, %1329 : vector<8x34xf32>
    %c6_618 = arith.constant 6 : index
    %c16_619 = arith.constant 16 : index
    %1331 = memref.load %arg4[%c6_618, %c16_619] : memref<9x32xf32, #tpu.memory_space<smem>>
    %1332 = vector.broadcast %1331 : f32 to vector<8x34xf32>
    %1333 = arith.mulf %1322, %1332 : vector<8x34xf32>
    %1334 = arith.addf %1330, %1333 : vector<8x34xf32>
    %c1_620 = arith.constant 1 : index
    %c16_621 = arith.constant 16 : index
    %1335 = memref.load %arg4[%c1_620, %c16_621] : memref<9x32xf32, #tpu.memory_space<smem>>
    %1336 = vector.broadcast %1335 : f32 to vector<8x34xf32>
    %1337 = arith.mulf %1320, %1336 : vector<8x34xf32>
    %1338 = arith.addf %1267, %1337 : vector<8x34xf32>
    %c4_622 = arith.constant 4 : index
    %c16_623 = arith.constant 16 : index
    %1339 = memref.load %arg4[%c4_622, %c16_623] : memref<9x32xf32, #tpu.memory_space<smem>>
    %1340 = vector.broadcast %1339 : f32 to vector<8x34xf32>
    %1341 = arith.mulf %1321, %1340 : vector<8x34xf32>
    %1342 = arith.addf %1338, %1341 : vector<8x34xf32>
    %c7_624 = arith.constant 7 : index
    %c16_625 = arith.constant 16 : index
    %1343 = memref.load %arg4[%c7_624, %c16_625] : memref<9x32xf32, #tpu.memory_space<smem>>
    %1344 = vector.broadcast %1343 : f32 to vector<8x34xf32>
    %1345 = arith.mulf %1322, %1344 : vector<8x34xf32>
    %1346 = arith.addf %1342, %1345 : vector<8x34xf32>
    %c2_626 = arith.constant 2 : index
    %c16_627 = arith.constant 16 : index
    %1347 = memref.load %arg4[%c2_626, %c16_627] : memref<9x32xf32, #tpu.memory_space<smem>>
    %1348 = vector.broadcast %1347 : f32 to vector<8x34xf32>
    %1349 = arith.mulf %1320, %1348 : vector<8x34xf32>
    %1350 = arith.addf %1279, %1349 : vector<8x34xf32>
    %c5_628 = arith.constant 5 : index
    %c16_629 = arith.constant 16 : index
    %1351 = memref.load %arg4[%c5_628, %c16_629] : memref<9x32xf32, #tpu.memory_space<smem>>
    %1352 = vector.broadcast %1351 : f32 to vector<8x34xf32>
    %1353 = arith.mulf %1321, %1352 : vector<8x34xf32>
    %1354 = arith.addf %1350, %1353 : vector<8x34xf32>
    %c8_630 = arith.constant 8 : index
    %c16_631 = arith.constant 16 : index
    %1355 = memref.load %arg4[%c8_630, %c16_631] : memref<9x32xf32, #tpu.memory_space<smem>>
    %1356 = vector.broadcast %1355 : f32 to vector<8x34xf32>
    %1357 = arith.mulf %1322, %1356 : vector<8x34xf32>
    %1358 = arith.addf %1354, %1357 : vector<8x34xf32>
    %c0_632 = arith.constant 0 : index
    %c17 = arith.constant 17 : index
    %1359 = memref.load %arg2[%c0_632, %c17] : memref<9x32xf32, #tpu.memory_space<smem>>
    %1360 = vector.broadcast %1359 : f32 to vector<10x34xf32>
    %1361 = arith.mulf %4, %1360 : vector<10x34xf32>
    %c1_633 = arith.constant 1 : index
    %c17_634 = arith.constant 17 : index
    %1362 = memref.load %arg2[%c1_633, %c17_634] : memref<9x32xf32, #tpu.memory_space<smem>>
    %1363 = vector.broadcast %1362 : f32 to vector<10x34xf32>
    %1364 = arith.mulf %5, %1363 : vector<10x34xf32>
    %1365 = arith.addf %1361, %1364 : vector<10x34xf32>
    %c2_635 = arith.constant 2 : index
    %c17_636 = arith.constant 17 : index
    %1366 = memref.load %arg2[%c2_635, %c17_636] : memref<9x32xf32, #tpu.memory_space<smem>>
    %1367 = vector.broadcast %1366 : f32 to vector<10x34xf32>
    %1368 = arith.mulf %6, %1367 : vector<10x34xf32>
    %1369 = arith.addf %1365, %1368 : vector<10x34xf32>
    %c3_637 = arith.constant 3 : index
    %c17_638 = arith.constant 17 : index
    %1370 = memref.load %arg2[%c3_637, %c17_638] : memref<9x32xf32, #tpu.memory_space<smem>>
    %1371 = vector.broadcast %1370 : f32 to vector<10x34xf32>
    %1372 = arith.mulf %7, %1371 : vector<10x34xf32>
    %1373 = arith.addf %1369, %1372 : vector<10x34xf32>
    %c4_639 = arith.constant 4 : index
    %c17_640 = arith.constant 17 : index
    %1374 = memref.load %arg2[%c4_639, %c17_640] : memref<9x32xf32, #tpu.memory_space<smem>>
    %1375 = vector.broadcast %1374 : f32 to vector<10x34xf32>
    %1376 = arith.mulf %8, %1375 : vector<10x34xf32>
    %1377 = arith.addf %1373, %1376 : vector<10x34xf32>
    %c5_641 = arith.constant 5 : index
    %c17_642 = arith.constant 17 : index
    %1378 = memref.load %arg2[%c5_641, %c17_642] : memref<9x32xf32, #tpu.memory_space<smem>>
    %1379 = vector.broadcast %1378 : f32 to vector<10x34xf32>
    %1380 = arith.mulf %9, %1379 : vector<10x34xf32>
    %1381 = arith.addf %1377, %1380 : vector<10x34xf32>
    %c6_643 = arith.constant 6 : index
    %c17_644 = arith.constant 17 : index
    %1382 = memref.load %arg2[%c6_643, %c17_644] : memref<9x32xf32, #tpu.memory_space<smem>>
    %1383 = vector.broadcast %1382 : f32 to vector<10x34xf32>
    %1384 = arith.mulf %10, %1383 : vector<10x34xf32>
    %1385 = arith.addf %1381, %1384 : vector<10x34xf32>
    %c7_645 = arith.constant 7 : index
    %c17_646 = arith.constant 17 : index
    %1386 = memref.load %arg2[%c7_645, %c17_646] : memref<9x32xf32, #tpu.memory_space<smem>>
    %1387 = vector.broadcast %1386 : f32 to vector<10x34xf32>
    %1388 = arith.mulf %11, %1387 : vector<10x34xf32>
    %1389 = arith.addf %1385, %1388 : vector<10x34xf32>
    %c8_647 = arith.constant 8 : index
    %c17_648 = arith.constant 17 : index
    %1390 = memref.load %arg2[%c8_647, %c17_648] : memref<9x32xf32, #tpu.memory_space<smem>>
    %1391 = vector.broadcast %1390 : f32 to vector<10x34xf32>
    %1392 = arith.mulf %12, %1391 : vector<10x34xf32>
    %1393 = arith.addf %1389, %1392 : vector<10x34xf32>
    %c17_649 = arith.constant 17 : index
    %1394 = memref.load %arg3[%c17_649] : memref<32xf32, #tpu.memory_space<smem>>
    %1395 = vector.broadcast %1394 : f32 to vector<10x34xf32>
    %1396 = arith.addf %1393, %1395 : vector<10x34xf32>
    %cst_650 = arith.constant 0.000000e+00 : f32
    %1397 = vector.broadcast %cst_650 : f32 to vector<10x34xf32>
    %1398 = arith.maximumf %1396, %1397 : vector<10x34xf32>
    %1399 = vector.extract_strided_slice %1398 {offsets = [0, 0], sizes = [8, 34], strides = [1, 1]} : vector<10x34xf32> to vector<8x34xf32>
    %1400 = vector.extract_strided_slice %1398 {offsets = [1, 0], sizes = [8, 34], strides = [1, 1]} : vector<10x34xf32> to vector<8x34xf32>
    %1401 = vector.extract_strided_slice %1398 {offsets = [2, 0], sizes = [8, 34], strides = [1, 1]} : vector<10x34xf32> to vector<8x34xf32>
    %c0_651 = arith.constant 0 : index
    %c17_652 = arith.constant 17 : index
    %1402 = memref.load %arg4[%c0_651, %c17_652] : memref<9x32xf32, #tpu.memory_space<smem>>
    %1403 = vector.broadcast %1402 : f32 to vector<8x34xf32>
    %1404 = arith.mulf %1399, %1403 : vector<8x34xf32>
    %1405 = arith.addf %1334, %1404 : vector<8x34xf32>
    %c3_653 = arith.constant 3 : index
    %c17_654 = arith.constant 17 : index
    %1406 = memref.load %arg4[%c3_653, %c17_654] : memref<9x32xf32, #tpu.memory_space<smem>>
    %1407 = vector.broadcast %1406 : f32 to vector<8x34xf32>
    %1408 = arith.mulf %1400, %1407 : vector<8x34xf32>
    %1409 = arith.addf %1405, %1408 : vector<8x34xf32>
    %c6_655 = arith.constant 6 : index
    %c17_656 = arith.constant 17 : index
    %1410 = memref.load %arg4[%c6_655, %c17_656] : memref<9x32xf32, #tpu.memory_space<smem>>
    %1411 = vector.broadcast %1410 : f32 to vector<8x34xf32>
    %1412 = arith.mulf %1401, %1411 : vector<8x34xf32>
    %1413 = arith.addf %1409, %1412 : vector<8x34xf32>
    %c1_657 = arith.constant 1 : index
    %c17_658 = arith.constant 17 : index
    %1414 = memref.load %arg4[%c1_657, %c17_658] : memref<9x32xf32, #tpu.memory_space<smem>>
    %1415 = vector.broadcast %1414 : f32 to vector<8x34xf32>
    %1416 = arith.mulf %1399, %1415 : vector<8x34xf32>
    %1417 = arith.addf %1346, %1416 : vector<8x34xf32>
    %c4_659 = arith.constant 4 : index
    %c17_660 = arith.constant 17 : index
    %1418 = memref.load %arg4[%c4_659, %c17_660] : memref<9x32xf32, #tpu.memory_space<smem>>
    %1419 = vector.broadcast %1418 : f32 to vector<8x34xf32>
    %1420 = arith.mulf %1400, %1419 : vector<8x34xf32>
    %1421 = arith.addf %1417, %1420 : vector<8x34xf32>
    %c7_661 = arith.constant 7 : index
    %c17_662 = arith.constant 17 : index
    %1422 = memref.load %arg4[%c7_661, %c17_662] : memref<9x32xf32, #tpu.memory_space<smem>>
    %1423 = vector.broadcast %1422 : f32 to vector<8x34xf32>
    %1424 = arith.mulf %1401, %1423 : vector<8x34xf32>
    %1425 = arith.addf %1421, %1424 : vector<8x34xf32>
    %c2_663 = arith.constant 2 : index
    %c17_664 = arith.constant 17 : index
    %1426 = memref.load %arg4[%c2_663, %c17_664] : memref<9x32xf32, #tpu.memory_space<smem>>
    %1427 = vector.broadcast %1426 : f32 to vector<8x34xf32>
    %1428 = arith.mulf %1399, %1427 : vector<8x34xf32>
    %1429 = arith.addf %1358, %1428 : vector<8x34xf32>
    %c5_665 = arith.constant 5 : index
    %c17_666 = arith.constant 17 : index
    %1430 = memref.load %arg4[%c5_665, %c17_666] : memref<9x32xf32, #tpu.memory_space<smem>>
    %1431 = vector.broadcast %1430 : f32 to vector<8x34xf32>
    %1432 = arith.mulf %1400, %1431 : vector<8x34xf32>
    %1433 = arith.addf %1429, %1432 : vector<8x34xf32>
    %c8_667 = arith.constant 8 : index
    %c17_668 = arith.constant 17 : index
    %1434 = memref.load %arg4[%c8_667, %c17_668] : memref<9x32xf32, #tpu.memory_space<smem>>
    %1435 = vector.broadcast %1434 : f32 to vector<8x34xf32>
    %1436 = arith.mulf %1401, %1435 : vector<8x34xf32>
    %1437 = arith.addf %1433, %1436 : vector<8x34xf32>
    %c0_669 = arith.constant 0 : index
    %c18 = arith.constant 18 : index
    %1438 = memref.load %arg2[%c0_669, %c18] : memref<9x32xf32, #tpu.memory_space<smem>>
    %1439 = vector.broadcast %1438 : f32 to vector<10x34xf32>
    %1440 = arith.mulf %4, %1439 : vector<10x34xf32>
    %c1_670 = arith.constant 1 : index
    %c18_671 = arith.constant 18 : index
    %1441 = memref.load %arg2[%c1_670, %c18_671] : memref<9x32xf32, #tpu.memory_space<smem>>
    %1442 = vector.broadcast %1441 : f32 to vector<10x34xf32>
    %1443 = arith.mulf %5, %1442 : vector<10x34xf32>
    %1444 = arith.addf %1440, %1443 : vector<10x34xf32>
    %c2_672 = arith.constant 2 : index
    %c18_673 = arith.constant 18 : index
    %1445 = memref.load %arg2[%c2_672, %c18_673] : memref<9x32xf32, #tpu.memory_space<smem>>
    %1446 = vector.broadcast %1445 : f32 to vector<10x34xf32>
    %1447 = arith.mulf %6, %1446 : vector<10x34xf32>
    %1448 = arith.addf %1444, %1447 : vector<10x34xf32>
    %c3_674 = arith.constant 3 : index
    %c18_675 = arith.constant 18 : index
    %1449 = memref.load %arg2[%c3_674, %c18_675] : memref<9x32xf32, #tpu.memory_space<smem>>
    %1450 = vector.broadcast %1449 : f32 to vector<10x34xf32>
    %1451 = arith.mulf %7, %1450 : vector<10x34xf32>
    %1452 = arith.addf %1448, %1451 : vector<10x34xf32>
    %c4_676 = arith.constant 4 : index
    %c18_677 = arith.constant 18 : index
    %1453 = memref.load %arg2[%c4_676, %c18_677] : memref<9x32xf32, #tpu.memory_space<smem>>
    %1454 = vector.broadcast %1453 : f32 to vector<10x34xf32>
    %1455 = arith.mulf %8, %1454 : vector<10x34xf32>
    %1456 = arith.addf %1452, %1455 : vector<10x34xf32>
    %c5_678 = arith.constant 5 : index
    %c18_679 = arith.constant 18 : index
    %1457 = memref.load %arg2[%c5_678, %c18_679] : memref<9x32xf32, #tpu.memory_space<smem>>
    %1458 = vector.broadcast %1457 : f32 to vector<10x34xf32>
    %1459 = arith.mulf %9, %1458 : vector<10x34xf32>
    %1460 = arith.addf %1456, %1459 : vector<10x34xf32>
    %c6_680 = arith.constant 6 : index
    %c18_681 = arith.constant 18 : index
    %1461 = memref.load %arg2[%c6_680, %c18_681] : memref<9x32xf32, #tpu.memory_space<smem>>
    %1462 = vector.broadcast %1461 : f32 to vector<10x34xf32>
    %1463 = arith.mulf %10, %1462 : vector<10x34xf32>
    %1464 = arith.addf %1460, %1463 : vector<10x34xf32>
    %c7_682 = arith.constant 7 : index
    %c18_683 = arith.constant 18 : index
    %1465 = memref.load %arg2[%c7_682, %c18_683] : memref<9x32xf32, #tpu.memory_space<smem>>
    %1466 = vector.broadcast %1465 : f32 to vector<10x34xf32>
    %1467 = arith.mulf %11, %1466 : vector<10x34xf32>
    %1468 = arith.addf %1464, %1467 : vector<10x34xf32>
    %c8_684 = arith.constant 8 : index
    %c18_685 = arith.constant 18 : index
    %1469 = memref.load %arg2[%c8_684, %c18_685] : memref<9x32xf32, #tpu.memory_space<smem>>
    %1470 = vector.broadcast %1469 : f32 to vector<10x34xf32>
    %1471 = arith.mulf %12, %1470 : vector<10x34xf32>
    %1472 = arith.addf %1468, %1471 : vector<10x34xf32>
    %c18_686 = arith.constant 18 : index
    %1473 = memref.load %arg3[%c18_686] : memref<32xf32, #tpu.memory_space<smem>>
    %1474 = vector.broadcast %1473 : f32 to vector<10x34xf32>
    %1475 = arith.addf %1472, %1474 : vector<10x34xf32>
    %cst_687 = arith.constant 0.000000e+00 : f32
    %1476 = vector.broadcast %cst_687 : f32 to vector<10x34xf32>
    %1477 = arith.maximumf %1475, %1476 : vector<10x34xf32>
    %1478 = vector.extract_strided_slice %1477 {offsets = [0, 0], sizes = [8, 34], strides = [1, 1]} : vector<10x34xf32> to vector<8x34xf32>
    %1479 = vector.extract_strided_slice %1477 {offsets = [1, 0], sizes = [8, 34], strides = [1, 1]} : vector<10x34xf32> to vector<8x34xf32>
    %1480 = vector.extract_strided_slice %1477 {offsets = [2, 0], sizes = [8, 34], strides = [1, 1]} : vector<10x34xf32> to vector<8x34xf32>
    %c0_688 = arith.constant 0 : index
    %c18_689 = arith.constant 18 : index
    %1481 = memref.load %arg4[%c0_688, %c18_689] : memref<9x32xf32, #tpu.memory_space<smem>>
    %1482 = vector.broadcast %1481 : f32 to vector<8x34xf32>
    %1483 = arith.mulf %1478, %1482 : vector<8x34xf32>
    %1484 = arith.addf %1413, %1483 : vector<8x34xf32>
    %c3_690 = arith.constant 3 : index
    %c18_691 = arith.constant 18 : index
    %1485 = memref.load %arg4[%c3_690, %c18_691] : memref<9x32xf32, #tpu.memory_space<smem>>
    %1486 = vector.broadcast %1485 : f32 to vector<8x34xf32>
    %1487 = arith.mulf %1479, %1486 : vector<8x34xf32>
    %1488 = arith.addf %1484, %1487 : vector<8x34xf32>
    %c6_692 = arith.constant 6 : index
    %c18_693 = arith.constant 18 : index
    %1489 = memref.load %arg4[%c6_692, %c18_693] : memref<9x32xf32, #tpu.memory_space<smem>>
    %1490 = vector.broadcast %1489 : f32 to vector<8x34xf32>
    %1491 = arith.mulf %1480, %1490 : vector<8x34xf32>
    %1492 = arith.addf %1488, %1491 : vector<8x34xf32>
    %c1_694 = arith.constant 1 : index
    %c18_695 = arith.constant 18 : index
    %1493 = memref.load %arg4[%c1_694, %c18_695] : memref<9x32xf32, #tpu.memory_space<smem>>
    %1494 = vector.broadcast %1493 : f32 to vector<8x34xf32>
    %1495 = arith.mulf %1478, %1494 : vector<8x34xf32>
    %1496 = arith.addf %1425, %1495 : vector<8x34xf32>
    %c4_696 = arith.constant 4 : index
    %c18_697 = arith.constant 18 : index
    %1497 = memref.load %arg4[%c4_696, %c18_697] : memref<9x32xf32, #tpu.memory_space<smem>>
    %1498 = vector.broadcast %1497 : f32 to vector<8x34xf32>
    %1499 = arith.mulf %1479, %1498 : vector<8x34xf32>
    %1500 = arith.addf %1496, %1499 : vector<8x34xf32>
    %c7_698 = arith.constant 7 : index
    %c18_699 = arith.constant 18 : index
    %1501 = memref.load %arg4[%c7_698, %c18_699] : memref<9x32xf32, #tpu.memory_space<smem>>
    %1502 = vector.broadcast %1501 : f32 to vector<8x34xf32>
    %1503 = arith.mulf %1480, %1502 : vector<8x34xf32>
    %1504 = arith.addf %1500, %1503 : vector<8x34xf32>
    %c2_700 = arith.constant 2 : index
    %c18_701 = arith.constant 18 : index
    %1505 = memref.load %arg4[%c2_700, %c18_701] : memref<9x32xf32, #tpu.memory_space<smem>>
    %1506 = vector.broadcast %1505 : f32 to vector<8x34xf32>
    %1507 = arith.mulf %1478, %1506 : vector<8x34xf32>
    %1508 = arith.addf %1437, %1507 : vector<8x34xf32>
    %c5_702 = arith.constant 5 : index
    %c18_703 = arith.constant 18 : index
    %1509 = memref.load %arg4[%c5_702, %c18_703] : memref<9x32xf32, #tpu.memory_space<smem>>
    %1510 = vector.broadcast %1509 : f32 to vector<8x34xf32>
    %1511 = arith.mulf %1479, %1510 : vector<8x34xf32>
    %1512 = arith.addf %1508, %1511 : vector<8x34xf32>
    %c8_704 = arith.constant 8 : index
    %c18_705 = arith.constant 18 : index
    %1513 = memref.load %arg4[%c8_704, %c18_705] : memref<9x32xf32, #tpu.memory_space<smem>>
    %1514 = vector.broadcast %1513 : f32 to vector<8x34xf32>
    %1515 = arith.mulf %1480, %1514 : vector<8x34xf32>
    %1516 = arith.addf %1512, %1515 : vector<8x34xf32>
    %c0_706 = arith.constant 0 : index
    %c19 = arith.constant 19 : index
    %1517 = memref.load %arg2[%c0_706, %c19] : memref<9x32xf32, #tpu.memory_space<smem>>
    %1518 = vector.broadcast %1517 : f32 to vector<10x34xf32>
    %1519 = arith.mulf %4, %1518 : vector<10x34xf32>
    %c1_707 = arith.constant 1 : index
    %c19_708 = arith.constant 19 : index
    %1520 = memref.load %arg2[%c1_707, %c19_708] : memref<9x32xf32, #tpu.memory_space<smem>>
    %1521 = vector.broadcast %1520 : f32 to vector<10x34xf32>
    %1522 = arith.mulf %5, %1521 : vector<10x34xf32>
    %1523 = arith.addf %1519, %1522 : vector<10x34xf32>
    %c2_709 = arith.constant 2 : index
    %c19_710 = arith.constant 19 : index
    %1524 = memref.load %arg2[%c2_709, %c19_710] : memref<9x32xf32, #tpu.memory_space<smem>>
    %1525 = vector.broadcast %1524 : f32 to vector<10x34xf32>
    %1526 = arith.mulf %6, %1525 : vector<10x34xf32>
    %1527 = arith.addf %1523, %1526 : vector<10x34xf32>
    %c3_711 = arith.constant 3 : index
    %c19_712 = arith.constant 19 : index
    %1528 = memref.load %arg2[%c3_711, %c19_712] : memref<9x32xf32, #tpu.memory_space<smem>>
    %1529 = vector.broadcast %1528 : f32 to vector<10x34xf32>
    %1530 = arith.mulf %7, %1529 : vector<10x34xf32>
    %1531 = arith.addf %1527, %1530 : vector<10x34xf32>
    %c4_713 = arith.constant 4 : index
    %c19_714 = arith.constant 19 : index
    %1532 = memref.load %arg2[%c4_713, %c19_714] : memref<9x32xf32, #tpu.memory_space<smem>>
    %1533 = vector.broadcast %1532 : f32 to vector<10x34xf32>
    %1534 = arith.mulf %8, %1533 : vector<10x34xf32>
    %1535 = arith.addf %1531, %1534 : vector<10x34xf32>
    %c5_715 = arith.constant 5 : index
    %c19_716 = arith.constant 19 : index
    %1536 = memref.load %arg2[%c5_715, %c19_716] : memref<9x32xf32, #tpu.memory_space<smem>>
    %1537 = vector.broadcast %1536 : f32 to vector<10x34xf32>
    %1538 = arith.mulf %9, %1537 : vector<10x34xf32>
    %1539 = arith.addf %1535, %1538 : vector<10x34xf32>
    %c6_717 = arith.constant 6 : index
    %c19_718 = arith.constant 19 : index
    %1540 = memref.load %arg2[%c6_717, %c19_718] : memref<9x32xf32, #tpu.memory_space<smem>>
    %1541 = vector.broadcast %1540 : f32 to vector<10x34xf32>
    %1542 = arith.mulf %10, %1541 : vector<10x34xf32>
    %1543 = arith.addf %1539, %1542 : vector<10x34xf32>
    %c7_719 = arith.constant 7 : index
    %c19_720 = arith.constant 19 : index
    %1544 = memref.load %arg2[%c7_719, %c19_720] : memref<9x32xf32, #tpu.memory_space<smem>>
    %1545 = vector.broadcast %1544 : f32 to vector<10x34xf32>
    %1546 = arith.mulf %11, %1545 : vector<10x34xf32>
    %1547 = arith.addf %1543, %1546 : vector<10x34xf32>
    %c8_721 = arith.constant 8 : index
    %c19_722 = arith.constant 19 : index
    %1548 = memref.load %arg2[%c8_721, %c19_722] : memref<9x32xf32, #tpu.memory_space<smem>>
    %1549 = vector.broadcast %1548 : f32 to vector<10x34xf32>
    %1550 = arith.mulf %12, %1549 : vector<10x34xf32>
    %1551 = arith.addf %1547, %1550 : vector<10x34xf32>
    %c19_723 = arith.constant 19 : index
    %1552 = memref.load %arg3[%c19_723] : memref<32xf32, #tpu.memory_space<smem>>
    %1553 = vector.broadcast %1552 : f32 to vector<10x34xf32>
    %1554 = arith.addf %1551, %1553 : vector<10x34xf32>
    %cst_724 = arith.constant 0.000000e+00 : f32
    %1555 = vector.broadcast %cst_724 : f32 to vector<10x34xf32>
    %1556 = arith.maximumf %1554, %1555 : vector<10x34xf32>
    %1557 = vector.extract_strided_slice %1556 {offsets = [0, 0], sizes = [8, 34], strides = [1, 1]} : vector<10x34xf32> to vector<8x34xf32>
    %1558 = vector.extract_strided_slice %1556 {offsets = [1, 0], sizes = [8, 34], strides = [1, 1]} : vector<10x34xf32> to vector<8x34xf32>
    %1559 = vector.extract_strided_slice %1556 {offsets = [2, 0], sizes = [8, 34], strides = [1, 1]} : vector<10x34xf32> to vector<8x34xf32>
    %c0_725 = arith.constant 0 : index
    %c19_726 = arith.constant 19 : index
    %1560 = memref.load %arg4[%c0_725, %c19_726] : memref<9x32xf32, #tpu.memory_space<smem>>
    %1561 = vector.broadcast %1560 : f32 to vector<8x34xf32>
    %1562 = arith.mulf %1557, %1561 : vector<8x34xf32>
    %1563 = arith.addf %1492, %1562 : vector<8x34xf32>
    %c3_727 = arith.constant 3 : index
    %c19_728 = arith.constant 19 : index
    %1564 = memref.load %arg4[%c3_727, %c19_728] : memref<9x32xf32, #tpu.memory_space<smem>>
    %1565 = vector.broadcast %1564 : f32 to vector<8x34xf32>
    %1566 = arith.mulf %1558, %1565 : vector<8x34xf32>
    %1567 = arith.addf %1563, %1566 : vector<8x34xf32>
    %c6_729 = arith.constant 6 : index
    %c19_730 = arith.constant 19 : index
    %1568 = memref.load %arg4[%c6_729, %c19_730] : memref<9x32xf32, #tpu.memory_space<smem>>
    %1569 = vector.broadcast %1568 : f32 to vector<8x34xf32>
    %1570 = arith.mulf %1559, %1569 : vector<8x34xf32>
    %1571 = arith.addf %1567, %1570 : vector<8x34xf32>
    %c1_731 = arith.constant 1 : index
    %c19_732 = arith.constant 19 : index
    %1572 = memref.load %arg4[%c1_731, %c19_732] : memref<9x32xf32, #tpu.memory_space<smem>>
    %1573 = vector.broadcast %1572 : f32 to vector<8x34xf32>
    %1574 = arith.mulf %1557, %1573 : vector<8x34xf32>
    %1575 = arith.addf %1504, %1574 : vector<8x34xf32>
    %c4_733 = arith.constant 4 : index
    %c19_734 = arith.constant 19 : index
    %1576 = memref.load %arg4[%c4_733, %c19_734] : memref<9x32xf32, #tpu.memory_space<smem>>
    %1577 = vector.broadcast %1576 : f32 to vector<8x34xf32>
    %1578 = arith.mulf %1558, %1577 : vector<8x34xf32>
    %1579 = arith.addf %1575, %1578 : vector<8x34xf32>
    %c7_735 = arith.constant 7 : index
    %c19_736 = arith.constant 19 : index
    %1580 = memref.load %arg4[%c7_735, %c19_736] : memref<9x32xf32, #tpu.memory_space<smem>>
    %1581 = vector.broadcast %1580 : f32 to vector<8x34xf32>
    %1582 = arith.mulf %1559, %1581 : vector<8x34xf32>
    %1583 = arith.addf %1579, %1582 : vector<8x34xf32>
    %c2_737 = arith.constant 2 : index
    %c19_738 = arith.constant 19 : index
    %1584 = memref.load %arg4[%c2_737, %c19_738] : memref<9x32xf32, #tpu.memory_space<smem>>
    %1585 = vector.broadcast %1584 : f32 to vector<8x34xf32>
    %1586 = arith.mulf %1557, %1585 : vector<8x34xf32>
    %1587 = arith.addf %1516, %1586 : vector<8x34xf32>
    %c5_739 = arith.constant 5 : index
    %c19_740 = arith.constant 19 : index
    %1588 = memref.load %arg4[%c5_739, %c19_740] : memref<9x32xf32, #tpu.memory_space<smem>>
    %1589 = vector.broadcast %1588 : f32 to vector<8x34xf32>
    %1590 = arith.mulf %1558, %1589 : vector<8x34xf32>
    %1591 = arith.addf %1587, %1590 : vector<8x34xf32>
    %c8_741 = arith.constant 8 : index
    %c19_742 = arith.constant 19 : index
    %1592 = memref.load %arg4[%c8_741, %c19_742] : memref<9x32xf32, #tpu.memory_space<smem>>
    %1593 = vector.broadcast %1592 : f32 to vector<8x34xf32>
    %1594 = arith.mulf %1559, %1593 : vector<8x34xf32>
    %1595 = arith.addf %1591, %1594 : vector<8x34xf32>
    %c0_743 = arith.constant 0 : index
    %c20 = arith.constant 20 : index
    %1596 = memref.load %arg2[%c0_743, %c20] : memref<9x32xf32, #tpu.memory_space<smem>>
    %1597 = vector.broadcast %1596 : f32 to vector<10x34xf32>
    %1598 = arith.mulf %4, %1597 : vector<10x34xf32>
    %c1_744 = arith.constant 1 : index
    %c20_745 = arith.constant 20 : index
    %1599 = memref.load %arg2[%c1_744, %c20_745] : memref<9x32xf32, #tpu.memory_space<smem>>
    %1600 = vector.broadcast %1599 : f32 to vector<10x34xf32>
    %1601 = arith.mulf %5, %1600 : vector<10x34xf32>
    %1602 = arith.addf %1598, %1601 : vector<10x34xf32>
    %c2_746 = arith.constant 2 : index
    %c20_747 = arith.constant 20 : index
    %1603 = memref.load %arg2[%c2_746, %c20_747] : memref<9x32xf32, #tpu.memory_space<smem>>
    %1604 = vector.broadcast %1603 : f32 to vector<10x34xf32>
    %1605 = arith.mulf %6, %1604 : vector<10x34xf32>
    %1606 = arith.addf %1602, %1605 : vector<10x34xf32>
    %c3_748 = arith.constant 3 : index
    %c20_749 = arith.constant 20 : index
    %1607 = memref.load %arg2[%c3_748, %c20_749] : memref<9x32xf32, #tpu.memory_space<smem>>
    %1608 = vector.broadcast %1607 : f32 to vector<10x34xf32>
    %1609 = arith.mulf %7, %1608 : vector<10x34xf32>
    %1610 = arith.addf %1606, %1609 : vector<10x34xf32>
    %c4_750 = arith.constant 4 : index
    %c20_751 = arith.constant 20 : index
    %1611 = memref.load %arg2[%c4_750, %c20_751] : memref<9x32xf32, #tpu.memory_space<smem>>
    %1612 = vector.broadcast %1611 : f32 to vector<10x34xf32>
    %1613 = arith.mulf %8, %1612 : vector<10x34xf32>
    %1614 = arith.addf %1610, %1613 : vector<10x34xf32>
    %c5_752 = arith.constant 5 : index
    %c20_753 = arith.constant 20 : index
    %1615 = memref.load %arg2[%c5_752, %c20_753] : memref<9x32xf32, #tpu.memory_space<smem>>
    %1616 = vector.broadcast %1615 : f32 to vector<10x34xf32>
    %1617 = arith.mulf %9, %1616 : vector<10x34xf32>
    %1618 = arith.addf %1614, %1617 : vector<10x34xf32>
    %c6_754 = arith.constant 6 : index
    %c20_755 = arith.constant 20 : index
    %1619 = memref.load %arg2[%c6_754, %c20_755] : memref<9x32xf32, #tpu.memory_space<smem>>
    %1620 = vector.broadcast %1619 : f32 to vector<10x34xf32>
    %1621 = arith.mulf %10, %1620 : vector<10x34xf32>
    %1622 = arith.addf %1618, %1621 : vector<10x34xf32>
    %c7_756 = arith.constant 7 : index
    %c20_757 = arith.constant 20 : index
    %1623 = memref.load %arg2[%c7_756, %c20_757] : memref<9x32xf32, #tpu.memory_space<smem>>
    %1624 = vector.broadcast %1623 : f32 to vector<10x34xf32>
    %1625 = arith.mulf %11, %1624 : vector<10x34xf32>
    %1626 = arith.addf %1622, %1625 : vector<10x34xf32>
    %c8_758 = arith.constant 8 : index
    %c20_759 = arith.constant 20 : index
    %1627 = memref.load %arg2[%c8_758, %c20_759] : memref<9x32xf32, #tpu.memory_space<smem>>
    %1628 = vector.broadcast %1627 : f32 to vector<10x34xf32>
    %1629 = arith.mulf %12, %1628 : vector<10x34xf32>
    %1630 = arith.addf %1626, %1629 : vector<10x34xf32>
    %c20_760 = arith.constant 20 : index
    %1631 = memref.load %arg3[%c20_760] : memref<32xf32, #tpu.memory_space<smem>>
    %1632 = vector.broadcast %1631 : f32 to vector<10x34xf32>
    %1633 = arith.addf %1630, %1632 : vector<10x34xf32>
    %cst_761 = arith.constant 0.000000e+00 : f32
    %1634 = vector.broadcast %cst_761 : f32 to vector<10x34xf32>
    %1635 = arith.maximumf %1633, %1634 : vector<10x34xf32>
    %1636 = vector.extract_strided_slice %1635 {offsets = [0, 0], sizes = [8, 34], strides = [1, 1]} : vector<10x34xf32> to vector<8x34xf32>
    %1637 = vector.extract_strided_slice %1635 {offsets = [1, 0], sizes = [8, 34], strides = [1, 1]} : vector<10x34xf32> to vector<8x34xf32>
    %1638 = vector.extract_strided_slice %1635 {offsets = [2, 0], sizes = [8, 34], strides = [1, 1]} : vector<10x34xf32> to vector<8x34xf32>
    %c0_762 = arith.constant 0 : index
    %c20_763 = arith.constant 20 : index
    %1639 = memref.load %arg4[%c0_762, %c20_763] : memref<9x32xf32, #tpu.memory_space<smem>>
    %1640 = vector.broadcast %1639 : f32 to vector<8x34xf32>
    %1641 = arith.mulf %1636, %1640 : vector<8x34xf32>
    %1642 = arith.addf %1571, %1641 : vector<8x34xf32>
    %c3_764 = arith.constant 3 : index
    %c20_765 = arith.constant 20 : index
    %1643 = memref.load %arg4[%c3_764, %c20_765] : memref<9x32xf32, #tpu.memory_space<smem>>
    %1644 = vector.broadcast %1643 : f32 to vector<8x34xf32>
    %1645 = arith.mulf %1637, %1644 : vector<8x34xf32>
    %1646 = arith.addf %1642, %1645 : vector<8x34xf32>
    %c6_766 = arith.constant 6 : index
    %c20_767 = arith.constant 20 : index
    %1647 = memref.load %arg4[%c6_766, %c20_767] : memref<9x32xf32, #tpu.memory_space<smem>>
    %1648 = vector.broadcast %1647 : f32 to vector<8x34xf32>
    %1649 = arith.mulf %1638, %1648 : vector<8x34xf32>
    %1650 = arith.addf %1646, %1649 : vector<8x34xf32>
    %c1_768 = arith.constant 1 : index
    %c20_769 = arith.constant 20 : index
    %1651 = memref.load %arg4[%c1_768, %c20_769] : memref<9x32xf32, #tpu.memory_space<smem>>
    %1652 = vector.broadcast %1651 : f32 to vector<8x34xf32>
    %1653 = arith.mulf %1636, %1652 : vector<8x34xf32>
    %1654 = arith.addf %1583, %1653 : vector<8x34xf32>
    %c4_770 = arith.constant 4 : index
    %c20_771 = arith.constant 20 : index
    %1655 = memref.load %arg4[%c4_770, %c20_771] : memref<9x32xf32, #tpu.memory_space<smem>>
    %1656 = vector.broadcast %1655 : f32 to vector<8x34xf32>
    %1657 = arith.mulf %1637, %1656 : vector<8x34xf32>
    %1658 = arith.addf %1654, %1657 : vector<8x34xf32>
    %c7_772 = arith.constant 7 : index
    %c20_773 = arith.constant 20 : index
    %1659 = memref.load %arg4[%c7_772, %c20_773] : memref<9x32xf32, #tpu.memory_space<smem>>
    %1660 = vector.broadcast %1659 : f32 to vector<8x34xf32>
    %1661 = arith.mulf %1638, %1660 : vector<8x34xf32>
    %1662 = arith.addf %1658, %1661 : vector<8x34xf32>
    %c2_774 = arith.constant 2 : index
    %c20_775 = arith.constant 20 : index
    %1663 = memref.load %arg4[%c2_774, %c20_775] : memref<9x32xf32, #tpu.memory_space<smem>>
    %1664 = vector.broadcast %1663 : f32 to vector<8x34xf32>
    %1665 = arith.mulf %1636, %1664 : vector<8x34xf32>
    %1666 = arith.addf %1595, %1665 : vector<8x34xf32>
    %c5_776 = arith.constant 5 : index
    %c20_777 = arith.constant 20 : index
    %1667 = memref.load %arg4[%c5_776, %c20_777] : memref<9x32xf32, #tpu.memory_space<smem>>
    %1668 = vector.broadcast %1667 : f32 to vector<8x34xf32>
    %1669 = arith.mulf %1637, %1668 : vector<8x34xf32>
    %1670 = arith.addf %1666, %1669 : vector<8x34xf32>
    %c8_778 = arith.constant 8 : index
    %c20_779 = arith.constant 20 : index
    %1671 = memref.load %arg4[%c8_778, %c20_779] : memref<9x32xf32, #tpu.memory_space<smem>>
    %1672 = vector.broadcast %1671 : f32 to vector<8x34xf32>
    %1673 = arith.mulf %1638, %1672 : vector<8x34xf32>
    %1674 = arith.addf %1670, %1673 : vector<8x34xf32>
    %c0_780 = arith.constant 0 : index
    %c21 = arith.constant 21 : index
    %1675 = memref.load %arg2[%c0_780, %c21] : memref<9x32xf32, #tpu.memory_space<smem>>
    %1676 = vector.broadcast %1675 : f32 to vector<10x34xf32>
    %1677 = arith.mulf %4, %1676 : vector<10x34xf32>
    %c1_781 = arith.constant 1 : index
    %c21_782 = arith.constant 21 : index
    %1678 = memref.load %arg2[%c1_781, %c21_782] : memref<9x32xf32, #tpu.memory_space<smem>>
    %1679 = vector.broadcast %1678 : f32 to vector<10x34xf32>
    %1680 = arith.mulf %5, %1679 : vector<10x34xf32>
    %1681 = arith.addf %1677, %1680 : vector<10x34xf32>
    %c2_783 = arith.constant 2 : index
    %c21_784 = arith.constant 21 : index
    %1682 = memref.load %arg2[%c2_783, %c21_784] : memref<9x32xf32, #tpu.memory_space<smem>>
    %1683 = vector.broadcast %1682 : f32 to vector<10x34xf32>
    %1684 = arith.mulf %6, %1683 : vector<10x34xf32>
    %1685 = arith.addf %1681, %1684 : vector<10x34xf32>
    %c3_785 = arith.constant 3 : index
    %c21_786 = arith.constant 21 : index
    %1686 = memref.load %arg2[%c3_785, %c21_786] : memref<9x32xf32, #tpu.memory_space<smem>>
    %1687 = vector.broadcast %1686 : f32 to vector<10x34xf32>
    %1688 = arith.mulf %7, %1687 : vector<10x34xf32>
    %1689 = arith.addf %1685, %1688 : vector<10x34xf32>
    %c4_787 = arith.constant 4 : index
    %c21_788 = arith.constant 21 : index
    %1690 = memref.load %arg2[%c4_787, %c21_788] : memref<9x32xf32, #tpu.memory_space<smem>>
    %1691 = vector.broadcast %1690 : f32 to vector<10x34xf32>
    %1692 = arith.mulf %8, %1691 : vector<10x34xf32>
    %1693 = arith.addf %1689, %1692 : vector<10x34xf32>
    %c5_789 = arith.constant 5 : index
    %c21_790 = arith.constant 21 : index
    %1694 = memref.load %arg2[%c5_789, %c21_790] : memref<9x32xf32, #tpu.memory_space<smem>>
    %1695 = vector.broadcast %1694 : f32 to vector<10x34xf32>
    %1696 = arith.mulf %9, %1695 : vector<10x34xf32>
    %1697 = arith.addf %1693, %1696 : vector<10x34xf32>
    %c6_791 = arith.constant 6 : index
    %c21_792 = arith.constant 21 : index
    %1698 = memref.load %arg2[%c6_791, %c21_792] : memref<9x32xf32, #tpu.memory_space<smem>>
    %1699 = vector.broadcast %1698 : f32 to vector<10x34xf32>
    %1700 = arith.mulf %10, %1699 : vector<10x34xf32>
    %1701 = arith.addf %1697, %1700 : vector<10x34xf32>
    %c7_793 = arith.constant 7 : index
    %c21_794 = arith.constant 21 : index
    %1702 = memref.load %arg2[%c7_793, %c21_794] : memref<9x32xf32, #tpu.memory_space<smem>>
    %1703 = vector.broadcast %1702 : f32 to vector<10x34xf32>
    %1704 = arith.mulf %11, %1703 : vector<10x34xf32>
    %1705 = arith.addf %1701, %1704 : vector<10x34xf32>
    %c8_795 = arith.constant 8 : index
    %c21_796 = arith.constant 21 : index
    %1706 = memref.load %arg2[%c8_795, %c21_796] : memref<9x32xf32, #tpu.memory_space<smem>>
    %1707 = vector.broadcast %1706 : f32 to vector<10x34xf32>
    %1708 = arith.mulf %12, %1707 : vector<10x34xf32>
    %1709 = arith.addf %1705, %1708 : vector<10x34xf32>
    %c21_797 = arith.constant 21 : index
    %1710 = memref.load %arg3[%c21_797] : memref<32xf32, #tpu.memory_space<smem>>
    %1711 = vector.broadcast %1710 : f32 to vector<10x34xf32>
    %1712 = arith.addf %1709, %1711 : vector<10x34xf32>
    %cst_798 = arith.constant 0.000000e+00 : f32
    %1713 = vector.broadcast %cst_798 : f32 to vector<10x34xf32>
    %1714 = arith.maximumf %1712, %1713 : vector<10x34xf32>
    %1715 = vector.extract_strided_slice %1714 {offsets = [0, 0], sizes = [8, 34], strides = [1, 1]} : vector<10x34xf32> to vector<8x34xf32>
    %1716 = vector.extract_strided_slice %1714 {offsets = [1, 0], sizes = [8, 34], strides = [1, 1]} : vector<10x34xf32> to vector<8x34xf32>
    %1717 = vector.extract_strided_slice %1714 {offsets = [2, 0], sizes = [8, 34], strides = [1, 1]} : vector<10x34xf32> to vector<8x34xf32>
    %c0_799 = arith.constant 0 : index
    %c21_800 = arith.constant 21 : index
    %1718 = memref.load %arg4[%c0_799, %c21_800] : memref<9x32xf32, #tpu.memory_space<smem>>
    %1719 = vector.broadcast %1718 : f32 to vector<8x34xf32>
    %1720 = arith.mulf %1715, %1719 : vector<8x34xf32>
    %1721 = arith.addf %1650, %1720 : vector<8x34xf32>
    %c3_801 = arith.constant 3 : index
    %c21_802 = arith.constant 21 : index
    %1722 = memref.load %arg4[%c3_801, %c21_802] : memref<9x32xf32, #tpu.memory_space<smem>>
    %1723 = vector.broadcast %1722 : f32 to vector<8x34xf32>
    %1724 = arith.mulf %1716, %1723 : vector<8x34xf32>
    %1725 = arith.addf %1721, %1724 : vector<8x34xf32>
    %c6_803 = arith.constant 6 : index
    %c21_804 = arith.constant 21 : index
    %1726 = memref.load %arg4[%c6_803, %c21_804] : memref<9x32xf32, #tpu.memory_space<smem>>
    %1727 = vector.broadcast %1726 : f32 to vector<8x34xf32>
    %1728 = arith.mulf %1717, %1727 : vector<8x34xf32>
    %1729 = arith.addf %1725, %1728 : vector<8x34xf32>
    %c1_805 = arith.constant 1 : index
    %c21_806 = arith.constant 21 : index
    %1730 = memref.load %arg4[%c1_805, %c21_806] : memref<9x32xf32, #tpu.memory_space<smem>>
    %1731 = vector.broadcast %1730 : f32 to vector<8x34xf32>
    %1732 = arith.mulf %1715, %1731 : vector<8x34xf32>
    %1733 = arith.addf %1662, %1732 : vector<8x34xf32>
    %c4_807 = arith.constant 4 : index
    %c21_808 = arith.constant 21 : index
    %1734 = memref.load %arg4[%c4_807, %c21_808] : memref<9x32xf32, #tpu.memory_space<smem>>
    %1735 = vector.broadcast %1734 : f32 to vector<8x34xf32>
    %1736 = arith.mulf %1716, %1735 : vector<8x34xf32>
    %1737 = arith.addf %1733, %1736 : vector<8x34xf32>
    %c7_809 = arith.constant 7 : index
    %c21_810 = arith.constant 21 : index
    %1738 = memref.load %arg4[%c7_809, %c21_810] : memref<9x32xf32, #tpu.memory_space<smem>>
    %1739 = vector.broadcast %1738 : f32 to vector<8x34xf32>
    %1740 = arith.mulf %1717, %1739 : vector<8x34xf32>
    %1741 = arith.addf %1737, %1740 : vector<8x34xf32>
    %c2_811 = arith.constant 2 : index
    %c21_812 = arith.constant 21 : index
    %1742 = memref.load %arg4[%c2_811, %c21_812] : memref<9x32xf32, #tpu.memory_space<smem>>
    %1743 = vector.broadcast %1742 : f32 to vector<8x34xf32>
    %1744 = arith.mulf %1715, %1743 : vector<8x34xf32>
    %1745 = arith.addf %1674, %1744 : vector<8x34xf32>
    %c5_813 = arith.constant 5 : index
    %c21_814 = arith.constant 21 : index
    %1746 = memref.load %arg4[%c5_813, %c21_814] : memref<9x32xf32, #tpu.memory_space<smem>>
    %1747 = vector.broadcast %1746 : f32 to vector<8x34xf32>
    %1748 = arith.mulf %1716, %1747 : vector<8x34xf32>
    %1749 = arith.addf %1745, %1748 : vector<8x34xf32>
    %c8_815 = arith.constant 8 : index
    %c21_816 = arith.constant 21 : index
    %1750 = memref.load %arg4[%c8_815, %c21_816] : memref<9x32xf32, #tpu.memory_space<smem>>
    %1751 = vector.broadcast %1750 : f32 to vector<8x34xf32>
    %1752 = arith.mulf %1717, %1751 : vector<8x34xf32>
    %1753 = arith.addf %1749, %1752 : vector<8x34xf32>
    %c0_817 = arith.constant 0 : index
    %c22 = arith.constant 22 : index
    %1754 = memref.load %arg2[%c0_817, %c22] : memref<9x32xf32, #tpu.memory_space<smem>>
    %1755 = vector.broadcast %1754 : f32 to vector<10x34xf32>
    %1756 = arith.mulf %4, %1755 : vector<10x34xf32>
    %c1_818 = arith.constant 1 : index
    %c22_819 = arith.constant 22 : index
    %1757 = memref.load %arg2[%c1_818, %c22_819] : memref<9x32xf32, #tpu.memory_space<smem>>
    %1758 = vector.broadcast %1757 : f32 to vector<10x34xf32>
    %1759 = arith.mulf %5, %1758 : vector<10x34xf32>
    %1760 = arith.addf %1756, %1759 : vector<10x34xf32>
    %c2_820 = arith.constant 2 : index
    %c22_821 = arith.constant 22 : index
    %1761 = memref.load %arg2[%c2_820, %c22_821] : memref<9x32xf32, #tpu.memory_space<smem>>
    %1762 = vector.broadcast %1761 : f32 to vector<10x34xf32>
    %1763 = arith.mulf %6, %1762 : vector<10x34xf32>
    %1764 = arith.addf %1760, %1763 : vector<10x34xf32>
    %c3_822 = arith.constant 3 : index
    %c22_823 = arith.constant 22 : index
    %1765 = memref.load %arg2[%c3_822, %c22_823] : memref<9x32xf32, #tpu.memory_space<smem>>
    %1766 = vector.broadcast %1765 : f32 to vector<10x34xf32>
    %1767 = arith.mulf %7, %1766 : vector<10x34xf32>
    %1768 = arith.addf %1764, %1767 : vector<10x34xf32>
    %c4_824 = arith.constant 4 : index
    %c22_825 = arith.constant 22 : index
    %1769 = memref.load %arg2[%c4_824, %c22_825] : memref<9x32xf32, #tpu.memory_space<smem>>
    %1770 = vector.broadcast %1769 : f32 to vector<10x34xf32>
    %1771 = arith.mulf %8, %1770 : vector<10x34xf32>
    %1772 = arith.addf %1768, %1771 : vector<10x34xf32>
    %c5_826 = arith.constant 5 : index
    %c22_827 = arith.constant 22 : index
    %1773 = memref.load %arg2[%c5_826, %c22_827] : memref<9x32xf32, #tpu.memory_space<smem>>
    %1774 = vector.broadcast %1773 : f32 to vector<10x34xf32>
    %1775 = arith.mulf %9, %1774 : vector<10x34xf32>
    %1776 = arith.addf %1772, %1775 : vector<10x34xf32>
    %c6_828 = arith.constant 6 : index
    %c22_829 = arith.constant 22 : index
    %1777 = memref.load %arg2[%c6_828, %c22_829] : memref<9x32xf32, #tpu.memory_space<smem>>
    %1778 = vector.broadcast %1777 : f32 to vector<10x34xf32>
    %1779 = arith.mulf %10, %1778 : vector<10x34xf32>
    %1780 = arith.addf %1776, %1779 : vector<10x34xf32>
    %c7_830 = arith.constant 7 : index
    %c22_831 = arith.constant 22 : index
    %1781 = memref.load %arg2[%c7_830, %c22_831] : memref<9x32xf32, #tpu.memory_space<smem>>
    %1782 = vector.broadcast %1781 : f32 to vector<10x34xf32>
    %1783 = arith.mulf %11, %1782 : vector<10x34xf32>
    %1784 = arith.addf %1780, %1783 : vector<10x34xf32>
    %c8_832 = arith.constant 8 : index
    %c22_833 = arith.constant 22 : index
    %1785 = memref.load %arg2[%c8_832, %c22_833] : memref<9x32xf32, #tpu.memory_space<smem>>
    %1786 = vector.broadcast %1785 : f32 to vector<10x34xf32>
    %1787 = arith.mulf %12, %1786 : vector<10x34xf32>
    %1788 = arith.addf %1784, %1787 : vector<10x34xf32>
    %c22_834 = arith.constant 22 : index
    %1789 = memref.load %arg3[%c22_834] : memref<32xf32, #tpu.memory_space<smem>>
    %1790 = vector.broadcast %1789 : f32 to vector<10x34xf32>
    %1791 = arith.addf %1788, %1790 : vector<10x34xf32>
    %cst_835 = arith.constant 0.000000e+00 : f32
    %1792 = vector.broadcast %cst_835 : f32 to vector<10x34xf32>
    %1793 = arith.maximumf %1791, %1792 : vector<10x34xf32>
    %1794 = vector.extract_strided_slice %1793 {offsets = [0, 0], sizes = [8, 34], strides = [1, 1]} : vector<10x34xf32> to vector<8x34xf32>
    %1795 = vector.extract_strided_slice %1793 {offsets = [1, 0], sizes = [8, 34], strides = [1, 1]} : vector<10x34xf32> to vector<8x34xf32>
    %1796 = vector.extract_strided_slice %1793 {offsets = [2, 0], sizes = [8, 34], strides = [1, 1]} : vector<10x34xf32> to vector<8x34xf32>
    %c0_836 = arith.constant 0 : index
    %c22_837 = arith.constant 22 : index
    %1797 = memref.load %arg4[%c0_836, %c22_837] : memref<9x32xf32, #tpu.memory_space<smem>>
    %1798 = vector.broadcast %1797 : f32 to vector<8x34xf32>
    %1799 = arith.mulf %1794, %1798 : vector<8x34xf32>
    %1800 = arith.addf %1729, %1799 : vector<8x34xf32>
    %c3_838 = arith.constant 3 : index
    %c22_839 = arith.constant 22 : index
    %1801 = memref.load %arg4[%c3_838, %c22_839] : memref<9x32xf32, #tpu.memory_space<smem>>
    %1802 = vector.broadcast %1801 : f32 to vector<8x34xf32>
    %1803 = arith.mulf %1795, %1802 : vector<8x34xf32>
    %1804 = arith.addf %1800, %1803 : vector<8x34xf32>
    %c6_840 = arith.constant 6 : index
    %c22_841 = arith.constant 22 : index
    %1805 = memref.load %arg4[%c6_840, %c22_841] : memref<9x32xf32, #tpu.memory_space<smem>>
    %1806 = vector.broadcast %1805 : f32 to vector<8x34xf32>
    %1807 = arith.mulf %1796, %1806 : vector<8x34xf32>
    %1808 = arith.addf %1804, %1807 : vector<8x34xf32>
    %c1_842 = arith.constant 1 : index
    %c22_843 = arith.constant 22 : index
    %1809 = memref.load %arg4[%c1_842, %c22_843] : memref<9x32xf32, #tpu.memory_space<smem>>
    %1810 = vector.broadcast %1809 : f32 to vector<8x34xf32>
    %1811 = arith.mulf %1794, %1810 : vector<8x34xf32>
    %1812 = arith.addf %1741, %1811 : vector<8x34xf32>
    %c4_844 = arith.constant 4 : index
    %c22_845 = arith.constant 22 : index
    %1813 = memref.load %arg4[%c4_844, %c22_845] : memref<9x32xf32, #tpu.memory_space<smem>>
    %1814 = vector.broadcast %1813 : f32 to vector<8x34xf32>
    %1815 = arith.mulf %1795, %1814 : vector<8x34xf32>
    %1816 = arith.addf %1812, %1815 : vector<8x34xf32>
    %c7_846 = arith.constant 7 : index
    %c22_847 = arith.constant 22 : index
    %1817 = memref.load %arg4[%c7_846, %c22_847] : memref<9x32xf32, #tpu.memory_space<smem>>
    %1818 = vector.broadcast %1817 : f32 to vector<8x34xf32>
    %1819 = arith.mulf %1796, %1818 : vector<8x34xf32>
    %1820 = arith.addf %1816, %1819 : vector<8x34xf32>
    %c2_848 = arith.constant 2 : index
    %c22_849 = arith.constant 22 : index
    %1821 = memref.load %arg4[%c2_848, %c22_849] : memref<9x32xf32, #tpu.memory_space<smem>>
    %1822 = vector.broadcast %1821 : f32 to vector<8x34xf32>
    %1823 = arith.mulf %1794, %1822 : vector<8x34xf32>
    %1824 = arith.addf %1753, %1823 : vector<8x34xf32>
    %c5_850 = arith.constant 5 : index
    %c22_851 = arith.constant 22 : index
    %1825 = memref.load %arg4[%c5_850, %c22_851] : memref<9x32xf32, #tpu.memory_space<smem>>
    %1826 = vector.broadcast %1825 : f32 to vector<8x34xf32>
    %1827 = arith.mulf %1795, %1826 : vector<8x34xf32>
    %1828 = arith.addf %1824, %1827 : vector<8x34xf32>
    %c8_852 = arith.constant 8 : index
    %c22_853 = arith.constant 22 : index
    %1829 = memref.load %arg4[%c8_852, %c22_853] : memref<9x32xf32, #tpu.memory_space<smem>>
    %1830 = vector.broadcast %1829 : f32 to vector<8x34xf32>
    %1831 = arith.mulf %1796, %1830 : vector<8x34xf32>
    %1832 = arith.addf %1828, %1831 : vector<8x34xf32>
    %c0_854 = arith.constant 0 : index
    %c23 = arith.constant 23 : index
    %1833 = memref.load %arg2[%c0_854, %c23] : memref<9x32xf32, #tpu.memory_space<smem>>
    %1834 = vector.broadcast %1833 : f32 to vector<10x34xf32>
    %1835 = arith.mulf %4, %1834 : vector<10x34xf32>
    %c1_855 = arith.constant 1 : index
    %c23_856 = arith.constant 23 : index
    %1836 = memref.load %arg2[%c1_855, %c23_856] : memref<9x32xf32, #tpu.memory_space<smem>>
    %1837 = vector.broadcast %1836 : f32 to vector<10x34xf32>
    %1838 = arith.mulf %5, %1837 : vector<10x34xf32>
    %1839 = arith.addf %1835, %1838 : vector<10x34xf32>
    %c2_857 = arith.constant 2 : index
    %c23_858 = arith.constant 23 : index
    %1840 = memref.load %arg2[%c2_857, %c23_858] : memref<9x32xf32, #tpu.memory_space<smem>>
    %1841 = vector.broadcast %1840 : f32 to vector<10x34xf32>
    %1842 = arith.mulf %6, %1841 : vector<10x34xf32>
    %1843 = arith.addf %1839, %1842 : vector<10x34xf32>
    %c3_859 = arith.constant 3 : index
    %c23_860 = arith.constant 23 : index
    %1844 = memref.load %arg2[%c3_859, %c23_860] : memref<9x32xf32, #tpu.memory_space<smem>>
    %1845 = vector.broadcast %1844 : f32 to vector<10x34xf32>
    %1846 = arith.mulf %7, %1845 : vector<10x34xf32>
    %1847 = arith.addf %1843, %1846 : vector<10x34xf32>
    %c4_861 = arith.constant 4 : index
    %c23_862 = arith.constant 23 : index
    %1848 = memref.load %arg2[%c4_861, %c23_862] : memref<9x32xf32, #tpu.memory_space<smem>>
    %1849 = vector.broadcast %1848 : f32 to vector<10x34xf32>
    %1850 = arith.mulf %8, %1849 : vector<10x34xf32>
    %1851 = arith.addf %1847, %1850 : vector<10x34xf32>
    %c5_863 = arith.constant 5 : index
    %c23_864 = arith.constant 23 : index
    %1852 = memref.load %arg2[%c5_863, %c23_864] : memref<9x32xf32, #tpu.memory_space<smem>>
    %1853 = vector.broadcast %1852 : f32 to vector<10x34xf32>
    %1854 = arith.mulf %9, %1853 : vector<10x34xf32>
    %1855 = arith.addf %1851, %1854 : vector<10x34xf32>
    %c6_865 = arith.constant 6 : index
    %c23_866 = arith.constant 23 : index
    %1856 = memref.load %arg2[%c6_865, %c23_866] : memref<9x32xf32, #tpu.memory_space<smem>>
    %1857 = vector.broadcast %1856 : f32 to vector<10x34xf32>
    %1858 = arith.mulf %10, %1857 : vector<10x34xf32>
    %1859 = arith.addf %1855, %1858 : vector<10x34xf32>
    %c7_867 = arith.constant 7 : index
    %c23_868 = arith.constant 23 : index
    %1860 = memref.load %arg2[%c7_867, %c23_868] : memref<9x32xf32, #tpu.memory_space<smem>>
    %1861 = vector.broadcast %1860 : f32 to vector<10x34xf32>
    %1862 = arith.mulf %11, %1861 : vector<10x34xf32>
    %1863 = arith.addf %1859, %1862 : vector<10x34xf32>
    %c8_869 = arith.constant 8 : index
    %c23_870 = arith.constant 23 : index
    %1864 = memref.load %arg2[%c8_869, %c23_870] : memref<9x32xf32, #tpu.memory_space<smem>>
    %1865 = vector.broadcast %1864 : f32 to vector<10x34xf32>
    %1866 = arith.mulf %12, %1865 : vector<10x34xf32>
    %1867 = arith.addf %1863, %1866 : vector<10x34xf32>
    %c23_871 = arith.constant 23 : index
    %1868 = memref.load %arg3[%c23_871] : memref<32xf32, #tpu.memory_space<smem>>
    %1869 = vector.broadcast %1868 : f32 to vector<10x34xf32>
    %1870 = arith.addf %1867, %1869 : vector<10x34xf32>
    %cst_872 = arith.constant 0.000000e+00 : f32
    %1871 = vector.broadcast %cst_872 : f32 to vector<10x34xf32>
    %1872 = arith.maximumf %1870, %1871 : vector<10x34xf32>
    %1873 = vector.extract_strided_slice %1872 {offsets = [0, 0], sizes = [8, 34], strides = [1, 1]} : vector<10x34xf32> to vector<8x34xf32>
    %1874 = vector.extract_strided_slice %1872 {offsets = [1, 0], sizes = [8, 34], strides = [1, 1]} : vector<10x34xf32> to vector<8x34xf32>
    %1875 = vector.extract_strided_slice %1872 {offsets = [2, 0], sizes = [8, 34], strides = [1, 1]} : vector<10x34xf32> to vector<8x34xf32>
    %c0_873 = arith.constant 0 : index
    %c23_874 = arith.constant 23 : index
    %1876 = memref.load %arg4[%c0_873, %c23_874] : memref<9x32xf32, #tpu.memory_space<smem>>
    %1877 = vector.broadcast %1876 : f32 to vector<8x34xf32>
    %1878 = arith.mulf %1873, %1877 : vector<8x34xf32>
    %1879 = arith.addf %1808, %1878 : vector<8x34xf32>
    %c3_875 = arith.constant 3 : index
    %c23_876 = arith.constant 23 : index
    %1880 = memref.load %arg4[%c3_875, %c23_876] : memref<9x32xf32, #tpu.memory_space<smem>>
    %1881 = vector.broadcast %1880 : f32 to vector<8x34xf32>
    %1882 = arith.mulf %1874, %1881 : vector<8x34xf32>
    %1883 = arith.addf %1879, %1882 : vector<8x34xf32>
    %c6_877 = arith.constant 6 : index
    %c23_878 = arith.constant 23 : index
    %1884 = memref.load %arg4[%c6_877, %c23_878] : memref<9x32xf32, #tpu.memory_space<smem>>
    %1885 = vector.broadcast %1884 : f32 to vector<8x34xf32>
    %1886 = arith.mulf %1875, %1885 : vector<8x34xf32>
    %1887 = arith.addf %1883, %1886 : vector<8x34xf32>
    %c1_879 = arith.constant 1 : index
    %c23_880 = arith.constant 23 : index
    %1888 = memref.load %arg4[%c1_879, %c23_880] : memref<9x32xf32, #tpu.memory_space<smem>>
    %1889 = vector.broadcast %1888 : f32 to vector<8x34xf32>
    %1890 = arith.mulf %1873, %1889 : vector<8x34xf32>
    %1891 = arith.addf %1820, %1890 : vector<8x34xf32>
    %c4_881 = arith.constant 4 : index
    %c23_882 = arith.constant 23 : index
    %1892 = memref.load %arg4[%c4_881, %c23_882] : memref<9x32xf32, #tpu.memory_space<smem>>
    %1893 = vector.broadcast %1892 : f32 to vector<8x34xf32>
    %1894 = arith.mulf %1874, %1893 : vector<8x34xf32>
    %1895 = arith.addf %1891, %1894 : vector<8x34xf32>
    %c7_883 = arith.constant 7 : index
    %c23_884 = arith.constant 23 : index
    %1896 = memref.load %arg4[%c7_883, %c23_884] : memref<9x32xf32, #tpu.memory_space<smem>>
    %1897 = vector.broadcast %1896 : f32 to vector<8x34xf32>
    %1898 = arith.mulf %1875, %1897 : vector<8x34xf32>
    %1899 = arith.addf %1895, %1898 : vector<8x34xf32>
    %c2_885 = arith.constant 2 : index
    %c23_886 = arith.constant 23 : index
    %1900 = memref.load %arg4[%c2_885, %c23_886] : memref<9x32xf32, #tpu.memory_space<smem>>
    %1901 = vector.broadcast %1900 : f32 to vector<8x34xf32>
    %1902 = arith.mulf %1873, %1901 : vector<8x34xf32>
    %1903 = arith.addf %1832, %1902 : vector<8x34xf32>
    %c5_887 = arith.constant 5 : index
    %c23_888 = arith.constant 23 : index
    %1904 = memref.load %arg4[%c5_887, %c23_888] : memref<9x32xf32, #tpu.memory_space<smem>>
    %1905 = vector.broadcast %1904 : f32 to vector<8x34xf32>
    %1906 = arith.mulf %1874, %1905 : vector<8x34xf32>
    %1907 = arith.addf %1903, %1906 : vector<8x34xf32>
    %c8_889 = arith.constant 8 : index
    %c23_890 = arith.constant 23 : index
    %1908 = memref.load %arg4[%c8_889, %c23_890] : memref<9x32xf32, #tpu.memory_space<smem>>
    %1909 = vector.broadcast %1908 : f32 to vector<8x34xf32>
    %1910 = arith.mulf %1875, %1909 : vector<8x34xf32>
    %1911 = arith.addf %1907, %1910 : vector<8x34xf32>
    %c0_891 = arith.constant 0 : index
    %c24 = arith.constant 24 : index
    %1912 = memref.load %arg2[%c0_891, %c24] : memref<9x32xf32, #tpu.memory_space<smem>>
    %1913 = vector.broadcast %1912 : f32 to vector<10x34xf32>
    %1914 = arith.mulf %4, %1913 : vector<10x34xf32>
    %c1_892 = arith.constant 1 : index
    %c24_893 = arith.constant 24 : index
    %1915 = memref.load %arg2[%c1_892, %c24_893] : memref<9x32xf32, #tpu.memory_space<smem>>
    %1916 = vector.broadcast %1915 : f32 to vector<10x34xf32>
    %1917 = arith.mulf %5, %1916 : vector<10x34xf32>
    %1918 = arith.addf %1914, %1917 : vector<10x34xf32>
    %c2_894 = arith.constant 2 : index
    %c24_895 = arith.constant 24 : index
    %1919 = memref.load %arg2[%c2_894, %c24_895] : memref<9x32xf32, #tpu.memory_space<smem>>
    %1920 = vector.broadcast %1919 : f32 to vector<10x34xf32>
    %1921 = arith.mulf %6, %1920 : vector<10x34xf32>
    %1922 = arith.addf %1918, %1921 : vector<10x34xf32>
    %c3_896 = arith.constant 3 : index
    %c24_897 = arith.constant 24 : index
    %1923 = memref.load %arg2[%c3_896, %c24_897] : memref<9x32xf32, #tpu.memory_space<smem>>
    %1924 = vector.broadcast %1923 : f32 to vector<10x34xf32>
    %1925 = arith.mulf %7, %1924 : vector<10x34xf32>
    %1926 = arith.addf %1922, %1925 : vector<10x34xf32>
    %c4_898 = arith.constant 4 : index
    %c24_899 = arith.constant 24 : index
    %1927 = memref.load %arg2[%c4_898, %c24_899] : memref<9x32xf32, #tpu.memory_space<smem>>
    %1928 = vector.broadcast %1927 : f32 to vector<10x34xf32>
    %1929 = arith.mulf %8, %1928 : vector<10x34xf32>
    %1930 = arith.addf %1926, %1929 : vector<10x34xf32>
    %c5_900 = arith.constant 5 : index
    %c24_901 = arith.constant 24 : index
    %1931 = memref.load %arg2[%c5_900, %c24_901] : memref<9x32xf32, #tpu.memory_space<smem>>
    %1932 = vector.broadcast %1931 : f32 to vector<10x34xf32>
    %1933 = arith.mulf %9, %1932 : vector<10x34xf32>
    %1934 = arith.addf %1930, %1933 : vector<10x34xf32>
    %c6_902 = arith.constant 6 : index
    %c24_903 = arith.constant 24 : index
    %1935 = memref.load %arg2[%c6_902, %c24_903] : memref<9x32xf32, #tpu.memory_space<smem>>
    %1936 = vector.broadcast %1935 : f32 to vector<10x34xf32>
    %1937 = arith.mulf %10, %1936 : vector<10x34xf32>
    %1938 = arith.addf %1934, %1937 : vector<10x34xf32>
    %c7_904 = arith.constant 7 : index
    %c24_905 = arith.constant 24 : index
    %1939 = memref.load %arg2[%c7_904, %c24_905] : memref<9x32xf32, #tpu.memory_space<smem>>
    %1940 = vector.broadcast %1939 : f32 to vector<10x34xf32>
    %1941 = arith.mulf %11, %1940 : vector<10x34xf32>
    %1942 = arith.addf %1938, %1941 : vector<10x34xf32>
    %c8_906 = arith.constant 8 : index
    %c24_907 = arith.constant 24 : index
    %1943 = memref.load %arg2[%c8_906, %c24_907] : memref<9x32xf32, #tpu.memory_space<smem>>
    %1944 = vector.broadcast %1943 : f32 to vector<10x34xf32>
    %1945 = arith.mulf %12, %1944 : vector<10x34xf32>
    %1946 = arith.addf %1942, %1945 : vector<10x34xf32>
    %c24_908 = arith.constant 24 : index
    %1947 = memref.load %arg3[%c24_908] : memref<32xf32, #tpu.memory_space<smem>>
    %1948 = vector.broadcast %1947 : f32 to vector<10x34xf32>
    %1949 = arith.addf %1946, %1948 : vector<10x34xf32>
    %cst_909 = arith.constant 0.000000e+00 : f32
    %1950 = vector.broadcast %cst_909 : f32 to vector<10x34xf32>
    %1951 = arith.maximumf %1949, %1950 : vector<10x34xf32>
    %1952 = vector.extract_strided_slice %1951 {offsets = [0, 0], sizes = [8, 34], strides = [1, 1]} : vector<10x34xf32> to vector<8x34xf32>
    %1953 = vector.extract_strided_slice %1951 {offsets = [1, 0], sizes = [8, 34], strides = [1, 1]} : vector<10x34xf32> to vector<8x34xf32>
    %1954 = vector.extract_strided_slice %1951 {offsets = [2, 0], sizes = [8, 34], strides = [1, 1]} : vector<10x34xf32> to vector<8x34xf32>
    %c0_910 = arith.constant 0 : index
    %c24_911 = arith.constant 24 : index
    %1955 = memref.load %arg4[%c0_910, %c24_911] : memref<9x32xf32, #tpu.memory_space<smem>>
    %1956 = vector.broadcast %1955 : f32 to vector<8x34xf32>
    %1957 = arith.mulf %1952, %1956 : vector<8x34xf32>
    %1958 = arith.addf %1887, %1957 : vector<8x34xf32>
    %c3_912 = arith.constant 3 : index
    %c24_913 = arith.constant 24 : index
    %1959 = memref.load %arg4[%c3_912, %c24_913] : memref<9x32xf32, #tpu.memory_space<smem>>
    %1960 = vector.broadcast %1959 : f32 to vector<8x34xf32>
    %1961 = arith.mulf %1953, %1960 : vector<8x34xf32>
    %1962 = arith.addf %1958, %1961 : vector<8x34xf32>
    %c6_914 = arith.constant 6 : index
    %c24_915 = arith.constant 24 : index
    %1963 = memref.load %arg4[%c6_914, %c24_915] : memref<9x32xf32, #tpu.memory_space<smem>>
    %1964 = vector.broadcast %1963 : f32 to vector<8x34xf32>
    %1965 = arith.mulf %1954, %1964 : vector<8x34xf32>
    %1966 = arith.addf %1962, %1965 : vector<8x34xf32>
    %c1_916 = arith.constant 1 : index
    %c24_917 = arith.constant 24 : index
    %1967 = memref.load %arg4[%c1_916, %c24_917] : memref<9x32xf32, #tpu.memory_space<smem>>
    %1968 = vector.broadcast %1967 : f32 to vector<8x34xf32>
    %1969 = arith.mulf %1952, %1968 : vector<8x34xf32>
    %1970 = arith.addf %1899, %1969 : vector<8x34xf32>
    %c4_918 = arith.constant 4 : index
    %c24_919 = arith.constant 24 : index
    %1971 = memref.load %arg4[%c4_918, %c24_919] : memref<9x32xf32, #tpu.memory_space<smem>>
    %1972 = vector.broadcast %1971 : f32 to vector<8x34xf32>
    %1973 = arith.mulf %1953, %1972 : vector<8x34xf32>
    %1974 = arith.addf %1970, %1973 : vector<8x34xf32>
    %c7_920 = arith.constant 7 : index
    %c24_921 = arith.constant 24 : index
    %1975 = memref.load %arg4[%c7_920, %c24_921] : memref<9x32xf32, #tpu.memory_space<smem>>
    %1976 = vector.broadcast %1975 : f32 to vector<8x34xf32>
    %1977 = arith.mulf %1954, %1976 : vector<8x34xf32>
    %1978 = arith.addf %1974, %1977 : vector<8x34xf32>
    %c2_922 = arith.constant 2 : index
    %c24_923 = arith.constant 24 : index
    %1979 = memref.load %arg4[%c2_922, %c24_923] : memref<9x32xf32, #tpu.memory_space<smem>>
    %1980 = vector.broadcast %1979 : f32 to vector<8x34xf32>
    %1981 = arith.mulf %1952, %1980 : vector<8x34xf32>
    %1982 = arith.addf %1911, %1981 : vector<8x34xf32>
    %c5_924 = arith.constant 5 : index
    %c24_925 = arith.constant 24 : index
    %1983 = memref.load %arg4[%c5_924, %c24_925] : memref<9x32xf32, #tpu.memory_space<smem>>
    %1984 = vector.broadcast %1983 : f32 to vector<8x34xf32>
    %1985 = arith.mulf %1953, %1984 : vector<8x34xf32>
    %1986 = arith.addf %1982, %1985 : vector<8x34xf32>
    %c8_926 = arith.constant 8 : index
    %c24_927 = arith.constant 24 : index
    %1987 = memref.load %arg4[%c8_926, %c24_927] : memref<9x32xf32, #tpu.memory_space<smem>>
    %1988 = vector.broadcast %1987 : f32 to vector<8x34xf32>
    %1989 = arith.mulf %1954, %1988 : vector<8x34xf32>
    %1990 = arith.addf %1986, %1989 : vector<8x34xf32>
    %c0_928 = arith.constant 0 : index
    %c25 = arith.constant 25 : index
    %1991 = memref.load %arg2[%c0_928, %c25] : memref<9x32xf32, #tpu.memory_space<smem>>
    %1992 = vector.broadcast %1991 : f32 to vector<10x34xf32>
    %1993 = arith.mulf %4, %1992 : vector<10x34xf32>
    %c1_929 = arith.constant 1 : index
    %c25_930 = arith.constant 25 : index
    %1994 = memref.load %arg2[%c1_929, %c25_930] : memref<9x32xf32, #tpu.memory_space<smem>>
    %1995 = vector.broadcast %1994 : f32 to vector<10x34xf32>
    %1996 = arith.mulf %5, %1995 : vector<10x34xf32>
    %1997 = arith.addf %1993, %1996 : vector<10x34xf32>
    %c2_931 = arith.constant 2 : index
    %c25_932 = arith.constant 25 : index
    %1998 = memref.load %arg2[%c2_931, %c25_932] : memref<9x32xf32, #tpu.memory_space<smem>>
    %1999 = vector.broadcast %1998 : f32 to vector<10x34xf32>
    %2000 = arith.mulf %6, %1999 : vector<10x34xf32>
    %2001 = arith.addf %1997, %2000 : vector<10x34xf32>
    %c3_933 = arith.constant 3 : index
    %c25_934 = arith.constant 25 : index
    %2002 = memref.load %arg2[%c3_933, %c25_934] : memref<9x32xf32, #tpu.memory_space<smem>>
    %2003 = vector.broadcast %2002 : f32 to vector<10x34xf32>
    %2004 = arith.mulf %7, %2003 : vector<10x34xf32>
    %2005 = arith.addf %2001, %2004 : vector<10x34xf32>
    %c4_935 = arith.constant 4 : index
    %c25_936 = arith.constant 25 : index
    %2006 = memref.load %arg2[%c4_935, %c25_936] : memref<9x32xf32, #tpu.memory_space<smem>>
    %2007 = vector.broadcast %2006 : f32 to vector<10x34xf32>
    %2008 = arith.mulf %8, %2007 : vector<10x34xf32>
    %2009 = arith.addf %2005, %2008 : vector<10x34xf32>
    %c5_937 = arith.constant 5 : index
    %c25_938 = arith.constant 25 : index
    %2010 = memref.load %arg2[%c5_937, %c25_938] : memref<9x32xf32, #tpu.memory_space<smem>>
    %2011 = vector.broadcast %2010 : f32 to vector<10x34xf32>
    %2012 = arith.mulf %9, %2011 : vector<10x34xf32>
    %2013 = arith.addf %2009, %2012 : vector<10x34xf32>
    %c6_939 = arith.constant 6 : index
    %c25_940 = arith.constant 25 : index
    %2014 = memref.load %arg2[%c6_939, %c25_940] : memref<9x32xf32, #tpu.memory_space<smem>>
    %2015 = vector.broadcast %2014 : f32 to vector<10x34xf32>
    %2016 = arith.mulf %10, %2015 : vector<10x34xf32>
    %2017 = arith.addf %2013, %2016 : vector<10x34xf32>
    %c7_941 = arith.constant 7 : index
    %c25_942 = arith.constant 25 : index
    %2018 = memref.load %arg2[%c7_941, %c25_942] : memref<9x32xf32, #tpu.memory_space<smem>>
    %2019 = vector.broadcast %2018 : f32 to vector<10x34xf32>
    %2020 = arith.mulf %11, %2019 : vector<10x34xf32>
    %2021 = arith.addf %2017, %2020 : vector<10x34xf32>
    %c8_943 = arith.constant 8 : index
    %c25_944 = arith.constant 25 : index
    %2022 = memref.load %arg2[%c8_943, %c25_944] : memref<9x32xf32, #tpu.memory_space<smem>>
    %2023 = vector.broadcast %2022 : f32 to vector<10x34xf32>
    %2024 = arith.mulf %12, %2023 : vector<10x34xf32>
    %2025 = arith.addf %2021, %2024 : vector<10x34xf32>
    %c25_945 = arith.constant 25 : index
    %2026 = memref.load %arg3[%c25_945] : memref<32xf32, #tpu.memory_space<smem>>
    %2027 = vector.broadcast %2026 : f32 to vector<10x34xf32>
    %2028 = arith.addf %2025, %2027 : vector<10x34xf32>
    %cst_946 = arith.constant 0.000000e+00 : f32
    %2029 = vector.broadcast %cst_946 : f32 to vector<10x34xf32>
    %2030 = arith.maximumf %2028, %2029 : vector<10x34xf32>
    %2031 = vector.extract_strided_slice %2030 {offsets = [0, 0], sizes = [8, 34], strides = [1, 1]} : vector<10x34xf32> to vector<8x34xf32>
    %2032 = vector.extract_strided_slice %2030 {offsets = [1, 0], sizes = [8, 34], strides = [1, 1]} : vector<10x34xf32> to vector<8x34xf32>
    %2033 = vector.extract_strided_slice %2030 {offsets = [2, 0], sizes = [8, 34], strides = [1, 1]} : vector<10x34xf32> to vector<8x34xf32>
    %c0_947 = arith.constant 0 : index
    %c25_948 = arith.constant 25 : index
    %2034 = memref.load %arg4[%c0_947, %c25_948] : memref<9x32xf32, #tpu.memory_space<smem>>
    %2035 = vector.broadcast %2034 : f32 to vector<8x34xf32>
    %2036 = arith.mulf %2031, %2035 : vector<8x34xf32>
    %2037 = arith.addf %1966, %2036 : vector<8x34xf32>
    %c3_949 = arith.constant 3 : index
    %c25_950 = arith.constant 25 : index
    %2038 = memref.load %arg4[%c3_949, %c25_950] : memref<9x32xf32, #tpu.memory_space<smem>>
    %2039 = vector.broadcast %2038 : f32 to vector<8x34xf32>
    %2040 = arith.mulf %2032, %2039 : vector<8x34xf32>
    %2041 = arith.addf %2037, %2040 : vector<8x34xf32>
    %c6_951 = arith.constant 6 : index
    %c25_952 = arith.constant 25 : index
    %2042 = memref.load %arg4[%c6_951, %c25_952] : memref<9x32xf32, #tpu.memory_space<smem>>
    %2043 = vector.broadcast %2042 : f32 to vector<8x34xf32>
    %2044 = arith.mulf %2033, %2043 : vector<8x34xf32>
    %2045 = arith.addf %2041, %2044 : vector<8x34xf32>
    %c1_953 = arith.constant 1 : index
    %c25_954 = arith.constant 25 : index
    %2046 = memref.load %arg4[%c1_953, %c25_954] : memref<9x32xf32, #tpu.memory_space<smem>>
    %2047 = vector.broadcast %2046 : f32 to vector<8x34xf32>
    %2048 = arith.mulf %2031, %2047 : vector<8x34xf32>
    %2049 = arith.addf %1978, %2048 : vector<8x34xf32>
    %c4_955 = arith.constant 4 : index
    %c25_956 = arith.constant 25 : index
    %2050 = memref.load %arg4[%c4_955, %c25_956] : memref<9x32xf32, #tpu.memory_space<smem>>
    %2051 = vector.broadcast %2050 : f32 to vector<8x34xf32>
    %2052 = arith.mulf %2032, %2051 : vector<8x34xf32>
    %2053 = arith.addf %2049, %2052 : vector<8x34xf32>
    %c7_957 = arith.constant 7 : index
    %c25_958 = arith.constant 25 : index
    %2054 = memref.load %arg4[%c7_957, %c25_958] : memref<9x32xf32, #tpu.memory_space<smem>>
    %2055 = vector.broadcast %2054 : f32 to vector<8x34xf32>
    %2056 = arith.mulf %2033, %2055 : vector<8x34xf32>
    %2057 = arith.addf %2053, %2056 : vector<8x34xf32>
    %c2_959 = arith.constant 2 : index
    %c25_960 = arith.constant 25 : index
    %2058 = memref.load %arg4[%c2_959, %c25_960] : memref<9x32xf32, #tpu.memory_space<smem>>
    %2059 = vector.broadcast %2058 : f32 to vector<8x34xf32>
    %2060 = arith.mulf %2031, %2059 : vector<8x34xf32>
    %2061 = arith.addf %1990, %2060 : vector<8x34xf32>
    %c5_961 = arith.constant 5 : index
    %c25_962 = arith.constant 25 : index
    %2062 = memref.load %arg4[%c5_961, %c25_962] : memref<9x32xf32, #tpu.memory_space<smem>>
    %2063 = vector.broadcast %2062 : f32 to vector<8x34xf32>
    %2064 = arith.mulf %2032, %2063 : vector<8x34xf32>
    %2065 = arith.addf %2061, %2064 : vector<8x34xf32>
    %c8_963 = arith.constant 8 : index
    %c25_964 = arith.constant 25 : index
    %2066 = memref.load %arg4[%c8_963, %c25_964] : memref<9x32xf32, #tpu.memory_space<smem>>
    %2067 = vector.broadcast %2066 : f32 to vector<8x34xf32>
    %2068 = arith.mulf %2033, %2067 : vector<8x34xf32>
    %2069 = arith.addf %2065, %2068 : vector<8x34xf32>
    %c0_965 = arith.constant 0 : index
    %c26 = arith.constant 26 : index
    %2070 = memref.load %arg2[%c0_965, %c26] : memref<9x32xf32, #tpu.memory_space<smem>>
    %2071 = vector.broadcast %2070 : f32 to vector<10x34xf32>
    %2072 = arith.mulf %4, %2071 : vector<10x34xf32>
    %c1_966 = arith.constant 1 : index
    %c26_967 = arith.constant 26 : index
    %2073 = memref.load %arg2[%c1_966, %c26_967] : memref<9x32xf32, #tpu.memory_space<smem>>
    %2074 = vector.broadcast %2073 : f32 to vector<10x34xf32>
    %2075 = arith.mulf %5, %2074 : vector<10x34xf32>
    %2076 = arith.addf %2072, %2075 : vector<10x34xf32>
    %c2_968 = arith.constant 2 : index
    %c26_969 = arith.constant 26 : index
    %2077 = memref.load %arg2[%c2_968, %c26_969] : memref<9x32xf32, #tpu.memory_space<smem>>
    %2078 = vector.broadcast %2077 : f32 to vector<10x34xf32>
    %2079 = arith.mulf %6, %2078 : vector<10x34xf32>
    %2080 = arith.addf %2076, %2079 : vector<10x34xf32>
    %c3_970 = arith.constant 3 : index
    %c26_971 = arith.constant 26 : index
    %2081 = memref.load %arg2[%c3_970, %c26_971] : memref<9x32xf32, #tpu.memory_space<smem>>
    %2082 = vector.broadcast %2081 : f32 to vector<10x34xf32>
    %2083 = arith.mulf %7, %2082 : vector<10x34xf32>
    %2084 = arith.addf %2080, %2083 : vector<10x34xf32>
    %c4_972 = arith.constant 4 : index
    %c26_973 = arith.constant 26 : index
    %2085 = memref.load %arg2[%c4_972, %c26_973] : memref<9x32xf32, #tpu.memory_space<smem>>
    %2086 = vector.broadcast %2085 : f32 to vector<10x34xf32>
    %2087 = arith.mulf %8, %2086 : vector<10x34xf32>
    %2088 = arith.addf %2084, %2087 : vector<10x34xf32>
    %c5_974 = arith.constant 5 : index
    %c26_975 = arith.constant 26 : index
    %2089 = memref.load %arg2[%c5_974, %c26_975] : memref<9x32xf32, #tpu.memory_space<smem>>
    %2090 = vector.broadcast %2089 : f32 to vector<10x34xf32>
    %2091 = arith.mulf %9, %2090 : vector<10x34xf32>
    %2092 = arith.addf %2088, %2091 : vector<10x34xf32>
    %c6_976 = arith.constant 6 : index
    %c26_977 = arith.constant 26 : index
    %2093 = memref.load %arg2[%c6_976, %c26_977] : memref<9x32xf32, #tpu.memory_space<smem>>
    %2094 = vector.broadcast %2093 : f32 to vector<10x34xf32>
    %2095 = arith.mulf %10, %2094 : vector<10x34xf32>
    %2096 = arith.addf %2092, %2095 : vector<10x34xf32>
    %c7_978 = arith.constant 7 : index
    %c26_979 = arith.constant 26 : index
    %2097 = memref.load %arg2[%c7_978, %c26_979] : memref<9x32xf32, #tpu.memory_space<smem>>
    %2098 = vector.broadcast %2097 : f32 to vector<10x34xf32>
    %2099 = arith.mulf %11, %2098 : vector<10x34xf32>
    %2100 = arith.addf %2096, %2099 : vector<10x34xf32>
    %c8_980 = arith.constant 8 : index
    %c26_981 = arith.constant 26 : index
    %2101 = memref.load %arg2[%c8_980, %c26_981] : memref<9x32xf32, #tpu.memory_space<smem>>
    %2102 = vector.broadcast %2101 : f32 to vector<10x34xf32>
    %2103 = arith.mulf %12, %2102 : vector<10x34xf32>
    %2104 = arith.addf %2100, %2103 : vector<10x34xf32>
    %c26_982 = arith.constant 26 : index
    %2105 = memref.load %arg3[%c26_982] : memref<32xf32, #tpu.memory_space<smem>>
    %2106 = vector.broadcast %2105 : f32 to vector<10x34xf32>
    %2107 = arith.addf %2104, %2106 : vector<10x34xf32>
    %cst_983 = arith.constant 0.000000e+00 : f32
    %2108 = vector.broadcast %cst_983 : f32 to vector<10x34xf32>
    %2109 = arith.maximumf %2107, %2108 : vector<10x34xf32>
    %2110 = vector.extract_strided_slice %2109 {offsets = [0, 0], sizes = [8, 34], strides = [1, 1]} : vector<10x34xf32> to vector<8x34xf32>
    %2111 = vector.extract_strided_slice %2109 {offsets = [1, 0], sizes = [8, 34], strides = [1, 1]} : vector<10x34xf32> to vector<8x34xf32>
    %2112 = vector.extract_strided_slice %2109 {offsets = [2, 0], sizes = [8, 34], strides = [1, 1]} : vector<10x34xf32> to vector<8x34xf32>
    %c0_984 = arith.constant 0 : index
    %c26_985 = arith.constant 26 : index
    %2113 = memref.load %arg4[%c0_984, %c26_985] : memref<9x32xf32, #tpu.memory_space<smem>>
    %2114 = vector.broadcast %2113 : f32 to vector<8x34xf32>
    %2115 = arith.mulf %2110, %2114 : vector<8x34xf32>
    %2116 = arith.addf %2045, %2115 : vector<8x34xf32>
    %c3_986 = arith.constant 3 : index
    %c26_987 = arith.constant 26 : index
    %2117 = memref.load %arg4[%c3_986, %c26_987] : memref<9x32xf32, #tpu.memory_space<smem>>
    %2118 = vector.broadcast %2117 : f32 to vector<8x34xf32>
    %2119 = arith.mulf %2111, %2118 : vector<8x34xf32>
    %2120 = arith.addf %2116, %2119 : vector<8x34xf32>
    %c6_988 = arith.constant 6 : index
    %c26_989 = arith.constant 26 : index
    %2121 = memref.load %arg4[%c6_988, %c26_989] : memref<9x32xf32, #tpu.memory_space<smem>>
    %2122 = vector.broadcast %2121 : f32 to vector<8x34xf32>
    %2123 = arith.mulf %2112, %2122 : vector<8x34xf32>
    %2124 = arith.addf %2120, %2123 : vector<8x34xf32>
    %c1_990 = arith.constant 1 : index
    %c26_991 = arith.constant 26 : index
    %2125 = memref.load %arg4[%c1_990, %c26_991] : memref<9x32xf32, #tpu.memory_space<smem>>
    %2126 = vector.broadcast %2125 : f32 to vector<8x34xf32>
    %2127 = arith.mulf %2110, %2126 : vector<8x34xf32>
    %2128 = arith.addf %2057, %2127 : vector<8x34xf32>
    %c4_992 = arith.constant 4 : index
    %c26_993 = arith.constant 26 : index
    %2129 = memref.load %arg4[%c4_992, %c26_993] : memref<9x32xf32, #tpu.memory_space<smem>>
    %2130 = vector.broadcast %2129 : f32 to vector<8x34xf32>
    %2131 = arith.mulf %2111, %2130 : vector<8x34xf32>
    %2132 = arith.addf %2128, %2131 : vector<8x34xf32>
    %c7_994 = arith.constant 7 : index
    %c26_995 = arith.constant 26 : index
    %2133 = memref.load %arg4[%c7_994, %c26_995] : memref<9x32xf32, #tpu.memory_space<smem>>
    %2134 = vector.broadcast %2133 : f32 to vector<8x34xf32>
    %2135 = arith.mulf %2112, %2134 : vector<8x34xf32>
    %2136 = arith.addf %2132, %2135 : vector<8x34xf32>
    %c2_996 = arith.constant 2 : index
    %c26_997 = arith.constant 26 : index
    %2137 = memref.load %arg4[%c2_996, %c26_997] : memref<9x32xf32, #tpu.memory_space<smem>>
    %2138 = vector.broadcast %2137 : f32 to vector<8x34xf32>
    %2139 = arith.mulf %2110, %2138 : vector<8x34xf32>
    %2140 = arith.addf %2069, %2139 : vector<8x34xf32>
    %c5_998 = arith.constant 5 : index
    %c26_999 = arith.constant 26 : index
    %2141 = memref.load %arg4[%c5_998, %c26_999] : memref<9x32xf32, #tpu.memory_space<smem>>
    %2142 = vector.broadcast %2141 : f32 to vector<8x34xf32>
    %2143 = arith.mulf %2111, %2142 : vector<8x34xf32>
    %2144 = arith.addf %2140, %2143 : vector<8x34xf32>
    %c8_1000 = arith.constant 8 : index
    %c26_1001 = arith.constant 26 : index
    %2145 = memref.load %arg4[%c8_1000, %c26_1001] : memref<9x32xf32, #tpu.memory_space<smem>>
    %2146 = vector.broadcast %2145 : f32 to vector<8x34xf32>
    %2147 = arith.mulf %2112, %2146 : vector<8x34xf32>
    %2148 = arith.addf %2144, %2147 : vector<8x34xf32>
    %c0_1002 = arith.constant 0 : index
    %c27 = arith.constant 27 : index
    %2149 = memref.load %arg2[%c0_1002, %c27] : memref<9x32xf32, #tpu.memory_space<smem>>
    %2150 = vector.broadcast %2149 : f32 to vector<10x34xf32>
    %2151 = arith.mulf %4, %2150 : vector<10x34xf32>
    %c1_1003 = arith.constant 1 : index
    %c27_1004 = arith.constant 27 : index
    %2152 = memref.load %arg2[%c1_1003, %c27_1004] : memref<9x32xf32, #tpu.memory_space<smem>>
    %2153 = vector.broadcast %2152 : f32 to vector<10x34xf32>
    %2154 = arith.mulf %5, %2153 : vector<10x34xf32>
    %2155 = arith.addf %2151, %2154 : vector<10x34xf32>
    %c2_1005 = arith.constant 2 : index
    %c27_1006 = arith.constant 27 : index
    %2156 = memref.load %arg2[%c2_1005, %c27_1006] : memref<9x32xf32, #tpu.memory_space<smem>>
    %2157 = vector.broadcast %2156 : f32 to vector<10x34xf32>
    %2158 = arith.mulf %6, %2157 : vector<10x34xf32>
    %2159 = arith.addf %2155, %2158 : vector<10x34xf32>
    %c3_1007 = arith.constant 3 : index
    %c27_1008 = arith.constant 27 : index
    %2160 = memref.load %arg2[%c3_1007, %c27_1008] : memref<9x32xf32, #tpu.memory_space<smem>>
    %2161 = vector.broadcast %2160 : f32 to vector<10x34xf32>
    %2162 = arith.mulf %7, %2161 : vector<10x34xf32>
    %2163 = arith.addf %2159, %2162 : vector<10x34xf32>
    %c4_1009 = arith.constant 4 : index
    %c27_1010 = arith.constant 27 : index
    %2164 = memref.load %arg2[%c4_1009, %c27_1010] : memref<9x32xf32, #tpu.memory_space<smem>>
    %2165 = vector.broadcast %2164 : f32 to vector<10x34xf32>
    %2166 = arith.mulf %8, %2165 : vector<10x34xf32>
    %2167 = arith.addf %2163, %2166 : vector<10x34xf32>
    %c5_1011 = arith.constant 5 : index
    %c27_1012 = arith.constant 27 : index
    %2168 = memref.load %arg2[%c5_1011, %c27_1012] : memref<9x32xf32, #tpu.memory_space<smem>>
    %2169 = vector.broadcast %2168 : f32 to vector<10x34xf32>
    %2170 = arith.mulf %9, %2169 : vector<10x34xf32>
    %2171 = arith.addf %2167, %2170 : vector<10x34xf32>
    %c6_1013 = arith.constant 6 : index
    %c27_1014 = arith.constant 27 : index
    %2172 = memref.load %arg2[%c6_1013, %c27_1014] : memref<9x32xf32, #tpu.memory_space<smem>>
    %2173 = vector.broadcast %2172 : f32 to vector<10x34xf32>
    %2174 = arith.mulf %10, %2173 : vector<10x34xf32>
    %2175 = arith.addf %2171, %2174 : vector<10x34xf32>
    %c7_1015 = arith.constant 7 : index
    %c27_1016 = arith.constant 27 : index
    %2176 = memref.load %arg2[%c7_1015, %c27_1016] : memref<9x32xf32, #tpu.memory_space<smem>>
    %2177 = vector.broadcast %2176 : f32 to vector<10x34xf32>
    %2178 = arith.mulf %11, %2177 : vector<10x34xf32>
    %2179 = arith.addf %2175, %2178 : vector<10x34xf32>
    %c8_1017 = arith.constant 8 : index
    %c27_1018 = arith.constant 27 : index
    %2180 = memref.load %arg2[%c8_1017, %c27_1018] : memref<9x32xf32, #tpu.memory_space<smem>>
    %2181 = vector.broadcast %2180 : f32 to vector<10x34xf32>
    %2182 = arith.mulf %12, %2181 : vector<10x34xf32>
    %2183 = arith.addf %2179, %2182 : vector<10x34xf32>
    %c27_1019 = arith.constant 27 : index
    %2184 = memref.load %arg3[%c27_1019] : memref<32xf32, #tpu.memory_space<smem>>
    %2185 = vector.broadcast %2184 : f32 to vector<10x34xf32>
    %2186 = arith.addf %2183, %2185 : vector<10x34xf32>
    %cst_1020 = arith.constant 0.000000e+00 : f32
    %2187 = vector.broadcast %cst_1020 : f32 to vector<10x34xf32>
    %2188 = arith.maximumf %2186, %2187 : vector<10x34xf32>
    %2189 = vector.extract_strided_slice %2188 {offsets = [0, 0], sizes = [8, 34], strides = [1, 1]} : vector<10x34xf32> to vector<8x34xf32>
    %2190 = vector.extract_strided_slice %2188 {offsets = [1, 0], sizes = [8, 34], strides = [1, 1]} : vector<10x34xf32> to vector<8x34xf32>
    %2191 = vector.extract_strided_slice %2188 {offsets = [2, 0], sizes = [8, 34], strides = [1, 1]} : vector<10x34xf32> to vector<8x34xf32>
    %c0_1021 = arith.constant 0 : index
    %c27_1022 = arith.constant 27 : index
    %2192 = memref.load %arg4[%c0_1021, %c27_1022] : memref<9x32xf32, #tpu.memory_space<smem>>
    %2193 = vector.broadcast %2192 : f32 to vector<8x34xf32>
    %2194 = arith.mulf %2189, %2193 : vector<8x34xf32>
    %2195 = arith.addf %2124, %2194 : vector<8x34xf32>
    %c3_1023 = arith.constant 3 : index
    %c27_1024 = arith.constant 27 : index
    %2196 = memref.load %arg4[%c3_1023, %c27_1024] : memref<9x32xf32, #tpu.memory_space<smem>>
    %2197 = vector.broadcast %2196 : f32 to vector<8x34xf32>
    %2198 = arith.mulf %2190, %2197 : vector<8x34xf32>
    %2199 = arith.addf %2195, %2198 : vector<8x34xf32>
    %c6_1025 = arith.constant 6 : index
    %c27_1026 = arith.constant 27 : index
    %2200 = memref.load %arg4[%c6_1025, %c27_1026] : memref<9x32xf32, #tpu.memory_space<smem>>
    %2201 = vector.broadcast %2200 : f32 to vector<8x34xf32>
    %2202 = arith.mulf %2191, %2201 : vector<8x34xf32>
    %2203 = arith.addf %2199, %2202 : vector<8x34xf32>
    %c1_1027 = arith.constant 1 : index
    %c27_1028 = arith.constant 27 : index
    %2204 = memref.load %arg4[%c1_1027, %c27_1028] : memref<9x32xf32, #tpu.memory_space<smem>>
    %2205 = vector.broadcast %2204 : f32 to vector<8x34xf32>
    %2206 = arith.mulf %2189, %2205 : vector<8x34xf32>
    %2207 = arith.addf %2136, %2206 : vector<8x34xf32>
    %c4_1029 = arith.constant 4 : index
    %c27_1030 = arith.constant 27 : index
    %2208 = memref.load %arg4[%c4_1029, %c27_1030] : memref<9x32xf32, #tpu.memory_space<smem>>
    %2209 = vector.broadcast %2208 : f32 to vector<8x34xf32>
    %2210 = arith.mulf %2190, %2209 : vector<8x34xf32>
    %2211 = arith.addf %2207, %2210 : vector<8x34xf32>
    %c7_1031 = arith.constant 7 : index
    %c27_1032 = arith.constant 27 : index
    %2212 = memref.load %arg4[%c7_1031, %c27_1032] : memref<9x32xf32, #tpu.memory_space<smem>>
    %2213 = vector.broadcast %2212 : f32 to vector<8x34xf32>
    %2214 = arith.mulf %2191, %2213 : vector<8x34xf32>
    %2215 = arith.addf %2211, %2214 : vector<8x34xf32>
    %c2_1033 = arith.constant 2 : index
    %c27_1034 = arith.constant 27 : index
    %2216 = memref.load %arg4[%c2_1033, %c27_1034] : memref<9x32xf32, #tpu.memory_space<smem>>
    %2217 = vector.broadcast %2216 : f32 to vector<8x34xf32>
    %2218 = arith.mulf %2189, %2217 : vector<8x34xf32>
    %2219 = arith.addf %2148, %2218 : vector<8x34xf32>
    %c5_1035 = arith.constant 5 : index
    %c27_1036 = arith.constant 27 : index
    %2220 = memref.load %arg4[%c5_1035, %c27_1036] : memref<9x32xf32, #tpu.memory_space<smem>>
    %2221 = vector.broadcast %2220 : f32 to vector<8x34xf32>
    %2222 = arith.mulf %2190, %2221 : vector<8x34xf32>
    %2223 = arith.addf %2219, %2222 : vector<8x34xf32>
    %c8_1037 = arith.constant 8 : index
    %c27_1038 = arith.constant 27 : index
    %2224 = memref.load %arg4[%c8_1037, %c27_1038] : memref<9x32xf32, #tpu.memory_space<smem>>
    %2225 = vector.broadcast %2224 : f32 to vector<8x34xf32>
    %2226 = arith.mulf %2191, %2225 : vector<8x34xf32>
    %2227 = arith.addf %2223, %2226 : vector<8x34xf32>
    %c0_1039 = arith.constant 0 : index
    %c28 = arith.constant 28 : index
    %2228 = memref.load %arg2[%c0_1039, %c28] : memref<9x32xf32, #tpu.memory_space<smem>>
    %2229 = vector.broadcast %2228 : f32 to vector<10x34xf32>
    %2230 = arith.mulf %4, %2229 : vector<10x34xf32>
    %c1_1040 = arith.constant 1 : index
    %c28_1041 = arith.constant 28 : index
    %2231 = memref.load %arg2[%c1_1040, %c28_1041] : memref<9x32xf32, #tpu.memory_space<smem>>
    %2232 = vector.broadcast %2231 : f32 to vector<10x34xf32>
    %2233 = arith.mulf %5, %2232 : vector<10x34xf32>
    %2234 = arith.addf %2230, %2233 : vector<10x34xf32>
    %c2_1042 = arith.constant 2 : index
    %c28_1043 = arith.constant 28 : index
    %2235 = memref.load %arg2[%c2_1042, %c28_1043] : memref<9x32xf32, #tpu.memory_space<smem>>
    %2236 = vector.broadcast %2235 : f32 to vector<10x34xf32>
    %2237 = arith.mulf %6, %2236 : vector<10x34xf32>
    %2238 = arith.addf %2234, %2237 : vector<10x34xf32>
    %c3_1044 = arith.constant 3 : index
    %c28_1045 = arith.constant 28 : index
    %2239 = memref.load %arg2[%c3_1044, %c28_1045] : memref<9x32xf32, #tpu.memory_space<smem>>
    %2240 = vector.broadcast %2239 : f32 to vector<10x34xf32>
    %2241 = arith.mulf %7, %2240 : vector<10x34xf32>
    %2242 = arith.addf %2238, %2241 : vector<10x34xf32>
    %c4_1046 = arith.constant 4 : index
    %c28_1047 = arith.constant 28 : index
    %2243 = memref.load %arg2[%c4_1046, %c28_1047] : memref<9x32xf32, #tpu.memory_space<smem>>
    %2244 = vector.broadcast %2243 : f32 to vector<10x34xf32>
    %2245 = arith.mulf %8, %2244 : vector<10x34xf32>
    %2246 = arith.addf %2242, %2245 : vector<10x34xf32>
    %c5_1048 = arith.constant 5 : index
    %c28_1049 = arith.constant 28 : index
    %2247 = memref.load %arg2[%c5_1048, %c28_1049] : memref<9x32xf32, #tpu.memory_space<smem>>
    %2248 = vector.broadcast %2247 : f32 to vector<10x34xf32>
    %2249 = arith.mulf %9, %2248 : vector<10x34xf32>
    %2250 = arith.addf %2246, %2249 : vector<10x34xf32>
    %c6_1050 = arith.constant 6 : index
    %c28_1051 = arith.constant 28 : index
    %2251 = memref.load %arg2[%c6_1050, %c28_1051] : memref<9x32xf32, #tpu.memory_space<smem>>
    %2252 = vector.broadcast %2251 : f32 to vector<10x34xf32>
    %2253 = arith.mulf %10, %2252 : vector<10x34xf32>
    %2254 = arith.addf %2250, %2253 : vector<10x34xf32>
    %c7_1052 = arith.constant 7 : index
    %c28_1053 = arith.constant 28 : index
    %2255 = memref.load %arg2[%c7_1052, %c28_1053] : memref<9x32xf32, #tpu.memory_space<smem>>
    %2256 = vector.broadcast %2255 : f32 to vector<10x34xf32>
    %2257 = arith.mulf %11, %2256 : vector<10x34xf32>
    %2258 = arith.addf %2254, %2257 : vector<10x34xf32>
    %c8_1054 = arith.constant 8 : index
    %c28_1055 = arith.constant 28 : index
    %2259 = memref.load %arg2[%c8_1054, %c28_1055] : memref<9x32xf32, #tpu.memory_space<smem>>
    %2260 = vector.broadcast %2259 : f32 to vector<10x34xf32>
    %2261 = arith.mulf %12, %2260 : vector<10x34xf32>
    %2262 = arith.addf %2258, %2261 : vector<10x34xf32>
    %c28_1056 = arith.constant 28 : index
    %2263 = memref.load %arg3[%c28_1056] : memref<32xf32, #tpu.memory_space<smem>>
    %2264 = vector.broadcast %2263 : f32 to vector<10x34xf32>
    %2265 = arith.addf %2262, %2264 : vector<10x34xf32>
    %cst_1057 = arith.constant 0.000000e+00 : f32
    %2266 = vector.broadcast %cst_1057 : f32 to vector<10x34xf32>
    %2267 = arith.maximumf %2265, %2266 : vector<10x34xf32>
    %2268 = vector.extract_strided_slice %2267 {offsets = [0, 0], sizes = [8, 34], strides = [1, 1]} : vector<10x34xf32> to vector<8x34xf32>
    %2269 = vector.extract_strided_slice %2267 {offsets = [1, 0], sizes = [8, 34], strides = [1, 1]} : vector<10x34xf32> to vector<8x34xf32>
    %2270 = vector.extract_strided_slice %2267 {offsets = [2, 0], sizes = [8, 34], strides = [1, 1]} : vector<10x34xf32> to vector<8x34xf32>
    %c0_1058 = arith.constant 0 : index
    %c28_1059 = arith.constant 28 : index
    %2271 = memref.load %arg4[%c0_1058, %c28_1059] : memref<9x32xf32, #tpu.memory_space<smem>>
    %2272 = vector.broadcast %2271 : f32 to vector<8x34xf32>
    %2273 = arith.mulf %2268, %2272 : vector<8x34xf32>
    %2274 = arith.addf %2203, %2273 : vector<8x34xf32>
    %c3_1060 = arith.constant 3 : index
    %c28_1061 = arith.constant 28 : index
    %2275 = memref.load %arg4[%c3_1060, %c28_1061] : memref<9x32xf32, #tpu.memory_space<smem>>
    %2276 = vector.broadcast %2275 : f32 to vector<8x34xf32>
    %2277 = arith.mulf %2269, %2276 : vector<8x34xf32>
    %2278 = arith.addf %2274, %2277 : vector<8x34xf32>
    %c6_1062 = arith.constant 6 : index
    %c28_1063 = arith.constant 28 : index
    %2279 = memref.load %arg4[%c6_1062, %c28_1063] : memref<9x32xf32, #tpu.memory_space<smem>>
    %2280 = vector.broadcast %2279 : f32 to vector<8x34xf32>
    %2281 = arith.mulf %2270, %2280 : vector<8x34xf32>
    %2282 = arith.addf %2278, %2281 : vector<8x34xf32>
    %c1_1064 = arith.constant 1 : index
    %c28_1065 = arith.constant 28 : index
    %2283 = memref.load %arg4[%c1_1064, %c28_1065] : memref<9x32xf32, #tpu.memory_space<smem>>
    %2284 = vector.broadcast %2283 : f32 to vector<8x34xf32>
    %2285 = arith.mulf %2268, %2284 : vector<8x34xf32>
    %2286 = arith.addf %2215, %2285 : vector<8x34xf32>
    %c4_1066 = arith.constant 4 : index
    %c28_1067 = arith.constant 28 : index
    %2287 = memref.load %arg4[%c4_1066, %c28_1067] : memref<9x32xf32, #tpu.memory_space<smem>>
    %2288 = vector.broadcast %2287 : f32 to vector<8x34xf32>
    %2289 = arith.mulf %2269, %2288 : vector<8x34xf32>
    %2290 = arith.addf %2286, %2289 : vector<8x34xf32>
    %c7_1068 = arith.constant 7 : index
    %c28_1069 = arith.constant 28 : index
    %2291 = memref.load %arg4[%c7_1068, %c28_1069] : memref<9x32xf32, #tpu.memory_space<smem>>
    %2292 = vector.broadcast %2291 : f32 to vector<8x34xf32>
    %2293 = arith.mulf %2270, %2292 : vector<8x34xf32>
    %2294 = arith.addf %2290, %2293 : vector<8x34xf32>
    %c2_1070 = arith.constant 2 : index
    %c28_1071 = arith.constant 28 : index
    %2295 = memref.load %arg4[%c2_1070, %c28_1071] : memref<9x32xf32, #tpu.memory_space<smem>>
    %2296 = vector.broadcast %2295 : f32 to vector<8x34xf32>
    %2297 = arith.mulf %2268, %2296 : vector<8x34xf32>
    %2298 = arith.addf %2227, %2297 : vector<8x34xf32>
    %c5_1072 = arith.constant 5 : index
    %c28_1073 = arith.constant 28 : index
    %2299 = memref.load %arg4[%c5_1072, %c28_1073] : memref<9x32xf32, #tpu.memory_space<smem>>
    %2300 = vector.broadcast %2299 : f32 to vector<8x34xf32>
    %2301 = arith.mulf %2269, %2300 : vector<8x34xf32>
    %2302 = arith.addf %2298, %2301 : vector<8x34xf32>
    %c8_1074 = arith.constant 8 : index
    %c28_1075 = arith.constant 28 : index
    %2303 = memref.load %arg4[%c8_1074, %c28_1075] : memref<9x32xf32, #tpu.memory_space<smem>>
    %2304 = vector.broadcast %2303 : f32 to vector<8x34xf32>
    %2305 = arith.mulf %2270, %2304 : vector<8x34xf32>
    %2306 = arith.addf %2302, %2305 : vector<8x34xf32>
    %c0_1076 = arith.constant 0 : index
    %c29 = arith.constant 29 : index
    %2307 = memref.load %arg2[%c0_1076, %c29] : memref<9x32xf32, #tpu.memory_space<smem>>
    %2308 = vector.broadcast %2307 : f32 to vector<10x34xf32>
    %2309 = arith.mulf %4, %2308 : vector<10x34xf32>
    %c1_1077 = arith.constant 1 : index
    %c29_1078 = arith.constant 29 : index
    %2310 = memref.load %arg2[%c1_1077, %c29_1078] : memref<9x32xf32, #tpu.memory_space<smem>>
    %2311 = vector.broadcast %2310 : f32 to vector<10x34xf32>
    %2312 = arith.mulf %5, %2311 : vector<10x34xf32>
    %2313 = arith.addf %2309, %2312 : vector<10x34xf32>
    %c2_1079 = arith.constant 2 : index
    %c29_1080 = arith.constant 29 : index
    %2314 = memref.load %arg2[%c2_1079, %c29_1080] : memref<9x32xf32, #tpu.memory_space<smem>>
    %2315 = vector.broadcast %2314 : f32 to vector<10x34xf32>
    %2316 = arith.mulf %6, %2315 : vector<10x34xf32>
    %2317 = arith.addf %2313, %2316 : vector<10x34xf32>
    %c3_1081 = arith.constant 3 : index
    %c29_1082 = arith.constant 29 : index
    %2318 = memref.load %arg2[%c3_1081, %c29_1082] : memref<9x32xf32, #tpu.memory_space<smem>>
    %2319 = vector.broadcast %2318 : f32 to vector<10x34xf32>
    %2320 = arith.mulf %7, %2319 : vector<10x34xf32>
    %2321 = arith.addf %2317, %2320 : vector<10x34xf32>
    %c4_1083 = arith.constant 4 : index
    %c29_1084 = arith.constant 29 : index
    %2322 = memref.load %arg2[%c4_1083, %c29_1084] : memref<9x32xf32, #tpu.memory_space<smem>>
    %2323 = vector.broadcast %2322 : f32 to vector<10x34xf32>
    %2324 = arith.mulf %8, %2323 : vector<10x34xf32>
    %2325 = arith.addf %2321, %2324 : vector<10x34xf32>
    %c5_1085 = arith.constant 5 : index
    %c29_1086 = arith.constant 29 : index
    %2326 = memref.load %arg2[%c5_1085, %c29_1086] : memref<9x32xf32, #tpu.memory_space<smem>>
    %2327 = vector.broadcast %2326 : f32 to vector<10x34xf32>
    %2328 = arith.mulf %9, %2327 : vector<10x34xf32>
    %2329 = arith.addf %2325, %2328 : vector<10x34xf32>
    %c6_1087 = arith.constant 6 : index
    %c29_1088 = arith.constant 29 : index
    %2330 = memref.load %arg2[%c6_1087, %c29_1088] : memref<9x32xf32, #tpu.memory_space<smem>>
    %2331 = vector.broadcast %2330 : f32 to vector<10x34xf32>
    %2332 = arith.mulf %10, %2331 : vector<10x34xf32>
    %2333 = arith.addf %2329, %2332 : vector<10x34xf32>
    %c7_1089 = arith.constant 7 : index
    %c29_1090 = arith.constant 29 : index
    %2334 = memref.load %arg2[%c7_1089, %c29_1090] : memref<9x32xf32, #tpu.memory_space<smem>>
    %2335 = vector.broadcast %2334 : f32 to vector<10x34xf32>
    %2336 = arith.mulf %11, %2335 : vector<10x34xf32>
    %2337 = arith.addf %2333, %2336 : vector<10x34xf32>
    %c8_1091 = arith.constant 8 : index
    %c29_1092 = arith.constant 29 : index
    %2338 = memref.load %arg2[%c8_1091, %c29_1092] : memref<9x32xf32, #tpu.memory_space<smem>>
    %2339 = vector.broadcast %2338 : f32 to vector<10x34xf32>
    %2340 = arith.mulf %12, %2339 : vector<10x34xf32>
    %2341 = arith.addf %2337, %2340 : vector<10x34xf32>
    %c29_1093 = arith.constant 29 : index
    %2342 = memref.load %arg3[%c29_1093] : memref<32xf32, #tpu.memory_space<smem>>
    %2343 = vector.broadcast %2342 : f32 to vector<10x34xf32>
    %2344 = arith.addf %2341, %2343 : vector<10x34xf32>
    %cst_1094 = arith.constant 0.000000e+00 : f32
    %2345 = vector.broadcast %cst_1094 : f32 to vector<10x34xf32>
    %2346 = arith.maximumf %2344, %2345 : vector<10x34xf32>
    %2347 = vector.extract_strided_slice %2346 {offsets = [0, 0], sizes = [8, 34], strides = [1, 1]} : vector<10x34xf32> to vector<8x34xf32>
    %2348 = vector.extract_strided_slice %2346 {offsets = [1, 0], sizes = [8, 34], strides = [1, 1]} : vector<10x34xf32> to vector<8x34xf32>
    %2349 = vector.extract_strided_slice %2346 {offsets = [2, 0], sizes = [8, 34], strides = [1, 1]} : vector<10x34xf32> to vector<8x34xf32>
    %c0_1095 = arith.constant 0 : index
    %c29_1096 = arith.constant 29 : index
    %2350 = memref.load %arg4[%c0_1095, %c29_1096] : memref<9x32xf32, #tpu.memory_space<smem>>
    %2351 = vector.broadcast %2350 : f32 to vector<8x34xf32>
    %2352 = arith.mulf %2347, %2351 : vector<8x34xf32>
    %2353 = arith.addf %2282, %2352 : vector<8x34xf32>
    %c3_1097 = arith.constant 3 : index
    %c29_1098 = arith.constant 29 : index
    %2354 = memref.load %arg4[%c3_1097, %c29_1098] : memref<9x32xf32, #tpu.memory_space<smem>>
    %2355 = vector.broadcast %2354 : f32 to vector<8x34xf32>
    %2356 = arith.mulf %2348, %2355 : vector<8x34xf32>
    %2357 = arith.addf %2353, %2356 : vector<8x34xf32>
    %c6_1099 = arith.constant 6 : index
    %c29_1100 = arith.constant 29 : index
    %2358 = memref.load %arg4[%c6_1099, %c29_1100] : memref<9x32xf32, #tpu.memory_space<smem>>
    %2359 = vector.broadcast %2358 : f32 to vector<8x34xf32>
    %2360 = arith.mulf %2349, %2359 : vector<8x34xf32>
    %2361 = arith.addf %2357, %2360 : vector<8x34xf32>
    %c1_1101 = arith.constant 1 : index
    %c29_1102 = arith.constant 29 : index
    %2362 = memref.load %arg4[%c1_1101, %c29_1102] : memref<9x32xf32, #tpu.memory_space<smem>>
    %2363 = vector.broadcast %2362 : f32 to vector<8x34xf32>
    %2364 = arith.mulf %2347, %2363 : vector<8x34xf32>
    %2365 = arith.addf %2294, %2364 : vector<8x34xf32>
    %c4_1103 = arith.constant 4 : index
    %c29_1104 = arith.constant 29 : index
    %2366 = memref.load %arg4[%c4_1103, %c29_1104] : memref<9x32xf32, #tpu.memory_space<smem>>
    %2367 = vector.broadcast %2366 : f32 to vector<8x34xf32>
    %2368 = arith.mulf %2348, %2367 : vector<8x34xf32>
    %2369 = arith.addf %2365, %2368 : vector<8x34xf32>
    %c7_1105 = arith.constant 7 : index
    %c29_1106 = arith.constant 29 : index
    %2370 = memref.load %arg4[%c7_1105, %c29_1106] : memref<9x32xf32, #tpu.memory_space<smem>>
    %2371 = vector.broadcast %2370 : f32 to vector<8x34xf32>
    %2372 = arith.mulf %2349, %2371 : vector<8x34xf32>
    %2373 = arith.addf %2369, %2372 : vector<8x34xf32>
    %c2_1107 = arith.constant 2 : index
    %c29_1108 = arith.constant 29 : index
    %2374 = memref.load %arg4[%c2_1107, %c29_1108] : memref<9x32xf32, #tpu.memory_space<smem>>
    %2375 = vector.broadcast %2374 : f32 to vector<8x34xf32>
    %2376 = arith.mulf %2347, %2375 : vector<8x34xf32>
    %2377 = arith.addf %2306, %2376 : vector<8x34xf32>
    %c5_1109 = arith.constant 5 : index
    %c29_1110 = arith.constant 29 : index
    %2378 = memref.load %arg4[%c5_1109, %c29_1110] : memref<9x32xf32, #tpu.memory_space<smem>>
    %2379 = vector.broadcast %2378 : f32 to vector<8x34xf32>
    %2380 = arith.mulf %2348, %2379 : vector<8x34xf32>
    %2381 = arith.addf %2377, %2380 : vector<8x34xf32>
    %c8_1111 = arith.constant 8 : index
    %c29_1112 = arith.constant 29 : index
    %2382 = memref.load %arg4[%c8_1111, %c29_1112] : memref<9x32xf32, #tpu.memory_space<smem>>
    %2383 = vector.broadcast %2382 : f32 to vector<8x34xf32>
    %2384 = arith.mulf %2349, %2383 : vector<8x34xf32>
    %2385 = arith.addf %2381, %2384 : vector<8x34xf32>
    %c0_1113 = arith.constant 0 : index
    %c30 = arith.constant 30 : index
    %2386 = memref.load %arg2[%c0_1113, %c30] : memref<9x32xf32, #tpu.memory_space<smem>>
    %2387 = vector.broadcast %2386 : f32 to vector<10x34xf32>
    %2388 = arith.mulf %4, %2387 : vector<10x34xf32>
    %c1_1114 = arith.constant 1 : index
    %c30_1115 = arith.constant 30 : index
    %2389 = memref.load %arg2[%c1_1114, %c30_1115] : memref<9x32xf32, #tpu.memory_space<smem>>
    %2390 = vector.broadcast %2389 : f32 to vector<10x34xf32>
    %2391 = arith.mulf %5, %2390 : vector<10x34xf32>
    %2392 = arith.addf %2388, %2391 : vector<10x34xf32>
    %c2_1116 = arith.constant 2 : index
    %c30_1117 = arith.constant 30 : index
    %2393 = memref.load %arg2[%c2_1116, %c30_1117] : memref<9x32xf32, #tpu.memory_space<smem>>
    %2394 = vector.broadcast %2393 : f32 to vector<10x34xf32>
    %2395 = arith.mulf %6, %2394 : vector<10x34xf32>
    %2396 = arith.addf %2392, %2395 : vector<10x34xf32>
    %c3_1118 = arith.constant 3 : index
    %c30_1119 = arith.constant 30 : index
    %2397 = memref.load %arg2[%c3_1118, %c30_1119] : memref<9x32xf32, #tpu.memory_space<smem>>
    %2398 = vector.broadcast %2397 : f32 to vector<10x34xf32>
    %2399 = arith.mulf %7, %2398 : vector<10x34xf32>
    %2400 = arith.addf %2396, %2399 : vector<10x34xf32>
    %c4_1120 = arith.constant 4 : index
    %c30_1121 = arith.constant 30 : index
    %2401 = memref.load %arg2[%c4_1120, %c30_1121] : memref<9x32xf32, #tpu.memory_space<smem>>
    %2402 = vector.broadcast %2401 : f32 to vector<10x34xf32>
    %2403 = arith.mulf %8, %2402 : vector<10x34xf32>
    %2404 = arith.addf %2400, %2403 : vector<10x34xf32>
    %c5_1122 = arith.constant 5 : index
    %c30_1123 = arith.constant 30 : index
    %2405 = memref.load %arg2[%c5_1122, %c30_1123] : memref<9x32xf32, #tpu.memory_space<smem>>
    %2406 = vector.broadcast %2405 : f32 to vector<10x34xf32>
    %2407 = arith.mulf %9, %2406 : vector<10x34xf32>
    %2408 = arith.addf %2404, %2407 : vector<10x34xf32>
    %c6_1124 = arith.constant 6 : index
    %c30_1125 = arith.constant 30 : index
    %2409 = memref.load %arg2[%c6_1124, %c30_1125] : memref<9x32xf32, #tpu.memory_space<smem>>
    %2410 = vector.broadcast %2409 : f32 to vector<10x34xf32>
    %2411 = arith.mulf %10, %2410 : vector<10x34xf32>
    %2412 = arith.addf %2408, %2411 : vector<10x34xf32>
    %c7_1126 = arith.constant 7 : index
    %c30_1127 = arith.constant 30 : index
    %2413 = memref.load %arg2[%c7_1126, %c30_1127] : memref<9x32xf32, #tpu.memory_space<smem>>
    %2414 = vector.broadcast %2413 : f32 to vector<10x34xf32>
    %2415 = arith.mulf %11, %2414 : vector<10x34xf32>
    %2416 = arith.addf %2412, %2415 : vector<10x34xf32>
    %c8_1128 = arith.constant 8 : index
    %c30_1129 = arith.constant 30 : index
    %2417 = memref.load %arg2[%c8_1128, %c30_1129] : memref<9x32xf32, #tpu.memory_space<smem>>
    %2418 = vector.broadcast %2417 : f32 to vector<10x34xf32>
    %2419 = arith.mulf %12, %2418 : vector<10x34xf32>
    %2420 = arith.addf %2416, %2419 : vector<10x34xf32>
    %c30_1130 = arith.constant 30 : index
    %2421 = memref.load %arg3[%c30_1130] : memref<32xf32, #tpu.memory_space<smem>>
    %2422 = vector.broadcast %2421 : f32 to vector<10x34xf32>
    %2423 = arith.addf %2420, %2422 : vector<10x34xf32>
    %cst_1131 = arith.constant 0.000000e+00 : f32
    %2424 = vector.broadcast %cst_1131 : f32 to vector<10x34xf32>
    %2425 = arith.maximumf %2423, %2424 : vector<10x34xf32>
    %2426 = vector.extract_strided_slice %2425 {offsets = [0, 0], sizes = [8, 34], strides = [1, 1]} : vector<10x34xf32> to vector<8x34xf32>
    %2427 = vector.extract_strided_slice %2425 {offsets = [1, 0], sizes = [8, 34], strides = [1, 1]} : vector<10x34xf32> to vector<8x34xf32>
    %2428 = vector.extract_strided_slice %2425 {offsets = [2, 0], sizes = [8, 34], strides = [1, 1]} : vector<10x34xf32> to vector<8x34xf32>
    %c0_1132 = arith.constant 0 : index
    %c30_1133 = arith.constant 30 : index
    %2429 = memref.load %arg4[%c0_1132, %c30_1133] : memref<9x32xf32, #tpu.memory_space<smem>>
    %2430 = vector.broadcast %2429 : f32 to vector<8x34xf32>
    %2431 = arith.mulf %2426, %2430 : vector<8x34xf32>
    %2432 = arith.addf %2361, %2431 : vector<8x34xf32>
    %c3_1134 = arith.constant 3 : index
    %c30_1135 = arith.constant 30 : index
    %2433 = memref.load %arg4[%c3_1134, %c30_1135] : memref<9x32xf32, #tpu.memory_space<smem>>
    %2434 = vector.broadcast %2433 : f32 to vector<8x34xf32>
    %2435 = arith.mulf %2427, %2434 : vector<8x34xf32>
    %2436 = arith.addf %2432, %2435 : vector<8x34xf32>
    %c6_1136 = arith.constant 6 : index
    %c30_1137 = arith.constant 30 : index
    %2437 = memref.load %arg4[%c6_1136, %c30_1137] : memref<9x32xf32, #tpu.memory_space<smem>>
    %2438 = vector.broadcast %2437 : f32 to vector<8x34xf32>
    %2439 = arith.mulf %2428, %2438 : vector<8x34xf32>
    %2440 = arith.addf %2436, %2439 : vector<8x34xf32>
    %c1_1138 = arith.constant 1 : index
    %c30_1139 = arith.constant 30 : index
    %2441 = memref.load %arg4[%c1_1138, %c30_1139] : memref<9x32xf32, #tpu.memory_space<smem>>
    %2442 = vector.broadcast %2441 : f32 to vector<8x34xf32>
    %2443 = arith.mulf %2426, %2442 : vector<8x34xf32>
    %2444 = arith.addf %2373, %2443 : vector<8x34xf32>
    %c4_1140 = arith.constant 4 : index
    %c30_1141 = arith.constant 30 : index
    %2445 = memref.load %arg4[%c4_1140, %c30_1141] : memref<9x32xf32, #tpu.memory_space<smem>>
    %2446 = vector.broadcast %2445 : f32 to vector<8x34xf32>
    %2447 = arith.mulf %2427, %2446 : vector<8x34xf32>
    %2448 = arith.addf %2444, %2447 : vector<8x34xf32>
    %c7_1142 = arith.constant 7 : index
    %c30_1143 = arith.constant 30 : index
    %2449 = memref.load %arg4[%c7_1142, %c30_1143] : memref<9x32xf32, #tpu.memory_space<smem>>
    %2450 = vector.broadcast %2449 : f32 to vector<8x34xf32>
    %2451 = arith.mulf %2428, %2450 : vector<8x34xf32>
    %2452 = arith.addf %2448, %2451 : vector<8x34xf32>
    %c2_1144 = arith.constant 2 : index
    %c30_1145 = arith.constant 30 : index
    %2453 = memref.load %arg4[%c2_1144, %c30_1145] : memref<9x32xf32, #tpu.memory_space<smem>>
    %2454 = vector.broadcast %2453 : f32 to vector<8x34xf32>
    %2455 = arith.mulf %2426, %2454 : vector<8x34xf32>
    %2456 = arith.addf %2385, %2455 : vector<8x34xf32>
    %c5_1146 = arith.constant 5 : index
    %c30_1147 = arith.constant 30 : index
    %2457 = memref.load %arg4[%c5_1146, %c30_1147] : memref<9x32xf32, #tpu.memory_space<smem>>
    %2458 = vector.broadcast %2457 : f32 to vector<8x34xf32>
    %2459 = arith.mulf %2427, %2458 : vector<8x34xf32>
    %2460 = arith.addf %2456, %2459 : vector<8x34xf32>
    %c8_1148 = arith.constant 8 : index
    %c30_1149 = arith.constant 30 : index
    %2461 = memref.load %arg4[%c8_1148, %c30_1149] : memref<9x32xf32, #tpu.memory_space<smem>>
    %2462 = vector.broadcast %2461 : f32 to vector<8x34xf32>
    %2463 = arith.mulf %2428, %2462 : vector<8x34xf32>
    %2464 = arith.addf %2460, %2463 : vector<8x34xf32>
    %c0_1150 = arith.constant 0 : index
    %c31 = arith.constant 31 : index
    %2465 = memref.load %arg2[%c0_1150, %c31] : memref<9x32xf32, #tpu.memory_space<smem>>
    %2466 = vector.broadcast %2465 : f32 to vector<10x34xf32>
    %2467 = arith.mulf %4, %2466 : vector<10x34xf32>
    %c1_1151 = arith.constant 1 : index
    %c31_1152 = arith.constant 31 : index
    %2468 = memref.load %arg2[%c1_1151, %c31_1152] : memref<9x32xf32, #tpu.memory_space<smem>>
    %2469 = vector.broadcast %2468 : f32 to vector<10x34xf32>
    %2470 = arith.mulf %5, %2469 : vector<10x34xf32>
    %2471 = arith.addf %2467, %2470 : vector<10x34xf32>
    %c2_1153 = arith.constant 2 : index
    %c31_1154 = arith.constant 31 : index
    %2472 = memref.load %arg2[%c2_1153, %c31_1154] : memref<9x32xf32, #tpu.memory_space<smem>>
    %2473 = vector.broadcast %2472 : f32 to vector<10x34xf32>
    %2474 = arith.mulf %6, %2473 : vector<10x34xf32>
    %2475 = arith.addf %2471, %2474 : vector<10x34xf32>
    %c3_1155 = arith.constant 3 : index
    %c31_1156 = arith.constant 31 : index
    %2476 = memref.load %arg2[%c3_1155, %c31_1156] : memref<9x32xf32, #tpu.memory_space<smem>>
    %2477 = vector.broadcast %2476 : f32 to vector<10x34xf32>
    %2478 = arith.mulf %7, %2477 : vector<10x34xf32>
    %2479 = arith.addf %2475, %2478 : vector<10x34xf32>
    %c4_1157 = arith.constant 4 : index
    %c31_1158 = arith.constant 31 : index
    %2480 = memref.load %arg2[%c4_1157, %c31_1158] : memref<9x32xf32, #tpu.memory_space<smem>>
    %2481 = vector.broadcast %2480 : f32 to vector<10x34xf32>
    %2482 = arith.mulf %8, %2481 : vector<10x34xf32>
    %2483 = arith.addf %2479, %2482 : vector<10x34xf32>
    %c5_1159 = arith.constant 5 : index
    %c31_1160 = arith.constant 31 : index
    %2484 = memref.load %arg2[%c5_1159, %c31_1160] : memref<9x32xf32, #tpu.memory_space<smem>>
    %2485 = vector.broadcast %2484 : f32 to vector<10x34xf32>
    %2486 = arith.mulf %9, %2485 : vector<10x34xf32>
    %2487 = arith.addf %2483, %2486 : vector<10x34xf32>
    %c6_1161 = arith.constant 6 : index
    %c31_1162 = arith.constant 31 : index
    %2488 = memref.load %arg2[%c6_1161, %c31_1162] : memref<9x32xf32, #tpu.memory_space<smem>>
    %2489 = vector.broadcast %2488 : f32 to vector<10x34xf32>
    %2490 = arith.mulf %10, %2489 : vector<10x34xf32>
    %2491 = arith.addf %2487, %2490 : vector<10x34xf32>
    %c7_1163 = arith.constant 7 : index
    %c31_1164 = arith.constant 31 : index
    %2492 = memref.load %arg2[%c7_1163, %c31_1164] : memref<9x32xf32, #tpu.memory_space<smem>>
    %2493 = vector.broadcast %2492 : f32 to vector<10x34xf32>
    %2494 = arith.mulf %11, %2493 : vector<10x34xf32>
    %2495 = arith.addf %2491, %2494 : vector<10x34xf32>
    %c8_1165 = arith.constant 8 : index
    %c31_1166 = arith.constant 31 : index
    %2496 = memref.load %arg2[%c8_1165, %c31_1166] : memref<9x32xf32, #tpu.memory_space<smem>>
    %2497 = vector.broadcast %2496 : f32 to vector<10x34xf32>
    %2498 = arith.mulf %12, %2497 : vector<10x34xf32>
    %2499 = arith.addf %2495, %2498 : vector<10x34xf32>
    %c31_1167 = arith.constant 31 : index
    %2500 = memref.load %arg3[%c31_1167] : memref<32xf32, #tpu.memory_space<smem>>
    %2501 = vector.broadcast %2500 : f32 to vector<10x34xf32>
    %2502 = arith.addf %2499, %2501 : vector<10x34xf32>
    %cst_1168 = arith.constant 0.000000e+00 : f32
    %2503 = vector.broadcast %cst_1168 : f32 to vector<10x34xf32>
    %2504 = arith.maximumf %2502, %2503 : vector<10x34xf32>
    %2505 = vector.extract_strided_slice %2504 {offsets = [0, 0], sizes = [8, 34], strides = [1, 1]} : vector<10x34xf32> to vector<8x34xf32>
    %2506 = vector.extract_strided_slice %2504 {offsets = [1, 0], sizes = [8, 34], strides = [1, 1]} : vector<10x34xf32> to vector<8x34xf32>
    %2507 = vector.extract_strided_slice %2504 {offsets = [2, 0], sizes = [8, 34], strides = [1, 1]} : vector<10x34xf32> to vector<8x34xf32>
    %c0_1169 = arith.constant 0 : index
    %c31_1170 = arith.constant 31 : index
    %2508 = memref.load %arg4[%c0_1169, %c31_1170] : memref<9x32xf32, #tpu.memory_space<smem>>
    %2509 = vector.broadcast %2508 : f32 to vector<8x34xf32>
    %2510 = arith.mulf %2505, %2509 : vector<8x34xf32>
    %2511 = arith.addf %2440, %2510 : vector<8x34xf32>
    %c3_1171 = arith.constant 3 : index
    %c31_1172 = arith.constant 31 : index
    %2512 = memref.load %arg4[%c3_1171, %c31_1172] : memref<9x32xf32, #tpu.memory_space<smem>>
    %2513 = vector.broadcast %2512 : f32 to vector<8x34xf32>
    %2514 = arith.mulf %2506, %2513 : vector<8x34xf32>
    %2515 = arith.addf %2511, %2514 : vector<8x34xf32>
    %c6_1173 = arith.constant 6 : index
    %c31_1174 = arith.constant 31 : index
    %2516 = memref.load %arg4[%c6_1173, %c31_1174] : memref<9x32xf32, #tpu.memory_space<smem>>
    %2517 = vector.broadcast %2516 : f32 to vector<8x34xf32>
    %2518 = arith.mulf %2507, %2517 : vector<8x34xf32>
    %2519 = arith.addf %2515, %2518 : vector<8x34xf32>
    %c1_1175 = arith.constant 1 : index
    %c31_1176 = arith.constant 31 : index
    %2520 = memref.load %arg4[%c1_1175, %c31_1176] : memref<9x32xf32, #tpu.memory_space<smem>>
    %2521 = vector.broadcast %2520 : f32 to vector<8x34xf32>
    %2522 = arith.mulf %2505, %2521 : vector<8x34xf32>
    %2523 = arith.addf %2452, %2522 : vector<8x34xf32>
    %c4_1177 = arith.constant 4 : index
    %c31_1178 = arith.constant 31 : index
    %2524 = memref.load %arg4[%c4_1177, %c31_1178] : memref<9x32xf32, #tpu.memory_space<smem>>
    %2525 = vector.broadcast %2524 : f32 to vector<8x34xf32>
    %2526 = arith.mulf %2506, %2525 : vector<8x34xf32>
    %2527 = arith.addf %2523, %2526 : vector<8x34xf32>
    %c7_1179 = arith.constant 7 : index
    %c31_1180 = arith.constant 31 : index
    %2528 = memref.load %arg4[%c7_1179, %c31_1180] : memref<9x32xf32, #tpu.memory_space<smem>>
    %2529 = vector.broadcast %2528 : f32 to vector<8x34xf32>
    %2530 = arith.mulf %2507, %2529 : vector<8x34xf32>
    %2531 = arith.addf %2527, %2530 : vector<8x34xf32>
    %c2_1181 = arith.constant 2 : index
    %c31_1182 = arith.constant 31 : index
    %2532 = memref.load %arg4[%c2_1181, %c31_1182] : memref<9x32xf32, #tpu.memory_space<smem>>
    %2533 = vector.broadcast %2532 : f32 to vector<8x34xf32>
    %2534 = arith.mulf %2505, %2533 : vector<8x34xf32>
    %2535 = arith.addf %2464, %2534 : vector<8x34xf32>
    %c5_1183 = arith.constant 5 : index
    %c31_1184 = arith.constant 31 : index
    %2536 = memref.load %arg4[%c5_1183, %c31_1184] : memref<9x32xf32, #tpu.memory_space<smem>>
    %2537 = vector.broadcast %2536 : f32 to vector<8x34xf32>
    %2538 = arith.mulf %2506, %2537 : vector<8x34xf32>
    %2539 = arith.addf %2535, %2538 : vector<8x34xf32>
    %c8_1185 = arith.constant 8 : index
    %c31_1186 = arith.constant 31 : index
    %2540 = memref.load %arg4[%c8_1185, %c31_1186] : memref<9x32xf32, #tpu.memory_space<smem>>
    %2541 = vector.broadcast %2540 : f32 to vector<8x34xf32>
    %2542 = arith.mulf %2507, %2541 : vector<8x34xf32>
    %2543 = arith.addf %2539, %2542 : vector<8x34xf32>
    %2544 = vector.extract_strided_slice %2519 {offsets = [0, 0], sizes = [8, 32], strides = [1, 1]} : vector<8x34xf32> to vector<8x32xf32>
    %2545 = vector.extract_strided_slice %2531 {offsets = [0, 1], sizes = [8, 32], strides = [1, 1]} : vector<8x34xf32> to vector<8x32xf32>
    %2546 = arith.addf %2544, %2545 : vector<8x32xf32>
    %2547 = vector.extract_strided_slice %2543 {offsets = [0, 2], sizes = [8, 32], strides = [1, 1]} : vector<8x34xf32> to vector<8x32xf32>
    %2548 = arith.addf %2546, %2547 : vector<8x32xf32>
    %c0_1187 = arith.constant 0 : index
    %2549 = memref.load %arg5[%c0_1187] : memref<1xf32, #tpu.memory_space<smem>>
    %2550 = vector.broadcast %2549 : f32 to vector<8x32xf32>
    %2551 = arith.addf %2548, %2550 : vector<8x32xf32>
    %2552 = tpu.iota {dimensions = array<i32: 0>} : vector<8x32xi32>
    %2553 = vector.broadcast %1 : i32 to vector<8x32xi32>
    %2554 = arith.addi %2553, %2552 : vector<8x32xi32>
    %2555 = tpu.iota {dimensions = array<i32: 1>} : vector<8x32xi32>
    %c24_i32 = arith.constant 24 : i32
    %2556 = vector.broadcast %c24_i32 : i32 to vector<8x32xi32>
    %2557 = arith.cmpi slt, %2554, %2556 : vector<8x32xi32>
    %c24_i32_1188 = arith.constant 24 : i32
    %2558 = vector.broadcast %c24_i32_1188 : i32 to vector<8x32xi32>
    %2559 = arith.cmpi slt, %2555, %2558 : vector<8x32xi32>
    %2560 = arith.andi %2557, %2559 : vector<8x32xi1>
    %cst_1189 = arith.constant 0xFF800000 : f32
    %2561 = vector.broadcast %cst_1189 : f32 to vector<8x32xf32>
    %2562 = arith.select %2560, %2551, %2561 : vector<8x32xi1>, vector<8x32xf32>
    %c0_1190 = arith.constant 0 : index
    %c0_1191 = arith.constant 0 : index
    %2563 = vector.load %arg6[%c0_1190, %c0_1191] : memref<8x32xf32, #tpu.memory_space<vmem>>, vector<8x32xf32>
    tpu.vector_store %arg6[%c0_1190, %c0_1191], %2562 {strides = array<i32>} : memref<8x32xf32, #tpu.memory_space<vmem>>, vector<8x32xf32>,
    return
  }
  func.func @transform_0(%arg0: i32) -> (i32, i32) {
    %c0_i32 = arith.constant 0 : i32
    %c0_i32_0 = arith.constant 0 : i32
    %c0_i32_1 = arith.constant 0 : i32
    return %c0_i32, %c0_i32_0 : i32, i32
  }
  func.func @transform_1(%arg0: i32) -> (i32, i32) {
    %c0_i32 = arith.constant 0 : i32
    %c0_i32_0 = arith.constant 0 : i32
    %c0_i32_1 = arith.constant 0 : i32
    return %c0_i32, %c0_i32_0 : i32, i32
  }
  func.func @transform_2(%arg0: i32) -> i32 {
    %c0_i32 = arith.constant 0 : i32
    %c0_i32_0 = arith.constant 0 : i32
    return %c0_i32 : i32
  }
  func.func @transform_3(%arg0: i32) -> (i32, i32) {
    %c0_i32 = arith.constant 0 : i32
    %c0_i32_0 = arith.constant 0 : i32
    %c0_i32_1 = arith.constant 0 : i32
    return %c0_i32, %c0_i32_0 : i32, i32
  }
  func.func @transform_4(%arg0: i32) -> i32 {
    %c0_i32 = arith.constant 0 : i32
    %c0_i32_0 = arith.constant 0 : i32
    return %c0_i32 : i32
  }
  func.func @transform_5(%arg0: i32) -> (i32, i32) {
    %c0_i32 = arith.constant 0 : i32
    %c0_i32_0 = arith.constant 0 : i32
    return %arg0, %c0_i32 : i32, i32
  }
}

</mosaic_0001>

<llo_original>
// kernel: tpu_custom_call.1
$region0: #{tpu_custom_call.1}
  #allocation0 [shape = 'u32[]', space=smem, size = 0x4, offset = 0x4, fixed_abs, tag = 'smem constant byte address 0x4 - core index']
  #allocation1 [shape = 'u32[144,128]{1,0:T(1,128)}', space=vmem, size = 0x12000, scoped, tag = 'internal scratch']
  #allocation2 [shape = 'f32[1]{0:T(128)S(6)}', space=smem, size = 0x200, scoped, tag = 'scoped memory for tpu_custom_call.1']
  %s0 = inlined_call_operand.hbm [shape: f32[36,36], index: 0, kind: input, shape index: {}]
  %s1 = inlined_call_operand.hbm [shape: f32[9,32], index: 1, kind: input, shape index: {}]
  %s2 = inlined_call_operand.vmem [shape: f32[32], index: 2, kind: input, shape index: {}]
  %s3 = inlined_call_operand.hbm [shape: f32[9,32], index: 3, kind: input, shape index: {}]
  %s4 = inlined_call_operand.<no memory space> [shape: f32[1], index: 4, kind: input, shape index: {}]
  %s5 = inlined_call_operand.hbm [shape: f32[32,32], index: 5, kind: output, shape index: {}]
  %s6 = sld [smem:[#allocation0]]
  $region69: #{tpu_custom_call.1} parent=0
    _
  %s8 = ssub.s32 1, %s6
  %s9 = scalar_select 0, %s8, %s6
  %10 = sst [smem:[#allocation2]] %s4
  $region1: #{tpu_custom_call.1} parent=0
    #allocation3 [shape = 'u8[20480]{0}', space=vmem, size = 0x5000, scoped, tag = 'input window, operand 0, single buffered']
    #allocation4 [shape = 's32[2]{0}', space=sflag, size = 0x8, scoped, tag = 'scoped memory for tpu_custom_call.1']
    #allocation5 [shape = 's32[2]{0}', space=sflag, size = 0x8, scoped, tag = 'scoped memory for tpu_custom_call.1']
    #allocation6 [shape = 's32[2]{0}', space=sflag, size = 0x8, scoped, tag = 'scoped memory for tpu_custom_call.1']
    #allocation7 [shape = 's32[2]{0}', space=sflag, size = 0x8, scoped, tag = 'scoped memory for tpu_custom_call.1']
    #allocation8 [shape = 'u8[8192]{0}', space=smem, size = 0x2000, scoped, tag = 'input window, operand 1, single buffered']
    #allocation9 [shape = 'u8[512]{0}', space=smem, size = 0x200, scoped, tag = 'input window, operand 2, single buffered']
    #allocation10 [shape = 'u8[8192]{0}', space=smem, size = 0x2000, scoped, tag = 'input window, operand 3, single buffered']
    #allocation11 [shape = 's32[1]{0}', space=sflag, size = 0x4, scoped, tag = 'scoped memory for tpu_custom_call.1']
    #allocation12 [shape = 'u8[8192]{0}', space=vmem, size = 0x2000, scoped, tag = 'output window, operand 0']
    %11 = vsyncpa [#allocation4], 0
    %12 = vsyncpa [#allocation6], 0
    %13 = vsyncpa [#allocation7], 0
    %14 = vsyncpa [#allocation11], 0
    %15 = vsyncpa [#allocation5], 0
    %s16 = scalar_lea.sflag [#allocation5], 1
    %17 = vsyncpa %s16, 0
    loop: start=0, step=1, limit=6
    $region2: #{tpu_custom_call.1} parent=1 // loop_pre_header
      _
    $region3: #{tpu_custom_call.1} parent=1 // loop_header
      %s19 = sphi 0, %s23
      %p20 = scmp.ge.s32.totalorder %s19, 6
      %s27 = sphi 0, %s27
      %s29 = sphi 0, %s27
      %s30 = sphi 0, %s29
      %s44 = sphi 0, %s30
      %s48 = sphi 0, %s48
      %s50 = sphi 0, %s48
      %s51 = sphi 0, %s50
      %s65 = sphi 0, %s51
      %s69 = sphi 0, %s69
      %s71 = sphi 0, %s69
      %s72 = sphi 0, %s71
      %s86 = sphi 0, %s72
      %s90 = sphi 0, %s90
      %s92 = sphi 0, %s90
      %s93 = sphi 0, %s92
      %s107 = sphi 0, %s93
      %s111 = sphi 0, %s111
      %s113 = sphi 0, %s111
      %s114 = sphi 0, %s113
      %s128 = sphi 0, %s114
      %s134 = sphi 0, %s136
      %s137 = sphi 0, %s134
      %s138 = sphi 0, %s137
      %s154 = sphi 0, %s138
    $region4: #{tpu_custom_call.1} parent=1 // loop_header_branch
      %22 = sbr.rel (%p20) target = $region8
    $region5: #{tpu_custom_call.1} parent=1 // loop_body
      %s24 = ssub.s32 %s19, 1
      %s25 = ssub.s32 %s19, 2
      %s26 = sadd.s32 %s19, 1
      %s28 = sadd.s32 %s27, 1
      %p31 = scmp.eq.s32.totalorder %s19, 3
      %p32 = scmp.ne.s32.totalorder %s27, %s29
      %p33 = scmp.eq.s32.totalorder %s19, 0
      %p34 = por %p32, %p33
      %p35 = scmp.ne.s32.totalorder %s27, %s29
      %p36 = scmp.eq.s32.totalorder %s24, 3
      %p37 = por %p35, %p36
      %p38 = scmp.ne.s32.totalorder %s29, %s30
      %p39 = scmp.eq.s32.totalorder %s24, 0
      %p40 = por %p38, %p39
      %p41 = scmp.ne.s32.totalorder %s29, %s30
      %p42 = scmp.eq.s32.totalorder %s25, 3
      %p43 = por %p41, %p42
      %p45 = scmp.ne.s32.totalorder %s30, %s44
      %p46 = scmp.eq.s32.totalorder %s25, 0
      %p47 = por %p45, %p46
      %s49 = sadd.s32 %s48, 1
      %p52 = scmp.eq.s32.totalorder %s19, 3
      %p53 = scmp.ne.s32.totalorder %s48, %s50
      %p54 = scmp.eq.s32.totalorder %s19, 0
      %p55 = por %p53, %p54
      %p56 = scmp.ne.s32.totalorder %s48, %s50
      %p57 = scmp.eq.s32.totalorder %s24, 3
      %p58 = por %p56, %p57
      %p59 = scmp.ne.s32.totalorder %s50, %s51
      %p60 = scmp.eq.s32.totalorder %s24, 0
      %p61 = por %p59, %p60
      %p62 = scmp.ne.s32.totalorder %s50, %s51
      %p63 = scmp.eq.s32.totalorder %s25, 3
      %p64 = por %p62, %p63
      %p66 = scmp.ne.s32.totalorder %s51, %s65
      %p67 = scmp.eq.s32.totalorder %s25, 0
      %p68 = por %p66, %p67
      %s70 = sadd.s32 %s69, 1
      %p73 = scmp.eq.s32.totalorder %s19, 3
      %p74 = scmp.ne.s32.totalorder %s69, %s71
      %p75 = scmp.eq.s32.totalorder %s19, 0
      %p76 = por %p74, %p75
      %p77 = scmp.ne.s32.totalorder %s69, %s71
      %p78 = scmp.eq.s32.totalorder %s24, 3
      %p79 = por %p77, %p78
      %p80 = scmp.ne.s32.totalorder %s71, %s72
      %p81 = scmp.eq.s32.totalorder %s24, 0
      %p82 = por %p80, %p81
      %p83 = scmp.ne.s32.totalorder %s71, %s72
      %p84 = scmp.eq.s32.totalorder %s25, 3
      %p85 = por %p83, %p84
      %p87 = scmp.ne.s32.totalorder %s72, %s86
      %p88 = scmp.eq.s32.totalorder %s25, 0
      %p89 = por %p87, %p88
      %s91 = sadd.s32 %s90, 1
      %p94 = scmp.eq.s32.totalorder %s19, 3
      %p95 = scmp.ne.s32.totalorder %s90, %s92
      %p96 = scmp.eq.s32.totalorder %s19, 0
      %p97 = por %p95, %p96
      %p98 = scmp.ne.s32.totalorder %s90, %s92
      %p99 = scmp.eq.s32.totalorder %s24, 3
      %p100 = por %p98, %p99
      %p101 = scmp.ne.s32.totalorder %s92, %s93
      %p102 = scmp.eq.s32.totalorder %s24, 0
      %p103 = por %p101, %p102
      %p104 = scmp.ne.s32.totalorder %s92, %s93
      %p105 = scmp.eq.s32.totalorder %s25, 3
      %p106 = por %p104, %p105
      %p108 = scmp.ne.s32.totalorder %s93, %s107
      %p109 = scmp.eq.s32.totalorder %s25, 0
      %p110 = por %p108, %p109
      %s112 = sadd.s32 %s111, 1
      %p115 = scmp.eq.s32.totalorder %s19, 3
      %p116 = scmp.ne.s32.totalorder %s111, %s113
      %p117 = scmp.eq.s32.totalorder %s19, 0
      %p118 = por %p116, %p117
      %p119 = scmp.ne.s32.totalorder %s111, %s113
      %p120 = scmp.eq.s32.totalorder %s24, 3
      %p121 = por %p119, %p120
      %p122 = scmp.ne.s32.totalorder %s113, %s114
      %p123 = scmp.eq.s32.totalorder %s24, 0
      %p124 = por %p122, %p123
      %p125 = scmp.ne.s32.totalorder %s113, %s114
      %p126 = scmp.eq.s32.totalorder %s25, 3
      %p127 = por %p125, %p126
      %p129 = scmp.ne.s32.totalorder %s114, %s128
      %p130 = scmp.eq.s32.totalorder %s25, 0
      %p131 = por %p129, %p130
      %s132 = ssub.s32 %s19, %s26
      %p133 = scmp.eq.s32.totalorder %s132, 0
      %s135 = sadd.s32 %s134, 1
      %s136 = scalar_select %p133, %s134, %s135
      %p139 = pneg %p133
      %p140 = scmp.eq.s32.totalorder %s19, 3
      %p141 = por %p139, %p140
      %p142 = scmp.ne.s32.totalorder %s134, %s137
      %p143 = scmp.eq.s32.totalorder %s19, 0
      %p144 = por %p142, %p143
      %p145 = scmp.ne.s32.totalorder %s134, %s137
      %p146 = scmp.eq.s32.totalorder %s24, 3
      %p147 = por %p145, %p146
      %p148 = scmp.ne.s32.totalorder %s137, %s138
      %p149 = scmp.eq.s32.totalorder %s24, 0
      %p150 = por %p148, %p149
      %p151 = scmp.ne.s32.totalorder %s137, %s138
      %p152 = scmp.eq.s32.totalorder %s25, 3
      %p153 = por %p151, %p152
      %p155 = scmp.ne.s32.totalorder %s138, %s154
      %p156 = scmp.eq.s32.totalorder %s25, 0
      %p157 = por %p155, %p156
      %p158 = scmp.le.s32.totalorder 1, %s19
      %p159 = scmp.lt.s32.totalorder %s19, 5
      %p160 = pnand %p158, %p159
      %p161 = pneg %p160
      // Predicated region
      $region9: #{tpu_custom_call.1} parent=5 // pred_check
        _
      $region10: #{tpu_custom_call.1} parent=5 // pred_check_branch
        %163 = sbr.rel (%p160) target = $region12
      $region11: #{tpu_custom_call.1} parent=5 // pred_region
        %s164 = ssub.s32 %s19, 1
        // Predicated region
        $region13: #{tpu_custom_call.1} parent=11 // pred_check
          %p165 = pneg %p40
        $region14: #{tpu_custom_call.1} parent=11 // pred_check_branch
          %167 = sbr.rel (%p165) target = $region16
        $region15: #{tpu_custom_call.1} parent=11 // pred_region
          %s169 = ssub.s32 640, 640
          %170 = vsyncadd [#allocation4], %s169
          %s171 = sshll.u32 [#allocation3], 4
          %s172 = int_to_ptr.vmem [resolvable:$true] %s171
          %177 = dma.hbm_to_vmem [thread:$0]  %s0, 640, %s172, [#allocation4], 128, 128, 8
        $region16: #{tpu_custom_call.1} parent=11 // pred_fallthru
          _
        // Predicated region
        $region17: #{tpu_custom_call.1} parent=11 // pred_check
          %p178 = pneg %p61
        $region18: #{tpu_custom_call.1} parent=11 // pred_check_branch
          %180 = sbr.rel (%p178) target = $region20
        $region19: #{tpu_custom_call.1} parent=11 // pred_region
          %s182 = ssub.s32 256, 256
          %183 = vsyncadd [#allocation6], %s182
          %188 = dma.hbm_to_smem %s1, 256, [#allocation8], [#allocation6], 128, 128, 8
        $region20: #{tpu_custom_call.1} parent=11 // pred_fallthru
          _
        // Predicated region
        $region21: #{tpu_custom_call.1} parent=11 // pred_check
          %p189 = pneg %p82
        $region22: #{tpu_custom_call.1} parent=11 // pred_check_branch
          %191 = sbr.rel (%p189) target = $region24
        $region23: #{tpu_custom_call.1} parent=11 // pred_region
          %s193 = ssub.s32 16, 16
          %194 = vsyncadd [#allocation7], %s193
          %s196 = sshll.u32 %s2, 4
          %s197 = int_to_ptr.vmem [resolvable:$true] %s196
          %199 = dma.vmem_to_smem %s197, 16, [#allocation9], [#allocation7]
        $region24: #{tpu_custom_call.1} parent=11 // pred_fallthru
          _
        // Predicated region
        $region25: #{tpu_custom_call.1} parent=11 // pred_check
          %p200 = pneg %p103
        $region26: #{tpu_custom_call.1} parent=11 // pred_check_branch
          %202 = sbr.rel (%p200) target = $region28
        $region27: #{tpu_custom_call.1} parent=11 // pred_region
          %s204 = ssub.s32 256, 256
          %205 = vsyncadd [#allocation11], %s204
          %210 = dma.hbm_to_smem %s3, 256, [#allocation10], [#allocation11], 128, 128, 8
        $region28: #{tpu_custom_call.1} parent=11 // pred_fallthru
          _
        // Predicated region
        $region29: #{tpu_custom_call.1} parent=11 // pred_check
          %p211 = pneg %p124
        $region30: #{tpu_custom_call.1} parent=11 // pred_check_branch
          %213 = sbr.rel (%p211) target = $region32
        $region31: #{tpu_custom_call.1} parent=11 // pred_region
          _
        $region32: #{tpu_custom_call.1} parent=11 // pred_fallthru
          _
      $region12: #{tpu_custom_call.1} parent=5 // pred_fallthru
        _
      %p214 = scmp.lt.s32.totalorder %s19, 4
      // Predicated region
      $region33: #{tpu_custom_call.1} parent=5 // pred_check
        %p215 = pneg %p214
      $region34: #{tpu_custom_call.1} parent=5 // pred_check_branch
        %217 = sbr.rel (%p215) target = $region36
      $region35: #{tpu_custom_call.1} parent=5 // pred_region
        _
      $region36: #{tpu_custom_call.1} parent=5 // pred_fallthru
        _
      %p218 = scmp.le.s32.totalorder 1, %s19
      %p219 = scmp.lt.s32.totalorder %s19, 5
      %p220 = pnand %p218, %p219
      %p221 = pneg %p220
      // Predicated region
      $region37: #{tpu_custom_call.1} parent=5 // pred_check
        _
      $region38: #{tpu_custom_call.1} parent=5 // pred_check_branch
        %223 = sbr.rel (%p220) target = $region40
      $region39: #{tpu_custom_call.1} parent=5 // pred_region
        %s224 = ssub.s32 %s19, 1
        // Predicated region
        $region41: #{tpu_custom_call.1} parent=39 // pred_check
          %p225 = pneg %p40
        $region42: #{tpu_custom_call.1} parent=39 // pred_check_branch
          %227 = sbr.rel (%p225) target = $region44
        $region43: #{tpu_custom_call.1} parent=39 // pred_region
          %228 = dma.done [#allocation4], 640
        $region44: #{tpu_custom_call.1} parent=39 // pred_fallthru
          _
        // Predicated region
        $region45: #{tpu_custom_call.1} parent=39 // pred_check
          %p229 = pneg %p61
        $region46: #{tpu_custom_call.1} parent=39 // pred_check_branch
          %231 = sbr.rel (%p229) target = $region48
        $region47: #{tpu_custom_call.1} parent=39 // pred_region
          %232 = dma.done [#allocation6], 256
        $region48: #{tpu_custom_call.1} parent=39 // pred_fallthru
          _
        // Predicated region
        $region49: #{tpu_custom_call.1} parent=39 // pred_check
          %p233 = pneg %p82
        $region50: #{tpu_custom_call.1} parent=39 // pred_check_branch
          %235 = sbr.rel (%p233) target = $region52
        $region51: #{tpu_custom_call.1} parent=39 // pred_region
          %236 = dma.done [#allocation7], 16
        $region52: #{tpu_custom_call.1} parent=39 // pred_fallthru
          _
        // Predicated region
        $region53: #{tpu_custom_call.1} parent=39 // pred_check
          %p237 = pneg %p103
        $region54: #{tpu_custom_call.1} parent=39 // pred_check_branch
          %239 = sbr.rel (%p237) target = $region56
        $region55: #{tpu_custom_call.1} parent=39 // pred_region
          %240 = dma.done [#allocation11], 256
        $region56: #{tpu_custom_call.1} parent=39 // pred_fallthru
          _
        %241 = sfence
        %p242 = pneg %p40
        %p243 = pneg %p37
        %p244 = pneg %p61
        %p245 = pneg %p58
        %p246 = pneg %p82
        %p247 = pneg %p79
        %p248 = pneg %p103
        %p249 = pneg %p100
        %p250 = pneg %p124
        %p251 = pneg %p121
        %p252 = pneg %p150
        %p253 = pneg %p147
        %s254 = sand.u32 %s137, 1
        %s255 = scalar_lea.sflag [#allocation5], %s254
        %s256 = sand.u32 %s137, 1
        %s257 = smul.addr %s256, 8
        %s258 = scalar_lea.vmem [#allocation12], %s257
        %s259 = smul.u32 %s24, 8
        %s260 = scalar_lea.vmem [#allocation3], %s259
        %v261 = vld [vmem:[%s260] sm:$0xff]
        %v262 = vld [vmem:[%s260 + $0x8] sm:$0xf]
        %s263 = sld [smem:[#allocation8]]
        %v264 = vstv %s263
        %v265 = vmul.f32 %v261, %v264
        %v266 = vmul.f32 %v262, %v264
        %s267 = sld [smem:[#allocation8 + $0x80]]
        %v268 = vstv %s267
        %v269 = vmul.f32 %v261, %v268
        %v270 = vmul.f32 %v262, %v268
        %273 = vrot.lane.b32.xlu0 %v269, 127
        %v274 = vpop.permute.xlu0 %273
        %275 = vrot.lane.b32.xlu0 %v270, 127
        %v276 = vpop.permute.xlu0 %275
        %v279 = vadd.f32 %v265, %v274
        %v280 = vadd.f32 %v266, %v276
        %s281 = sld [smem:[#allocation8 + $0x100]]
        %v282 = vstv %s281
        %v283 = vmul.f32 %v261, %v282
        %v284 = vmul.f32 %v262, %v282
        %287 = vrot.lane.b32.xlu0 %v283, 126
        %v288 = vpop.permute.xlu0 %287
        %289 = vrot.lane.b32.xlu0 %v284, 126
        %v290 = vpop.permute.xlu0 %289
        %v293 = vadd.f32 %v279, %v288
        %v294 = vadd.f32 %v280, %v290
        %s295 = sld [smem:[#allocation8 + $0x180]]
        %v296 = vstv %s295
        %v297 = vmul.f32 %v261, %v296
        %v298 = vmul.f32 %v262, %v296
        %vm301 = vcmask 1046528
        %v302 = vrot.slane %v297, 1
        %v303 = vrot.slane %v298, 1
        %v304 = vsel %vm301, %v302, %v303
        %v307 = vadd.f32 %v293, %v304
        %v308 = vadd.f32 %v294, %v303
        %s309 = sld [smem:[#allocation8 + $0x200]]
        %v310 = vstv %s309
        %v311 = vmul.f32 %v261, %v310
        %v312 = vmul.f32 %v262, %v310
        %v315 = vrot.slane %v311, 1
        %v316 = vrot.slane %v312, 1
        %v317 = vsel %vm301, %v315, %v316
        %318 = vrot.lane.b32.xlu0 %v317, 127
        %v319 = vpop.permute.xlu0 %318
        %320 = vrot.lane.b32.xlu0 %v316, 127
        %v321 = vpop.permute.xlu0 %320
        %v324 = vadd.f32 %v307, %v319
        %v325 = vadd.f32 %v308, %v321
        %s326 = sld [smem:[#allocation8 + $0x280]]
        %v327 = vstv %s326
        %v328 = vmul.f32 %v261, %v327
        %v329 = vmul.f32 %v262, %v327
        %v332 = vrot.slane %v328, 1
        %v333 = vrot.slane %v329, 1
        %v334 = vsel %vm301, %v332, %v333
        %335 = vrot.lane.b32.xlu0 %v334, 126
        %v336 = vpop.permute.xlu0 %335
        %337 = vrot.lane.b32.xlu0 %v333, 126
        %v338 = vpop.permute.xlu0 %337
        %v341 = vadd.f32 %v324, %v336
        %v342 = vadd.f32 %v325, %v338
        %s343 = sld [smem:[#allocation8 + $0x300]]
        %v344 = vstv %s343
        %v345 = vmul.f32 %v261, %v344
        %v346 = vmul.f32 %v262, %v344
        %vm349 = vcmask 1045504
        %v350 = vrot.slane %v345, 2
        %v351 = vrot.slane %v346, 2
        %v352 = vsel %vm349, %v350, %v351
        %v355 = vadd.f32 %v341, %v352
        %v356 = vadd.f32 %v342, %v351
        %s357 = sld [smem:[#allocation8 + $0x380]]
        %v358 = vstv %s357
        %v359 = vmul.f32 %v261, %v358
        %v360 = vmul.f32 %v262, %v358
        %v363 = vrot.slane %v359, 2
        %v364 = vrot.slane %v360, 2
        %v365 = vsel %vm349, %v363, %v364
        %366 = vrot.lane.b32.xlu0 %v365, 127
        %v367 = vpop.permute.xlu0 %366
        %368 = vrot.lane.b32.xlu0 %v364, 127
        %v369 = vpop.permute.xlu0 %368
        %v372 = vadd.f32 %v355, %v367
        %v373 = vadd.f32 %v356, %v369
        %s374 = sld [smem:[#allocation8 + $0x400]]
        %v375 = vstv %s374
        %v376 = vmul.f32 %v261, %v375
        %v377 = vmul.f32 %v262, %v375
        %v380 = vrot.slane %v376, 2
        %v381 = vrot.slane %v377, 2
        %v382 = vsel %vm349, %v380, %v381
        %383 = vrot.lane.b32.xlu0 %v382, 126
        %v384 = vpop.permute.xlu0 %383
        %385 = vrot.lane.b32.xlu0 %v381, 126
        %v386 = vpop.permute.xlu0 %385
        %v389 = vadd.f32 %v372, %v384
        %v390 = vadd.f32 %v373, %v386
        %s391 = sld [smem:[#allocation9]]
        %v392 = vstv %s391
        %v393 = vadd.f32 %v389, %v392
        %v394 = vadd.f32 %v390, %v392
        %v395 = vmax.f32 %v393, 0.0
        %v396 = vmax.f32 %v394, 0.0
        %s397 = sld [smem:[#allocation10]]
        %v398 = vstv %s397
        %v399 = vmul.f32 %v395, %v398
        %v400 = vadd.f32 %v399, 0.0
        %s401 = sld [smem:[#allocation10 + $0x180]]
        %v402 = vstv %s401
        %v403 = vmul.f32 %v395, %v402
        %v404 = vmul.f32 %v396, %v402
        %v407 = vrot.slane %v403, 1
        %v408 = vrot.slane %v404, 1
        %v409 = vsel %vm301, %v407, %v408
        %v411 = vadd.f32 %v400, %v409
        %s412 = sld [smem:[#allocation10 + $0x300]]
        %v413 = vstv %s412
        %v414 = vmul.f32 %v395, %v413
        %v415 = vmul.f32 %v396, %v413
        %v418 = vrot.slane %v414, 2
        %v419 = vrot.slane %v415, 2
        %v420 = vsel %vm349, %v418, %v419
        %v422 = vadd.f32 %v411, %v420
        %s423 = sld [smem:[#allocation10 + $0x80]]
        %v424 = vstv %s423
        %v425 = vmul.f32 %v395, %v424
        %v426 = vadd.f32 %v425, 0.0
        %s427 = sld [smem:[#allocation10 + $0x200]]
        %v428 = vstv %s427
        %v429 = vmul.f32 %v395, %v428
        %v430 = vmul.f32 %v396, %v428
        %v433 = vrot.slane %v429, 1
        %v434 = vrot.slane %v430, 1
        %v435 = vsel %vm301, %v433, %v434
        %v437 = vadd.f32 %v426, %v435
        %s438 = sld [smem:[#allocation10 + $0x380]]
        %v439 = vstv %s438
        %v440 = vmul.f32 %v395, %v439
        %v441 = vmul.f32 %v396, %v439
        %v444 = vrot.slane %v440, 2
        %v445 = vrot.slane %v441, 2
        %v446 = vsel %vm349, %v444, %v445
        %v448 = vadd.f32 %v437, %v446
        %s449 = sld [smem:[#allocation10 + $0x100]]
        %v450 = vstv %s449
        %v451 = vmul.f32 %v395, %v450
        %v452 = vadd.f32 %v451, 0.0
        %s453 = sld [smem:[#allocation10 + $0x280]]
        %v454 = vstv %s453
        %v455 = vmul.f32 %v395, %v454
        %v456 = vmul.f32 %v396, %v454
        %v459 = vrot.slane %v455, 1
        %v460 = vrot.slane %v456, 1
        %v461 = vsel %vm301, %v459, %v460
        %v463 = vadd.f32 %v452, %v461
        %s464 = sld [smem:[#allocation10 + $0x400]]
        %v465 = vstv %s464
        %v466 = vmul.f32 %v395, %v465
        %v467 = vmul.f32 %v396, %v465
        %v470 = vrot.slane %v466, 2
        %v471 = vrot.slane %v467, 2
        %v472 = vsel %vm349, %v470, %v471
        %v474 = vadd.f32 %v463, %v472
        %s475 = sld [smem:[#allocation8 + $0x1]]
        %v476 = vstv %s475
        %v477 = vmul.f32 %v261, %v476
        %v478 = vmul.f32 %v262, %v476
        %s479 = sld [smem:[#allocation8 + $0x81]]
        %v480 = vstv %s479
        %v481 = vmul.f32 %v261, %v480
        %v482 = vmul.f32 %v262, %v480
        %485 = vrot.lane.b32.xlu0 %v481, 127
        %v486 = vpop.permute.xlu0 %485
        %487 = vrot.lane.b32.xlu0 %v482, 127
        %v488 = vpop.permute.xlu0 %487
        %v491 = vadd.f32 %v477, %v486
        %v492 = vadd.f32 %v478, %v488
        %s493 = sld [smem:[#allocation8 + $0x101]]
        %v494 = vstv %s493
        %v495 = vmul.f32 %v261, %v494
        %v496 = vmul.f32 %v262, %v494
        %499 = vrot.lane.b32.xlu0 %v495, 126
        %v500 = vpop.permute.xlu0 %499
        %501 = vrot.lane.b32.xlu0 %v496, 126
        %v502 = vpop.permute.xlu0 %501
        %v505 = vadd.f32 %v491, %v500
        %v506 = vadd.f32 %v492, %v502
        %s507 = sld [smem:[#allocation8 + $0x181]]
        %v508 = vstv %s507
        %v509 = vmul.f32 %v261, %v508
        %v510 = vmul.f32 %v262, %v508
        %v513 = vrot.slane %v509, 1
        %v514 = vrot.slane %v510, 1
        %v515 = vsel %vm301, %v513, %v514
        %v518 = vadd.f32 %v505, %v515
        %v519 = vadd.f32 %v506, %v514
        %s520 = sld [smem:[#allocation8 + $0x201]]
        %v521 = vstv %s520
        %v522 = vmul.f32 %v261, %v521
        %v523 = vmul.f32 %v262, %v521
        %v526 = vrot.slane %v522, 1
        %v527 = vrot.slane %v523, 1
        %v528 = vsel %vm301, %v526, %v527
        %529 = vrot.lane.b32.xlu0 %v528, 127
        %v530 = vpop.permute.xlu0 %529
        %531 = vrot.lane.b32.xlu0 %v527, 127
        %v532 = vpop.permute.xlu0 %531
        %v535 = vadd.f32 %v518, %v530
        %v536 = vadd.f32 %v519, %v532
        %s537 = sld [smem:[#allocation8 + $0x281]]
        %v538 = vstv %s537
        %v539 = vmul.f32 %v261, %v538
        %v540 = vmul.f32 %v262, %v538
        %v543 = vrot.slane %v539, 1
        %v544 = vrot.slane %v540, 1
        %v545 = vsel %vm301, %v543, %v544
        %546 = vrot.lane.b32.xlu0 %v545, 126
        %v547 = vpop.permute.xlu0 %546
        %548 = vrot.lane.b32.xlu0 %v544, 126
        %v549 = vpop.permute.xlu0 %548
        %v552 = vadd.f32 %v535, %v547
        %v553 = vadd.f32 %v536, %v549
        %s554 = sld [smem:[#allocation8 + $0x301]]
        %v555 = vstv %s554
        %v556 = vmul.f32 %v261, %v555
        %v557 = vmul.f32 %v262, %v555
        %v560 = vrot.slane %v556, 2
        %v561 = vrot.slane %v557, 2
        %v562 = vsel %vm349, %v560, %v561
        %v565 = vadd.f32 %v552, %v562
        %v566 = vadd.f32 %v553, %v561
        %s567 = sld [smem:[#allocation8 + $0x381]]
        %v568 = vstv %s567
        %v569 = vmul.f32 %v261, %v568
        %v570 = vmul.f32 %v262, %v568
        %v573 = vrot.slane %v569, 2
        %v574 = vrot.slane %v570, 2
        %v575 = vsel %vm349, %v573, %v574
        %576 = vrot.lane.b32.xlu0 %v575, 127
        %v577 = vpop.permute.xlu0 %576
        %578 = vrot.lane.b32.xlu0 %v574, 127
        %v579 = vpop.permute.xlu0 %578
        %v582 = vadd.f32 %v565, %v577
        %v583 = vadd.f32 %v566, %v579
        %s584 = sld [smem:[#allocation8 + $0x401]]
        %v585 = vstv %s584
        %v586 = vmul.f32 %v261, %v585
        %v587 = vmul.f32 %v262, %v585
        %v590 = vrot.slane %v586, 2
        %v591 = vrot.slane %v587, 2
        %v592 = vsel %vm349, %v590, %v591
        %593 = vrot.lane.b32.xlu0 %v592, 126
        %v594 = vpop.permute.xlu0 %593
        %595 = vrot.lane.b32.xlu0 %v591, 126
        %v596 = vpop.permute.xlu0 %595
        %v599 = vadd.f32 %v582, %v594
        %v600 = vadd.f32 %v583, %v596
        %s601 = sld [smem:[#allocation9 + $0x1]]
        %v602 = vstv %s601
        %v603 = vadd.f32 %v599, %v602
        %v604 = vadd.f32 %v600, %v602
        %v605 = vmax.f32 %v603, 0.0
        %v606 = vmax.f32 %v604, 0.0
        %s607 = sld [smem:[#allocation10 + $0x1]]
        %v608 = vstv %s607
        %v609 = vmul.f32 %v605, %v608
        %v610 = vadd.f32 %v422, %v609
        %s611 = sld [smem:[#allocation10 + $0x181]]
        %v612 = vstv %s611
        %v613 = vmul.f32 %v605, %v612
        %v614 = vmul.f32 %v606, %v612
        %v617 = vrot.slane %v613, 1
        %v618 = vrot.slane %v614, 1
        %v619 = vsel %vm301, %v617, %v618
        %v621 = vadd.f32 %v610, %v619
        %s622 = sld [smem:[#allocation10 + $0x301]]
        %v623 = vstv %s622
        %v624 = vmul.f32 %v605, %v623
        %v625 = vmul.f32 %v606, %v623
        %v628 = vrot.slane %v624, 2
        %v629 = vrot.slane %v625, 2
        %v630 = vsel %vm349, %v628, %v629
        %v632 = vadd.f32 %v621, %v630
        %s633 = sld [smem:[#allocation10 + $0x81]]
        %v634 = vstv %s633
        %v635 = vmul.f32 %v605, %v634
        %v636 = vadd.f32 %v448, %v635
        %s637 = sld [smem:[#allocation10 + $0x201]]
        %v638 = vstv %s637
        %v639 = vmul.f32 %v605, %v638
        %v640 = vmul.f32 %v606, %v638
        %v643 = vrot.slane %v639, 1
        %v644 = vrot.slane %v640, 1
        %v645 = vsel %vm301, %v643, %v644
        %v647 = vadd.f32 %v636, %v645
        %s648 = sld [smem:[#allocation10 + $0x381]]
        %v649 = vstv %s648
        %v650 = vmul.f32 %v605, %v649
        %v651 = vmul.f32 %v606, %v649
        %v654 = vrot.slane %v650, 2
        %v655 = vrot.slane %v651, 2
        %v656 = vsel %vm349, %v654, %v655
        %v658 = vadd.f32 %v647, %v656
        %s659 = sld [smem:[#allocation10 + $0x101]]
        %v660 = vstv %s659
        %v661 = vmul.f32 %v605, %v660
        %v662 = vadd.f32 %v474, %v661
        %s663 = sld [smem:[#allocation10 + $0x281]]
        %v664 = vstv %s663
        %v665 = vmul.f32 %v605, %v664
        %v666 = vmul.f32 %v606, %v664
        %v669 = vrot.slane %v665, 1
        %v670 = vrot.slane %v666, 1
        %v671 = vsel %vm301, %v669, %v670
        %v673 = vadd.f32 %v662, %v671
        %s674 = sld [smem:[#allocation10 + $0x401]]
        %v675 = vstv %s674
        %v676 = vmul.f32 %v605, %v675
        %v677 = vmul.f32 %v606, %v675
        %v680 = vrot.slane %v676, 2
        %v681 = vrot.slane %v677, 2
        %v682 = vsel %vm349, %v680, %v681
        %v684 = vadd.f32 %v673, %v682
        %s685 = sld [smem:[#allocation8 + $0x2]]
        %v686 = vstv %s685
        %v687 = vmul.f32 %v261, %v686
        %v688 = vmul.f32 %v262, %v686
        %s689 = sld [smem:[#allocation8 + $0x82]]
        %v690 = vstv %s689
        %v691 = vmul.f32 %v261, %v690
        %v692 = vmul.f32 %v262, %v690
        %695 = vrot.lane.b32.xlu0 %v691, 127
        %v696 = vpop.permute.xlu0 %695
        %697 = vrot.lane.b32.xlu0 %v692, 127
        %v698 = vpop.permute.xlu0 %697
        %v701 = vadd.f32 %v687, %v696
        %v702 = vadd.f32 %v688, %v698
        %s703 = sld [smem:[#allocation8 + $0x102]]
        %v704 = vstv %s703
        %v705 = vmul.f32 %v261, %v704
        %v706 = vmul.f32 %v262, %v704
        %709 = vrot.lane.b32.xlu0 %v705, 126
        %v710 = vpop.permute.xlu0 %709
        %711 = vrot.lane.b32.xlu0 %v706, 126
        %v712 = vpop.permute.xlu0 %711
        %v715 = vadd.f32 %v701, %v710
        %v716 = vadd.f32 %v702, %v712
        %s717 = sld [smem:[#allocation8 + $0x182]]
        %v718 = vstv %s717
        %v719 = vmul.f32 %v261, %v718
        %v720 = vmul.f32 %v262, %v718
        %v723 = vrot.slane %v719, 1
        %v724 = vrot.slane %v720, 1
        %v725 = vsel %vm301, %v723, %v724
        %v728 = vadd.f32 %v715, %v725
        %v729 = vadd.f32 %v716, %v724
        %s730 = sld [smem:[#allocation8 + $0x202]]
        %v731 = vstv %s730
        %v732 = vmul.f32 %v261, %v731
        %v733 = vmul.f32 %v262, %v731
        %v736 = vrot.slane %v732, 1
        %v737 = vrot.slane %v733, 1
        %v738 = vsel %vm301, %v736, %v737
        %739 = vrot.lane.b32.xlu0 %v738, 127
        %v740 = vpop.permute.xlu0 %739
        %741 = vrot.lane.b32.xlu0 %v737, 127
        %v742 = vpop.permute.xlu0 %741
        %v745 = vadd.f32 %v728, %v740
        %v746 = vadd.f32 %v729, %v742
        %s747 = sld [smem:[#allocation8 + $0x282]]
        %v748 = vstv %s747
        %v749 = vmul.f32 %v261, %v748
        %v750 = vmul.f32 %v262, %v748
        %v753 = vrot.slane %v749, 1
        %v754 = vrot.slane %v750, 1
        %v755 = vsel %vm301, %v753, %v754
        %756 = vrot.lane.b32.xlu0 %v755, 126
        %v757 = vpop.permute.xlu0 %756
        %758 = vrot.lane.b32.xlu0 %v754, 126
        %v759 = vpop.permute.xlu0 %758
        %v762 = vadd.f32 %v745, %v757
        %v763 = vadd.f32 %v746, %v759
        %s764 = sld [smem:[#allocation8 + $0x302]]
        %v765 = vstv %s764
        %v766 = vmul.f32 %v261, %v765
        %v767 = vmul.f32 %v262, %v765
        %v770 = vrot.slane %v766, 2
        %v771 = vrot.slane %v767, 2
        %v772 = vsel %vm349, %v770, %v771
        %v775 = vadd.f32 %v762, %v772
        %v776 = vadd.f32 %v763, %v771
        %s777 = sld [smem:[#allocation8 + $0x382]]
        %v778 = vstv %s777
        %v779 = vmul.f32 %v261, %v778
        %v780 = vmul.f32 %v262, %v778
        %v783 = vrot.slane %v779, 2
        %v784 = vrot.slane %v780, 2
        %v785 = vsel %vm349, %v783, %v784
        %786 = vrot.lane.b32.xlu0 %v785, 127
        %v787 = vpop.permute.xlu0 %786
        %788 = vrot.lane.b32.xlu0 %v784, 127
        %v789 = vpop.permute.xlu0 %788
        %v792 = vadd.f32 %v775, %v787
        %v793 = vadd.f32 %v776, %v789
        %s794 = sld [smem:[#allocation8 + $0x402]]
        %v795 = vstv %s794
        %v796 = vmul.f32 %v261, %v795
        %v797 = vmul.f32 %v262, %v795
        %v800 = vrot.slane %v796, 2
        %v801 = vrot.slane %v797, 2
        %v802 = vsel %vm349, %v800, %v801
        %803 = vrot.lane.b32.xlu0 %v802, 126
        %v804 = vpop.permute.xlu0 %803
        %805 = vrot.lane.b32.xlu0 %v801, 126
        %v806 = vpop.permute.xlu0 %805
        %v809 = vadd.f32 %v792, %v804
        %v810 = vadd.f32 %v793, %v806
        %s811 = sld [smem:[#allocation9 + $0x2]]
        %v812 = vstv %s811
        %v813 = vadd.f32 %v809, %v812
        %v814 = vadd.f32 %v810, %v812
        %v815 = vmax.f32 %v813, 0.0
        %v816 = vmax.f32 %v814, 0.0
        %s817 = sld [smem:[#allocation10 + $0x2]]
        %v818 = vstv %s817
        %v819 = vmul.f32 %v815, %v818
        %v820 = vadd.f32 %v632, %v819
        %s821 = sld [smem:[#allocation10 + $0x182]]
        %v822 = vstv %s821
        %v823 = vmul.f32 %v815, %v822
        %v824 = vmul.f32 %v816, %v822
        %v827 = vrot.slane %v823, 1
        %v828 = vrot.slane %v824, 1
        %v829 = vsel %vm301, %v827, %v828
        %v831 = vadd.f32 %v820, %v829
        %s832 = sld [smem:[#allocation10 + $0x302]]
        %v833 = vstv %s832
        %v834 = vmul.f32 %v815, %v833
        %v835 = vmul.f32 %v816, %v833
        %v838 = vrot.slane %v834, 2
        %v839 = vrot.slane %v835, 2
        %v840 = vsel %vm349, %v838, %v839
        %v842 = vadd.f32 %v831, %v840
        %s843 = sld [smem:[#allocation10 + $0x82]]
        %v844 = vstv %s843
        %v845 = vmul.f32 %v815, %v844
        %v846 = vadd.f32 %v658, %v845
        %s847 = sld [smem:[#allocation10 + $0x202]]
        %v848 = vstv %s847
        %v849 = vmul.f32 %v815, %v848
        %v850 = vmul.f32 %v816, %v848
        %v853 = vrot.slane %v849, 1
        %v854 = vrot.slane %v850, 1
        %v855 = vsel %vm301, %v853, %v854
        %v857 = vadd.f32 %v846, %v855
        %s858 = sld [smem:[#allocation10 + $0x382]]
        %v859 = vstv %s858
        %v860 = vmul.f32 %v815, %v859
        %v861 = vmul.f32 %v816, %v859
        %v864 = vrot.slane %v860, 2
        %v865 = vrot.slane %v861, 2
        %v866 = vsel %vm349, %v864, %v865
        %v868 = vadd.f32 %v857, %v866
        %s869 = sld [smem:[#allocation10 + $0x102]]
        %v870 = vstv %s869
        %v871 = vmul.f32 %v815, %v870
        %v872 = vadd.f32 %v684, %v871
        %s873 = sld [smem:[#allocation10 + $0x282]]
        %v874 = vstv %s873
        %v875 = vmul.f32 %v815, %v874
        %v876 = vmul.f32 %v816, %v874
        %v879 = vrot.slane %v875, 1
        %v880 = vrot.slane %v876, 1
        %v881 = vsel %vm301, %v879, %v880
        %v883 = vadd.f32 %v872, %v881
        %s884 = sld [smem:[#allocation10 + $0x402]]
        %v885 = vstv %s884
        %v886 = vmul.f32 %v815, %v885
        %v887 = vmul.f32 %v816, %v885
        %v890 = vrot.slane %v886, 2
        %v891 = vrot.slane %v887, 2
        %v892 = vsel %vm349, %v890, %v891
        %v894 = vadd.f32 %v883, %v892
        %s895 = sld [smem:[#allocation8 + $0x3]]
        %v896 = vstv %s895
        %v897 = vmul.f32 %v261, %v896
        %v898 = vmul.f32 %v262, %v896
        %s899 = sld [smem:[#allocation8 + $0x83]]
        %v900 = vstv %s899
        %v901 = vmul.f32 %v261, %v900
        %v902 = vmul.f32 %v262, %v900
        %905 = vrot.lane.b32.xlu0 %v901, 127
        %v906 = vpop.permute.xlu0 %905
        %907 = vrot.lane.b32.xlu0 %v902, 127
        %v908 = vpop.permute.xlu0 %907
        %v911 = vadd.f32 %v897, %v906
        %v912 = vadd.f32 %v898, %v908
        %s913 = sld [smem:[#allocation8 + $0x103]]
        %v914 = vstv %s913
        %v915 = vmul.f32 %v261, %v914
        %v916 = vmul.f32 %v262, %v914
        %919 = vrot.lane.b32.xlu0 %v915, 126
        %v920 = vpop.permute.xlu0 %919
        %921 = vrot.lane.b32.xlu0 %v916, 126
        %v922 = vpop.permute.xlu0 %921
        %v925 = vadd.f32 %v911, %v920
        %v926 = vadd.f32 %v912, %v922
        %s927 = sld [smem:[#allocation8 + $0x183]]
        %v928 = vstv %s927
        %v929 = vmul.f32 %v261, %v928
        %v930 = vmul.f32 %v262, %v928
        %v933 = vrot.slane %v929, 1
        %v934 = vrot.slane %v930, 1
        %v935 = vsel %vm301, %v933, %v934
        %v938 = vadd.f32 %v925, %v935
        %v939 = vadd.f32 %v926, %v934
        %s940 = sld [smem:[#allocation8 + $0x203]]
        %v941 = vstv %s940
        %v942 = vmul.f32 %v261, %v941
        %v943 = vmul.f32 %v262, %v941
        %v946 = vrot.slane %v942, 1
        %v947 = vrot.slane %v943, 1
        %v948 = vsel %vm301, %v946, %v947
        %949 = vrot.lane.b32.xlu0 %v948, 127
        %v950 = vpop.permute.xlu0 %949
        %951 = vrot.lane.b32.xlu0 %v947, 127
        %v952 = vpop.permute.xlu0 %951
        %v955 = vadd.f32 %v938, %v950
        %v956 = vadd.f32 %v939, %v952
        %s957 = sld [smem:[#allocation8 + $0x283]]
        %v958 = vstv %s957
        %v959 = vmul.f32 %v261, %v958
        %v960 = vmul.f32 %v262, %v958
        %v963 = vrot.slane %v959, 1
        %v964 = vrot.slane %v960, 1
        %v965 = vsel %vm301, %v963, %v964
        %966 = vrot.lane.b32.xlu0 %v965, 126
        %v967 = vpop.permute.xlu0 %966
        %968 = vrot.lane.b32.xlu0 %v964, 126
        %v969 = vpop.permute.xlu0 %968
        %v972 = vadd.f32 %v955, %v967
        %v973 = vadd.f32 %v956, %v969
        %s974 = sld [smem:[#allocation8 + $0x303]]
        %v975 = vstv %s974
        %v976 = vmul.f32 %v261, %v975
        %v977 = vmul.f32 %v262, %v975
        %v980 = vrot.slane %v976, 2
        %v981 = vrot.slane %v977, 2
        %v982 = vsel %vm349, %v980, %v981
        %v985 = vadd.f32 %v972, %v982
        %v986 = vadd.f32 %v973, %v981
        %s987 = sld [smem:[#allocation8 + $0x383]]
        %v988 = vstv %s987
        %v989 = vmul.f32 %v261, %v988
        %v990 = vmul.f32 %v262, %v988
        %v993 = vrot.slane %v989, 2
        %v994 = vrot.slane %v990, 2
        %v995 = vsel %vm349, %v993, %v994
        %996 = vrot.lane.b32.xlu0 %v995, 127
        %v997 = vpop.permute.xlu0 %996
        %998 = vrot.lane.b32.xlu0 %v994, 127
        %v999 = vpop.permute.xlu0 %998
        %v1002 = vadd.f32 %v985, %v997
        %v1003 = vadd.f32 %v986, %v999
        %s1004 = sld [smem:[#allocation8 + $0x403]]
        %v1005 = vstv %s1004
        %v1006 = vmul.f32 %v261, %v1005
        %v1007 = vmul.f32 %v262, %v1005
        %v1010 = vrot.slane %v1006, 2
        %v1011 = vrot.slane %v1007, 2
        %v1012 = vsel %vm349, %v1010, %v1011
        %1013 = vrot.lane.b32.xlu0 %v1012, 126
        %v1014 = vpop.permute.xlu0 %1013
        %1015 = vrot.lane.b32.xlu0 %v1011, 126
        %v1016 = vpop.permute.xlu0 %1015
        %v1019 = vadd.f32 %v1002, %v1014
        %v1020 = vadd.f32 %v1003, %v1016
        %s1021 = sld [smem:[#allocation9 + $0x3]]
        %v1022 = vstv %s1021
        %v1023 = vadd.f32 %v1019, %v1022
        %v1024 = vadd.f32 %v1020, %v1022
        %v1025 = vmax.f32 %v1023, 0.0
        %v1026 = vmax.f32 %v1024, 0.0
        %s1027 = sld [smem:[#allocation10 + $0x3]]
        %v1028 = vstv %s1027
        %v1029 = vmul.f32 %v1025, %v1028
        %v1030 = vadd.f32 %v842, %v1029
        %s1031 = sld [smem:[#allocation10 + $0x183]]
        %v1032 = vstv %s1031
        %v1033 = vmul.f32 %v1025, %v1032
        %v1034 = vmul.f32 %v1026, %v1032
        %v1037 = vrot.slane %v1033, 1
        %v1038 = vrot.slane %v1034, 1
        %v1039 = vsel %vm301, %v1037, %v1038
        %v1041 = vadd.f32 %v1030, %v1039
        %s1042 = sld [smem:[#allocation10 + $0x303]]
        %v1043 = vstv %s1042
        %v1044 = vmul.f32 %v1025, %v1043
        %v1045 = vmul.f32 %v1026, %v1043
        %v1048 = vrot.slane %v1044, 2
        %v1049 = vrot.slane %v1045, 2
        %v1050 = vsel %vm349, %v1048, %v1049
        %v1052 = vadd.f32 %v1041, %v1050
        %s1053 = sld [smem:[#allocation10 + $0x83]]
        %v1054 = vstv %s1053
        %v1055 = vmul.f32 %v1025, %v1054
        %v1056 = vadd.f32 %v868, %v1055
        %s1057 = sld [smem:[#allocation10 + $0x203]]
        %v1058 = vstv %s1057
        %v1059 = vmul.f32 %v1025, %v1058
        %v1060 = vmul.f32 %v1026, %v1058
        %v1063 = vrot.slane %v1059, 1
        %v1064 = vrot.slane %v1060, 1
        %v1065 = vsel %vm301, %v1063, %v1064
        %v1067 = vadd.f32 %v1056, %v1065
        %s1068 = sld [smem:[#allocation10 + $0x383]]
        %v1069 = vstv %s1068
        %v1070 = vmul.f32 %v1025, %v1069
        %v1071 = vmul.f32 %v1026, %v1069
        %v1074 = vrot.slane %v1070, 2
        %v1075 = vrot.slane %v1071, 2
        %v1076 = vsel %vm349, %v1074, %v1075
        %v1078 = vadd.f32 %v1067, %v1076
        %s1079 = sld [smem:[#allocation10 + $0x103]]
        %v1080 = vstv %s1079
        %v1081 = vmul.f32 %v1025, %v1080
        %v1082 = vadd.f32 %v894, %v1081
        %s1083 = sld [smem:[#allocation10 + $0x283]]
        %v1084 = vstv %s1083
        %v1085 = vmul.f32 %v1025, %v1084
        %v1086 = vmul.f32 %v1026, %v1084
        %v1089 = vrot.slane %v1085, 1
        %v1090 = vrot.slane %v1086, 1
        %v1091 = vsel %vm301, %v1089, %v1090
        %v1093 = vadd.f32 %v1082, %v1091
        %s1094 = sld [smem:[#allocation10 + $0x403]]
        %v1095 = vstv %s1094
        %v1096 = vmul.f32 %v1025, %v1095
        %v1097 = vmul.f32 %v1026, %v1095
        %v1100 = vrot.slane %v1096, 2
        %v1101 = vrot.slane %v1097, 2
        %v1102 = vsel %vm349, %v1100, %v1101
        %v1104 = vadd.f32 %v1093, %v1102
        %s1105 = sld [smem:[#allocation8 + $0x4]]
        %v1106 = vstv %s1105
        %v1107 = vmul.f32 %v261, %v1106
        %v1108 = vmul.f32 %v262, %v1106
        %s1109 = sld [smem:[#allocation8 + $0x84]]
        %v1110 = vstv %s1109
        %v1111 = vmul.f32 %v261, %v1110
        %v1112 = vmul.f32 %v262, %v1110
        %1115 = vrot.lane.b32.xlu0 %v1111, 127
        %v1116 = vpop.permute.xlu0 %1115
        %1117 = vrot.lane.b32.xlu0 %v1112, 127
        %v1118 = vpop.permute.xlu0 %1117
        %v1121 = vadd.f32 %v1107, %v1116
        %v1122 = vadd.f32 %v1108, %v1118
        %s1123 = sld [smem:[#allocation8 + $0x104]]
        %v1124 = vstv %s1123
        %v1125 = vmul.f32 %v261, %v1124
        %v1126 = vmul.f32 %v262, %v1124
        %1129 = vrot.lane.b32.xlu0 %v1125, 126
        %v1130 = vpop.permute.xlu0 %1129
        %1131 = vrot.lane.b32.xlu0 %v1126, 126
        %v1132 = vpop.permute.xlu0 %1131
        %v1135 = vadd.f32 %v1121, %v1130
        %v1136 = vadd.f32 %v1122, %v1132
        %s1137 = sld [smem:[#allocation8 + $0x184]]
        %v1138 = vstv %s1137
        %v1139 = vmul.f32 %v261, %v1138
        %v1140 = vmul.f32 %v262, %v1138
        %v1143 = vrot.slane %v1139, 1
        %v1144 = vrot.slane %v1140, 1
        %v1145 = vsel %vm301, %v1143, %v1144
        %v1148 = vadd.f32 %v1135, %v1145
        %v1149 = vadd.f32 %v1136, %v1144
        %s1150 = sld [smem:[#allocation8 + $0x204]]
        %v1151 = vstv %s1150
        %v1152 = vmul.f32 %v261, %v1151
        %v1153 = vmul.f32 %v262, %v1151
        %v1156 = vrot.slane %v1152, 1
        %v1157 = vrot.slane %v1153, 1
        %v1158 = vsel %vm301, %v1156, %v1157
        %1159 = vrot.lane.b32.xlu0 %v1158, 127
        %v1160 = vpop.permute.xlu0 %1159
        %1161 = vrot.lane.b32.xlu0 %v1157, 127
        %v1162 = vpop.permute.xlu0 %1161
        %v1165 = vadd.f32 %v1148, %v1160
        %v1166 = vadd.f32 %v1149, %v1162
        %s1167 = sld [smem:[#allocation8 + $0x284]]
        %v1168 = vstv %s1167
        %v1169 = vmul.f32 %v261, %v1168
        %v1170 = vmul.f32 %v262, %v1168
        %v1173 = vrot.slane %v1169, 1
        %v1174 = vrot.slane %v1170, 1
        %v1175 = vsel %vm301, %v1173, %v1174
        %1176 = vrot.lane.b32.xlu0 %v1175, 126
        %v1177 = vpop.permute.xlu0 %1176
        %1178 = vrot.lane.b32.xlu0 %v1174, 126
        %v1179 = vpop.permute.xlu0 %1178
        %v1182 = vadd.f32 %v1165, %v1177
        %v1183 = vadd.f32 %v1166, %v1179
        %s1184 = sld [smem:[#allocation8 + $0x304]]
        %v1185 = vstv %s1184
        %v1186 = vmul.f32 %v261, %v1185
        %v1187 = vmul.f32 %v262, %v1185
        %v1190 = vrot.slane %v1186, 2
        %v1191 = vrot.slane %v1187, 2
        %v1192 = vsel %vm349, %v1190, %v1191
        %v1195 = vadd.f32 %v1182, %v1192
        %v1196 = vadd.f32 %v1183, %v1191
        %s1197 = sld [smem:[#allocation8 + $0x384]]
        %v1198 = vstv %s1197
        %v1199 = vmul.f32 %v261, %v1198
        %v1200 = vmul.f32 %v262, %v1198
        %v1203 = vrot.slane %v1199, 2
        %v1204 = vrot.slane %v1200, 2
        %v1205 = vsel %vm349, %v1203, %v1204
        %1206 = vrot.lane.b32.xlu0 %v1205, 127
        %v1207 = vpop.permute.xlu0 %1206
        %1208 = vrot.lane.b32.xlu0 %v1204, 127
        %v1209 = vpop.permute.xlu0 %1208
        %v1212 = vadd.f32 %v1195, %v1207
        %v1213 = vadd.f32 %v1196, %v1209
        %s1214 = sld [smem:[#allocation8 + $0x404]]
        %v1215 = vstv %s1214
        %v1216 = vmul.f32 %v261, %v1215
        %v1217 = vmul.f32 %v262, %v1215
        %v1220 = vrot.slane %v1216, 2
        %v1221 = vrot.slane %v1217, 2
        %v1222 = vsel %vm349, %v1220, %v1221
        %1223 = vrot.lane.b32.xlu0 %v1222, 126
        %v1224 = vpop.permute.xlu0 %1223
        %1225 = vrot.lane.b32.xlu0 %v1221, 126
        %v1226 = vpop.permute.xlu0 %1225
        %v1229 = vadd.f32 %v1212, %v1224
        %v1230 = vadd.f32 %v1213, %v1226
        %s1231 = sld [smem:[#allocation9 + $0x4]]
        %v1232 = vstv %s1231
        %v1233 = vadd.f32 %v1229, %v1232
        %v1234 = vadd.f32 %v1230, %v1232
        %v1235 = vmax.f32 %v1233, 0.0
        %v1236 = vmax.f32 %v1234, 0.0
        %s1237 = sld [smem:[#allocation10 + $0x4]]
        %v1238 = vstv %s1237
        %v1239 = vmul.f32 %v1235, %v1238
        %v1240 = vadd.f32 %v1052, %v1239
        %s1241 = sld [smem:[#allocation10 + $0x184]]
        %v1242 = vstv %s1241
        %v1243 = vmul.f32 %v1235, %v1242
        %v1244 = vmul.f32 %v1236, %v1242
        %v1247 = vrot.slane %v1243, 1
        %v1248 = vrot.slane %v1244, 1
        %v1249 = vsel %vm301, %v1247, %v1248
        %v1251 = vadd.f32 %v1240, %v1249
        %s1252 = sld [smem:[#allocation10 + $0x304]]
        %v1253 = vstv %s1252
        %v1254 = vmul.f32 %v1235, %v1253
        %v1255 = vmul.f32 %v1236, %v1253
        %v1258 = vrot.slane %v1254, 2
        %v1259 = vrot.slane %v1255, 2
        %v1260 = vsel %vm349, %v1258, %v1259
        %v1262 = vadd.f32 %v1251, %v1260
        %s1263 = sld [smem:[#allocation10 + $0x84]]
        %v1264 = vstv %s1263
        %v1265 = vmul.f32 %v1235, %v1264
        %v1266 = vadd.f32 %v1078, %v1265
        %s1267 = sld [smem:[#allocation10 + $0x204]]
        %v1268 = vstv %s1267
        %v1269 = vmul.f32 %v1235, %v1268
        %v1270 = vmul.f32 %v1236, %v1268
        %v1273 = vrot.slane %v1269, 1
        %v1274 = vrot.slane %v1270, 1
        %v1275 = vsel %vm301, %v1273, %v1274
        %v1277 = vadd.f32 %v1266, %v1275
        %s1278 = sld [smem:[#allocation10 + $0x384]]
        %v1279 = vstv %s1278
        %v1280 = vmul.f32 %v1235, %v1279
        %v1281 = vmul.f32 %v1236, %v1279
        %v1284 = vrot.slane %v1280, 2
        %v1285 = vrot.slane %v1281, 2
        %v1286 = vsel %vm349, %v1284, %v1285
        %v1288 = vadd.f32 %v1277, %v1286
        %s1289 = sld [smem:[#allocation10 + $0x104]]
        %v1290 = vstv %s1289
        %v1291 = vmul.f32 %v1235, %v1290
        %v1292 = vadd.f32 %v1104, %v1291
        %s1293 = sld [smem:[#allocation10 + $0x284]]
        %v1294 = vstv %s1293
        %v1295 = vmul.f32 %v1235, %v1294
        %v1296 = vmul.f32 %v1236, %v1294
        %v1299 = vrot.slane %v1295, 1
        %v1300 = vrot.slane %v1296, 1
        %v1301 = vsel %vm301, %v1299, %v1300
        %v1303 = vadd.f32 %v1292, %v1301
        %s1304 = sld [smem:[#allocation10 + $0x404]]
        %v1305 = vstv %s1304
        %v1306 = vmul.f32 %v1235, %v1305
        %v1307 = vmul.f32 %v1236, %v1305
        %v1310 = vrot.slane %v1306, 2
        %v1311 = vrot.slane %v1307, 2
        %v1312 = vsel %vm349, %v1310, %v1311
        %v1314 = vadd.f32 %v1303, %v1312
        %s1315 = sld [smem:[#allocation8 + $0x5]]
        %v1316 = vstv %s1315
        %v1317 = vmul.f32 %v261, %v1316
        %v1318 = vmul.f32 %v262, %v1316
        %s1319 = sld [smem:[#allocation8 + $0x85]]
        %v1320 = vstv %s1319
        %v1321 = vmul.f32 %v261, %v1320
        %v1322 = vmul.f32 %v262, %v1320
        %1325 = vrot.lane.b32.xlu0 %v1321, 127
        %v1326 = vpop.permute.xlu0 %1325
        %1327 = vrot.lane.b32.xlu0 %v1322, 127
        %v1328 = vpop.permute.xlu0 %1327
        %v1331 = vadd.f32 %v1317, %v1326
        %v1332 = vadd.f32 %v1318, %v1328
        %s1333 = sld [smem:[#allocation8 + $0x105]]
        %v1334 = vstv %s1333
        %v1335 = vmul.f32 %v261, %v1334
        %v1336 = vmul.f32 %v262, %v1334
        %1339 = vrot.lane.b32.xlu0 %v1335, 126
        %v1340 = vpop.permute.xlu0 %1339
        %1341 = vrot.lane.b32.xlu0 %v1336, 126
        %v1342 = vpop.permute.xlu0 %1341
        %v1345 = vadd.f32 %v1331, %v1340
        %v1346 = vadd.f32 %v1332, %v1342
        %s1347 = sld [smem:[#allocation8 + $0x185]]
        %v1348 = vstv %s1347
        %v1349 = vmul.f32 %v261, %v1348
        %v1350 = vmul.f32 %v262, %v1348
        %v1353 = vrot.slane %v1349, 1
        %v1354 = vrot.slane %v1350, 1
        %v1355 = vsel %vm301, %v1353, %v1354
        %v1358 = vadd.f32 %v1345, %v1355
        %v1359 = vadd.f32 %v1346, %v1354
        %s1360 = sld [smem:[#allocation8 + $0x205]]
        %v1361 = vstv %s1360
        %v1362 = vmul.f32 %v261, %v1361
        %v1363 = vmul.f32 %v262, %v1361
        %v1366 = vrot.slane %v1362, 1
        %v1367 = vrot.slane %v1363, 1
        %v1368 = vsel %vm301, %v1366, %v1367
        %1369 = vrot.lane.b32.xlu0 %v1368, 127
        %v1370 = vpop.permute.xlu0 %1369
        %1371 = vrot.lane.b32.xlu0 %v1367, 127
        %v1372 = vpop.permute.xlu0 %1371
        %v1375 = vadd.f32 %v1358, %v1370
        %v1376 = vadd.f32 %v1359, %v1372
        %s1377 = sld [smem:[#allocation8 + $0x285]]
        %v1378 = vstv %s1377
        %v1379 = vmul.f32 %v261, %v1378
        %v1380 = vmul.f32 %v262, %v1378
        %v1383 = vrot.slane %v1379, 1
        %v1384 = vrot.slane %v1380, 1
        %v1385 = vsel %vm301, %v1383, %v1384
        %1386 = vrot.lane.b32.xlu0 %v1385, 126
        %v1387 = vpop.permute.xlu0 %1386
        %1388 = vrot.lane.b32.xlu0 %v1384, 126
        %v1389 = vpop.permute.xlu0 %1388
        %v1392 = vadd.f32 %v1375, %v1387
        %v1393 = vadd.f32 %v1376, %v1389
        %s1394 = sld [smem:[#allocation8 + $0x305]]
        %v1395 = vstv %s1394
        %v1396 = vmul.f32 %v261, %v1395
        %v1397 = vmul.f32 %v262, %v1395
        %v1400 = vrot.slane %v1396, 2
        %v1401 = vrot.slane %v1397, 2
        %v1402 = vsel %vm349, %v1400, %v1401
        %v1405 = vadd.f32 %v1392, %v1402
        %v1406 = vadd.f32 %v1393, %v1401
        %s1407 = sld [smem:[#allocation8 + $0x385]]
        %v1408 = vstv %s1407
        %v1409 = vmul.f32 %v261, %v1408
        %v1410 = vmul.f32 %v262, %v1408
        %v1413 = vrot.slane %v1409, 2
        %v1414 = vrot.slane %v1410, 2
        %v1415 = vsel %vm349, %v1413, %v1414
        %1416 = vrot.lane.b32.xlu0 %v1415, 127
        %v1417 = vpop.permute.xlu0 %1416
        %1418 = vrot.lane.b32.xlu0 %v1414, 127
        %v1419 = vpop.permute.xlu0 %1418
        %v1422 = vadd.f32 %v1405, %v1417
        %v1423 = vadd.f32 %v1406, %v1419
        %s1424 = sld [smem:[#allocation8 + $0x405]]
        %v1425 = vstv %s1424
        %v1426 = vmul.f32 %v261, %v1425
        %v1427 = vmul.f32 %v262, %v1425
        %v1430 = vrot.slane %v1426, 2
        %v1431 = vrot.slane %v1427, 2
        %v1432 = vsel %vm349, %v1430, %v1431
        %1433 = vrot.lane.b32.xlu0 %v1432, 126
        %v1434 = vpop.permute.xlu0 %1433
        %1435 = vrot.lane.b32.xlu0 %v1431, 126
        %v1436 = vpop.permute.xlu0 %1435
        %v1439 = vadd.f32 %v1422, %v1434
        %v1440 = vadd.f32 %v1423, %v1436
        %s1441 = sld [smem:[#allocation9 + $0x5]]
        %v1442 = vstv %s1441
        %v1443 = vadd.f32 %v1439, %v1442
        %v1444 = vadd.f32 %v1440, %v1442
        %v1445 = vmax.f32 %v1443, 0.0
        %v1446 = vmax.f32 %v1444, 0.0
        %s1447 = sld [smem:[#allocation10 + $0x5]]
        %v1448 = vstv %s1447
        %v1449 = vmul.f32 %v1445, %v1448
        %v1450 = vadd.f32 %v1262, %v1449
        %s1451 = sld [smem:[#allocation10 + $0x185]]
        %v1452 = vstv %s1451
        %v1453 = vmul.f32 %v1445, %v1452
        %v1454 = vmul.f32 %v1446, %v1452
        %v1457 = vrot.slane %v1453, 1
        %v1458 = vrot.slane %v1454, 1
        %v1459 = vsel %vm301, %v1457, %v1458
        %v1461 = vadd.f32 %v1450, %v1459
        %s1462 = sld [smem:[#allocation10 + $0x305]]
        %v1463 = vstv %s1462
        %v1464 = vmul.f32 %v1445, %v1463
        %v1465 = vmul.f32 %v1446, %v1463
        %v1468 = vrot.slane %v1464, 2
        %v1469 = vrot.slane %v1465, 2
        %v1470 = vsel %vm349, %v1468, %v1469
        %v1472 = vadd.f32 %v1461, %v1470
        %s1473 = sld [smem:[#allocation10 + $0x85]]
        %v1474 = vstv %s1473
        %v1475 = vmul.f32 %v1445, %v1474
        %v1476 = vadd.f32 %v1288, %v1475
        %s1477 = sld [smem:[#allocation10 + $0x205]]
        %v1478 = vstv %s1477
        %v1479 = vmul.f32 %v1445, %v1478
        %v1480 = vmul.f32 %v1446, %v1478
        %v1483 = vrot.slane %v1479, 1
        %v1484 = vrot.slane %v1480, 1
        %v1485 = vsel %vm301, %v1483, %v1484
        %v1487 = vadd.f32 %v1476, %v1485
        %s1488 = sld [smem:[#allocation10 + $0x385]]
        %v1489 = vstv %s1488
        %v1490 = vmul.f32 %v1445, %v1489
        %v1491 = vmul.f32 %v1446, %v1489
        %v1494 = vrot.slane %v1490, 2
        %v1495 = vrot.slane %v1491, 2
        %v1496 = vsel %vm349, %v1494, %v1495
        %v1498 = vadd.f32 %v1487, %v1496
        %s1499 = sld [smem:[#allocation10 + $0x105]]
        %v1500 = vstv %s1499
        %v1501 = vmul.f32 %v1445, %v1500
        %v1502 = vadd.f32 %v1314, %v1501
        %s1503 = sld [smem:[#allocation10 + $0x285]]
        %v1504 = vstv %s1503
        %v1505 = vmul.f32 %v1445, %v1504
        %v1506 = vmul.f32 %v1446, %v1504
        %v1509 = vrot.slane %v1505, 1
        %v1510 = vrot.slane %v1506, 1
        %v1511 = vsel %vm301, %v1509, %v1510
        %v1513 = vadd.f32 %v1502, %v1511
        %s1514 = sld [smem:[#allocation10 + $0x405]]
        %v1515 = vstv %s1514
        %v1516 = vmul.f32 %v1445, %v1515
        %v1517 = vmul.f32 %v1446, %v1515
        %v1520 = vrot.slane %v1516, 2
        %v1521 = vrot.slane %v1517, 2
        %v1522 = vsel %vm349, %v1520, %v1521
        %v1524 = vadd.f32 %v1513, %v1522
        %s1525 = sld [smem:[#allocation8 + $0x6]]
        %v1526 = vstv %s1525
        %v1527 = vmul.f32 %v261, %v1526
        %v1528 = vmul.f32 %v262, %v1526
        %s1529 = sld [smem:[#allocation8 + $0x86]]
        %v1530 = vstv %s1529
        %v1531 = vmul.f32 %v261, %v1530
        %v1532 = vmul.f32 %v262, %v1530
        %1535 = vrot.lane.b32.xlu0 %v1531, 127
        %v1536 = vpop.permute.xlu0 %1535
        %1537 = vrot.lane.b32.xlu0 %v1532, 127
        %v1538 = vpop.permute.xlu0 %1537
        %v1541 = vadd.f32 %v1527, %v1536
        %v1542 = vadd.f32 %v1528, %v1538
        %s1543 = sld [smem:[#allocation8 + $0x106]]
        %v1544 = vstv %s1543
        %v1545 = vmul.f32 %v261, %v1544
        %v1546 = vmul.f32 %v262, %v1544
        %1549 = vrot.lane.b32.xlu0 %v1545, 126
        %v1550 = vpop.permute.xlu0 %1549
        %1551 = vrot.lane.b32.xlu0 %v1546, 126
        %v1552 = vpop.permute.xlu0 %1551
        %v1555 = vadd.f32 %v1541, %v1550
        %v1556 = vadd.f32 %v1542, %v1552
        %s1557 = sld [smem:[#allocation8 + $0x186]]
        %v1558 = vstv %s1557
        %v1559 = vmul.f32 %v261, %v1558
        %v1560 = vmul.f32 %v262, %v1558
        %v1563 = vrot.slane %v1559, 1
        %v1564 = vrot.slane %v1560, 1
        %v1565 = vsel %vm301, %v1563, %v1564
        %v1568 = vadd.f32 %v1555, %v1565
        %v1569 = vadd.f32 %v1556, %v1564
        %s1570 = sld [smem:[#allocation8 + $0x206]]
        %v1571 = vstv %s1570
        %v1572 = vmul.f32 %v261, %v1571
        %v1573 = vmul.f32 %v262, %v1571
        %v1576 = vrot.slane %v1572, 1
        %v1577 = vrot.slane %v1573, 1
        %v1578 = vsel %vm301, %v1576, %v1577
        %1579 = vrot.lane.b32.xlu0 %v1578, 127
        %v1580 = vpop.permute.xlu0 %1579
        %1581 = vrot.lane.b32.xlu0 %v1577, 127
        %v1582 = vpop.permute.xlu0 %1581
        %v1585 = vadd.f32 %v1568, %v1580
        %v1586 = vadd.f32 %v1569, %v1582
        %s1587 = sld [smem:[#allocation8 + $0x286]]
        %v1588 = vstv %s1587
        %v1589 = vmul.f32 %v261, %v1588
        %v1590 = vmul.f32 %v262, %v1588
        %v1593 = vrot.slane %v1589, 1
        %v1594 = vrot.slane %v1590, 1
        %v1595 = vsel %vm301, %v1593, %v1594
        %1596 = vrot.lane.b32.xlu0 %v1595, 126
        %v1597 = vpop.permute.xlu0 %1596
        %1598 = vrot.lane.b32.xlu0 %v1594, 126
        %v1599 = vpop.permute.xlu0 %1598
        %v1602 = vadd.f32 %v1585, %v1597
        %v1603 = vadd.f32 %v1586, %v1599
        %s1604 = sld [smem:[#allocation8 + $0x306]]
        %v1605 = vstv %s1604
        %v1606 = vmul.f32 %v261, %v1605
        %v1607 = vmul.f32 %v262, %v1605
        %v1610 = vrot.slane %v1606, 2
        %v1611 = vrot.slane %v1607, 2
        %v1612 = vsel %vm349, %v1610, %v1611
        %v1615 = vadd.f32 %v1602, %v1612
        %v1616 = vadd.f32 %v1603, %v1611
        %s1617 = sld [smem:[#allocation8 + $0x386]]
        %v1618 = vstv %s1617
        %v1619 = vmul.f32 %v261, %v1618
        %v1620 = vmul.f32 %v262, %v1618
        %v1623 = vrot.slane %v1619, 2
        %v1624 = vrot.slane %v1620, 2
        %v1625 = vsel %vm349, %v1623, %v1624
        %1626 = vrot.lane.b32.xlu0 %v1625, 127
        %v1627 = vpop.permute.xlu0 %1626
        %1628 = vrot.lane.b32.xlu0 %v1624, 127
        %v1629 = vpop.permute.xlu0 %1628
        %v1632 = vadd.f32 %v1615, %v1627
        %v1633 = vadd.f32 %v1616, %v1629
        %s1634 = sld [smem:[#allocation8 + $0x406]]
        %v1635 = vstv %s1634
        %v1636 = vmul.f32 %v261, %v1635
        %v1637 = vmul.f32 %v262, %v1635
        %v1640 = vrot.slane %v1636, 2
        %v1641 = vrot.slane %v1637, 2
        %v1642 = vsel %vm349, %v1640, %v1641
        %1643 = vrot.lane.b32.xlu0 %v1642, 126
        %v1644 = vpop.permute.xlu0 %1643
        %1645 = vrot.lane.b32.xlu0 %v1641, 126
        %v1646 = vpop.permute.xlu0 %1645
        %v1649 = vadd.f32 %v1632, %v1644
        %v1650 = vadd.f32 %v1633, %v1646
        %s1651 = sld [smem:[#allocation9 + $0x6]]
        %v1652 = vstv %s1651
        %v1653 = vadd.f32 %v1649, %v1652
        %v1654 = vadd.f32 %v1650, %v1652
        %v1655 = vmax.f32 %v1653, 0.0
        %v1656 = vmax.f32 %v1654, 0.0
        %s1657 = sld [smem:[#allocation10 + $0x6]]
        %v1658 = vstv %s1657
        %v1659 = vmul.f32 %v1655, %v1658
        %v1660 = vadd.f32 %v1472, %v1659
        %s1661 = sld [smem:[#allocation10 + $0x186]]
        %v1662 = vstv %s1661
        %v1663 = vmul.f32 %v1655, %v1662
        %v1664 = vmul.f32 %v1656, %v1662
        %v1667 = vrot.slane %v1663, 1
        %v1668 = vrot.slane %v1664, 1
        %v1669 = vsel %vm301, %v1667, %v1668
        %v1671 = vadd.f32 %v1660, %v1669
        %s1672 = sld [smem:[#allocation10 + $0x306]]
        %v1673 = vstv %s1672
        %v1674 = vmul.f32 %v1655, %v1673
        %v1675 = vmul.f32 %v1656, %v1673
        %v1678 = vrot.slane %v1674, 2
        %v1679 = vrot.slane %v1675, 2
        %v1680 = vsel %vm349, %v1678, %v1679
        %v1682 = vadd.f32 %v1671, %v1680
        %s1683 = sld [smem:[#allocation10 + $0x86]]
        %v1684 = vstv %s1683
        %v1685 = vmul.f32 %v1655, %v1684
        %v1686 = vadd.f32 %v1498, %v1685
        %s1687 = sld [smem:[#allocation10 + $0x206]]
        %v1688 = vstv %s1687
        %v1689 = vmul.f32 %v1655, %v1688
        %v1690 = vmul.f32 %v1656, %v1688
        %v1693 = vrot.slane %v1689, 1
        %v1694 = vrot.slane %v1690, 1
        %v1695 = vsel %vm301, %v1693, %v1694
        %v1697 = vadd.f32 %v1686, %v1695
        %s1698 = sld [smem:[#allocation10 + $0x386]]
        %v1699 = vstv %s1698
        %v1700 = vmul.f32 %v1655, %v1699
        %v1701 = vmul.f32 %v1656, %v1699
        %v1704 = vrot.slane %v1700, 2
        %v1705 = vrot.slane %v1701, 2
        %v1706 = vsel %vm349, %v1704, %v1705
        %v1708 = vadd.f32 %v1697, %v1706
        %s1709 = sld [smem:[#allocation10 + $0x106]]
        %v1710 = vstv %s1709
        %v1711 = vmul.f32 %v1655, %v1710
        %v1712 = vadd.f32 %v1524, %v1711
        %s1713 = sld [smem:[#allocation10 + $0x286]]
        %v1714 = vstv %s1713
        %v1715 = vmul.f32 %v1655, %v1714
        %v1716 = vmul.f32 %v1656, %v1714
        %v1719 = vrot.slane %v1715, 1
        %v1720 = vrot.slane %v1716, 1
        %v1721 = vsel %vm301, %v1719, %v1720
        %v1723 = vadd.f32 %v1712, %v1721
        %s1724 = sld [smem:[#allocation10 + $0x406]]
        %v1725 = vstv %s1724
        %v1726 = vmul.f32 %v1655, %v1725
        %v1727 = vmul.f32 %v1656, %v1725
        %v1730 = vrot.slane %v1726, 2
        %v1731 = vrot.slane %v1727, 2
        %v1732 = vsel %vm349, %v1730, %v1731
        %v1734 = vadd.f32 %v1723, %v1732
        %s1735 = sld [smem:[#allocation8 + $0x7]]
        %v1736 = vstv %s1735
        %v1737 = vmul.f32 %v261, %v1736
        %v1738 = vmul.f32 %v262, %v1736
        %s1739 = sld [smem:[#allocation8 + $0x87]]
        %v1740 = vstv %s1739
        %v1741 = vmul.f32 %v261, %v1740
        %v1742 = vmul.f32 %v262, %v1740
        %1745 = vrot.lane.b32.xlu0 %v1741, 127
        %v1746 = vpop.permute.xlu0 %1745
        %1747 = vrot.lane.b32.xlu0 %v1742, 127
        %v1748 = vpop.permute.xlu0 %1747
        %v1751 = vadd.f32 %v1737, %v1746
        %v1752 = vadd.f32 %v1738, %v1748
        %s1753 = sld [smem:[#allocation8 + $0x107]]
        %v1754 = vstv %s1753
        %v1755 = vmul.f32 %v261, %v1754
        %v1756 = vmul.f32 %v262, %v1754
        %1759 = vrot.lane.b32.xlu0 %v1755, 126
        %v1760 = vpop.permute.xlu0 %1759
        %1761 = vrot.lane.b32.xlu0 %v1756, 126
        %v1762 = vpop.permute.xlu0 %1761
        %v1765 = vadd.f32 %v1751, %v1760
        %v1766 = vadd.f32 %v1752, %v1762
        %s1767 = sld [smem:[#allocation8 + $0x187]]
        %v1768 = vstv %s1767
        %v1769 = vmul.f32 %v261, %v1768
        %v1770 = vmul.f32 %v262, %v1768
        %v1773 = vrot.slane %v1769, 1
        %v1774 = vrot.slane %v1770, 1
        %v1775 = vsel %vm301, %v1773, %v1774
        %v1778 = vadd.f32 %v1765, %v1775
        %v1779 = vadd.f32 %v1766, %v1774
        %s1780 = sld [smem:[#allocation8 + $0x207]]
        %v1781 = vstv %s1780
        %v1782 = vmul.f32 %v261, %v1781
        %v1783 = vmul.f32 %v262, %v1781
        %v1786 = vrot.slane %v1782, 1
        %v1787 = vrot.slane %v1783, 1
        %v1788 = vsel %vm301, %v1786, %v1787
        %1789 = vrot.lane.b32.xlu0 %v1788, 127
        %v1790 = vpop.permute.xlu0 %1789
        %1791 = vrot.lane.b32.xlu0 %v1787, 127
        %v1792 = vpop.permute.xlu0 %1791
        %v1795 = vadd.f32 %v1778, %v1790
        %v1796 = vadd.f32 %v1779, %v1792
        %s1797 = sld [smem:[#allocation8 + $0x287]]
        %v1798 = vstv %s1797
        %v1799 = vmul.f32 %v261, %v1798
        %v1800 = vmul.f32 %v262, %v1798
        %v1803 = vrot.slane %v1799, 1
        %v1804 = vrot.slane %v1800, 1
        %v1805 = vsel %vm301, %v1803, %v1804
        %1806 = vrot.lane.b32.xlu0 %v1805, 126
        %v1807 = vpop.permute.xlu0 %1806
        %1808 = vrot.lane.b32.xlu0 %v1804, 126
        %v1809 = vpop.permute.xlu0 %1808
        %v1812 = vadd.f32 %v1795, %v1807
        %v1813 = vadd.f32 %v1796, %v1809
        %s1814 = sld [smem:[#allocation8 + $0x307]]
        %v1815 = vstv %s1814
        %v1816 = vmul.f32 %v261, %v1815
        %v1817 = vmul.f32 %v262, %v1815
        %v1820 = vrot.slane %v1816, 2
        %v1821 = vrot.slane %v1817, 2
        %v1822 = vsel %vm349, %v1820, %v1821
        %v1825 = vadd.f32 %v1812, %v1822
        %v1826 = vadd.f32 %v1813, %v1821
        %s1827 = sld [smem:[#allocation8 + $0x387]]
        %v1828 = vstv %s1827
        %v1829 = vmul.f32 %v261, %v1828
        %v1830 = vmul.f32 %v262, %v1828
        %v1833 = vrot.slane %v1829, 2
        %v1834 = vrot.slane %v1830, 2
        %v1835 = vsel %vm349, %v1833, %v1834
        %1836 = vrot.lane.b32.xlu0 %v1835, 127
        %v1837 = vpop.permute.xlu0 %1836
        %1838 = vrot.lane.b32.xlu0 %v1834, 127
        %v1839 = vpop.permute.xlu0 %1838
        %v1842 = vadd.f32 %v1825, %v1837
        %v1843 = vadd.f32 %v1826, %v1839
        %s1844 = sld [smem:[#allocation8 + $0x407]]
        %v1845 = vstv %s1844
        %v1846 = vmul.f32 %v261, %v1845
        %v1847 = vmul.f32 %v262, %v1845
        %v1850 = vrot.slane %v1846, 2
        %v1851 = vrot.slane %v1847, 2
        %v1852 = vsel %vm349, %v1850, %v1851
        %1853 = vrot.lane.b32.xlu0 %v1852, 126
        %v1854 = vpop.permute.xlu0 %1853
        %1855 = vrot.lane.b32.xlu0 %v1851, 126
        %v1856 = vpop.permute.xlu0 %1855
        %v1859 = vadd.f32 %v1842, %v1854
        %v1860 = vadd.f32 %v1843, %v1856
        %s1861 = sld [smem:[#allocation9 + $0x7]]
        %v1862 = vstv %s1861
        %v1863 = vadd.f32 %v1859, %v1862
        %v1864 = vadd.f32 %v1860, %v1862
        %v1865 = vmax.f32 %v1863, 0.0
        %v1866 = vmax.f32 %v1864, 0.0
        %s1867 = sld [smem:[#allocation10 + $0x7]]
        %v1868 = vstv %s1867
        %v1869 = vmul.f32 %v1865, %v1868
        %v1870 = vadd.f32 %v1682, %v1869
        %s1871 = sld [smem:[#allocation10 + $0x187]]
        %v1872 = vstv %s1871
        %v1873 = vmul.f32 %v1865, %v1872
        %v1874 = vmul.f32 %v1866, %v1872
        %v1877 = vrot.slane %v1873, 1
        %v1878 = vrot.slane %v1874, 1
        %v1879 = vsel %vm301, %v1877, %v1878
        %v1881 = vadd.f32 %v1870, %v1879
        %s1882 = sld [smem:[#allocation10 + $0x307]]
        %v1883 = vstv %s1882
        %v1884 = vmul.f32 %v1865, %v1883
        %v1885 = vmul.f32 %v1866, %v1883
        %v1888 = vrot.slane %v1884, 2
        %v1889 = vrot.slane %v1885, 2
        %v1890 = vsel %vm349, %v1888, %v1889
        %v1892 = vadd.f32 %v1881, %v1890
        %s1893 = sld [smem:[#allocation10 + $0x87]]
        %v1894 = vstv %s1893
        %v1895 = vmul.f32 %v1865, %v1894
        %v1896 = vadd.f32 %v1708, %v1895
        %s1897 = sld [smem:[#allocation10 + $0x207]]
        %v1898 = vstv %s1897
        %v1899 = vmul.f32 %v1865, %v1898
        %v1900 = vmul.f32 %v1866, %v1898
        %v1903 = vrot.slane %v1899, 1
        %v1904 = vrot.slane %v1900, 1
        %v1905 = vsel %vm301, %v1903, %v1904
        %v1907 = vadd.f32 %v1896, %v1905
        %s1908 = sld [smem:[#allocation10 + $0x387]]
        %v1909 = vstv %s1908
        %v1910 = vmul.f32 %v1865, %v1909
        %v1911 = vmul.f32 %v1866, %v1909
        %v1914 = vrot.slane %v1910, 2
        %v1915 = vrot.slane %v1911, 2
        %v1916 = vsel %vm349, %v1914, %v1915
        %v1918 = vadd.f32 %v1907, %v1916
        %s1919 = sld [smem:[#allocation10 + $0x107]]
        %v1920 = vstv %s1919
        %v1921 = vmul.f32 %v1865, %v1920
        %v1922 = vadd.f32 %v1734, %v1921
        %s1923 = sld [smem:[#allocation10 + $0x287]]
        %v1924 = vstv %s1923
        %v1925 = vmul.f32 %v1865, %v1924
        %v1926 = vmul.f32 %v1866, %v1924
        %v1929 = vrot.slane %v1925, 1
        %v1930 = vrot.slane %v1926, 1
        %v1931 = vsel %vm301, %v1929, %v1930
        %v1933 = vadd.f32 %v1922, %v1931
        %s1934 = sld [smem:[#allocation10 + $0x407]]
        %v1935 = vstv %s1934
        %v1936 = vmul.f32 %v1865, %v1935
        %v1937 = vmul.f32 %v1866, %v1935
        %v1940 = vrot.slane %v1936, 2
        %v1941 = vrot.slane %v1937, 2
        %v1942 = vsel %vm349, %v1940, %v1941
        %v1944 = vadd.f32 %v1933, %v1942
        %s1945 = sld [smem:[#allocation8 + $0x8]]
        %v1946 = vstv %s1945
        %v1947 = vmul.f32 %v261, %v1946
        %v1948 = vmul.f32 %v262, %v1946
        %s1949 = sld [smem:[#allocation8 + $0x88]]
        %v1950 = vstv %s1949
        %v1951 = vmul.f32 %v261, %v1950
        %v1952 = vmul.f32 %v262, %v1950
        %1955 = vrot.lane.b32.xlu0 %v1951, 127
        %v1956 = vpop.permute.xlu0 %1955
        %1957 = vrot.lane.b32.xlu0 %v1952, 127
        %v1958 = vpop.permute.xlu0 %1957
        %v1961 = vadd.f32 %v1947, %v1956
        %v1962 = vadd.f32 %v1948, %v1958
        %s1963 = sld [smem:[#allocation8 + $0x108]]
        %v1964 = vstv %s1963
        %v1965 = vmul.f32 %v261, %v1964
        %v1966 = vmul.f32 %v262, %v1964
        %1969 = vrot.lane.b32.xlu0 %v1965, 126
        %v1970 = vpop.permute.xlu0 %1969
        %1971 = vrot.lane.b32.xlu0 %v1966, 126
        %v1972 = vpop.permute.xlu0 %1971
        %v1975 = vadd.f32 %v1961, %v1970
        %v1976 = vadd.f32 %v1962, %v1972
        %s1977 = sld [smem:[#allocation8 + $0x188]]
        %v1978 = vstv %s1977
        %v1979 = vmul.f32 %v261, %v1978
        %v1980 = vmul.f32 %v262, %v1978
        %v1983 = vrot.slane %v1979, 1
        %v1984 = vrot.slane %v1980, 1
        %v1985 = vsel %vm301, %v1983, %v1984
        %v1988 = vadd.f32 %v1975, %v1985
        %v1989 = vadd.f32 %v1976, %v1984
        %s1990 = sld [smem:[#allocation8 + $0x208]]
        %v1991 = vstv %s1990
        %v1992 = vmul.f32 %v261, %v1991
        %v1993 = vmul.f32 %v262, %v1991
        %v1996 = vrot.slane %v1992, 1
        %v1997 = vrot.slane %v1993, 1
        %v1998 = vsel %vm301, %v1996, %v1997
        %1999 = vrot.lane.b32.xlu0 %v1998, 127
        %v2000 = vpop.permute.xlu0 %1999
        %2001 = vrot.lane.b32.xlu0 %v1997, 127
        %v2002 = vpop.permute.xlu0 %2001
        %v2005 = vadd.f32 %v1988, %v2000
        %v2006 = vadd.f32 %v1989, %v2002
        %s2007 = sld [smem:[#allocation8 + $0x288]]
        %v2008 = vstv %s2007
        %v2009 = vmul.f32 %v261, %v2008
        %v2010 = vmul.f32 %v262, %v2008
        %v2013 = vrot.slane %v2009, 1
        %v2014 = vrot.slane %v2010, 1
        %v2015 = vsel %vm301, %v2013, %v2014
        %2016 = vrot.lane.b32.xlu0 %v2015, 126
        %v2017 = vpop.permute.xlu0 %2016
        %2018 = vrot.lane.b32.xlu0 %v2014, 126
        %v2019 = vpop.permute.xlu0 %2018
        %v2022 = vadd.f32 %v2005, %v2017
        %v2023 = vadd.f32 %v2006, %v2019
        %s2024 = sld [smem:[#allocation8 + $0x308]]
        %v2025 = vstv %s2024
        %v2026 = vmul.f32 %v261, %v2025
        %v2027 = vmul.f32 %v262, %v2025
        %v2030 = vrot.slane %v2026, 2
        %v2031 = vrot.slane %v2027, 2
        %v2032 = vsel %vm349, %v2030, %v2031
        %v2035 = vadd.f32 %v2022, %v2032
        %v2036 = vadd.f32 %v2023, %v2031
        %s2037 = sld [smem:[#allocation8 + $0x388]]
        %v2038 = vstv %s2037
        %v2039 = vmul.f32 %v261, %v2038
        %v2040 = vmul.f32 %v262, %v2038
        %v2043 = vrot.slane %v2039, 2
        %v2044 = vrot.slane %v2040, 2
        %v2045 = vsel %vm349, %v2043, %v2044
        %2046 = vrot.lane.b32.xlu0 %v2045, 127
        %v2047 = vpop.permute.xlu0 %2046
        %2048 = vrot.lane.b32.xlu0 %v2044, 127
        %v2049 = vpop.permute.xlu0 %2048
        %v2052 = vadd.f32 %v2035, %v2047
        %v2053 = vadd.f32 %v2036, %v2049
        %s2054 = sld [smem:[#allocation8 + $0x408]]
        %v2055 = vstv %s2054
        %v2056 = vmul.f32 %v261, %v2055
        %v2057 = vmul.f32 %v262, %v2055
        %v2060 = vrot.slane %v2056, 2
        %v2061 = vrot.slane %v2057, 2
        %v2062 = vsel %vm349, %v2060, %v2061
        %2063 = vrot.lane.b32.xlu0 %v2062, 126
        %v2064 = vpop.permute.xlu0 %2063
        %2065 = vrot.lane.b32.xlu0 %v2061, 126
        %v2066 = vpop.permute.xlu0 %2065
        %v2069 = vadd.f32 %v2052, %v2064
        %v2070 = vadd.f32 %v2053, %v2066
        %s2071 = sld [smem:[#allocation9 + $0x8]]
        %v2072 = vstv %s2071
        %v2073 = vadd.f32 %v2069, %v2072
        %v2074 = vadd.f32 %v2070, %v2072
        %v2075 = vmax.f32 %v2073, 0.0
        %v2076 = vmax.f32 %v2074, 0.0
        %s2077 = sld [smem:[#allocation10 + $0x8]]
        %v2078 = vstv %s2077
        %v2079 = vmul.f32 %v2075, %v2078
        %v2080 = vadd.f32 %v1892, %v2079
        %s2081 = sld [smem:[#allocation10 + $0x188]]
        %v2082 = vstv %s2081
        %v2083 = vmul.f32 %v2075, %v2082
        %v2084 = vmul.f32 %v2076, %v2082
        %v2087 = vrot.slane %v2083, 1
        %v2088 = vrot.slane %v2084, 1
        %v2089 = vsel %vm301, %v2087, %v2088
        %v2091 = vadd.f32 %v2080, %v2089
        %s2092 = sld [smem:[#allocation10 + $0x308]]
        %v2093 = vstv %s2092
        %v2094 = vmul.f32 %v2075, %v2093
        %v2095 = vmul.f32 %v2076, %v2093
        %v2098 = vrot.slane %v2094, 2
        %v2099 = vrot.slane %v2095, 2
        %v2100 = vsel %vm349, %v2098, %v2099
        %v2102 = vadd.f32 %v2091, %v2100
        %s2103 = sld [smem:[#allocation10 + $0x88]]
        %v2104 = vstv %s2103
        %v2105 = vmul.f32 %v2075, %v2104
        %v2106 = vadd.f32 %v1918, %v2105
        %s2107 = sld [smem:[#allocation10 + $0x208]]
        %v2108 = vstv %s2107
        %v2109 = vmul.f32 %v2075, %v2108
        %v2110 = vmul.f32 %v2076, %v2108
        %v2113 = vrot.slane %v2109, 1
        %v2114 = vrot.slane %v2110, 1
        %v2115 = vsel %vm301, %v2113, %v2114
        %v2117 = vadd.f32 %v2106, %v2115
        %s2118 = sld [smem:[#allocation10 + $0x388]]
        %v2119 = vstv %s2118
        %v2120 = vmul.f32 %v2075, %v2119
        %v2121 = vmul.f32 %v2076, %v2119
        %v2124 = vrot.slane %v2120, 2
        %v2125 = vrot.slane %v2121, 2
        %v2126 = vsel %vm349, %v2124, %v2125
        %v2128 = vadd.f32 %v2117, %v2126
        %s2129 = sld [smem:[#allocation10 + $0x108]]
        %v2130 = vstv %s2129
        %v2131 = vmul.f32 %v2075, %v2130
        %v2132 = vadd.f32 %v1944, %v2131
        %s2133 = sld [smem:[#allocation10 + $0x288]]
        %v2134 = vstv %s2133
        %v2135 = vmul.f32 %v2075, %v2134
        %v2136 = vmul.f32 %v2076, %v2134
        %v2139 = vrot.slane %v2135, 1
        %v2140 = vrot.slane %v2136, 1
        %v2141 = vsel %vm301, %v2139, %v2140
        %v2143 = vadd.f32 %v2132, %v2141
        %s2144 = sld [smem:[#allocation10 + $0x408]]
        %v2145 = vstv %s2144
        %v2146 = vmul.f32 %v2075, %v2145
        %v2147 = vmul.f32 %v2076, %v2145
        %v2150 = vrot.slane %v2146, 2
        %v2151 = vrot.slane %v2147, 2
        %v2152 = vsel %vm349, %v2150, %v2151
        %v2154 = vadd.f32 %v2143, %v2152
        %s2155 = sld [smem:[#allocation8 + $0x9]]
        %v2156 = vstv %s2155
        %v2157 = vmul.f32 %v261, %v2156
        %v2158 = vmul.f32 %v262, %v2156
        %s2159 = sld [smem:[#allocation8 + $0x89]]
        %v2160 = vstv %s2159
        %v2161 = vmul.f32 %v261, %v2160
        %v2162 = vmul.f32 %v262, %v2160
        %2165 = vrot.lane.b32.xlu0 %v2161, 127
        %v2166 = vpop.permute.xlu0 %2165
        %2167 = vrot.lane.b32.xlu0 %v2162, 127
        %v2168 = vpop.permute.xlu0 %2167
        %v2171 = vadd.f32 %v2157, %v2166
        %v2172 = vadd.f32 %v2158, %v2168
        %s2173 = sld [smem:[#allocation8 + $0x109]]
        %v2174 = vstv %s2173
        %v2175 = vmul.f32 %v261, %v2174
        %v2176 = vmul.f32 %v262, %v2174
        %2179 = vrot.lane.b32.xlu0 %v2175, 126
        %v2180 = vpop.permute.xlu0 %2179
        %2181 = vrot.lane.b32.xlu0 %v2176, 126
        %v2182 = vpop.permute.xlu0 %2181
        %v2185 = vadd.f32 %v2171, %v2180
        %v2186 = vadd.f32 %v2172, %v2182
        %s2187 = sld [smem:[#allocation8 + $0x189]]
        %v2188 = vstv %s2187
        %v2189 = vmul.f32 %v261, %v2188
        %v2190 = vmul.f32 %v262, %v2188
        %v2193 = vrot.slane %v2189, 1
        %v2194 = vrot.slane %v2190, 1
        %v2195 = vsel %vm301, %v2193, %v2194
        %v2198 = vadd.f32 %v2185, %v2195
        %v2199 = vadd.f32 %v2186, %v2194
        %s2200 = sld [smem:[#allocation8 + $0x209]]
        %v2201 = vstv %s2200
        %v2202 = vmul.f32 %v261, %v2201
        %v2203 = vmul.f32 %v262, %v2201
        %v2206 = vrot.slane %v2202, 1
        %v2207 = vrot.slane %v2203, 1
        %v2208 = vsel %vm301, %v2206, %v2207
        %2209 = vrot.lane.b32.xlu0 %v2208, 127
        %v2210 = vpop.permute.xlu0 %2209
        %2211 = vrot.lane.b32.xlu0 %v2207, 127
        %v2212 = vpop.permute.xlu0 %2211
        %v2215 = vadd.f32 %v2198, %v2210
        %v2216 = vadd.f32 %v2199, %v2212
        %s2217 = sld [smem:[#allocation8 + $0x289]]
        %v2218 = vstv %s2217
        %v2219 = vmul.f32 %v261, %v2218
        %v2220 = vmul.f32 %v262, %v2218
        %v2223 = vrot.slane %v2219, 1
        %v2224 = vrot.slane %v2220, 1
        %v2225 = vsel %vm301, %v2223, %v2224
        %2226 = vrot.lane.b32.xlu0 %v2225, 126
        %v2227 = vpop.permute.xlu0 %2226
        %2228 = vrot.lane.b32.xlu0 %v2224, 126
        %v2229 = vpop.permute.xlu0 %2228
        %v2232 = vadd.f32 %v2215, %v2227
        %v2233 = vadd.f32 %v2216, %v2229
        %s2234 = sld [smem:[#allocation8 + $0x309]]
        %v2235 = vstv %s2234
        %v2236 = vmul.f32 %v261, %v2235
        %v2237 = vmul.f32 %v262, %v2235
        %v2240 = vrot.slane %v2236, 2
        %v2241 = vrot.slane %v2237, 2
        %v2242 = vsel %vm349, %v2240, %v2241
        %v2245 = vadd.f32 %v2232, %v2242
        %v2246 = vadd.f32 %v2233, %v2241
        %s2247 = sld [smem:[#allocation8 + $0x389]]
        %v2248 = vstv %s2247
        %v2249 = vmul.f32 %v261, %v2248
        %v2250 = vmul.f32 %v262, %v2248
        %v2253 = vrot.slane %v2249, 2
        %v2254 = vrot.slane %v2250, 2
        %v2255 = vsel %vm349, %v2253, %v2254
        %2256 = vrot.lane.b32.xlu0 %v2255, 127
        %v2257 = vpop.permute.xlu0 %2256
        %2258 = vrot.lane.b32.xlu0 %v2254, 127
        %v2259 = vpop.permute.xlu0 %2258
        %v2262 = vadd.f32 %v2245, %v2257
        %v2263 = vadd.f32 %v2246, %v2259
        %s2264 = sld [smem:[#allocation8 + $0x409]]
        %v2265 = vstv %s2264
        %v2266 = vmul.f32 %v261, %v2265
        %v2267 = vmul.f32 %v262, %v2265
        %v2270 = vrot.slane %v2266, 2
        %v2271 = vrot.slane %v2267, 2
        %v2272 = vsel %vm349, %v2270, %v2271
        %2273 = vrot.lane.b32.xlu0 %v2272, 126
        %v2274 = vpop.permute.xlu0 %2273
        %2275 = vrot.lane.b32.xlu0 %v2271, 126
        %v2276 = vpop.permute.xlu0 %2275
        %v2279 = vadd.f32 %v2262, %v2274
        %v2280 = vadd.f32 %v2263, %v2276
        %s2281 = sld [smem:[#allocation9 + $0x9]]
        %v2282 = vstv %s2281
        %v2283 = vadd.f32 %v2279, %v2282
        %v2284 = vadd.f32 %v2280, %v2282
        %v2285 = vmax.f32 %v2283, 0.0
        %v2286 = vmax.f32 %v2284, 0.0
        %s2287 = sld [smem:[#allocation10 + $0x9]]
        %v2288 = vstv %s2287
        %v2289 = vmul.f32 %v2285, %v2288
        %v2290 = vadd.f32 %v2102, %v2289
        %s2291 = sld [smem:[#allocation10 + $0x189]]
        %v2292 = vstv %s2291
        %v2293 = vmul.f32 %v2285, %v2292
        %v2294 = vmul.f32 %v2286, %v2292
        %v2297 = vrot.slane %v2293, 1
        %v2298 = vrot.slane %v2294, 1
        %v2299 = vsel %vm301, %v2297, %v2298
        %v2301 = vadd.f32 %v2290, %v2299
        %s2302 = sld [smem:[#allocation10 + $0x309]]
        %v2303 = vstv %s2302
        %v2304 = vmul.f32 %v2285, %v2303
        %v2305 = vmul.f32 %v2286, %v2303
        %v2308 = vrot.slane %v2304, 2
        %v2309 = vrot.slane %v2305, 2
        %v2310 = vsel %vm349, %v2308, %v2309
        %v2312 = vadd.f32 %v2301, %v2310
        %s2313 = sld [smem:[#allocation10 + $0x89]]
        %v2314 = vstv %s2313
        %v2315 = vmul.f32 %v2285, %v2314
        %v2316 = vadd.f32 %v2128, %v2315
        %s2317 = sld [smem:[#allocation10 + $0x209]]
        %v2318 = vstv %s2317
        %v2319 = vmul.f32 %v2285, %v2318
        %v2320 = vmul.f32 %v2286, %v2318
        %v2323 = vrot.slane %v2319, 1
        %v2324 = vrot.slane %v2320, 1
        %v2325 = vsel %vm301, %v2323, %v2324
        %v2327 = vadd.f32 %v2316, %v2325
        %s2328 = sld [smem:[#allocation10 + $0x389]]
        %v2329 = vstv %s2328
        %v2330 = vmul.f32 %v2285, %v2329
        %v2331 = vmul.f32 %v2286, %v2329
        %v2334 = vrot.slane %v2330, 2
        %v2335 = vrot.slane %v2331, 2
        %v2336 = vsel %vm349, %v2334, %v2335
        %v2338 = vadd.f32 %v2327, %v2336
        %s2339 = sld [smem:[#allocation10 + $0x109]]
        %v2340 = vstv %s2339
        %v2341 = vmul.f32 %v2285, %v2340
        %v2342 = vadd.f32 %v2154, %v2341
        %s2343 = sld [smem:[#allocation10 + $0x289]]
        %v2344 = vstv %s2343
        %v2345 = vmul.f32 %v2285, %v2344
        %v2346 = vmul.f32 %v2286, %v2344
        %v2349 = vrot.slane %v2345, 1
        %v2350 = vrot.slane %v2346, 1
        %v2351 = vsel %vm301, %v2349, %v2350
        %v2353 = vadd.f32 %v2342, %v2351
        %s2354 = sld [smem:[#allocation10 + $0x409]]
        %v2355 = vstv %s2354
        %v2356 = vmul.f32 %v2285, %v2355
        %v2357 = vmul.f32 %v2286, %v2355
        %v2360 = vrot.slane %v2356, 2
        %v2361 = vrot.slane %v2357, 2
        %v2362 = vsel %vm349, %v2360, %v2361
        %v2364 = vadd.f32 %v2353, %v2362
        %s2365 = sld [smem:[#allocation8 + $0xa]]
        %v2366 = vstv %s2365
        %v2367 = vmul.f32 %v261, %v2366
        %v2368 = vmul.f32 %v262, %v2366
        %s2369 = sld [smem:[#allocation8 + $0x8a]]
        %v2370 = vstv %s2369
        %v2371 = vmul.f32 %v261, %v2370
        %v2372 = vmul.f32 %v262, %v2370
        %2375 = vrot.lane.b32.xlu0 %v2371, 127
        %v2376 = vpop.permute.xlu0 %2375
        %2377 = vrot.lane.b32.xlu0 %v2372, 127
        %v2378 = vpop.permute.xlu0 %2377
        %v2381 = vadd.f32 %v2367, %v2376
        %v2382 = vadd.f32 %v2368, %v2378
        %s2383 = sld [smem:[#allocation8 + $0x10a]]
        %v2384 = vstv %s2383
        %v2385 = vmul.f32 %v261, %v2384
        %v2386 = vmul.f32 %v262, %v2384
        %2389 = vrot.lane.b32.xlu0 %v2385, 126
        %v2390 = vpop.permute.xlu0 %2389
        %2391 = vrot.lane.b32.xlu0 %v2386, 126
        %v2392 = vpop.permute.xlu0 %2391
        %v2395 = vadd.f32 %v2381, %v2390
        %v2396 = vadd.f32 %v2382, %v2392
        %s2397 = sld [smem:[#allocation8 + $0x18a]]
        %v2398 = vstv %s2397
        %v2399 = vmul.f32 %v261, %v2398
        %v2400 = vmul.f32 %v262, %v2398
        %v2403 = vrot.slane %v2399, 1
        %v2404 = vrot.slane %v2400, 1
        %v2405 = vsel %vm301, %v2403, %v2404
        %v2408 = vadd.f32 %v2395, %v2405
        %v2409 = vadd.f32 %v2396, %v2404
        %s2410 = sld [smem:[#allocation8 + $0x20a]]
        %v2411 = vstv %s2410
        %v2412 = vmul.f32 %v261, %v2411
        %v2413 = vmul.f32 %v262, %v2411
        %v2416 = vrot.slane %v2412, 1
        %v2417 = vrot.slane %v2413, 1
        %v2418 = vsel %vm301, %v2416, %v2417
        %2419 = vrot.lane.b32.xlu0 %v2418, 127
        %v2420 = vpop.permute.xlu0 %2419
        %2421 = vrot.lane.b32.xlu0 %v2417, 127
        %v2422 = vpop.permute.xlu0 %2421
        %v2425 = vadd.f32 %v2408, %v2420
        %v2426 = vadd.f32 %v2409, %v2422
        %s2427 = sld [smem:[#allocation8 + $0x28a]]
        %v2428 = vstv %s2427
        %v2429 = vmul.f32 %v261, %v2428
        %v2430 = vmul.f32 %v262, %v2428
        %v2433 = vrot.slane %v2429, 1
        %v2434 = vrot.slane %v2430, 1
        %v2435 = vsel %vm301, %v2433, %v2434
        %2436 = vrot.lane.b32.xlu0 %v2435, 126
        %v2437 = vpop.permute.xlu0 %2436
        %2438 = vrot.lane.b32.xlu0 %v2434, 126
        %v2439 = vpop.permute.xlu0 %2438
        %v2442 = vadd.f32 %v2425, %v2437
        %v2443 = vadd.f32 %v2426, %v2439
        %s2444 = sld [smem:[#allocation8 + $0x30a]]
        %v2445 = vstv %s2444
        %v2446 = vmul.f32 %v261, %v2445
        %v2447 = vmul.f32 %v262, %v2445
        %v2450 = vrot.slane %v2446, 2
        %v2451 = vrot.slane %v2447, 2
        %v2452 = vsel %vm349, %v2450, %v2451
        %v2455 = vadd.f32 %v2442, %v2452
        %v2456 = vadd.f32 %v2443, %v2451
        %s2457 = sld [smem:[#allocation8 + $0x38a]]
        %v2458 = vstv %s2457
        %v2459 = vmul.f32 %v261, %v2458
        %v2460 = vmul.f32 %v262, %v2458
        %v2463 = vrot.slane %v2459, 2
        %v2464 = vrot.slane %v2460, 2
        %v2465 = vsel %vm349, %v2463, %v2464
        %2466 = vrot.lane.b32.xlu0 %v2465, 127
        %v2467 = vpop.permute.xlu0 %2466
        %2468 = vrot.lane.b32.xlu0 %v2464, 127
        %v2469 = vpop.permute.xlu0 %2468
        %v2472 = vadd.f32 %v2455, %v2467
        %v2473 = vadd.f32 %v2456, %v2469
        %s2474 = sld [smem:[#allocation8 + $0x40a]]
        %v2475 = vstv %s2474
        %v2476 = vmul.f32 %v261, %v2475
        %v2477 = vmul.f32 %v262, %v2475
        %v2480 = vrot.slane %v2476, 2
        %v2481 = vrot.slane %v2477, 2
        %v2482 = vsel %vm349, %v2480, %v2481
        %2483 = vrot.lane.b32.xlu0 %v2482, 126
        %v2484 = vpop.permute.xlu0 %2483
        %2485 = vrot.lane.b32.xlu0 %v2481, 126
        %v2486 = vpop.permute.xlu0 %2485
        %v2489 = vadd.f32 %v2472, %v2484
        %v2490 = vadd.f32 %v2473, %v2486
        %s2491 = sld [smem:[#allocation9 + $0xa]]
        %v2492 = vstv %s2491
        %v2493 = vadd.f32 %v2489, %v2492
        %v2494 = vadd.f32 %v2490, %v2492
        %v2495 = vmax.f32 %v2493, 0.0
        %v2496 = vmax.f32 %v2494, 0.0
        %s2497 = sld [smem:[#allocation10 + $0xa]]
        %v2498 = vstv %s2497
        %v2499 = vmul.f32 %v2495, %v2498
        %v2500 = vadd.f32 %v2312, %v2499
        %s2501 = sld [smem:[#allocation10 + $0x18a]]
        %v2502 = vstv %s2501
        %v2503 = vmul.f32 %v2495, %v2502
        %v2504 = vmul.f32 %v2496, %v2502
        %v2507 = vrot.slane %v2503, 1
        %v2508 = vrot.slane %v2504, 1
        %v2509 = vsel %vm301, %v2507, %v2508
        %v2511 = vadd.f32 %v2500, %v2509
        %s2512 = sld [smem:[#allocation10 + $0x30a]]
        %v2513 = vstv %s2512
        %v2514 = vmul.f32 %v2495, %v2513
        %v2515 = vmul.f32 %v2496, %v2513
        %v2518 = vrot.slane %v2514, 2
        %v2519 = vrot.slane %v2515, 2
        %v2520 = vsel %vm349, %v2518, %v2519
        %v2522 = vadd.f32 %v2511, %v2520
        %s2523 = sld [smem:[#allocation10 + $0x8a]]
        %v2524 = vstv %s2523
        %v2525 = vmul.f32 %v2495, %v2524
        %v2526 = vadd.f32 %v2338, %v2525
        %s2527 = sld [smem:[#allocation10 + $0x20a]]
        %v2528 = vstv %s2527
        %v2529 = vmul.f32 %v2495, %v2528
        %v2530 = vmul.f32 %v2496, %v2528
        %v2533 = vrot.slane %v2529, 1
        %v2534 = vrot.slane %v2530, 1
        %v2535 = vsel %vm301, %v2533, %v2534
        %v2537 = vadd.f32 %v2526, %v2535
        %s2538 = sld [smem:[#allocation10 + $0x38a]]
        %v2539 = vstv %s2538
        %v2540 = vmul.f32 %v2495, %v2539
        %v2541 = vmul.f32 %v2496, %v2539
        %v2544 = vrot.slane %v2540, 2
        %v2545 = vrot.slane %v2541, 2
        %v2546 = vsel %vm349, %v2544, %v2545
        %v2548 = vadd.f32 %v2537, %v2546
        %s2549 = sld [smem:[#allocation10 + $0x10a]]
        %v2550 = vstv %s2549
        %v2551 = vmul.f32 %v2495, %v2550
        %v2552 = vadd.f32 %v2364, %v2551
        %s2553 = sld [smem:[#allocation10 + $0x28a]]
        %v2554 = vstv %s2553
        %v2555 = vmul.f32 %v2495, %v2554
        %v2556 = vmul.f32 %v2496, %v2554
        %v2559 = vrot.slane %v2555, 1
        %v2560 = vrot.slane %v2556, 1
        %v2561 = vsel %vm301, %v2559, %v2560
        %v2563 = vadd.f32 %v2552, %v2561
        %s2564 = sld [smem:[#allocation10 + $0x40a]]
        %v2565 = vstv %s2564
        %v2566 = vmul.f32 %v2495, %v2565
        %v2567 = vmul.f32 %v2496, %v2565
        %v2570 = vrot.slane %v2566, 2
        %v2571 = vrot.slane %v2567, 2
        %v2572 = vsel %vm349, %v2570, %v2571
        %v2574 = vadd.f32 %v2563, %v2572
        %s2575 = sld [smem:[#allocation8 + $0xb]]
        %v2576 = vstv %s2575
        %v2577 = vmul.f32 %v261, %v2576
        %v2578 = vmul.f32 %v262, %v2576
        %s2579 = sld [smem:[#allocation8 + $0x8b]]
        %v2580 = vstv %s2579
        %v2581 = vmul.f32 %v261, %v2580
        %v2582 = vmul.f32 %v262, %v2580
        %2585 = vrot.lane.b32.xlu0 %v2581, 127
        %v2586 = vpop.permute.xlu0 %2585
        %2587 = vrot.lane.b32.xlu0 %v2582, 127
        %v2588 = vpop.permute.xlu0 %2587
        %v2591 = vadd.f32 %v2577, %v2586
        %v2592 = vadd.f32 %v2578, %v2588
        %s2593 = sld [smem:[#allocation8 + $0x10b]]
        %v2594 = vstv %s2593
        %v2595 = vmul.f32 %v261, %v2594
        %v2596 = vmul.f32 %v262, %v2594
        %2599 = vrot.lane.b32.xlu0 %v2595, 126
        %v2600 = vpop.permute.xlu0 %2599
        %2601 = vrot.lane.b32.xlu0 %v2596, 126
        %v2602 = vpop.permute.xlu0 %2601
        %v2605 = vadd.f32 %v2591, %v2600
        %v2606 = vadd.f32 %v2592, %v2602
        %s2607 = sld [smem:[#allocation8 + $0x18b]]
        %v2608 = vstv %s2607
        %v2609 = vmul.f32 %v261, %v2608
        %v2610 = vmul.f32 %v262, %v2608
        %v2613 = vrot.slane %v2609, 1
        %v2614 = vrot.slane %v2610, 1
        %v2615 = vsel %vm301, %v2613, %v2614
        %v2618 = vadd.f32 %v2605, %v2615
        %v2619 = vadd.f32 %v2606, %v2614
        %s2620 = sld [smem:[#allocation8 + $0x20b]]
        %v2621 = vstv %s2620
        %v2622 = vmul.f32 %v261, %v2621
        %v2623 = vmul.f32 %v262, %v2621
        %v2626 = vrot.slane %v2622, 1
        %v2627 = vrot.slane %v2623, 1
        %v2628 = vsel %vm301, %v2626, %v2627
        %2629 = vrot.lane.b32.xlu0 %v2628, 127
        %v2630 = vpop.permute.xlu0 %2629
        %2631 = vrot.lane.b32.xlu0 %v2627, 127
        %v2632 = vpop.permute.xlu0 %2631
        %v2635 = vadd.f32 %v2618, %v2630
        %v2636 = vadd.f32 %v2619, %v2632
        %s2637 = sld [smem:[#allocation8 + $0x28b]]
        %v2638 = vstv %s2637
        %v2639 = vmul.f32 %v261, %v2638
        %v2640 = vmul.f32 %v262, %v2638
        %v2643 = vrot.slane %v2639, 1
        %v2644 = vrot.slane %v2640, 1
        %v2645 = vsel %vm301, %v2643, %v2644
        %2646 = vrot.lane.b32.xlu0 %v2645, 126
        %v2647 = vpop.permute.xlu0 %2646
        %2648 = vrot.lane.b32.xlu0 %v2644, 126
        %v2649 = vpop.permute.xlu0 %2648
        %v2652 = vadd.f32 %v2635, %v2647
        %v2653 = vadd.f32 %v2636, %v2649
        %s2654 = sld [smem:[#allocation8 + $0x30b]]
        %v2655 = vstv %s2654
        %v2656 = vmul.f32 %v261, %v2655
        %v2657 = vmul.f32 %v262, %v2655
        %v2660 = vrot.slane %v2656, 2
        %v2661 = vrot.slane %v2657, 2
        %v2662 = vsel %vm349, %v2660, %v2661
        %v2665 = vadd.f32 %v2652, %v2662
        %v2666 = vadd.f32 %v2653, %v2661
        %s2667 = sld [smem:[#allocation8 + $0x38b]]
        %v2668 = vstv %s2667
        %v2669 = vmul.f32 %v261, %v2668
        %v2670 = vmul.f32 %v262, %v2668
        %v2673 = vrot.slane %v2669, 2
        %v2674 = vrot.slane %v2670, 2
        %v2675 = vsel %vm349, %v2673, %v2674
        %2676 = vrot.lane.b32.xlu0 %v2675, 127
        %v2677 = vpop.permute.xlu0 %2676
        %2678 = vrot.lane.b32.xlu0 %v2674, 127
        %v2679 = vpop.permute.xlu0 %2678
        %v2682 = vadd.f32 %v2665, %v2677
        %v2683 = vadd.f32 %v2666, %v2679
        %s2684 = sld [smem:[#allocation8 + $0x40b]]
        %v2685 = vstv %s2684
        %v2686 = vmul.f32 %v261, %v2685
        %v2687 = vmul.f32 %v262, %v2685
        %v2690 = vrot.slane %v2686, 2
        %v2691 = vrot.slane %v2687, 2
        %v2692 = vsel %vm349, %v2690, %v2691
        %2693 = vrot.lane.b32.xlu0 %v2692, 126
        %v2694 = vpop.permute.xlu0 %2693
        %2695 = vrot.lane.b32.xlu0 %v2691, 126
        %v2696 = vpop.permute.xlu0 %2695
        %v2699 = vadd.f32 %v2682, %v2694
        %v2700 = vadd.f32 %v2683, %v2696
        %s2701 = sld [smem:[#allocation9 + $0xb]]
        %v2702 = vstv %s2701
        %v2703 = vadd.f32 %v2699, %v2702
        %v2704 = vadd.f32 %v2700, %v2702
        %v2705 = vmax.f32 %v2703, 0.0
        %v2706 = vmax.f32 %v2704, 0.0
        %s2707 = sld [smem:[#allocation10 + $0xb]]
        %v2708 = vstv %s2707
        %v2709 = vmul.f32 %v2705, %v2708
        %v2710 = vadd.f32 %v2522, %v2709
        %s2711 = sld [smem:[#allocation10 + $0x18b]]
        %v2712 = vstv %s2711
        %v2713 = vmul.f32 %v2705, %v2712
        %v2714 = vmul.f32 %v2706, %v2712
        %v2717 = vrot.slane %v2713, 1
        %v2718 = vrot.slane %v2714, 1
        %v2719 = vsel %vm301, %v2717, %v2718
        %v2721 = vadd.f32 %v2710, %v2719
        %s2722 = sld [smem:[#allocation10 + $0x30b]]
        %v2723 = vstv %s2722
        %v2724 = vmul.f32 %v2705, %v2723
        %v2725 = vmul.f32 %v2706, %v2723
        %v2728 = vrot.slane %v2724, 2
        %v2729 = vrot.slane %v2725, 2
        %v2730 = vsel %vm349, %v2728, %v2729
        %v2732 = vadd.f32 %v2721, %v2730
        %s2733 = sld [smem:[#allocation10 + $0x8b]]
        %v2734 = vstv %s2733
        %v2735 = vmul.f32 %v2705, %v2734
        %v2736 = vadd.f32 %v2548, %v2735
        %s2737 = sld [smem:[#allocation10 + $0x20b]]
        %v2738 = vstv %s2737
        %v2739 = vmul.f32 %v2705, %v2738
        %v2740 = vmul.f32 %v2706, %v2738
        %v2743 = vrot.slane %v2739, 1
        %v2744 = vrot.slane %v2740, 1
        %v2745 = vsel %vm301, %v2743, %v2744
        %v2747 = vadd.f32 %v2736, %v2745
        %s2748 = sld [smem:[#allocation10 + $0x38b]]
        %v2749 = vstv %s2748
        %v2750 = vmul.f32 %v2705, %v2749
        %v2751 = vmul.f32 %v2706, %v2749
        %v2754 = vrot.slane %v2750, 2
        %v2755 = vrot.slane %v2751, 2
        %v2756 = vsel %vm349, %v2754, %v2755
        %v2758 = vadd.f32 %v2747, %v2756
        %s2759 = sld [smem:[#allocation10 + $0x10b]]
        %v2760 = vstv %s2759
        %v2761 = vmul.f32 %v2705, %v2760
        %v2762 = vadd.f32 %v2574, %v2761
        %s2763 = sld [smem:[#allocation10 + $0x28b]]
        %v2764 = vstv %s2763
        %v2765 = vmul.f32 %v2705, %v2764
        %v2766 = vmul.f32 %v2706, %v2764
        %v2769 = vrot.slane %v2765, 1
        %v2770 = vrot.slane %v2766, 1
        %v2771 = vsel %vm301, %v2769, %v2770
        %v2773 = vadd.f32 %v2762, %v2771
        %s2774 = sld [smem:[#allocation10 + $0x40b]]
        %v2775 = vstv %s2774
        %v2776 = vmul.f32 %v2705, %v2775
        %v2777 = vmul.f32 %v2706, %v2775
        %v2780 = vrot.slane %v2776, 2
        %v2781 = vrot.slane %v2777, 2
        %v2782 = vsel %vm349, %v2780, %v2781
        %v2784 = vadd.f32 %v2773, %v2782
        %s2785 = sld [smem:[#allocation8 + $0xc]]
        %v2786 = vstv %s2785
        %v2787 = vmul.f32 %v261, %v2786
        %v2788 = vmul.f32 %v262, %v2786
        %s2789 = sld [smem:[#allocation8 + $0x8c]]
        %v2790 = vstv %s2789
        %v2791 = vmul.f32 %v261, %v2790
        %v2792 = vmul.f32 %v262, %v2790
        %2795 = vrot.lane.b32.xlu0 %v2791, 127
        %v2796 = vpop.permute.xlu0 %2795
        %2797 = vrot.lane.b32.xlu0 %v2792, 127
        %v2798 = vpop.permute.xlu0 %2797
        %v2801 = vadd.f32 %v2787, %v2796
        %v2802 = vadd.f32 %v2788, %v2798
        %s2803 = sld [smem:[#allocation8 + $0x10c]]
        %v2804 = vstv %s2803
        %v2805 = vmul.f32 %v261, %v2804
        %v2806 = vmul.f32 %v262, %v2804
        %2809 = vrot.lane.b32.xlu0 %v2805, 126
        %v2810 = vpop.permute.xlu0 %2809
        %2811 = vrot.lane.b32.xlu0 %v2806, 126
        %v2812 = vpop.permute.xlu0 %2811
        %v2815 = vadd.f32 %v2801, %v2810
        %v2816 = vadd.f32 %v2802, %v2812
        %s2817 = sld [smem:[#allocation8 + $0x18c]]
        %v2818 = vstv %s2817
        %v2819 = vmul.f32 %v261, %v2818
        %v2820 = vmul.f32 %v262, %v2818
        %v2823 = vrot.slane %v2819, 1
        %v2824 = vrot.slane %v2820, 1
        %v2825 = vsel %vm301, %v2823, %v2824
        %v2828 = vadd.f32 %v2815, %v2825
        %v2829 = vadd.f32 %v2816, %v2824
        %s2830 = sld [smem:[#allocation8 + $0x20c]]
        %v2831 = vstv %s2830
        %v2832 = vmul.f32 %v261, %v2831
        %v2833 = vmul.f32 %v262, %v2831
        %v2836 = vrot.slane %v2832, 1
        %v2837 = vrot.slane %v2833, 1
        %v2838 = vsel %vm301, %v2836, %v2837
        %2839 = vrot.lane.b32.xlu0 %v2838, 127
        %v2840 = vpop.permute.xlu0 %2839
        %2841 = vrot.lane.b32.xlu0 %v2837, 127
        %v2842 = vpop.permute.xlu0 %2841
        %v2845 = vadd.f32 %v2828, %v2840
        %v2846 = vadd.f32 %v2829, %v2842
        %s2847 = sld [smem:[#allocation8 + $0x28c]]
        %v2848 = vstv %s2847
        %v2849 = vmul.f32 %v261, %v2848
        %v2850 = vmul.f32 %v262, %v2848
        %v2853 = vrot.slane %v2849, 1
        %v2854 = vrot.slane %v2850, 1
        %v2855 = vsel %vm301, %v2853, %v2854
        %2856 = vrot.lane.b32.xlu0 %v2855, 126
        %v2857 = vpop.permute.xlu0 %2856
        %2858 = vrot.lane.b32.xlu0 %v2854, 126
        %v2859 = vpop.permute.xlu0 %2858
        %v2862 = vadd.f32 %v2845, %v2857
        %v2863 = vadd.f32 %v2846, %v2859
        %s2864 = sld [smem:[#allocation8 + $0x30c]]
        %v2865 = vstv %s2864
        %v2866 = vmul.f32 %v261, %v2865
        %v2867 = vmul.f32 %v262, %v2865
        %v2870 = vrot.slane %v2866, 2
        %v2871 = vrot.slane %v2867, 2
        %v2872 = vsel %vm349, %v2870, %v2871
        %v2875 = vadd.f32 %v2862, %v2872
        %v2876 = vadd.f32 %v2863, %v2871
        %s2877 = sld [smem:[#allocation8 + $0x38c]]
        %v2878 = vstv %s2877
        %v2879 = vmul.f32 %v261, %v2878
        %v2880 = vmul.f32 %v262, %v2878
        %v2883 = vrot.slane %v2879, 2
        %v2884 = vrot.slane %v2880, 2
        %v2885 = vsel %vm349, %v2883, %v2884
        %2886 = vrot.lane.b32.xlu0 %v2885, 127
        %v2887 = vpop.permute.xlu0 %2886
        %2888 = vrot.lane.b32.xlu0 %v2884, 127
        %v2889 = vpop.permute.xlu0 %2888
        %v2892 = vadd.f32 %v2875, %v2887
        %v2893 = vadd.f32 %v2876, %v2889
        %s2894 = sld [smem:[#allocation8 + $0x40c]]
        %v2895 = vstv %s2894
        %v2896 = vmul.f32 %v261, %v2895
        %v2897 = vmul.f32 %v262, %v2895
        %v2900 = vrot.slane %v2896, 2
        %v2901 = vrot.slane %v2897, 2
        %v2902 = vsel %vm349, %v2900, %v2901
        %2903 = vrot.lane.b32.xlu0 %v2902, 126
        %v2904 = vpop.permute.xlu0 %2903
        %2905 = vrot.lane.b32.xlu0 %v2901, 126
        %v2906 = vpop.permute.xlu0 %2905
        %v2909 = vadd.f32 %v2892, %v2904
        %v2910 = vadd.f32 %v2893, %v2906
        %s2911 = sld [smem:[#allocation9 + $0xc]]
        %v2912 = vstv %s2911
        %v2913 = vadd.f32 %v2909, %v2912
        %v2914 = vadd.f32 %v2910, %v2912
        %v2915 = vmax.f32 %v2913, 0.0
        %v2916 = vmax.f32 %v2914, 0.0
        %s2917 = sld [smem:[#allocation10 + $0xc]]
        %v2918 = vstv %s2917
        %v2919 = vmul.f32 %v2915, %v2918
        %v2920 = vadd.f32 %v2732, %v2919
        %s2921 = sld [smem:[#allocation10 + $0x18c]]
        %v2922 = vstv %s2921
        %v2923 = vmul.f32 %v2915, %v2922
        %v2924 = vmul.f32 %v2916, %v2922
        %v2927 = vrot.slane %v2923, 1
        %v2928 = vrot.slane %v2924, 1
        %v2929 = vsel %vm301, %v2927, %v2928
        %v2931 = vadd.f32 %v2920, %v2929
        %s2932 = sld [smem:[#allocation10 + $0x30c]]
        %v2933 = vstv %s2932
        %v2934 = vmul.f32 %v2915, %v2933
        %v2935 = vmul.f32 %v2916, %v2933
        %v2938 = vrot.slane %v2934, 2
        %v2939 = vrot.slane %v2935, 2
        %v2940 = vsel %vm349, %v2938, %v2939
        %v2942 = vadd.f32 %v2931, %v2940
        %s2943 = sld [smem:[#allocation10 + $0x8c]]
        %v2944 = vstv %s2943
        %v2945 = vmul.f32 %v2915, %v2944
        %v2946 = vadd.f32 %v2758, %v2945
        %s2947 = sld [smem:[#allocation10 + $0x20c]]
        %v2948 = vstv %s2947
        %v2949 = vmul.f32 %v2915, %v2948
        %v2950 = vmul.f32 %v2916, %v2948
        %v2953 = vrot.slane %v2949, 1
        %v2954 = vrot.slane %v2950, 1
        %v2955 = vsel %vm301, %v2953, %v2954
        %v2957 = vadd.f32 %v2946, %v2955
        %s2958 = sld [smem:[#allocation10 + $0x38c]]
        %v2959 = vstv %s2958
        %v2960 = vmul.f32 %v2915, %v2959
        %v2961 = vmul.f32 %v2916, %v2959
        %v2964 = vrot.slane %v2960, 2
        %v2965 = vrot.slane %v2961, 2
        %v2966 = vsel %vm349, %v2964, %v2965
        %v2968 = vadd.f32 %v2957, %v2966
        %s2969 = sld [smem:[#allocation10 + $0x10c]]
        %v2970 = vstv %s2969
        %v2971 = vmul.f32 %v2915, %v2970
        %v2972 = vadd.f32 %v2784, %v2971
        %s2973 = sld [smem:[#allocation10 + $0x28c]]
        %v2974 = vstv %s2973
        %v2975 = vmul.f32 %v2915, %v2974
        %v2976 = vmul.f32 %v2916, %v2974
        %v2979 = vrot.slane %v2975, 1
        %v2980 = vrot.slane %v2976, 1
        %v2981 = vsel %vm301, %v2979, %v2980
        %v2983 = vadd.f32 %v2972, %v2981
        %s2984 = sld [smem:[#allocation10 + $0x40c]]
        %v2985 = vstv %s2984
        %v2986 = vmul.f32 %v2915, %v2985
        %v2987 = vmul.f32 %v2916, %v2985
        %v2990 = vrot.slane %v2986, 2
        %v2991 = vrot.slane %v2987, 2
        %v2992 = vsel %vm349, %v2990, %v2991
        %v2994 = vadd.f32 %v2983, %v2992
        %s2995 = sld [smem:[#allocation8 + $0xd]]
        %v2996 = vstv %s2995
        %v2997 = vmul.f32 %v261, %v2996
        %v2998 = vmul.f32 %v262, %v2996
        %s2999 = sld [smem:[#allocation8 + $0x8d]]
        %v3000 = vstv %s2999
        %v3001 = vmul.f32 %v261, %v3000
        %v3002 = vmul.f32 %v262, %v3000
        %3005 = vrot.lane.b32.xlu0 %v3001, 127
        %v3006 = vpop.permute.xlu0 %3005
        %3007 = vrot.lane.b32.xlu0 %v3002, 127
        %v3008 = vpop.permute.xlu0 %3007
        %v3011 = vadd.f32 %v2997, %v3006
        %v3012 = vadd.f32 %v2998, %v3008
        %s3013 = sld [smem:[#allocation8 + $0x10d]]
        %v3014 = vstv %s3013
        %v3015 = vmul.f32 %v261, %v3014
        %v3016 = vmul.f32 %v262, %v3014
        %3019 = vrot.lane.b32.xlu0 %v3015, 126
        %v3020 = vpop.permute.xlu0 %3019
        %3021 = vrot.lane.b32.xlu0 %v3016, 126
        %v3022 = vpop.permute.xlu0 %3021
        %v3025 = vadd.f32 %v3011, %v3020
        %v3026 = vadd.f32 %v3012, %v3022
        %s3027 = sld [smem:[#allocation8 + $0x18d]]
        %v3028 = vstv %s3027
        %v3029 = vmul.f32 %v261, %v3028
        %v3030 = vmul.f32 %v262, %v3028
        %v3033 = vrot.slane %v3029, 1
        %v3034 = vrot.slane %v3030, 1
        %v3035 = vsel %vm301, %v3033, %v3034
        %v3038 = vadd.f32 %v3025, %v3035
        %v3039 = vadd.f32 %v3026, %v3034
        %s3040 = sld [smem:[#allocation8 + $0x20d]]
        %v3041 = vstv %s3040
        %v3042 = vmul.f32 %v261, %v3041
        %v3043 = vmul.f32 %v262, %v3041
        %v3046 = vrot.slane %v3042, 1
        %v3047 = vrot.slane %v3043, 1
        %v3048 = vsel %vm301, %v3046, %v3047
        %3049 = vrot.lane.b32.xlu0 %v3048, 127
        %v3050 = vpop.permute.xlu0 %3049
        %3051 = vrot.lane.b32.xlu0 %v3047, 127
        %v3052 = vpop.permute.xlu0 %3051
        %v3055 = vadd.f32 %v3038, %v3050
        %v3056 = vadd.f32 %v3039, %v3052
        %s3057 = sld [smem:[#allocation8 + $0x28d]]
        %v3058 = vstv %s3057
        %v3059 = vmul.f32 %v261, %v3058
        %v3060 = vmul.f32 %v262, %v3058
        %v3063 = vrot.slane %v3059, 1
        %v3064 = vrot.slane %v3060, 1
        %v3065 = vsel %vm301, %v3063, %v3064
        %3066 = vrot.lane.b32.xlu0 %v3065, 126
        %v3067 = vpop.permute.xlu0 %3066
        %3068 = vrot.lane.b32.xlu0 %v3064, 126
        %v3069 = vpop.permute.xlu0 %3068
        %v3072 = vadd.f32 %v3055, %v3067
        %v3073 = vadd.f32 %v3056, %v3069
        %s3074 = sld [smem:[#allocation8 + $0x30d]]
        %v3075 = vstv %s3074
        %v3076 = vmul.f32 %v261, %v3075
        %v3077 = vmul.f32 %v262, %v3075
        %v3080 = vrot.slane %v3076, 2
        %v3081 = vrot.slane %v3077, 2
        %v3082 = vsel %vm349, %v3080, %v3081
        %v3085 = vadd.f32 %v3072, %v3082
        %v3086 = vadd.f32 %v3073, %v3081
        %s3087 = sld [smem:[#allocation8 + $0x38d]]
        %v3088 = vstv %s3087
        %v3089 = vmul.f32 %v261, %v3088
        %v3090 = vmul.f32 %v262, %v3088
        %v3093 = vrot.slane %v3089, 2
        %v3094 = vrot.slane %v3090, 2
        %v3095 = vsel %vm349, %v3093, %v3094
        %3096 = vrot.lane.b32.xlu0 %v3095, 127
        %v3097 = vpop.permute.xlu0 %3096
        %3098 = vrot.lane.b32.xlu0 %v3094, 127
        %v3099 = vpop.permute.xlu0 %3098
        %v3102 = vadd.f32 %v3085, %v3097
        %v3103 = vadd.f32 %v3086, %v3099
        %s3104 = sld [smem:[#allocation8 + $0x40d]]
        %v3105 = vstv %s3104
        %v3106 = vmul.f32 %v261, %v3105
        %v3107 = vmul.f32 %v262, %v3105
        %v3110 = vrot.slane %v3106, 2
        %v3111 = vrot.slane %v3107, 2
        %v3112 = vsel %vm349, %v3110, %v3111
        %3113 = vrot.lane.b32.xlu0 %v3112, 126
        %v3114 = vpop.permute.xlu0 %3113
        %3115 = vrot.lane.b32.xlu0 %v3111, 126
        %v3116 = vpop.permute.xlu0 %3115
        %v3119 = vadd.f32 %v3102, %v3114
        %v3120 = vadd.f32 %v3103, %v3116
        %s3121 = sld [smem:[#allocation9 + $0xd]]
        %v3122 = vstv %s3121
        %v3123 = vadd.f32 %v3119, %v3122
        %v3124 = vadd.f32 %v3120, %v3122
        %v3125 = vmax.f32 %v3123, 0.0
        %v3126 = vmax.f32 %v3124, 0.0
        %s3127 = sld [smem:[#allocation10 + $0xd]]
        %v3128 = vstv %s3127
        %v3129 = vmul.f32 %v3125, %v3128
        %v3130 = vadd.f32 %v2942, %v3129
        %s3131 = sld [smem:[#allocation10 + $0x18d]]
        %v3132 = vstv %s3131
        %v3133 = vmul.f32 %v3125, %v3132
        %v3134 = vmul.f32 %v3126, %v3132
        %v3137 = vrot.slane %v3133, 1
        %v3138 = vrot.slane %v3134, 1
        %v3139 = vsel %vm301, %v3137, %v3138
        %v3141 = vadd.f32 %v3130, %v3139
        %s3142 = sld [smem:[#allocation10 + $0x30d]]
        %v3143 = vstv %s3142
        %v3144 = vmul.f32 %v3125, %v3143
        %v3145 = vmul.f32 %v3126, %v3143
        %v3148 = vrot.slane %v3144, 2
        %v3149 = vrot.slane %v3145, 2
        %v3150 = vsel %vm349, %v3148, %v3149
        %v3152 = vadd.f32 %v3141, %v3150
        %s3153 = sld [smem:[#allocation10 + $0x8d]]
        %v3154 = vstv %s3153
        %v3155 = vmul.f32 %v3125, %v3154
        %v3156 = vadd.f32 %v2968, %v3155
        %s3157 = sld [smem:[#allocation10 + $0x20d]]
        %v3158 = vstv %s3157
        %v3159 = vmul.f32 %v3125, %v3158
        %v3160 = vmul.f32 %v3126, %v3158
        %v3163 = vrot.slane %v3159, 1
        %v3164 = vrot.slane %v3160, 1
        %v3165 = vsel %vm301, %v3163, %v3164
        %v3167 = vadd.f32 %v3156, %v3165
        %s3168 = sld [smem:[#allocation10 + $0x38d]]
        %v3169 = vstv %s3168
        %v3170 = vmul.f32 %v3125, %v3169
        %v3171 = vmul.f32 %v3126, %v3169
        %v3174 = vrot.slane %v3170, 2
        %v3175 = vrot.slane %v3171, 2
        %v3176 = vsel %vm349, %v3174, %v3175
        %v3178 = vadd.f32 %v3167, %v3176
        %s3179 = sld [smem:[#allocation10 + $0x10d]]
        %v3180 = vstv %s3179
        %v3181 = vmul.f32 %v3125, %v3180
        %v3182 = vadd.f32 %v2994, %v3181
        %s3183 = sld [smem:[#allocation10 + $0x28d]]
        %v3184 = vstv %s3183
        %v3185 = vmul.f32 %v3125, %v3184
        %v3186 = vmul.f32 %v3126, %v3184
        %v3189 = vrot.slane %v3185, 1
        %v3190 = vrot.slane %v3186, 1
        %v3191 = vsel %vm301, %v3189, %v3190
        %v3193 = vadd.f32 %v3182, %v3191
        %s3194 = sld [smem:[#allocation10 + $0x40d]]
        %v3195 = vstv %s3194
        %v3196 = vmul.f32 %v3125, %v3195
        %v3197 = vmul.f32 %v3126, %v3195
        %v3200 = vrot.slane %v3196, 2
        %v3201 = vrot.slane %v3197, 2
        %v3202 = vsel %vm349, %v3200, %v3201
        %v3204 = vadd.f32 %v3193, %v3202
        %s3205 = sld [smem:[#allocation8 + $0xe]]
        %v3206 = vstv %s3205
        %v3207 = vmul.f32 %v261, %v3206
        %v3208 = vmul.f32 %v262, %v3206
        %s3209 = sld [smem:[#allocation8 + $0x8e]]
        %v3210 = vstv %s3209
        %v3211 = vmul.f32 %v261, %v3210
        %v3212 = vmul.f32 %v262, %v3210
        %3215 = vrot.lane.b32.xlu0 %v3211, 127
        %v3216 = vpop.permute.xlu0 %3215
        %3217 = vrot.lane.b32.xlu0 %v3212, 127
        %v3218 = vpop.permute.xlu0 %3217
        %v3221 = vadd.f32 %v3207, %v3216
        %v3222 = vadd.f32 %v3208, %v3218
        %s3223 = sld [smem:[#allocation8 + $0x10e]]
        %v3224 = vstv %s3223
        %v3225 = vmul.f32 %v261, %v3224
        %v3226 = vmul.f32 %v262, %v3224
        %3229 = vrot.lane.b32.xlu0 %v3225, 126
        %v3230 = vpop.permute.xlu0 %3229
        %3231 = vrot.lane.b32.xlu0 %v3226, 126
        %v3232 = vpop.permute.xlu0 %3231
        %v3235 = vadd.f32 %v3221, %v3230
        %v3236 = vadd.f32 %v3222, %v3232
        %s3237 = sld [smem:[#allocation8 + $0x18e]]
        %v3238 = vstv %s3237
        %v3239 = vmul.f32 %v261, %v3238
        %v3240 = vmul.f32 %v262, %v3238
        %v3243 = vrot.slane %v3239, 1
        %v3244 = vrot.slane %v3240, 1
        %v3245 = vsel %vm301, %v3243, %v3244
        %v3248 = vadd.f32 %v3235, %v3245
        %v3249 = vadd.f32 %v3236, %v3244
        %s3250 = sld [smem:[#allocation8 + $0x20e]]
        %v3251 = vstv %s3250
        %v3252 = vmul.f32 %v261, %v3251
        %v3253 = vmul.f32 %v262, %v3251
        %v3256 = vrot.slane %v3252, 1
        %v3257 = vrot.slane %v3253, 1
        %v3258 = vsel %vm301, %v3256, %v3257
        %3259 = vrot.lane.b32.xlu0 %v3258, 127
        %v3260 = vpop.permute.xlu0 %3259
        %3261 = vrot.lane.b32.xlu0 %v3257, 127
        %v3262 = vpop.permute.xlu0 %3261
        %v3265 = vadd.f32 %v3248, %v3260
        %v3266 = vadd.f32 %v3249, %v3262
        %s3267 = sld [smem:[#allocation8 + $0x28e]]
        %v3268 = vstv %s3267
        %v3269 = vmul.f32 %v261, %v3268
        %v3270 = vmul.f32 %v262, %v3268
        %v3273 = vrot.slane %v3269, 1
        %v3274 = vrot.slane %v3270, 1
        %v3275 = vsel %vm301, %v3273, %v3274
        %3276 = vrot.lane.b32.xlu0 %v3275, 126
        %v3277 = vpop.permute.xlu0 %3276
        %3278 = vrot.lane.b32.xlu0 %v3274, 126
        %v3279 = vpop.permute.xlu0 %3278
        %v3282 = vadd.f32 %v3265, %v3277
        %v3283 = vadd.f32 %v3266, %v3279
        %s3284 = sld [smem:[#allocation8 + $0x30e]]
        %v3285 = vstv %s3284
        %v3286 = vmul.f32 %v261, %v3285
        %v3287 = vmul.f32 %v262, %v3285
        %v3290 = vrot.slane %v3286, 2
        %v3291 = vrot.slane %v3287, 2
        %v3292 = vsel %vm349, %v3290, %v3291
        %v3295 = vadd.f32 %v3282, %v3292
        %v3296 = vadd.f32 %v3283, %v3291
        %s3297 = sld [smem:[#allocation8 + $0x38e]]
        %v3298 = vstv %s3297
        %v3299 = vmul.f32 %v261, %v3298
        %v3300 = vmul.f32 %v262, %v3298
        %v3303 = vrot.slane %v3299, 2
        %v3304 = vrot.slane %v3300, 2
        %v3305 = vsel %vm349, %v3303, %v3304
        %3306 = vrot.lane.b32.xlu0 %v3305, 127
        %v3307 = vpop.permute.xlu0 %3306
        %3308 = vrot.lane.b32.xlu0 %v3304, 127
        %v3309 = vpop.permute.xlu0 %3308
        %v3312 = vadd.f32 %v3295, %v3307
        %v3313 = vadd.f32 %v3296, %v3309
        %s3314 = sld [smem:[#allocation8 + $0x40e]]
        %v3315 = vstv %s3314
        %v3316 = vmul.f32 %v261, %v3315
        %v3317 = vmul.f32 %v262, %v3315
        %v3320 = vrot.slane %v3316, 2
        %v3321 = vrot.slane %v3317, 2
        %v3322 = vsel %vm349, %v3320, %v3321
        %3323 = vrot.lane.b32.xlu0 %v3322, 126
        %v3324 = vpop.permute.xlu0 %3323
        %3325 = vrot.lane.b32.xlu0 %v3321, 126
        %v3326 = vpop.permute.xlu0 %3325
        %v3329 = vadd.f32 %v3312, %v3324
        %v3330 = vadd.f32 %v3313, %v3326
        %s3331 = sld [smem:[#allocation9 + $0xe]]
        %v3332 = vstv %s3331
        %v3333 = vadd.f32 %v3329, %v3332
        %v3334 = vadd.f32 %v3330, %v3332
        %v3335 = vmax.f32 %v3333, 0.0
        %v3336 = vmax.f32 %v3334, 0.0
        %s3337 = sld [smem:[#allocation10 + $0xe]]
        %v3338 = vstv %s3337
        %v3339 = vmul.f32 %v3335, %v3338
        %v3340 = vadd.f32 %v3152, %v3339
        %s3341 = sld [smem:[#allocation10 + $0x18e]]
        %v3342 = vstv %s3341
        %v3343 = vmul.f32 %v3335, %v3342
        %v3344 = vmul.f32 %v3336, %v3342
        %v3347 = vrot.slane %v3343, 1
        %v3348 = vrot.slane %v3344, 1
        %v3349 = vsel %vm301, %v3347, %v3348
        %v3351 = vadd.f32 %v3340, %v3349
        %s3352 = sld [smem:[#allocation10 + $0x30e]]
        %v3353 = vstv %s3352
        %v3354 = vmul.f32 %v3335, %v3353
        %v3355 = vmul.f32 %v3336, %v3353
        %v3358 = vrot.slane %v3354, 2
        %v3359 = vrot.slane %v3355, 2
        %v3360 = vsel %vm349, %v3358, %v3359
        %v3362 = vadd.f32 %v3351, %v3360
        %s3363 = sld [smem:[#allocation10 + $0x8e]]
        %v3364 = vstv %s3363
        %v3365 = vmul.f32 %v3335, %v3364
        %v3366 = vadd.f32 %v3178, %v3365
        %s3367 = sld [smem:[#allocation10 + $0x20e]]
        %v3368 = vstv %s3367
        %v3369 = vmul.f32 %v3335, %v3368
        %v3370 = vmul.f32 %v3336, %v3368
        %v3373 = vrot.slane %v3369, 1
        %v3374 = vrot.slane %v3370, 1
        %v3375 = vsel %vm301, %v3373, %v3374
        %v3377 = vadd.f32 %v3366, %v3375
        %s3378 = sld [smem:[#allocation10 + $0x38e]]
        %v3379 = vstv %s3378
        %v3380 = vmul.f32 %v3335, %v3379
        %v3381 = vmul.f32 %v3336, %v3379
        %v3384 = vrot.slane %v3380, 2
        %v3385 = vrot.slane %v3381, 2
        %v3386 = vsel %vm349, %v3384, %v3385
        %v3388 = vadd.f32 %v3377, %v3386
        %s3389 = sld [smem:[#allocation10 + $0x10e]]
        %v3390 = vstv %s3389
        %v3391 = vmul.f32 %v3335, %v3390
        %v3392 = vadd.f32 %v3204, %v3391
        %s3393 = sld [smem:[#allocation10 + $0x28e]]
        %v3394 = vstv %s3393
        %v3395 = vmul.f32 %v3335, %v3394
        %v3396 = vmul.f32 %v3336, %v3394
        %v3399 = vrot.slane %v3395, 1
        %v3400 = vrot.slane %v3396, 1
        %v3401 = vsel %vm301, %v3399, %v3400
        %v3403 = vadd.f32 %v3392, %v3401
        %s3404 = sld [smem:[#allocation10 + $0x40e]]
        %v3405 = vstv %s3404
        %v3406 = vmul.f32 %v3335, %v3405
        %v3407 = vmul.f32 %v3336, %v3405
        %v3410 = vrot.slane %v3406, 2
        %v3411 = vrot.slane %v3407, 2
        %v3412 = vsel %vm349, %v3410, %v3411
        %v3414 = vadd.f32 %v3403, %v3412
        %s3415 = sld [smem:[#allocation8 + $0xf]]
        %v3416 = vstv %s3415
        %v3417 = vmul.f32 %v261, %v3416
        %v3418 = vmul.f32 %v262, %v3416
        %s3419 = sld [smem:[#allocation8 + $0x8f]]
        %v3420 = vstv %s3419
        %v3421 = vmul.f32 %v261, %v3420
        %v3422 = vmul.f32 %v262, %v3420
        %3425 = vrot.lane.b32.xlu0 %v3421, 127
        %v3426 = vpop.permute.xlu0 %3425
        %3427 = vrot.lane.b32.xlu0 %v3422, 127
        %v3428 = vpop.permute.xlu0 %3427
        %v3431 = vadd.f32 %v3417, %v3426
        %v3432 = vadd.f32 %v3418, %v3428
        %s3433 = sld [smem:[#allocation8 + $0x10f]]
        %v3434 = vstv %s3433
        %v3435 = vmul.f32 %v261, %v3434
        %v3436 = vmul.f32 %v262, %v3434
        %3439 = vrot.lane.b32.xlu0 %v3435, 126
        %v3440 = vpop.permute.xlu0 %3439
        %3441 = vrot.lane.b32.xlu0 %v3436, 126
        %v3442 = vpop.permute.xlu0 %3441
        %v3445 = vadd.f32 %v3431, %v3440
        %v3446 = vadd.f32 %v3432, %v3442
        %s3447 = sld [smem:[#allocation8 + $0x18f]]
        %v3448 = vstv %s3447
        %v3449 = vmul.f32 %v261, %v3448
        %v3450 = vmul.f32 %v262, %v3448
        %v3453 = vrot.slane %v3449, 1
        %v3454 = vrot.slane %v3450, 1
        %v3455 = vsel %vm301, %v3453, %v3454
        %v3458 = vadd.f32 %v3445, %v3455
        %v3459 = vadd.f32 %v3446, %v3454
        %s3460 = sld [smem:[#allocation8 + $0x20f]]
        %v3461 = vstv %s3460
        %v3462 = vmul.f32 %v261, %v3461
        %v3463 = vmul.f32 %v262, %v3461
        %v3466 = vrot.slane %v3462, 1
        %v3467 = vrot.slane %v3463, 1
        %v3468 = vsel %vm301, %v3466, %v3467
        %3469 = vrot.lane.b32.xlu0 %v3468, 127
        %v3470 = vpop.permute.xlu0 %3469
        %3471 = vrot.lane.b32.xlu0 %v3467, 127
        %v3472 = vpop.permute.xlu0 %3471
        %v3475 = vadd.f32 %v3458, %v3470
        %v3476 = vadd.f32 %v3459, %v3472
        %s3477 = sld [smem:[#allocation8 + $0x28f]]
        %v3478 = vstv %s3477
        %v3479 = vmul.f32 %v261, %v3478
        %v3480 = vmul.f32 %v262, %v3478
        %v3483 = vrot.slane %v3479, 1
        %v3484 = vrot.slane %v3480, 1
        %v3485 = vsel %vm301, %v3483, %v3484
        %3486 = vrot.lane.b32.xlu0 %v3485, 126
        %v3487 = vpop.permute.xlu0 %3486
        %3488 = vrot.lane.b32.xlu0 %v3484, 126
        %v3489 = vpop.permute.xlu0 %3488
        %v3492 = vadd.f32 %v3475, %v3487
        %v3493 = vadd.f32 %v3476, %v3489
        %s3494 = sld [smem:[#allocation8 + $0x30f]]
        %v3495 = vstv %s3494
        %v3496 = vmul.f32 %v261, %v3495
        %v3497 = vmul.f32 %v262, %v3495
        %v3500 = vrot.slane %v3496, 2
        %v3501 = vrot.slane %v3497, 2
        %v3502 = vsel %vm349, %v3500, %v3501
        %v3505 = vadd.f32 %v3492, %v3502
        %v3506 = vadd.f32 %v3493, %v3501
        %s3507 = sld [smem:[#allocation8 + $0x38f]]
        %v3508 = vstv %s3507
        %v3509 = vmul.f32 %v261, %v3508
        %v3510 = vmul.f32 %v262, %v3508
        %v3513 = vrot.slane %v3509, 2
        %v3514 = vrot.slane %v3510, 2
        %v3515 = vsel %vm349, %v3513, %v3514
        %3516 = vrot.lane.b32.xlu0 %v3515, 127
        %v3517 = vpop.permute.xlu0 %3516
        %3518 = vrot.lane.b32.xlu0 %v3514, 127
        %v3519 = vpop.permute.xlu0 %3518
        %v3522 = vadd.f32 %v3505, %v3517
        %v3523 = vadd.f32 %v3506, %v3519
        %s3524 = sld [smem:[#allocation8 + $0x40f]]
        %v3525 = vstv %s3524
        %v3526 = vmul.f32 %v261, %v3525
        %v3527 = vmul.f32 %v262, %v3525
        %v3530 = vrot.slane %v3526, 2
        %v3531 = vrot.slane %v3527, 2
        %v3532 = vsel %vm349, %v3530, %v3531
        %3533 = vrot.lane.b32.xlu0 %v3532, 126
        %v3534 = vpop.permute.xlu0 %3533
        %3535 = vrot.lane.b32.xlu0 %v3531, 126
        %v3536 = vpop.permute.xlu0 %3535
        %v3539 = vadd.f32 %v3522, %v3534
        %v3540 = vadd.f32 %v3523, %v3536
        %s3541 = sld [smem:[#allocation9 + $0xf]]
        %v3542 = vstv %s3541
        %v3543 = vadd.f32 %v3539, %v3542
        %v3544 = vadd.f32 %v3540, %v3542
        %v3545 = vmax.f32 %v3543, 0.0
        %v3546 = vmax.f32 %v3544, 0.0
        %s3547 = sld [smem:[#allocation10 + $0xf]]
        %v3548 = vstv %s3547
        %v3549 = vmul.f32 %v3545, %v3548
        %v3550 = vadd.f32 %v3362, %v3549
        %s3551 = sld [smem:[#allocation10 + $0x18f]]
        %v3552 = vstv %s3551
        %v3553 = vmul.f32 %v3545, %v3552
        %v3554 = vmul.f32 %v3546, %v3552
        %v3557 = vrot.slane %v3553, 1
        %v3558 = vrot.slane %v3554, 1
        %v3559 = vsel %vm301, %v3557, %v3558
        %v3561 = vadd.f32 %v3550, %v3559
        %s3562 = sld [smem:[#allocation10 + $0x30f]]
        %v3563 = vstv %s3562
        %v3564 = vmul.f32 %v3545, %v3563
        %v3565 = vmul.f32 %v3546, %v3563
        %v3568 = vrot.slane %v3564, 2
        %v3569 = vrot.slane %v3565, 2
        %v3570 = vsel %vm349, %v3568, %v3569
        %v3572 = vadd.f32 %v3561, %v3570
        %s3573 = sld [smem:[#allocation10 + $0x8f]]
        %v3574 = vstv %s3573
        %v3575 = vmul.f32 %v3545, %v3574
        %v3576 = vadd.f32 %v3388, %v3575
        %s3577 = sld [smem:[#allocation10 + $0x20f]]
        %v3578 = vstv %s3577
        %v3579 = vmul.f32 %v3545, %v3578
        %v3580 = vmul.f32 %v3546, %v3578
        %v3583 = vrot.slane %v3579, 1
        %v3584 = vrot.slane %v3580, 1
        %v3585 = vsel %vm301, %v3583, %v3584
        %v3587 = vadd.f32 %v3576, %v3585
        %s3588 = sld [smem:[#allocation10 + $0x38f]]
        %v3589 = vstv %s3588
        %v3590 = vmul.f32 %v3545, %v3589
        %v3591 = vmul.f32 %v3546, %v3589
        %v3594 = vrot.slane %v3590, 2
        %v3595 = vrot.slane %v3591, 2
        %v3596 = vsel %vm349, %v3594, %v3595
        %v3598 = vadd.f32 %v3587, %v3596
        %s3599 = sld [smem:[#allocation10 + $0x10f]]
        %v3600 = vstv %s3599
        %v3601 = vmul.f32 %v3545, %v3600
        %v3602 = vadd.f32 %v3414, %v3601
        %s3603 = sld [smem:[#allocation10 + $0x28f]]
        %v3604 = vstv %s3603
        %v3605 = vmul.f32 %v3545, %v3604
        %v3606 = vmul.f32 %v3546, %v3604
        %v3609 = vrot.slane %v3605, 1
        %v3610 = vrot.slane %v3606, 1
        %v3611 = vsel %vm301, %v3609, %v3610
        %v3613 = vadd.f32 %v3602, %v3611
        %s3614 = sld [smem:[#allocation10 + $0x40f]]
        %v3615 = vstv %s3614
        %v3616 = vmul.f32 %v3545, %v3615
        %v3617 = vmul.f32 %v3546, %v3615
        %v3620 = vrot.slane %v3616, 2
        %v3621 = vrot.slane %v3617, 2
        %v3622 = vsel %vm349, %v3620, %v3621
        %v3624 = vadd.f32 %v3613, %v3622
        %s3625 = sld [smem:[#allocation8 + $0x10]]
        %v3626 = vstv %s3625
        %v3627 = vmul.f32 %v261, %v3626
        %v3628 = vmul.f32 %v262, %v3626
        %s3629 = sld [smem:[#allocation8 + $0x90]]
        %v3630 = vstv %s3629
        %v3631 = vmul.f32 %v261, %v3630
        %v3632 = vmul.f32 %v262, %v3630
        %3635 = vrot.lane.b32.xlu0 %v3631, 127
        %v3636 = vpop.permute.xlu0 %3635
        %3637 = vrot.lane.b32.xlu0 %v3632, 127
        %v3638 = vpop.permute.xlu0 %3637
        %v3641 = vadd.f32 %v3627, %v3636
        %v3642 = vadd.f32 %v3628, %v3638
        %s3643 = sld [smem:[#allocation8 + $0x110]]
        %v3644 = vstv %s3643
        %v3645 = vmul.f32 %v261, %v3644
        %v3646 = vmul.f32 %v262, %v3644
        %3649 = vrot.lane.b32.xlu0 %v3645, 126
        %v3650 = vpop.permute.xlu0 %3649
        %3651 = vrot.lane.b32.xlu0 %v3646, 126
        %v3652 = vpop.permute.xlu0 %3651
        %v3655 = vadd.f32 %v3641, %v3650
        %v3656 = vadd.f32 %v3642, %v3652
        %s3657 = sld [smem:[#allocation8 + $0x190]]
        %v3658 = vstv %s3657
        %v3659 = vmul.f32 %v261, %v3658
        %v3660 = vmul.f32 %v262, %v3658
        %v3663 = vrot.slane %v3659, 1
        %v3664 = vrot.slane %v3660, 1
        %v3665 = vsel %vm301, %v3663, %v3664
        %v3668 = vadd.f32 %v3655, %v3665
        %v3669 = vadd.f32 %v3656, %v3664
        %s3670 = sld [smem:[#allocation8 + $0x210]]
        %v3671 = vstv %s3670
        %v3672 = vmul.f32 %v261, %v3671
        %v3673 = vmul.f32 %v262, %v3671
        %v3676 = vrot.slane %v3672, 1
        %v3677 = vrot.slane %v3673, 1
        %v3678 = vsel %vm301, %v3676, %v3677
        %3679 = vrot.lane.b32.xlu0 %v3678, 127
        %v3680 = vpop.permute.xlu0 %3679
        %3681 = vrot.lane.b32.xlu0 %v3677, 127
        %v3682 = vpop.permute.xlu0 %3681
        %v3685 = vadd.f32 %v3668, %v3680
        %v3686 = vadd.f32 %v3669, %v3682
        %s3687 = sld [smem:[#allocation8 + $0x290]]
        %v3688 = vstv %s3687
        %v3689 = vmul.f32 %v261, %v3688
        %v3690 = vmul.f32 %v262, %v3688
        %v3693 = vrot.slane %v3689, 1
        %v3694 = vrot.slane %v3690, 1
        %v3695 = vsel %vm301, %v3693, %v3694
        %3696 = vrot.lane.b32.xlu0 %v3695, 126
        %v3697 = vpop.permute.xlu0 %3696
        %3698 = vrot.lane.b32.xlu0 %v3694, 126
        %v3699 = vpop.permute.xlu0 %3698
        %v3702 = vadd.f32 %v3685, %v3697
        %v3703 = vadd.f32 %v3686, %v3699
        %s3704 = sld [smem:[#allocation8 + $0x310]]
        %v3705 = vstv %s3704
        %v3706 = vmul.f32 %v261, %v3705
        %v3707 = vmul.f32 %v262, %v3705
        %v3710 = vrot.slane %v3706, 2
        %v3711 = vrot.slane %v3707, 2
        %v3712 = vsel %vm349, %v3710, %v3711
        %v3715 = vadd.f32 %v3702, %v3712
        %v3716 = vadd.f32 %v3703, %v3711
        %s3717 = sld [smem:[#allocation8 + $0x390]]
        %v3718 = vstv %s3717
        %v3719 = vmul.f32 %v261, %v3718
        %v3720 = vmul.f32 %v262, %v3718
        %v3723 = vrot.slane %v3719, 2
        %v3724 = vrot.slane %v3720, 2
        %v3725 = vsel %vm349, %v3723, %v3724
        %3726 = vrot.lane.b32.xlu0 %v3725, 127
        %v3727 = vpop.permute.xlu0 %3726
        %3728 = vrot.lane.b32.xlu0 %v3724, 127
        %v3729 = vpop.permute.xlu0 %3728
        %v3732 = vadd.f32 %v3715, %v3727
        %v3733 = vadd.f32 %v3716, %v3729
        %s3734 = sld [smem:[#allocation8 + $0x410]]
        %v3735 = vstv %s3734
        %v3736 = vmul.f32 %v261, %v3735
        %v3737 = vmul.f32 %v262, %v3735
        %v3740 = vrot.slane %v3736, 2
        %v3741 = vrot.slane %v3737, 2
        %v3742 = vsel %vm349, %v3740, %v3741
        %3743 = vrot.lane.b32.xlu0 %v3742, 126
        %v3744 = vpop.permute.xlu0 %3743
        %3745 = vrot.lane.b32.xlu0 %v3741, 126
        %v3746 = vpop.permute.xlu0 %3745
        %v3749 = vadd.f32 %v3732, %v3744
        %v3750 = vadd.f32 %v3733, %v3746
        %s3751 = sld [smem:[#allocation9 + $0x10]]
        %v3752 = vstv %s3751
        %v3753 = vadd.f32 %v3749, %v3752
        %v3754 = vadd.f32 %v3750, %v3752
        %v3755 = vmax.f32 %v3753, 0.0
        %v3756 = vmax.f32 %v3754, 0.0
        %s3757 = sld [smem:[#allocation10 + $0x10]]
        %v3758 = vstv %s3757
        %v3759 = vmul.f32 %v3755, %v3758
        %v3760 = vadd.f32 %v3572, %v3759
        %s3761 = sld [smem:[#allocation10 + $0x190]]
        %v3762 = vstv %s3761
        %v3763 = vmul.f32 %v3755, %v3762
        %v3764 = vmul.f32 %v3756, %v3762
        %v3767 = vrot.slane %v3763, 1
        %v3768 = vrot.slane %v3764, 1
        %v3769 = vsel %vm301, %v3767, %v3768
        %v3771 = vadd.f32 %v3760, %v3769
        %s3772 = sld [smem:[#allocation10 + $0x310]]
        %v3773 = vstv %s3772
        %v3774 = vmul.f32 %v3755, %v3773
        %v3775 = vmul.f32 %v3756, %v3773
        %v3778 = vrot.slane %v3774, 2
        %v3779 = vrot.slane %v3775, 2
        %v3780 = vsel %vm349, %v3778, %v3779
        %v3782 = vadd.f32 %v3771, %v3780
        %s3783 = sld [smem:[#allocation10 + $0x90]]
        %v3784 = vstv %s3783
        %v3785 = vmul.f32 %v3755, %v3784
        %v3786 = vadd.f32 %v3598, %v3785
        %s3787 = sld [smem:[#allocation10 + $0x210]]
        %v3788 = vstv %s3787
        %v3789 = vmul.f32 %v3755, %v3788
        %v3790 = vmul.f32 %v3756, %v3788
        %v3793 = vrot.slane %v3789, 1
        %v3794 = vrot.slane %v3790, 1
        %v3795 = vsel %vm301, %v3793, %v3794
        %v3797 = vadd.f32 %v3786, %v3795
        %s3798 = sld [smem:[#allocation10 + $0x390]]
        %v3799 = vstv %s3798
        %v3800 = vmul.f32 %v3755, %v3799
        %v3801 = vmul.f32 %v3756, %v3799
        %v3804 = vrot.slane %v3800, 2
        %v3805 = vrot.slane %v3801, 2
        %v3806 = vsel %vm349, %v3804, %v3805
        %v3808 = vadd.f32 %v3797, %v3806
        %s3809 = sld [smem:[#allocation10 + $0x110]]
        %v3810 = vstv %s3809
        %v3811 = vmul.f32 %v3755, %v3810
        %v3812 = vadd.f32 %v3624, %v3811
        %s3813 = sld [smem:[#allocation10 + $0x290]]
        %v3814 = vstv %s3813
        %v3815 = vmul.f32 %v3755, %v3814
        %v3816 = vmul.f32 %v3756, %v3814
        %v3819 = vrot.slane %v3815, 1
        %v3820 = vrot.slane %v3816, 1
        %v3821 = vsel %vm301, %v3819, %v3820
        %v3823 = vadd.f32 %v3812, %v3821
        %s3824 = sld [smem:[#allocation10 + $0x410]]
        %v3825 = vstv %s3824
        %v3826 = vmul.f32 %v3755, %v3825
        %v3827 = vmul.f32 %v3756, %v3825
        %v3830 = vrot.slane %v3826, 2
        %v3831 = vrot.slane %v3827, 2
        %v3832 = vsel %vm349, %v3830, %v3831
        %v3834 = vadd.f32 %v3823, %v3832
        %s3835 = sld [smem:[#allocation8 + $0x11]]
        %v3836 = vstv %s3835
        %v3837 = vmul.f32 %v261, %v3836
        %v3838 = vmul.f32 %v262, %v3836
        %s3839 = sld [smem:[#allocation8 + $0x91]]
        %v3840 = vstv %s3839
        %v3841 = vmul.f32 %v261, %v3840
        %v3842 = vmul.f32 %v262, %v3840
        %3845 = vrot.lane.b32.xlu0 %v3841, 127
        %v3846 = vpop.permute.xlu0 %3845
        %3847 = vrot.lane.b32.xlu0 %v3842, 127
        %v3848 = vpop.permute.xlu0 %3847
        %v3851 = vadd.f32 %v3837, %v3846
        %v3852 = vadd.f32 %v3838, %v3848
        %s3853 = sld [smem:[#allocation8 + $0x111]]
        %v3854 = vstv %s3853
        %v3855 = vmul.f32 %v261, %v3854
        %v3856 = vmul.f32 %v262, %v3854
        %3859 = vrot.lane.b32.xlu0 %v3855, 126
        %v3860 = vpop.permute.xlu0 %3859
        %3861 = vrot.lane.b32.xlu0 %v3856, 126
        %v3862 = vpop.permute.xlu0 %3861
        %v3865 = vadd.f32 %v3851, %v3860
        %v3866 = vadd.f32 %v3852, %v3862
        %s3867 = sld [smem:[#allocation8 + $0x191]]
        %v3868 = vstv %s3867
        %v3869 = vmul.f32 %v261, %v3868
        %v3870 = vmul.f32 %v262, %v3868
        %v3873 = vrot.slane %v3869, 1
        %v3874 = vrot.slane %v3870, 1
        %v3875 = vsel %vm301, %v3873, %v3874
        %v3878 = vadd.f32 %v3865, %v3875
        %v3879 = vadd.f32 %v3866, %v3874
        %s3880 = sld [smem:[#allocation8 + $0x211]]
        %v3881 = vstv %s3880
        %v3882 = vmul.f32 %v261, %v3881
        %v3883 = vmul.f32 %v262, %v3881
        %v3886 = vrot.slane %v3882, 1
        %v3887 = vrot.slane %v3883, 1
        %v3888 = vsel %vm301, %v3886, %v3887
        %3889 = vrot.lane.b32.xlu0 %v3888, 127
        %v3890 = vpop.permute.xlu0 %3889
        %3891 = vrot.lane.b32.xlu0 %v3887, 127
        %v3892 = vpop.permute.xlu0 %3891
        %v3895 = vadd.f32 %v3878, %v3890
        %v3896 = vadd.f32 %v3879, %v3892
        %s3897 = sld [smem:[#allocation8 + $0x291]]
        %v3898 = vstv %s3897
        %v3899 = vmul.f32 %v261, %v3898
        %v3900 = vmul.f32 %v262, %v3898
        %v3903 = vrot.slane %v3899, 1
        %v3904 = vrot.slane %v3900, 1
        %v3905 = vsel %vm301, %v3903, %v3904
        %3906 = vrot.lane.b32.xlu0 %v3905, 126
        %v3907 = vpop.permute.xlu0 %3906
        %3908 = vrot.lane.b32.xlu0 %v3904, 126
        %v3909 = vpop.permute.xlu0 %3908
        %v3912 = vadd.f32 %v3895, %v3907
        %v3913 = vadd.f32 %v3896, %v3909
        %s3914 = sld [smem:[#allocation8 + $0x311]]
        %v3915 = vstv %s3914
        %v3916 = vmul.f32 %v261, %v3915
        %v3917 = vmul.f32 %v262, %v3915
        %v3920 = vrot.slane %v3916, 2
        %v3921 = vrot.slane %v3917, 2
        %v3922 = vsel %vm349, %v3920, %v3921
        %v3925 = vadd.f32 %v3912, %v3922
        %v3926 = vadd.f32 %v3913, %v3921
        %s3927 = sld [smem:[#allocation8 + $0x391]]
        %v3928 = vstv %s3927
        %v3929 = vmul.f32 %v261, %v3928
        %v3930 = vmul.f32 %v262, %v3928
        %v3933 = vrot.slane %v3929, 2
        %v3934 = vrot.slane %v3930, 2
        %v3935 = vsel %vm349, %v3933, %v3934
        %3936 = vrot.lane.b32.xlu0 %v3935, 127
        %v3937 = vpop.permute.xlu0 %3936
        %3938 = vrot.lane.b32.xlu0 %v3934, 127
        %v3939 = vpop.permute.xlu0 %3938
        %v3942 = vadd.f32 %v3925, %v3937
        %v3943 = vadd.f32 %v3926, %v3939
        %s3944 = sld [smem:[#allocation8 + $0x411]]
        %v3945 = vstv %s3944
        %v3946 = vmul.f32 %v261, %v3945
        %v3947 = vmul.f32 %v262, %v3945
        %v3950 = vrot.slane %v3946, 2
        %v3951 = vrot.slane %v3947, 2
        %v3952 = vsel %vm349, %v3950, %v3951
        %3953 = vrot.lane.b32.xlu0 %v3952, 126
        %v3954 = vpop.permute.xlu0 %3953
        %3955 = vrot.lane.b32.xlu0 %v3951, 126
        %v3956 = vpop.permute.xlu0 %3955
        %v3959 = vadd.f32 %v3942, %v3954
        %v3960 = vadd.f32 %v3943, %v3956
        %s3961 = sld [smem:[#allocation9 + $0x11]]
        %v3962 = vstv %s3961
        %v3963 = vadd.f32 %v3959, %v3962
        %v3964 = vadd.f32 %v3960, %v3962
        %v3965 = vmax.f32 %v3963, 0.0
        %v3966 = vmax.f32 %v3964, 0.0
        %s3967 = sld [smem:[#allocation10 + $0x11]]
        %v3968 = vstv %s3967
        %v3969 = vmul.f32 %v3965, %v3968
        %v3970 = vadd.f32 %v3782, %v3969
        %s3971 = sld [smem:[#allocation10 + $0x191]]
        %v3972 = vstv %s3971
        %v3973 = vmul.f32 %v3965, %v3972
        %v3974 = vmul.f32 %v3966, %v3972
        %v3977 = vrot.slane %v3973, 1
        %v3978 = vrot.slane %v3974, 1
        %v3979 = vsel %vm301, %v3977, %v3978
        %v3981 = vadd.f32 %v3970, %v3979
        %s3982 = sld [smem:[#allocation10 + $0x311]]
        %v3983 = vstv %s3982
        %v3984 = vmul.f32 %v3965, %v3983
        %v3985 = vmul.f32 %v3966, %v3983
        %v3988 = vrot.slane %v3984, 2
        %v3989 = vrot.slane %v3985, 2
        %v3990 = vsel %vm349, %v3988, %v3989
        %v3992 = vadd.f32 %v3981, %v3990
        %s3993 = sld [smem:[#allocation10 + $0x91]]
        %v3994 = vstv %s3993
        %v3995 = vmul.f32 %v3965, %v3994
        %v3996 = vadd.f32 %v3808, %v3995
        %s3997 = sld [smem:[#allocation10 + $0x211]]
        %v3998 = vstv %s3997
        %v3999 = vmul.f32 %v3965, %v3998
        %v4000 = vmul.f32 %v3966, %v3998
        %v4003 = vrot.slane %v3999, 1
        %v4004 = vrot.slane %v4000, 1
        %v4005 = vsel %vm301, %v4003, %v4004
        %v4007 = vadd.f32 %v3996, %v4005
        %s4008 = sld [smem:[#allocation10 + $0x391]]
        %v4009 = vstv %s4008
        %v4010 = vmul.f32 %v3965, %v4009
        %v4011 = vmul.f32 %v3966, %v4009
        %v4014 = vrot.slane %v4010, 2
        %v4015 = vrot.slane %v4011, 2
        %v4016 = vsel %vm349, %v4014, %v4015
        %v4018 = vadd.f32 %v4007, %v4016
        %s4019 = sld [smem:[#allocation10 + $0x111]]
        %v4020 = vstv %s4019
        %v4021 = vmul.f32 %v3965, %v4020
        %v4022 = vadd.f32 %v3834, %v4021
        %s4023 = sld [smem:[#allocation10 + $0x291]]
        %v4024 = vstv %s4023
        %v4025 = vmul.f32 %v3965, %v4024
        %v4026 = vmul.f32 %v3966, %v4024
        %v4029 = vrot.slane %v4025, 1
        %v4030 = vrot.slane %v4026, 1
        %v4031 = vsel %vm301, %v4029, %v4030
        %v4033 = vadd.f32 %v4022, %v4031
        %s4034 = sld [smem:[#allocation10 + $0x411]]
        %v4035 = vstv %s4034
        %v4036 = vmul.f32 %v3965, %v4035
        %v4037 = vmul.f32 %v3966, %v4035
        %v4040 = vrot.slane %v4036, 2
        %v4041 = vrot.slane %v4037, 2
        %v4042 = vsel %vm349, %v4040, %v4041
        %v4044 = vadd.f32 %v4033, %v4042
        %s4045 = sld [smem:[#allocation8 + $0x12]]
        %v4046 = vstv %s4045
        %v4047 = vmul.f32 %v261, %v4046
        %v4048 = vmul.f32 %v262, %v4046
        %s4049 = sld [smem:[#allocation8 + $0x92]]
        %v4050 = vstv %s4049
        %v4051 = vmul.f32 %v261, %v4050
        %v4052 = vmul.f32 %v262, %v4050
        %4055 = vrot.lane.b32.xlu0 %v4051, 127
        %v4056 = vpop.permute.xlu0 %4055
        %4057 = vrot.lane.b32.xlu0 %v4052, 127
        %v4058 = vpop.permute.xlu0 %4057
        %v4061 = vadd.f32 %v4047, %v4056
        %v4062 = vadd.f32 %v4048, %v4058
        %s4063 = sld [smem:[#allocation8 + $0x112]]
        %v4064 = vstv %s4063
        %v4065 = vmul.f32 %v261, %v4064
        %v4066 = vmul.f32 %v262, %v4064
        %4069 = vrot.lane.b32.xlu0 %v4065, 126
        %v4070 = vpop.permute.xlu0 %4069
        %4071 = vrot.lane.b32.xlu0 %v4066, 126
        %v4072 = vpop.permute.xlu0 %4071
        %v4075 = vadd.f32 %v4061, %v4070
        %v4076 = vadd.f32 %v4062, %v4072
        %s4077 = sld [smem:[#allocation8 + $0x192]]
        %v4078 = vstv %s4077
        %v4079 = vmul.f32 %v261, %v4078
        %v4080 = vmul.f32 %v262, %v4078
        %v4083 = vrot.slane %v4079, 1
        %v4084 = vrot.slane %v4080, 1
        %v4085 = vsel %vm301, %v4083, %v4084
        %v4088 = vadd.f32 %v4075, %v4085
        %v4089 = vadd.f32 %v4076, %v4084
        %s4090 = sld [smem:[#allocation8 + $0x212]]
        %v4091 = vstv %s4090
        %v4092 = vmul.f32 %v261, %v4091
        %v4093 = vmul.f32 %v262, %v4091
        %v4096 = vrot.slane %v4092, 1
        %v4097 = vrot.slane %v4093, 1
        %v4098 = vsel %vm301, %v4096, %v4097
        %4099 = vrot.lane.b32.xlu0 %v4098, 127
        %v4100 = vpop.permute.xlu0 %4099
        %4101 = vrot.lane.b32.xlu0 %v4097, 127
        %v4102 = vpop.permute.xlu0 %4101
        %v4105 = vadd.f32 %v4088, %v4100
        %v4106 = vadd.f32 %v4089, %v4102
        %s4107 = sld [smem:[#allocation8 + $0x292]]
        %v4108 = vstv %s4107
        %v4109 = vmul.f32 %v261, %v4108
        %v4110 = vmul.f32 %v262, %v4108
        %v4113 = vrot.slane %v4109, 1
        %v4114 = vrot.slane %v4110, 1
        %v4115 = vsel %vm301, %v4113, %v4114
        %4116 = vrot.lane.b32.xlu0 %v4115, 126
        %v4117 = vpop.permute.xlu0 %4116
        %4118 = vrot.lane.b32.xlu0 %v4114, 126
        %v4119 = vpop.permute.xlu0 %4118
        %v4122 = vadd.f32 %v4105, %v4117
        %v4123 = vadd.f32 %v4106, %v4119
        %s4124 = sld [smem:[#allocation8 + $0x312]]
        %v4125 = vstv %s4124
        %v4126 = vmul.f32 %v261, %v4125
        %v4127 = vmul.f32 %v262, %v4125
        %v4130 = vrot.slane %v4126, 2
        %v4131 = vrot.slane %v4127, 2
        %v4132 = vsel %vm349, %v4130, %v4131
        %v4135 = vadd.f32 %v4122, %v4132
        %v4136 = vadd.f32 %v4123, %v4131
        %s4137 = sld [smem:[#allocation8 + $0x392]]
        %v4138 = vstv %s4137
        %v4139 = vmul.f32 %v261, %v4138
        %v4140 = vmul.f32 %v262, %v4138
        %v4143 = vrot.slane %v4139, 2
        %v4144 = vrot.slane %v4140, 2
        %v4145 = vsel %vm349, %v4143, %v4144
        %4146 = vrot.lane.b32.xlu0 %v4145, 127
        %v4147 = vpop.permute.xlu0 %4146
        %4148 = vrot.lane.b32.xlu0 %v4144, 127
        %v4149 = vpop.permute.xlu0 %4148
        %v4152 = vadd.f32 %v4135, %v4147
        %v4153 = vadd.f32 %v4136, %v4149
        %s4154 = sld [smem:[#allocation8 + $0x412]]
        %v4155 = vstv %s4154
        %v4156 = vmul.f32 %v261, %v4155
        %v4157 = vmul.f32 %v262, %v4155
        %v4160 = vrot.slane %v4156, 2
        %v4161 = vrot.slane %v4157, 2
        %v4162 = vsel %vm349, %v4160, %v4161
        %4163 = vrot.lane.b32.xlu0 %v4162, 126
        %v4164 = vpop.permute.xlu0 %4163
        %4165 = vrot.lane.b32.xlu0 %v4161, 126
        %v4166 = vpop.permute.xlu0 %4165
        %v4169 = vadd.f32 %v4152, %v4164
        %v4170 = vadd.f32 %v4153, %v4166
        %s4171 = sld [smem:[#allocation9 + $0x12]]
        %v4172 = vstv %s4171
        %v4173 = vadd.f32 %v4169, %v4172
        %v4174 = vadd.f32 %v4170, %v4172
        %v4175 = vmax.f32 %v4173, 0.0
        %v4176 = vmax.f32 %v4174, 0.0
        %s4177 = sld [smem:[#allocation10 + $0x12]]
        %v4178 = vstv %s4177
        %v4179 = vmul.f32 %v4175, %v4178
        %v4180 = vadd.f32 %v3992, %v4179
        %s4181 = sld [smem:[#allocation10 + $0x192]]
        %v4182 = vstv %s4181
        %v4183 = vmul.f32 %v4175, %v4182
        %v4184 = vmul.f32 %v4176, %v4182
        %v4187 = vrot.slane %v4183, 1
        %v4188 = vrot.slane %v4184, 1
        %v4189 = vsel %vm301, %v4187, %v4188
        %v4191 = vadd.f32 %v4180, %v4189
        %s4192 = sld [smem:[#allocation10 + $0x312]]
        %v4193 = vstv %s4192
        %v4194 = vmul.f32 %v4175, %v4193
        %v4195 = vmul.f32 %v4176, %v4193
        %v4198 = vrot.slane %v4194, 2
        %v4199 = vrot.slane %v4195, 2
        %v4200 = vsel %vm349, %v4198, %v4199
        %v4202 = vadd.f32 %v4191, %v4200
        %s4203 = sld [smem:[#allocation10 + $0x92]]
        %v4204 = vstv %s4203
        %v4205 = vmul.f32 %v4175, %v4204
        %v4206 = vadd.f32 %v4018, %v4205
        %s4207 = sld [smem:[#allocation10 + $0x212]]
        %v4208 = vstv %s4207
        %v4209 = vmul.f32 %v4175, %v4208
        %v4210 = vmul.f32 %v4176, %v4208
        %v4213 = vrot.slane %v4209, 1
        %v4214 = vrot.slane %v4210, 1
        %v4215 = vsel %vm301, %v4213, %v4214
        %v4217 = vadd.f32 %v4206, %v4215
        %s4218 = sld [smem:[#allocation10 + $0x392]]
        %v4219 = vstv %s4218
        %v4220 = vmul.f32 %v4175, %v4219
        %v4221 = vmul.f32 %v4176, %v4219
        %v4224 = vrot.slane %v4220, 2
        %v4225 = vrot.slane %v4221, 2
        %v4226 = vsel %vm349, %v4224, %v4225
        %v4228 = vadd.f32 %v4217, %v4226
        %s4229 = sld [smem:[#allocation10 + $0x112]]
        %v4230 = vstv %s4229
        %v4231 = vmul.f32 %v4175, %v4230
        %v4232 = vadd.f32 %v4044, %v4231
        %s4233 = sld [smem:[#allocation10 + $0x292]]
        %v4234 = vstv %s4233
        %v4235 = vmul.f32 %v4175, %v4234
        %v4236 = vmul.f32 %v4176, %v4234
        %v4239 = vrot.slane %v4235, 1
        %v4240 = vrot.slane %v4236, 1
        %v4241 = vsel %vm301, %v4239, %v4240
        %v4243 = vadd.f32 %v4232, %v4241
        %s4244 = sld [smem:[#allocation10 + $0x412]]
        %v4245 = vstv %s4244
        %v4246 = vmul.f32 %v4175, %v4245
        %v4247 = vmul.f32 %v4176, %v4245
        %v4250 = vrot.slane %v4246, 2
        %v4251 = vrot.slane %v4247, 2
        %v4252 = vsel %vm349, %v4250, %v4251
        %v4254 = vadd.f32 %v4243, %v4252
        %s4255 = sld [smem:[#allocation8 + $0x13]]
        %v4256 = vstv %s4255
        %v4257 = vmul.f32 %v261, %v4256
        %v4258 = vmul.f32 %v262, %v4256
        %s4259 = sld [smem:[#allocation8 + $0x93]]
        %v4260 = vstv %s4259
        %v4261 = vmul.f32 %v261, %v4260
        %v4262 = vmul.f32 %v262, %v4260
        %4265 = vrot.lane.b32.xlu0 %v4261, 127
        %v4266 = vpop.permute.xlu0 %4265
        %4267 = vrot.lane.b32.xlu0 %v4262, 127
        %v4268 = vpop.permute.xlu0 %4267
        %v4271 = vadd.f32 %v4257, %v4266
        %v4272 = vadd.f32 %v4258, %v4268
        %s4273 = sld [smem:[#allocation8 + $0x113]]
        %v4274 = vstv %s4273
        %v4275 = vmul.f32 %v261, %v4274
        %v4276 = vmul.f32 %v262, %v4274
        %4279 = vrot.lane.b32.xlu0 %v4275, 126
        %v4280 = vpop.permute.xlu0 %4279
        %4281 = vrot.lane.b32.xlu0 %v4276, 126
        %v4282 = vpop.permute.xlu0 %4281
        %v4285 = vadd.f32 %v4271, %v4280
        %v4286 = vadd.f32 %v4272, %v4282
        %s4287 = sld [smem:[#allocation8 + $0x193]]
        %v4288 = vstv %s4287
        %v4289 = vmul.f32 %v261, %v4288
        %v4290 = vmul.f32 %v262, %v4288
        %v4293 = vrot.slane %v4289, 1
        %v4294 = vrot.slane %v4290, 1
        %v4295 = vsel %vm301, %v4293, %v4294
        %v4298 = vadd.f32 %v4285, %v4295
        %v4299 = vadd.f32 %v4286, %v4294
        %s4300 = sld [smem:[#allocation8 + $0x213]]
        %v4301 = vstv %s4300
        %v4302 = vmul.f32 %v261, %v4301
        %v4303 = vmul.f32 %v262, %v4301
        %v4306 = vrot.slane %v4302, 1
        %v4307 = vrot.slane %v4303, 1
        %v4308 = vsel %vm301, %v4306, %v4307
        %4309 = vrot.lane.b32.xlu0 %v4308, 127
        %v4310 = vpop.permute.xlu0 %4309
        %4311 = vrot.lane.b32.xlu0 %v4307, 127
        %v4312 = vpop.permute.xlu0 %4311
        %v4315 = vadd.f32 %v4298, %v4310
        %v4316 = vadd.f32 %v4299, %v4312
        %s4317 = sld [smem:[#allocation8 + $0x293]]
        %v4318 = vstv %s4317
        %v4319 = vmul.f32 %v261, %v4318
        %v4320 = vmul.f32 %v262, %v4318
        %v4323 = vrot.slane %v4319, 1
        %v4324 = vrot.slane %v4320, 1
        %v4325 = vsel %vm301, %v4323, %v4324
        %4326 = vrot.lane.b32.xlu0 %v4325, 126
        %v4327 = vpop.permute.xlu0 %4326
        %4328 = vrot.lane.b32.xlu0 %v4324, 126
        %v4329 = vpop.permute.xlu0 %4328
        %v4332 = vadd.f32 %v4315, %v4327
        %v4333 = vadd.f32 %v4316, %v4329
        %s4334 = sld [smem:[#allocation8 + $0x313]]
        %v4335 = vstv %s4334
        %v4336 = vmul.f32 %v261, %v4335
        %v4337 = vmul.f32 %v262, %v4335
        %v4340 = vrot.slane %v4336, 2
        %v4341 = vrot.slane %v4337, 2
        %v4342 = vsel %vm349, %v4340, %v4341
        %v4345 = vadd.f32 %v4332, %v4342
        %v4346 = vadd.f32 %v4333, %v4341
        %s4347 = sld [smem:[#allocation8 + $0x393]]
        %v4348 = vstv %s4347
        %v4349 = vmul.f32 %v261, %v4348
        %v4350 = vmul.f32 %v262, %v4348
        %v4353 = vrot.slane %v4349, 2
        %v4354 = vrot.slane %v4350, 2
        %v4355 = vsel %vm349, %v4353, %v4354
        %4356 = vrot.lane.b32.xlu0 %v4355, 127
        %v4357 = vpop.permute.xlu0 %4356
        %4358 = vrot.lane.b32.xlu0 %v4354, 127
        %v4359 = vpop.permute.xlu0 %4358
        %v4362 = vadd.f32 %v4345, %v4357
        %v4363 = vadd.f32 %v4346, %v4359
        %s4364 = sld [smem:[#allocation8 + $0x413]]
        %v4365 = vstv %s4364
        %v4366 = vmul.f32 %v261, %v4365
        %v4367 = vmul.f32 %v262, %v4365
        %v4370 = vrot.slane %v4366, 2
        %v4371 = vrot.slane %v4367, 2
        %v4372 = vsel %vm349, %v4370, %v4371
        %4373 = vrot.lane.b32.xlu0 %v4372, 126
        %v4374 = vpop.permute.xlu0 %4373
        %4375 = vrot.lane.b32.xlu0 %v4371, 126
        %v4376 = vpop.permute.xlu0 %4375
        %v4379 = vadd.f32 %v4362, %v4374
        %v4380 = vadd.f32 %v4363, %v4376
        %s4381 = sld [smem:[#allocation9 + $0x13]]
        %v4382 = vstv %s4381
        %v4383 = vadd.f32 %v4379, %v4382
        %v4384 = vadd.f32 %v4380, %v4382
        %v4385 = vmax.f32 %v4383, 0.0
        %v4386 = vmax.f32 %v4384, 0.0
        %s4387 = sld [smem:[#allocation10 + $0x13]]
        %v4388 = vstv %s4387
        %v4389 = vmul.f32 %v4385, %v4388
        %v4390 = vadd.f32 %v4202, %v4389
        %s4391 = sld [smem:[#allocation10 + $0x193]]
        %v4392 = vstv %s4391
        %v4393 = vmul.f32 %v4385, %v4392
        %v4394 = vmul.f32 %v4386, %v4392
        %v4397 = vrot.slane %v4393, 1
        %v4398 = vrot.slane %v4394, 1
        %v4399 = vsel %vm301, %v4397, %v4398
        %v4401 = vadd.f32 %v4390, %v4399
        %s4402 = sld [smem:[#allocation10 + $0x313]]
        %v4403 = vstv %s4402
        %v4404 = vmul.f32 %v4385, %v4403
        %v4405 = vmul.f32 %v4386, %v4403
        %v4408 = vrot.slane %v4404, 2
        %v4409 = vrot.slane %v4405, 2
        %v4410 = vsel %vm349, %v4408, %v4409
        %v4412 = vadd.f32 %v4401, %v4410
        %s4413 = sld [smem:[#allocation10 + $0x93]]
        %v4414 = vstv %s4413
        %v4415 = vmul.f32 %v4385, %v4414
        %v4416 = vadd.f32 %v4228, %v4415
        %s4417 = sld [smem:[#allocation10 + $0x213]]
        %v4418 = vstv %s4417
        %v4419 = vmul.f32 %v4385, %v4418
        %v4420 = vmul.f32 %v4386, %v4418
        %v4423 = vrot.slane %v4419, 1
        %v4424 = vrot.slane %v4420, 1
        %v4425 = vsel %vm301, %v4423, %v4424
        %v4427 = vadd.f32 %v4416, %v4425
        %s4428 = sld [smem:[#allocation10 + $0x393]]
        %v4429 = vstv %s4428
        %v4430 = vmul.f32 %v4385, %v4429
        %v4431 = vmul.f32 %v4386, %v4429
        %v4434 = vrot.slane %v4430, 2
        %v4435 = vrot.slane %v4431, 2
        %v4436 = vsel %vm349, %v4434, %v4435
        %v4438 = vadd.f32 %v4427, %v4436
        %s4439 = sld [smem:[#allocation10 + $0x113]]
        %v4440 = vstv %s4439
        %v4441 = vmul.f32 %v4385, %v4440
        %v4442 = vadd.f32 %v4254, %v4441
        %s4443 = sld [smem:[#allocation10 + $0x293]]
        %v4444 = vstv %s4443
        %v4445 = vmul.f32 %v4385, %v4444
        %v4446 = vmul.f32 %v4386, %v4444
        %v4449 = vrot.slane %v4445, 1
        %v4450 = vrot.slane %v4446, 1
        %v4451 = vsel %vm301, %v4449, %v4450
        %v4453 = vadd.f32 %v4442, %v4451
        %s4454 = sld [smem:[#allocation10 + $0x413]]
        %v4455 = vstv %s4454
        %v4456 = vmul.f32 %v4385, %v4455
        %v4457 = vmul.f32 %v4386, %v4455
        %v4460 = vrot.slane %v4456, 2
        %v4461 = vrot.slane %v4457, 2
        %v4462 = vsel %vm349, %v4460, %v4461
        %v4464 = vadd.f32 %v4453, %v4462
        %s4465 = sld [smem:[#allocation8 + $0x14]]
        %v4466 = vstv %s4465
        %v4467 = vmul.f32 %v261, %v4466
        %v4468 = vmul.f32 %v262, %v4466
        %s4469 = sld [smem:[#allocation8 + $0x94]]
        %v4470 = vstv %s4469
        %v4471 = vmul.f32 %v261, %v4470
        %v4472 = vmul.f32 %v262, %v4470
        %4475 = vrot.lane.b32.xlu0 %v4471, 127
        %v4476 = vpop.permute.xlu0 %4475
        %4477 = vrot.lane.b32.xlu0 %v4472, 127
        %v4478 = vpop.permute.xlu0 %4477
        %v4481 = vadd.f32 %v4467, %v4476
        %v4482 = vadd.f32 %v4468, %v4478
        %s4483 = sld [smem:[#allocation8 + $0x114]]
        %v4484 = vstv %s4483
        %v4485 = vmul.f32 %v261, %v4484
        %v4486 = vmul.f32 %v262, %v4484
        %4489 = vrot.lane.b32.xlu0 %v4485, 126
        %v4490 = vpop.permute.xlu0 %4489
        %4491 = vrot.lane.b32.xlu0 %v4486, 126
        %v4492 = vpop.permute.xlu0 %4491
        %v4495 = vadd.f32 %v4481, %v4490
        %v4496 = vadd.f32 %v4482, %v4492
        %s4497 = sld [smem:[#allocation8 + $0x194]]
        %v4498 = vstv %s4497
        %v4499 = vmul.f32 %v261, %v4498
        %v4500 = vmul.f32 %v262, %v4498
        %v4503 = vrot.slane %v4499, 1
        %v4504 = vrot.slane %v4500, 1
        %v4505 = vsel %vm301, %v4503, %v4504
        %v4508 = vadd.f32 %v4495, %v4505
        %v4509 = vadd.f32 %v4496, %v4504
        %s4510 = sld [smem:[#allocation8 + $0x214]]
        %v4511 = vstv %s4510
        %v4512 = vmul.f32 %v261, %v4511
        %v4513 = vmul.f32 %v262, %v4511
        %v4516 = vrot.slane %v4512, 1
        %v4517 = vrot.slane %v4513, 1
        %v4518 = vsel %vm301, %v4516, %v4517
        %4519 = vrot.lane.b32.xlu0 %v4518, 127
        %v4520 = vpop.permute.xlu0 %4519
        %4521 = vrot.lane.b32.xlu0 %v4517, 127
        %v4522 = vpop.permute.xlu0 %4521
        %v4525 = vadd.f32 %v4508, %v4520
        %v4526 = vadd.f32 %v4509, %v4522
        %s4527 = sld [smem:[#allocation8 + $0x294]]
        %v4528 = vstv %s4527
        %v4529 = vmul.f32 %v261, %v4528
        %v4530 = vmul.f32 %v262, %v4528
        %v4533 = vrot.slane %v4529, 1
        %v4534 = vrot.slane %v4530, 1
        %v4535 = vsel %vm301, %v4533, %v4534
        %4536 = vrot.lane.b32.xlu0 %v4535, 126
        %v4537 = vpop.permute.xlu0 %4536
        %4538 = vrot.lane.b32.xlu0 %v4534, 126
        %v4539 = vpop.permute.xlu0 %4538
        %v4542 = vadd.f32 %v4525, %v4537
        %v4543 = vadd.f32 %v4526, %v4539
        %s4544 = sld [smem:[#allocation8 + $0x314]]
        %v4545 = vstv %s4544
        %v4546 = vmul.f32 %v261, %v4545
        %v4547 = vmul.f32 %v262, %v4545
        %v4550 = vrot.slane %v4546, 2
        %v4551 = vrot.slane %v4547, 2
        %v4552 = vsel %vm349, %v4550, %v4551
        %v4555 = vadd.f32 %v4542, %v4552
        %v4556 = vadd.f32 %v4543, %v4551
        %s4557 = sld [smem:[#allocation8 + $0x394]]
        %v4558 = vstv %s4557
        %v4559 = vmul.f32 %v261, %v4558
        %v4560 = vmul.f32 %v262, %v4558
        %v4563 = vrot.slane %v4559, 2
        %v4564 = vrot.slane %v4560, 2
        %v4565 = vsel %vm349, %v4563, %v4564
        %4566 = vrot.lane.b32.xlu0 %v4565, 127
        %v4567 = vpop.permute.xlu0 %4566
        %4568 = vrot.lane.b32.xlu0 %v4564, 127
        %v4569 = vpop.permute.xlu0 %4568
        %v4572 = vadd.f32 %v4555, %v4567
        %v4573 = vadd.f32 %v4556, %v4569
        %s4574 = sld [smem:[#allocation8 + $0x414]]
        %v4575 = vstv %s4574
        %v4576 = vmul.f32 %v261, %v4575
        %v4577 = vmul.f32 %v262, %v4575
        %v4580 = vrot.slane %v4576, 2
        %v4581 = vrot.slane %v4577, 2
        %v4582 = vsel %vm349, %v4580, %v4581
        %4583 = vrot.lane.b32.xlu0 %v4582, 126
        %v4584 = vpop.permute.xlu0 %4583
        %4585 = vrot.lane.b32.xlu0 %v4581, 126
        %v4586 = vpop.permute.xlu0 %4585
        %v4589 = vadd.f32 %v4572, %v4584
        %v4590 = vadd.f32 %v4573, %v4586
        %s4591 = sld [smem:[#allocation9 + $0x14]]
        %v4592 = vstv %s4591
        %v4593 = vadd.f32 %v4589, %v4592
        %v4594 = vadd.f32 %v4590, %v4592
        %v4595 = vmax.f32 %v4593, 0.0
        %v4596 = vmax.f32 %v4594, 0.0
        %s4597 = sld [smem:[#allocation10 + $0x14]]
        %v4598 = vstv %s4597
        %v4599 = vmul.f32 %v4595, %v4598
        %v4600 = vadd.f32 %v4412, %v4599
        %s4601 = sld [smem:[#allocation10 + $0x194]]
        %v4602 = vstv %s4601
        %v4603 = vmul.f32 %v4595, %v4602
        %v4604 = vmul.f32 %v4596, %v4602
        %v4607 = vrot.slane %v4603, 1
        %v4608 = vrot.slane %v4604, 1
        %v4609 = vsel %vm301, %v4607, %v4608
        %v4611 = vadd.f32 %v4600, %v4609
        %s4612 = sld [smem:[#allocation10 + $0x314]]
        %v4613 = vstv %s4612
        %v4614 = vmul.f32 %v4595, %v4613
        %v4615 = vmul.f32 %v4596, %v4613
        %v4618 = vrot.slane %v4614, 2
        %v4619 = vrot.slane %v4615, 2
        %v4620 = vsel %vm349, %v4618, %v4619
        %v4622 = vadd.f32 %v4611, %v4620
        %s4623 = sld [smem:[#allocation10 + $0x94]]
        %v4624 = vstv %s4623
        %v4625 = vmul.f32 %v4595, %v4624
        %v4626 = vadd.f32 %v4438, %v4625
        %s4627 = sld [smem:[#allocation10 + $0x214]]
        %v4628 = vstv %s4627
        %v4629 = vmul.f32 %v4595, %v4628
        %v4630 = vmul.f32 %v4596, %v4628
        %v4633 = vrot.slane %v4629, 1
        %v4634 = vrot.slane %v4630, 1
        %v4635 = vsel %vm301, %v4633, %v4634
        %v4637 = vadd.f32 %v4626, %v4635
        %s4638 = sld [smem:[#allocation10 + $0x394]]
        %v4639 = vstv %s4638
        %v4640 = vmul.f32 %v4595, %v4639
        %v4641 = vmul.f32 %v4596, %v4639
        %v4644 = vrot.slane %v4640, 2
        %v4645 = vrot.slane %v4641, 2
        %v4646 = vsel %vm349, %v4644, %v4645
        %v4648 = vadd.f32 %v4637, %v4646
        %s4649 = sld [smem:[#allocation10 + $0x114]]
        %v4650 = vstv %s4649
        %v4651 = vmul.f32 %v4595, %v4650
        %v4652 = vadd.f32 %v4464, %v4651
        %s4653 = sld [smem:[#allocation10 + $0x294]]
        %v4654 = vstv %s4653
        %v4655 = vmul.f32 %v4595, %v4654
        %v4656 = vmul.f32 %v4596, %v4654
        %v4659 = vrot.slane %v4655, 1
        %v4660 = vrot.slane %v4656, 1
        %v4661 = vsel %vm301, %v4659, %v4660
        %v4663 = vadd.f32 %v4652, %v4661
        %s4664 = sld [smem:[#allocation10 + $0x414]]
        %v4665 = vstv %s4664
        %v4666 = vmul.f32 %v4595, %v4665
        %v4667 = vmul.f32 %v4596, %v4665
        %v4670 = vrot.slane %v4666, 2
        %v4671 = vrot.slane %v4667, 2
        %v4672 = vsel %vm349, %v4670, %v4671
        %v4674 = vadd.f32 %v4663, %v4672
        %s4675 = sld [smem:[#allocation8 + $0x15]]
        %v4676 = vstv %s4675
        %v4677 = vmul.f32 %v261, %v4676
        %v4678 = vmul.f32 %v262, %v4676
        %s4679 = sld [smem:[#allocation8 + $0x95]]
        %v4680 = vstv %s4679
        %v4681 = vmul.f32 %v261, %v4680
        %v4682 = vmul.f32 %v262, %v4680
        %4685 = vrot.lane.b32.xlu0 %v4681, 127
        %v4686 = vpop.permute.xlu0 %4685
        %4687 = vrot.lane.b32.xlu0 %v4682, 127
        %v4688 = vpop.permute.xlu0 %4687
        %v4691 = vadd.f32 %v4677, %v4686
        %v4692 = vadd.f32 %v4678, %v4688
        %s4693 = sld [smem:[#allocation8 + $0x115]]
        %v4694 = vstv %s4693
        %v4695 = vmul.f32 %v261, %v4694
        %v4696 = vmul.f32 %v262, %v4694
        %4699 = vrot.lane.b32.xlu0 %v4695, 126
        %v4700 = vpop.permute.xlu0 %4699
        %4701 = vrot.lane.b32.xlu0 %v4696, 126
        %v4702 = vpop.permute.xlu0 %4701
        %v4705 = vadd.f32 %v4691, %v4700
        %v4706 = vadd.f32 %v4692, %v4702
        %s4707 = sld [smem:[#allocation8 + $0x195]]
        %v4708 = vstv %s4707
        %v4709 = vmul.f32 %v261, %v4708
        %v4710 = vmul.f32 %v262, %v4708
        %v4713 = vrot.slane %v4709, 1
        %v4714 = vrot.slane %v4710, 1
        %v4715 = vsel %vm301, %v4713, %v4714
        %v4718 = vadd.f32 %v4705, %v4715
        %v4719 = vadd.f32 %v4706, %v4714
        %s4720 = sld [smem:[#allocation8 + $0x215]]
        %v4721 = vstv %s4720
        %v4722 = vmul.f32 %v261, %v4721
        %v4723 = vmul.f32 %v262, %v4721
        %v4726 = vrot.slane %v4722, 1
        %v4727 = vrot.slane %v4723, 1
        %v4728 = vsel %vm301, %v4726, %v4727
        %4729 = vrot.lane.b32.xlu0 %v4728, 127
        %v4730 = vpop.permute.xlu0 %4729
        %4731 = vrot.lane.b32.xlu0 %v4727, 127
        %v4732 = vpop.permute.xlu0 %4731
        %v4735 = vadd.f32 %v4718, %v4730
        %v4736 = vadd.f32 %v4719, %v4732
        %s4737 = sld [smem:[#allocation8 + $0x295]]
        %v4738 = vstv %s4737
        %v4739 = vmul.f32 %v261, %v4738
        %v4740 = vmul.f32 %v262, %v4738
        %v4743 = vrot.slane %v4739, 1
        %v4744 = vrot.slane %v4740, 1
        %v4745 = vsel %vm301, %v4743, %v4744
        %4746 = vrot.lane.b32.xlu0 %v4745, 126
        %v4747 = vpop.permute.xlu0 %4746
        %4748 = vrot.lane.b32.xlu0 %v4744, 126
        %v4749 = vpop.permute.xlu0 %4748
        %v4752 = vadd.f32 %v4735, %v4747
        %v4753 = vadd.f32 %v4736, %v4749
        %s4754 = sld [smem:[#allocation8 + $0x315]]
        %v4755 = vstv %s4754
        %v4756 = vmul.f32 %v261, %v4755
        %v4757 = vmul.f32 %v262, %v4755
        %v4760 = vrot.slane %v4756, 2
        %v4761 = vrot.slane %v4757, 2
        %v4762 = vsel %vm349, %v4760, %v4761
        %v4765 = vadd.f32 %v4752, %v4762
        %v4766 = vadd.f32 %v4753, %v4761
        %s4767 = sld [smem:[#allocation8 + $0x395]]
        %v4768 = vstv %s4767
        %v4769 = vmul.f32 %v261, %v4768
        %v4770 = vmul.f32 %v262, %v4768
        %v4773 = vrot.slane %v4769, 2
        %v4774 = vrot.slane %v4770, 2
        %v4775 = vsel %vm349, %v4773, %v4774
        %4776 = vrot.lane.b32.xlu0 %v4775, 127
        %v4777 = vpop.permute.xlu0 %4776
        %4778 = vrot.lane.b32.xlu0 %v4774, 127
        %v4779 = vpop.permute.xlu0 %4778
        %v4782 = vadd.f32 %v4765, %v4777
        %v4783 = vadd.f32 %v4766, %v4779
        %s4784 = sld [smem:[#allocation8 + $0x415]]
        %v4785 = vstv %s4784
        %v4786 = vmul.f32 %v261, %v4785
        %v4787 = vmul.f32 %v262, %v4785
        %v4790 = vrot.slane %v4786, 2
        %v4791 = vrot.slane %v4787, 2
        %v4792 = vsel %vm349, %v4790, %v4791
        %4793 = vrot.lane.b32.xlu0 %v4792, 126
        %v4794 = vpop.permute.xlu0 %4793
        %4795 = vrot.lane.b32.xlu0 %v4791, 126
        %v4796 = vpop.permute.xlu0 %4795
        %v4799 = vadd.f32 %v4782, %v4794
        %v4800 = vadd.f32 %v4783, %v4796
        %s4801 = sld [smem:[#allocation9 + $0x15]]
        %v4802 = vstv %s4801
        %v4803 = vadd.f32 %v4799, %v4802
        %v4804 = vadd.f32 %v4800, %v4802
        %v4805 = vmax.f32 %v4803, 0.0
        %v4806 = vmax.f32 %v4804, 0.0
        %s4807 = sld [smem:[#allocation10 + $0x15]]
        %v4808 = vstv %s4807
        %v4809 = vmul.f32 %v4805, %v4808
        %v4810 = vadd.f32 %v4622, %v4809
        %s4811 = sld [smem:[#allocation10 + $0x195]]
        %v4812 = vstv %s4811
        %v4813 = vmul.f32 %v4805, %v4812
        %v4814 = vmul.f32 %v4806, %v4812
        %v4817 = vrot.slane %v4813, 1
        %v4818 = vrot.slane %v4814, 1
        %v4819 = vsel %vm301, %v4817, %v4818
        %v4821 = vadd.f32 %v4810, %v4819
        %s4822 = sld [smem:[#allocation10 + $0x315]]
        %v4823 = vstv %s4822
        %v4824 = vmul.f32 %v4805, %v4823
        %v4825 = vmul.f32 %v4806, %v4823
        %v4828 = vrot.slane %v4824, 2
        %v4829 = vrot.slane %v4825, 2
        %v4830 = vsel %vm349, %v4828, %v4829
        %v4832 = vadd.f32 %v4821, %v4830
        %s4833 = sld [smem:[#allocation10 + $0x95]]
        %v4834 = vstv %s4833
        %v4835 = vmul.f32 %v4805, %v4834
        %v4836 = vadd.f32 %v4648, %v4835
        %s4837 = sld [smem:[#allocation10 + $0x215]]
        %v4838 = vstv %s4837
        %v4839 = vmul.f32 %v4805, %v4838
        %v4840 = vmul.f32 %v4806, %v4838
        %v4843 = vrot.slane %v4839, 1
        %v4844 = vrot.slane %v4840, 1
        %v4845 = vsel %vm301, %v4843, %v4844
        %v4847 = vadd.f32 %v4836, %v4845
        %s4848 = sld [smem:[#allocation10 + $0x395]]
        %v4849 = vstv %s4848
        %v4850 = vmul.f32 %v4805, %v4849
        %v4851 = vmul.f32 %v4806, %v4849
        %v4854 = vrot.slane %v4850, 2
        %v4855 = vrot.slane %v4851, 2
        %v4856 = vsel %vm349, %v4854, %v4855
        %v4858 = vadd.f32 %v4847, %v4856
        %s4859 = sld [smem:[#allocation10 + $0x115]]
        %v4860 = vstv %s4859
        %v4861 = vmul.f32 %v4805, %v4860
        %v4862 = vadd.f32 %v4674, %v4861
        %s4863 = sld [smem:[#allocation10 + $0x295]]
        %v4864 = vstv %s4863
        %v4865 = vmul.f32 %v4805, %v4864
        %v4866 = vmul.f32 %v4806, %v4864
        %v4869 = vrot.slane %v4865, 1
        %v4870 = vrot.slane %v4866, 1
        %v4871 = vsel %vm301, %v4869, %v4870
        %v4873 = vadd.f32 %v4862, %v4871
        %s4874 = sld [smem:[#allocation10 + $0x415]]
        %v4875 = vstv %s4874
        %v4876 = vmul.f32 %v4805, %v4875
        %v4877 = vmul.f32 %v4806, %v4875
        %v4880 = vrot.slane %v4876, 2
        %v4881 = vrot.slane %v4877, 2
        %v4882 = vsel %vm349, %v4880, %v4881
        %v4884 = vadd.f32 %v4873, %v4882
        %s4885 = sld [smem:[#allocation8 + $0x16]]
        %v4886 = vstv %s4885
        %v4887 = vmul.f32 %v261, %v4886
        %v4888 = vmul.f32 %v262, %v4886
        %s4889 = sld [smem:[#allocation8 + $0x96]]
        %v4890 = vstv %s4889
        %v4891 = vmul.f32 %v261, %v4890
        %v4892 = vmul.f32 %v262, %v4890
        %4895 = vrot.lane.b32.xlu0 %v4891, 127
        %v4896 = vpop.permute.xlu0 %4895
        %4897 = vrot.lane.b32.xlu0 %v4892, 127
        %v4898 = vpop.permute.xlu0 %4897
        %v4901 = vadd.f32 %v4887, %v4896
        %v4902 = vadd.f32 %v4888, %v4898
        %s4903 = sld [smem:[#allocation8 + $0x116]]
        %v4904 = vstv %s4903
        %v4905 = vmul.f32 %v261, %v4904
        %v4906 = vmul.f32 %v262, %v4904
        %4909 = vrot.lane.b32.xlu0 %v4905, 126
        %v4910 = vpop.permute.xlu0 %4909
        %4911 = vrot.lane.b32.xlu0 %v4906, 126
        %v4912 = vpop.permute.xlu0 %4911
        %v4915 = vadd.f32 %v4901, %v4910
        %v4916 = vadd.f32 %v4902, %v4912
        %s4917 = sld [smem:[#allocation8 + $0x196]]
        %v4918 = vstv %s4917
        %v4919 = vmul.f32 %v261, %v4918
        %v4920 = vmul.f32 %v262, %v4918
        %v4923 = vrot.slane %v4919, 1
        %v4924 = vrot.slane %v4920, 1
        %v4925 = vsel %vm301, %v4923, %v4924
        %v4928 = vadd.f32 %v4915, %v4925
        %v4929 = vadd.f32 %v4916, %v4924
        %s4930 = sld [smem:[#allocation8 + $0x216]]
        %v4931 = vstv %s4930
        %v4932 = vmul.f32 %v261, %v4931
        %v4933 = vmul.f32 %v262, %v4931
        %v4936 = vrot.slane %v4932, 1
        %v4937 = vrot.slane %v4933, 1
        %v4938 = vsel %vm301, %v4936, %v4937
        %4939 = vrot.lane.b32.xlu0 %v4938, 127
        %v4940 = vpop.permute.xlu0 %4939
        %4941 = vrot.lane.b32.xlu0 %v4937, 127
        %v4942 = vpop.permute.xlu0 %4941
        %v4945 = vadd.f32 %v4928, %v4940
        %v4946 = vadd.f32 %v4929, %v4942
        %s4947 = sld [smem:[#allocation8 + $0x296]]
        %v4948 = vstv %s4947
        %v4949 = vmul.f32 %v261, %v4948
        %v4950 = vmul.f32 %v262, %v4948
        %v4953 = vrot.slane %v4949, 1
        %v4954 = vrot.slane %v4950, 1
        %v4955 = vsel %vm301, %v4953, %v4954
        %4956 = vrot.lane.b32.xlu0 %v4955, 126
        %v4957 = vpop.permute.xlu0 %4956
        %4958 = vrot.lane.b32.xlu0 %v4954, 126
        %v4959 = vpop.permute.xlu0 %4958
        %v4962 = vadd.f32 %v4945, %v4957
        %v4963 = vadd.f32 %v4946, %v4959
        %s4964 = sld [smem:[#allocation8 + $0x316]]
        %v4965 = vstv %s4964
        %v4966 = vmul.f32 %v261, %v4965
        %v4967 = vmul.f32 %v262, %v4965
        %v4970 = vrot.slane %v4966, 2
        %v4971 = vrot.slane %v4967, 2
        %v4972 = vsel %vm349, %v4970, %v4971
        %v4975 = vadd.f32 %v4962, %v4972
        %v4976 = vadd.f32 %v4963, %v4971
        %s4977 = sld [smem:[#allocation8 + $0x396]]
        %v4978 = vstv %s4977
        %v4979 = vmul.f32 %v261, %v4978
        %v4980 = vmul.f32 %v262, %v4978
        %v4983 = vrot.slane %v4979, 2
        %v4984 = vrot.slane %v4980, 2
        %v4985 = vsel %vm349, %v4983, %v4984
        %4986 = vrot.lane.b32.xlu0 %v4985, 127
        %v4987 = vpop.permute.xlu0 %4986
        %4988 = vrot.lane.b32.xlu0 %v4984, 127
        %v4989 = vpop.permute.xlu0 %4988
        %v4992 = vadd.f32 %v4975, %v4987
        %v4993 = vadd.f32 %v4976, %v4989
        %s4994 = sld [smem:[#allocation8 + $0x416]]
        %v4995 = vstv %s4994
        %v4996 = vmul.f32 %v261, %v4995
        %v4997 = vmul.f32 %v262, %v4995
        %v5000 = vrot.slane %v4996, 2
        %v5001 = vrot.slane %v4997, 2
        %v5002 = vsel %vm349, %v5000, %v5001
        %5003 = vrot.lane.b32.xlu0 %v5002, 126
        %v5004 = vpop.permute.xlu0 %5003
        %5005 = vrot.lane.b32.xlu0 %v5001, 126
        %v5006 = vpop.permute.xlu0 %5005
        %v5009 = vadd.f32 %v4992, %v5004
        %v5010 = vadd.f32 %v4993, %v5006
        %s5011 = sld [smem:[#allocation9 + $0x16]]
        %v5012 = vstv %s5011
        %v5013 = vadd.f32 %v5009, %v5012
        %v5014 = vadd.f32 %v5010, %v5012
        %v5015 = vmax.f32 %v5013, 0.0
        %v5016 = vmax.f32 %v5014, 0.0
        %s5017 = sld [smem:[#allocation10 + $0x16]]
        %v5018 = vstv %s5017
        %v5019 = vmul.f32 %v5015, %v5018
        %v5020 = vadd.f32 %v4832, %v5019
        %s5021 = sld [smem:[#allocation10 + $0x196]]
        %v5022 = vstv %s5021
        %v5023 = vmul.f32 %v5015, %v5022
        %v5024 = vmul.f32 %v5016, %v5022
        %v5027 = vrot.slane %v5023, 1
        %v5028 = vrot.slane %v5024, 1
        %v5029 = vsel %vm301, %v5027, %v5028
        %v5031 = vadd.f32 %v5020, %v5029
        %s5032 = sld [smem:[#allocation10 + $0x316]]
        %v5033 = vstv %s5032
        %v5034 = vmul.f32 %v5015, %v5033
        %v5035 = vmul.f32 %v5016, %v5033
        %v5038 = vrot.slane %v5034, 2
        %v5039 = vrot.slane %v5035, 2
        %v5040 = vsel %vm349, %v5038, %v5039
        %v5042 = vadd.f32 %v5031, %v5040
        %s5043 = sld [smem:[#allocation10 + $0x96]]
        %v5044 = vstv %s5043
        %v5045 = vmul.f32 %v5015, %v5044
        %v5046 = vadd.f32 %v4858, %v5045
        %s5047 = sld [smem:[#allocation10 + $0x216]]
        %v5048 = vstv %s5047
        %v5049 = vmul.f32 %v5015, %v5048
        %v5050 = vmul.f32 %v5016, %v5048
        %v5053 = vrot.slane %v5049, 1
        %v5054 = vrot.slane %v5050, 1
        %v5055 = vsel %vm301, %v5053, %v5054
        %v5057 = vadd.f32 %v5046, %v5055
        %s5058 = sld [smem:[#allocation10 + $0x396]]
        %v5059 = vstv %s5058
        %v5060 = vmul.f32 %v5015, %v5059
        %v5061 = vmul.f32 %v5016, %v5059
        %v5064 = vrot.slane %v5060, 2
        %v5065 = vrot.slane %v5061, 2
        %v5066 = vsel %vm349, %v5064, %v5065
        %v5068 = vadd.f32 %v5057, %v5066
        %s5069 = sld [smem:[#allocation10 + $0x116]]
        %v5070 = vstv %s5069
        %v5071 = vmul.f32 %v5015, %v5070
        %v5072 = vadd.f32 %v4884, %v5071
        %s5073 = sld [smem:[#allocation10 + $0x296]]
        %v5074 = vstv %s5073
        %v5075 = vmul.f32 %v5015, %v5074
        %v5076 = vmul.f32 %v5016, %v5074
        %v5079 = vrot.slane %v5075, 1
        %v5080 = vrot.slane %v5076, 1
        %v5081 = vsel %vm301, %v5079, %v5080
        %v5083 = vadd.f32 %v5072, %v5081
        %s5084 = sld [smem:[#allocation10 + $0x416]]
        %v5085 = vstv %s5084
        %v5086 = vmul.f32 %v5015, %v5085
        %v5087 = vmul.f32 %v5016, %v5085
        %v5090 = vrot.slane %v5086, 2
        %v5091 = vrot.slane %v5087, 2
        %v5092 = vsel %vm349, %v5090, %v5091
        %v5094 = vadd.f32 %v5083, %v5092
        %s5095 = sld [smem:[#allocation8 + $0x17]]
        %v5096 = vstv %s5095
        %v5097 = vmul.f32 %v261, %v5096
        %v5098 = vmul.f32 %v262, %v5096
        %s5099 = sld [smem:[#allocation8 + $0x97]]
        %v5100 = vstv %s5099
        %v5101 = vmul.f32 %v261, %v5100
        %v5102 = vmul.f32 %v262, %v5100
        %5105 = vrot.lane.b32.xlu0 %v5101, 127
        %v5106 = vpop.permute.xlu0 %5105
        %5107 = vrot.lane.b32.xlu0 %v5102, 127
        %v5108 = vpop.permute.xlu0 %5107
        %v5111 = vadd.f32 %v5097, %v5106
        %v5112 = vadd.f32 %v5098, %v5108
        %s5113 = sld [smem:[#allocation8 + $0x117]]
        %v5114 = vstv %s5113
        %v5115 = vmul.f32 %v261, %v5114
        %v5116 = vmul.f32 %v262, %v5114
        %5119 = vrot.lane.b32.xlu0 %v5115, 126
        %v5120 = vpop.permute.xlu0 %5119
        %5121 = vrot.lane.b32.xlu0 %v5116, 126
        %v5122 = vpop.permute.xlu0 %5121
        %v5125 = vadd.f32 %v5111, %v5120
        %v5126 = vadd.f32 %v5112, %v5122
        %s5127 = sld [smem:[#allocation8 + $0x197]]
        %v5128 = vstv %s5127
        %v5129 = vmul.f32 %v261, %v5128
        %v5130 = vmul.f32 %v262, %v5128
        %v5133 = vrot.slane %v5129, 1
        %v5134 = vrot.slane %v5130, 1
        %v5135 = vsel %vm301, %v5133, %v5134
        %v5138 = vadd.f32 %v5125, %v5135
        %v5139 = vadd.f32 %v5126, %v5134
        %s5140 = sld [smem:[#allocation8 + $0x217]]
        %v5141 = vstv %s5140
        %v5142 = vmul.f32 %v261, %v5141
        %v5143 = vmul.f32 %v262, %v5141
        %v5146 = vrot.slane %v5142, 1
        %v5147 = vrot.slane %v5143, 1
        %v5148 = vsel %vm301, %v5146, %v5147
        %5149 = vrot.lane.b32.xlu0 %v5148, 127
        %v5150 = vpop.permute.xlu0 %5149
        %5151 = vrot.lane.b32.xlu0 %v5147, 127
        %v5152 = vpop.permute.xlu0 %5151
        %v5155 = vadd.f32 %v5138, %v5150
        %v5156 = vadd.f32 %v5139, %v5152
        %s5157 = sld [smem:[#allocation8 + $0x297]]
        %v5158 = vstv %s5157
        %v5159 = vmul.f32 %v261, %v5158
        %v5160 = vmul.f32 %v262, %v5158
        %v5163 = vrot.slane %v5159, 1
        %v5164 = vrot.slane %v5160, 1
        %v5165 = vsel %vm301, %v5163, %v5164
        %5166 = vrot.lane.b32.xlu0 %v5165, 126
        %v5167 = vpop.permute.xlu0 %5166
        %5168 = vrot.lane.b32.xlu0 %v5164, 126
        %v5169 = vpop.permute.xlu0 %5168
        %v5172 = vadd.f32 %v5155, %v5167
        %v5173 = vadd.f32 %v5156, %v5169
        %s5174 = sld [smem:[#allocation8 + $0x317]]
        %v5175 = vstv %s5174
        %v5176 = vmul.f32 %v261, %v5175
        %v5177 = vmul.f32 %v262, %v5175
        %v5180 = vrot.slane %v5176, 2
        %v5181 = vrot.slane %v5177, 2
        %v5182 = vsel %vm349, %v5180, %v5181
        %v5185 = vadd.f32 %v5172, %v5182
        %v5186 = vadd.f32 %v5173, %v5181
        %s5187 = sld [smem:[#allocation8 + $0x397]]
        %v5188 = vstv %s5187
        %v5189 = vmul.f32 %v261, %v5188
        %v5190 = vmul.f32 %v262, %v5188
        %v5193 = vrot.slane %v5189, 2
        %v5194 = vrot.slane %v5190, 2
        %v5195 = vsel %vm349, %v5193, %v5194
        %5196 = vrot.lane.b32.xlu0 %v5195, 127
        %v5197 = vpop.permute.xlu0 %5196
        %5198 = vrot.lane.b32.xlu0 %v5194, 127
        %v5199 = vpop.permute.xlu0 %5198
        %v5202 = vadd.f32 %v5185, %v5197
        %v5203 = vadd.f32 %v5186, %v5199
        %s5204 = sld [smem:[#allocation8 + $0x417]]
        %v5205 = vstv %s5204
        %v5206 = vmul.f32 %v261, %v5205
        %v5207 = vmul.f32 %v262, %v5205
        %v5210 = vrot.slane %v5206, 2
        %v5211 = vrot.slane %v5207, 2
        %v5212 = vsel %vm349, %v5210, %v5211
        %5213 = vrot.lane.b32.xlu0 %v5212, 126
        %v5214 = vpop.permute.xlu0 %5213
        %5215 = vrot.lane.b32.xlu0 %v5211, 126
        %v5216 = vpop.permute.xlu0 %5215
        %v5219 = vadd.f32 %v5202, %v5214
        %v5220 = vadd.f32 %v5203, %v5216
        %s5221 = sld [smem:[#allocation9 + $0x17]]
        %v5222 = vstv %s5221
        %v5223 = vadd.f32 %v5219, %v5222
        %v5224 = vadd.f32 %v5220, %v5222
        %v5225 = vmax.f32 %v5223, 0.0
        %v5226 = vmax.f32 %v5224, 0.0
        %s5227 = sld [smem:[#allocation10 + $0x17]]
        %v5228 = vstv %s5227
        %v5229 = vmul.f32 %v5225, %v5228
        %v5230 = vadd.f32 %v5042, %v5229
        %s5231 = sld [smem:[#allocation10 + $0x197]]
        %v5232 = vstv %s5231
        %v5233 = vmul.f32 %v5225, %v5232
        %v5234 = vmul.f32 %v5226, %v5232
        %v5237 = vrot.slane %v5233, 1
        %v5238 = vrot.slane %v5234, 1
        %v5239 = vsel %vm301, %v5237, %v5238
        %v5241 = vadd.f32 %v5230, %v5239
        %s5242 = sld [smem:[#allocation10 + $0x317]]
        %v5243 = vstv %s5242
        %v5244 = vmul.f32 %v5225, %v5243
        %v5245 = vmul.f32 %v5226, %v5243
        %v5248 = vrot.slane %v5244, 2
        %v5249 = vrot.slane %v5245, 2
        %v5250 = vsel %vm349, %v5248, %v5249
        %v5252 = vadd.f32 %v5241, %v5250
        %s5253 = sld [smem:[#allocation10 + $0x97]]
        %v5254 = vstv %s5253
        %v5255 = vmul.f32 %v5225, %v5254
        %v5256 = vadd.f32 %v5068, %v5255
        %s5257 = sld [smem:[#allocation10 + $0x217]]
        %v5258 = vstv %s5257
        %v5259 = vmul.f32 %v5225, %v5258
        %v5260 = vmul.f32 %v5226, %v5258
        %v5263 = vrot.slane %v5259, 1
        %v5264 = vrot.slane %v5260, 1
        %v5265 = vsel %vm301, %v5263, %v5264
        %v5267 = vadd.f32 %v5256, %v5265
        %s5268 = sld [smem:[#allocation10 + $0x397]]
        %v5269 = vstv %s5268
        %v5270 = vmul.f32 %v5225, %v5269
        %v5271 = vmul.f32 %v5226, %v5269
        %v5274 = vrot.slane %v5270, 2
        %v5275 = vrot.slane %v5271, 2
        %v5276 = vsel %vm349, %v5274, %v5275
        %v5278 = vadd.f32 %v5267, %v5276
        %s5279 = sld [smem:[#allocation10 + $0x117]]
        %v5280 = vstv %s5279
        %v5281 = vmul.f32 %v5225, %v5280
        %v5282 = vadd.f32 %v5094, %v5281
        %s5283 = sld [smem:[#allocation10 + $0x297]]
        %v5284 = vstv %s5283
        %v5285 = vmul.f32 %v5225, %v5284
        %v5286 = vmul.f32 %v5226, %v5284
        %v5289 = vrot.slane %v5285, 1
        %v5290 = vrot.slane %v5286, 1
        %v5291 = vsel %vm301, %v5289, %v5290
        %v5293 = vadd.f32 %v5282, %v5291
        %s5294 = sld [smem:[#allocation10 + $0x417]]
        %v5295 = vstv %s5294
        %v5296 = vmul.f32 %v5225, %v5295
        %v5297 = vmul.f32 %v5226, %v5295
        %v5300 = vrot.slane %v5296, 2
        %v5301 = vrot.slane %v5297, 2
        %v5302 = vsel %vm349, %v5300, %v5301
        %v5304 = vadd.f32 %v5293, %v5302
        %s5305 = sld [smem:[#allocation8 + $0x18]]
        %v5306 = vstv %s5305
        %v5307 = vmul.f32 %v261, %v5306
        %v5308 = vmul.f32 %v262, %v5306
        %s5309 = sld [smem:[#allocation8 + $0x98]]
        %v5310 = vstv %s5309
        %v5311 = vmul.f32 %v261, %v5310
        %v5312 = vmul.f32 %v262, %v5310
        %5315 = vrot.lane.b32.xlu0 %v5311, 127
        %v5316 = vpop.permute.xlu0 %5315
        %5317 = vrot.lane.b32.xlu0 %v5312, 127
        %v5318 = vpop.permute.xlu0 %5317
        %v5321 = vadd.f32 %v5307, %v5316
        %v5322 = vadd.f32 %v5308, %v5318
        %s5323 = sld [smem:[#allocation8 + $0x118]]
        %v5324 = vstv %s5323
        %v5325 = vmul.f32 %v261, %v5324
        %v5326 = vmul.f32 %v262, %v5324
        %5329 = vrot.lane.b32.xlu0 %v5325, 126
        %v5330 = vpop.permute.xlu0 %5329
        %5331 = vrot.lane.b32.xlu0 %v5326, 126
        %v5332 = vpop.permute.xlu0 %5331
        %v5335 = vadd.f32 %v5321, %v5330
        %v5336 = vadd.f32 %v5322, %v5332
        %s5337 = sld [smem:[#allocation8 + $0x198]]
        %v5338 = vstv %s5337
        %v5339 = vmul.f32 %v261, %v5338
        %v5340 = vmul.f32 %v262, %v5338
        %v5343 = vrot.slane %v5339, 1
        %v5344 = vrot.slane %v5340, 1
        %v5345 = vsel %vm301, %v5343, %v5344
        %v5348 = vadd.f32 %v5335, %v5345
        %v5349 = vadd.f32 %v5336, %v5344
        %s5350 = sld [smem:[#allocation8 + $0x218]]
        %v5351 = vstv %s5350
        %v5352 = vmul.f32 %v261, %v5351
        %v5353 = vmul.f32 %v262, %v5351
        %v5356 = vrot.slane %v5352, 1
        %v5357 = vrot.slane %v5353, 1
        %v5358 = vsel %vm301, %v5356, %v5357
        %5359 = vrot.lane.b32.xlu0 %v5358, 127
        %v5360 = vpop.permute.xlu0 %5359
        %5361 = vrot.lane.b32.xlu0 %v5357, 127
        %v5362 = vpop.permute.xlu0 %5361
        %v5365 = vadd.f32 %v5348, %v5360
        %v5366 = vadd.f32 %v5349, %v5362
        %s5367 = sld [smem:[#allocation8 + $0x298]]
        %v5368 = vstv %s5367
        %v5369 = vmul.f32 %v261, %v5368
        %v5370 = vmul.f32 %v262, %v5368
        %v5373 = vrot.slane %v5369, 1
        %v5374 = vrot.slane %v5370, 1
        %v5375 = vsel %vm301, %v5373, %v5374
        %5376 = vrot.lane.b32.xlu0 %v5375, 126
        %v5377 = vpop.permute.xlu0 %5376
        %5378 = vrot.lane.b32.xlu0 %v5374, 126
        %v5379 = vpop.permute.xlu0 %5378
        %v5382 = vadd.f32 %v5365, %v5377
        %v5383 = vadd.f32 %v5366, %v5379
        %s5384 = sld [smem:[#allocation8 + $0x318]]
        %v5385 = vstv %s5384
        %v5386 = vmul.f32 %v261, %v5385
        %v5387 = vmul.f32 %v262, %v5385
        %v5390 = vrot.slane %v5386, 2
        %v5391 = vrot.slane %v5387, 2
        %v5392 = vsel %vm349, %v5390, %v5391
        %v5395 = vadd.f32 %v5382, %v5392
        %v5396 = vadd.f32 %v5383, %v5391
        %s5397 = sld [smem:[#allocation8 + $0x398]]
        %v5398 = vstv %s5397
        %v5399 = vmul.f32 %v261, %v5398
        %v5400 = vmul.f32 %v262, %v5398
        %v5403 = vrot.slane %v5399, 2
        %v5404 = vrot.slane %v5400, 2
        %v5405 = vsel %vm349, %v5403, %v5404
        %5406 = vrot.lane.b32.xlu0 %v5405, 127
        %v5407 = vpop.permute.xlu0 %5406
        %5408 = vrot.lane.b32.xlu0 %v5404, 127
        %v5409 = vpop.permute.xlu0 %5408
        %v5412 = vadd.f32 %v5395, %v5407
        %v5413 = vadd.f32 %v5396, %v5409
        %s5414 = sld [smem:[#allocation8 + $0x418]]
        %v5415 = vstv %s5414
        %v5416 = vmul.f32 %v261, %v5415
        %v5417 = vmul.f32 %v262, %v5415
        %v5420 = vrot.slane %v5416, 2
        %v5421 = vrot.slane %v5417, 2
        %v5422 = vsel %vm349, %v5420, %v5421
        %5423 = vrot.lane.b32.xlu0 %v5422, 126
        %v5424 = vpop.permute.xlu0 %5423
        %5425 = vrot.lane.b32.xlu0 %v5421, 126
        %v5426 = vpop.permute.xlu0 %5425
        %v5429 = vadd.f32 %v5412, %v5424
        %v5430 = vadd.f32 %v5413, %v5426
        %s5431 = sld [smem:[#allocation9 + $0x18]]
        %v5432 = vstv %s5431
        %v5433 = vadd.f32 %v5429, %v5432
        %v5434 = vadd.f32 %v5430, %v5432
        %v5435 = vmax.f32 %v5433, 0.0
        %v5436 = vmax.f32 %v5434, 0.0
        %s5437 = sld [smem:[#allocation10 + $0x18]]
        %v5438 = vstv %s5437
        %v5439 = vmul.f32 %v5435, %v5438
        %v5440 = vadd.f32 %v5252, %v5439
        %s5441 = sld [smem:[#allocation10 + $0x198]]
        %v5442 = vstv %s5441
        %v5443 = vmul.f32 %v5435, %v5442
        %v5444 = vmul.f32 %v5436, %v5442
        %v5447 = vrot.slane %v5443, 1
        %v5448 = vrot.slane %v5444, 1
        %v5449 = vsel %vm301, %v5447, %v5448
        %v5451 = vadd.f32 %v5440, %v5449
        %s5452 = sld [smem:[#allocation10 + $0x318]]
        %v5453 = vstv %s5452
        %v5454 = vmul.f32 %v5435, %v5453
        %v5455 = vmul.f32 %v5436, %v5453
        %v5458 = vrot.slane %v5454, 2
        %v5459 = vrot.slane %v5455, 2
        %v5460 = vsel %vm349, %v5458, %v5459
        %v5462 = vadd.f32 %v5451, %v5460
        %s5463 = sld [smem:[#allocation10 + $0x98]]
        %v5464 = vstv %s5463
        %v5465 = vmul.f32 %v5435, %v5464
        %v5466 = vadd.f32 %v5278, %v5465
        %s5467 = sld [smem:[#allocation10 + $0x218]]
        %v5468 = vstv %s5467
        %v5469 = vmul.f32 %v5435, %v5468
        %v5470 = vmul.f32 %v5436, %v5468
        %v5473 = vrot.slane %v5469, 1
        %v5474 = vrot.slane %v5470, 1
        %v5475 = vsel %vm301, %v5473, %v5474
        %v5477 = vadd.f32 %v5466, %v5475
        %s5478 = sld [smem:[#allocation10 + $0x398]]
        %v5479 = vstv %s5478
        %v5480 = vmul.f32 %v5435, %v5479
        %v5481 = vmul.f32 %v5436, %v5479
        %v5484 = vrot.slane %v5480, 2
        %v5485 = vrot.slane %v5481, 2
        %v5486 = vsel %vm349, %v5484, %v5485
        %v5488 = vadd.f32 %v5477, %v5486
        %s5489 = sld [smem:[#allocation10 + $0x118]]
        %v5490 = vstv %s5489
        %v5491 = vmul.f32 %v5435, %v5490
        %v5492 = vadd.f32 %v5304, %v5491
        %s5493 = sld [smem:[#allocation10 + $0x298]]
        %v5494 = vstv %s5493
        %v5495 = vmul.f32 %v5435, %v5494
        %v5496 = vmul.f32 %v5436, %v5494
        %v5499 = vrot.slane %v5495, 1
        %v5500 = vrot.slane %v5496, 1
        %v5501 = vsel %vm301, %v5499, %v5500
        %v5503 = vadd.f32 %v5492, %v5501
        %s5504 = sld [smem:[#allocation10 + $0x418]]
        %v5505 = vstv %s5504
        %v5506 = vmul.f32 %v5435, %v5505
        %v5507 = vmul.f32 %v5436, %v5505
        %v5510 = vrot.slane %v5506, 2
        %v5511 = vrot.slane %v5507, 2
        %v5512 = vsel %vm349, %v5510, %v5511
        %v5514 = vadd.f32 %v5503, %v5512
        %s5515 = sld [smem:[#allocation8 + $0x19]]
        %v5516 = vstv %s5515
        %v5517 = vmul.f32 %v261, %v5516
        %v5518 = vmul.f32 %v262, %v5516
        %s5519 = sld [smem:[#allocation8 + $0x99]]
        %v5520 = vstv %s5519
        %v5521 = vmul.f32 %v261, %v5520
        %v5522 = vmul.f32 %v262, %v5520
        %5525 = vrot.lane.b32.xlu0 %v5521, 127
        %v5526 = vpop.permute.xlu0 %5525
        %5527 = vrot.lane.b32.xlu0 %v5522, 127
        %v5528 = vpop.permute.xlu0 %5527
        %v5531 = vadd.f32 %v5517, %v5526
        %v5532 = vadd.f32 %v5518, %v5528
        %s5533 = sld [smem:[#allocation8 + $0x119]]
        %v5534 = vstv %s5533
        %v5535 = vmul.f32 %v261, %v5534
        %v5536 = vmul.f32 %v262, %v5534
        %5539 = vrot.lane.b32.xlu0 %v5535, 126
        %v5540 = vpop.permute.xlu0 %5539
        %5541 = vrot.lane.b32.xlu0 %v5536, 126
        %v5542 = vpop.permute.xlu0 %5541
        %v5545 = vadd.f32 %v5531, %v5540
        %v5546 = vadd.f32 %v5532, %v5542
        %s5547 = sld [smem:[#allocation8 + $0x199]]
        %v5548 = vstv %s5547
        %v5549 = vmul.f32 %v261, %v5548
        %v5550 = vmul.f32 %v262, %v5548
        %v5553 = vrot.slane %v5549, 1
        %v5554 = vrot.slane %v5550, 1
        %v5555 = vsel %vm301, %v5553, %v5554
        %v5558 = vadd.f32 %v5545, %v5555
        %v5559 = vadd.f32 %v5546, %v5554
        %s5560 = sld [smem:[#allocation8 + $0x219]]
        %v5561 = vstv %s5560
        %v5562 = vmul.f32 %v261, %v5561
        %v5563 = vmul.f32 %v262, %v5561
        %v5566 = vrot.slane %v5562, 1
        %v5567 = vrot.slane %v5563, 1
        %v5568 = vsel %vm301, %v5566, %v5567
        %5569 = vrot.lane.b32.xlu0 %v5568, 127
        %v5570 = vpop.permute.xlu0 %5569
        %5571 = vrot.lane.b32.xlu0 %v5567, 127
        %v5572 = vpop.permute.xlu0 %5571
        %v5575 = vadd.f32 %v5558, %v5570
        %v5576 = vadd.f32 %v5559, %v5572
        %s5577 = sld [smem:[#allocation8 + $0x299]]
        %v5578 = vstv %s5577
        %v5579 = vmul.f32 %v261, %v5578
        %v5580 = vmul.f32 %v262, %v5578
        %v5583 = vrot.slane %v5579, 1
        %v5584 = vrot.slane %v5580, 1
        %v5585 = vsel %vm301, %v5583, %v5584
        %5586 = vrot.lane.b32.xlu0 %v5585, 126
        %v5587 = vpop.permute.xlu0 %5586
        %5588 = vrot.lane.b32.xlu0 %v5584, 126
        %v5589 = vpop.permute.xlu0 %5588
        %v5592 = vadd.f32 %v5575, %v5587
        %v5593 = vadd.f32 %v5576, %v5589
        %s5594 = sld [smem:[#allocation8 + $0x319]]
        %v5595 = vstv %s5594
        %v5596 = vmul.f32 %v261, %v5595
        %v5597 = vmul.f32 %v262, %v5595
        %v5600 = vrot.slane %v5596, 2
        %v5601 = vrot.slane %v5597, 2
        %v5602 = vsel %vm349, %v5600, %v5601
        %v5605 = vadd.f32 %v5592, %v5602
        %v5606 = vadd.f32 %v5593, %v5601
        %s5607 = sld [smem:[#allocation8 + $0x399]]
        %v5608 = vstv %s5607
        %v5609 = vmul.f32 %v261, %v5608
        %v5610 = vmul.f32 %v262, %v5608
        %v5613 = vrot.slane %v5609, 2
        %v5614 = vrot.slane %v5610, 2
        %v5615 = vsel %vm349, %v5613, %v5614
        %5616 = vrot.lane.b32.xlu0 %v5615, 127
        %v5617 = vpop.permute.xlu0 %5616
        %5618 = vrot.lane.b32.xlu0 %v5614, 127
        %v5619 = vpop.permute.xlu0 %5618
        %v5622 = vadd.f32 %v5605, %v5617
        %v5623 = vadd.f32 %v5606, %v5619
        %s5624 = sld [smem:[#allocation8 + $0x419]]
        %v5625 = vstv %s5624
        %v5626 = vmul.f32 %v261, %v5625
        %v5627 = vmul.f32 %v262, %v5625
        %v5630 = vrot.slane %v5626, 2
        %v5631 = vrot.slane %v5627, 2
        %v5632 = vsel %vm349, %v5630, %v5631
        %5633 = vrot.lane.b32.xlu0 %v5632, 126
        %v5634 = vpop.permute.xlu0 %5633
        %5635 = vrot.lane.b32.xlu0 %v5631, 126
        %v5636 = vpop.permute.xlu0 %5635
        %v5639 = vadd.f32 %v5622, %v5634
        %v5640 = vadd.f32 %v5623, %v5636
        %s5641 = sld [smem:[#allocation9 + $0x19]]
        %v5642 = vstv %s5641
        %v5643 = vadd.f32 %v5639, %v5642
        %v5644 = vadd.f32 %v5640, %v5642
        %v5645 = vmax.f32 %v5643, 0.0
        %v5646 = vmax.f32 %v5644, 0.0
        %s5647 = sld [smem:[#allocation10 + $0x19]]
        %v5648 = vstv %s5647
        %v5649 = vmul.f32 %v5645, %v5648
        %v5650 = vadd.f32 %v5462, %v5649
        %s5651 = sld [smem:[#allocation10 + $0x199]]
        %v5652 = vstv %s5651
        %v5653 = vmul.f32 %v5645, %v5652
        %v5654 = vmul.f32 %v5646, %v5652
        %v5657 = vrot.slane %v5653, 1
        %v5658 = vrot.slane %v5654, 1
        %v5659 = vsel %vm301, %v5657, %v5658
        %v5661 = vadd.f32 %v5650, %v5659
        %s5662 = sld [smem:[#allocation10 + $0x319]]
        %v5663 = vstv %s5662
        %v5664 = vmul.f32 %v5645, %v5663
        %v5665 = vmul.f32 %v5646, %v5663
        %v5668 = vrot.slane %v5664, 2
        %v5669 = vrot.slane %v5665, 2
        %v5670 = vsel %vm349, %v5668, %v5669
        %v5672 = vadd.f32 %v5661, %v5670
        %s5673 = sld [smem:[#allocation10 + $0x99]]
        %v5674 = vstv %s5673
        %v5675 = vmul.f32 %v5645, %v5674
        %v5676 = vadd.f32 %v5488, %v5675
        %s5677 = sld [smem:[#allocation10 + $0x219]]
        %v5678 = vstv %s5677
        %v5679 = vmul.f32 %v5645, %v5678
        %v5680 = vmul.f32 %v5646, %v5678
        %v5683 = vrot.slane %v5679, 1
        %v5684 = vrot.slane %v5680, 1
        %v5685 = vsel %vm301, %v5683, %v5684
        %v5687 = vadd.f32 %v5676, %v5685
        %s5688 = sld [smem:[#allocation10 + $0x399]]
        %v5689 = vstv %s5688
        %v5690 = vmul.f32 %v5645, %v5689
        %v5691 = vmul.f32 %v5646, %v5689
        %v5694 = vrot.slane %v5690, 2
        %v5695 = vrot.slane %v5691, 2
        %v5696 = vsel %vm349, %v5694, %v5695
        %v5698 = vadd.f32 %v5687, %v5696
        %s5699 = sld [smem:[#allocation10 + $0x119]]
        %v5700 = vstv %s5699
        %v5701 = vmul.f32 %v5645, %v5700
        %v5702 = vadd.f32 %v5514, %v5701
        %s5703 = sld [smem:[#allocation10 + $0x299]]
        %v5704 = vstv %s5703
        %v5705 = vmul.f32 %v5645, %v5704
        %v5706 = vmul.f32 %v5646, %v5704
        %v5709 = vrot.slane %v5705, 1
        %v5710 = vrot.slane %v5706, 1
        %v5711 = vsel %vm301, %v5709, %v5710
        %v5713 = vadd.f32 %v5702, %v5711
        %s5714 = sld [smem:[#allocation10 + $0x419]]
        %v5715 = vstv %s5714
        %v5716 = vmul.f32 %v5645, %v5715
        %v5717 = vmul.f32 %v5646, %v5715
        %v5720 = vrot.slane %v5716, 2
        %v5721 = vrot.slane %v5717, 2
        %v5722 = vsel %vm349, %v5720, %v5721
        %v5724 = vadd.f32 %v5713, %v5722
        %s5725 = sld [smem:[#allocation8 + $0x1a]]
        %v5726 = vstv %s5725
        %v5727 = vmul.f32 %v261, %v5726
        %v5728 = vmul.f32 %v262, %v5726
        %s5729 = sld [smem:[#allocation8 + $0x9a]]
        %v5730 = vstv %s5729
        %v5731 = vmul.f32 %v261, %v5730
        %v5732 = vmul.f32 %v262, %v5730
        %5735 = vrot.lane.b32.xlu0 %v5731, 127
        %v5736 = vpop.permute.xlu0 %5735
        %5737 = vrot.lane.b32.xlu0 %v5732, 127
        %v5738 = vpop.permute.xlu0 %5737
        %v5741 = vadd.f32 %v5727, %v5736
        %v5742 = vadd.f32 %v5728, %v5738
        %s5743 = sld [smem:[#allocation8 + $0x11a]]
        %v5744 = vstv %s5743
        %v5745 = vmul.f32 %v261, %v5744
        %v5746 = vmul.f32 %v262, %v5744
        %5749 = vrot.lane.b32.xlu0 %v5745, 126
        %v5750 = vpop.permute.xlu0 %5749
        %5751 = vrot.lane.b32.xlu0 %v5746, 126
        %v5752 = vpop.permute.xlu0 %5751
        %v5755 = vadd.f32 %v5741, %v5750
        %v5756 = vadd.f32 %v5742, %v5752
        %s5757 = sld [smem:[#allocation8 + $0x19a]]
        %v5758 = vstv %s5757
        %v5759 = vmul.f32 %v261, %v5758
        %v5760 = vmul.f32 %v262, %v5758
        %v5763 = vrot.slane %v5759, 1
        %v5764 = vrot.slane %v5760, 1
        %v5765 = vsel %vm301, %v5763, %v5764
        %v5768 = vadd.f32 %v5755, %v5765
        %v5769 = vadd.f32 %v5756, %v5764
        %s5770 = sld [smem:[#allocation8 + $0x21a]]
        %v5771 = vstv %s5770
        %v5772 = vmul.f32 %v261, %v5771
        %v5773 = vmul.f32 %v262, %v5771
        %v5776 = vrot.slane %v5772, 1
        %v5777 = vrot.slane %v5773, 1
        %v5778 = vsel %vm301, %v5776, %v5777
        %5779 = vrot.lane.b32.xlu0 %v5778, 127
        %v5780 = vpop.permute.xlu0 %5779
        %5781 = vrot.lane.b32.xlu0 %v5777, 127
        %v5782 = vpop.permute.xlu0 %5781
        %v5785 = vadd.f32 %v5768, %v5780
        %v5786 = vadd.f32 %v5769, %v5782
        %s5787 = sld [smem:[#allocation8 + $0x29a]]
        %v5788 = vstv %s5787
        %v5789 = vmul.f32 %v261, %v5788
        %v5790 = vmul.f32 %v262, %v5788
        %v5793 = vrot.slane %v5789, 1
        %v5794 = vrot.slane %v5790, 1
        %v5795 = vsel %vm301, %v5793, %v5794
        %5796 = vrot.lane.b32.xlu0 %v5795, 126
        %v5797 = vpop.permute.xlu0 %5796
        %5798 = vrot.lane.b32.xlu0 %v5794, 126
        %v5799 = vpop.permute.xlu0 %5798
        %v5802 = vadd.f32 %v5785, %v5797
        %v5803 = vadd.f32 %v5786, %v5799
        %s5804 = sld [smem:[#allocation8 + $0x31a]]
        %v5805 = vstv %s5804
        %v5806 = vmul.f32 %v261, %v5805
        %v5807 = vmul.f32 %v262, %v5805
        %v5810 = vrot.slane %v5806, 2
        %v5811 = vrot.slane %v5807, 2
        %v5812 = vsel %vm349, %v5810, %v5811
        %v5815 = vadd.f32 %v5802, %v5812
        %v5816 = vadd.f32 %v5803, %v5811
        %s5817 = sld [smem:[#allocation8 + $0x39a]]
        %v5818 = vstv %s5817
        %v5819 = vmul.f32 %v261, %v5818
        %v5820 = vmul.f32 %v262, %v5818
        %v5823 = vrot.slane %v5819, 2
        %v5824 = vrot.slane %v5820, 2
        %v5825 = vsel %vm349, %v5823, %v5824
        %5826 = vrot.lane.b32.xlu0 %v5825, 127
        %v5827 = vpop.permute.xlu0 %5826
        %5828 = vrot.lane.b32.xlu0 %v5824, 127
        %v5829 = vpop.permute.xlu0 %5828
        %v5832 = vadd.f32 %v5815, %v5827
        %v5833 = vadd.f32 %v5816, %v5829
        %s5834 = sld [smem:[#allocation8 + $0x41a]]
        %v5835 = vstv %s5834
        %v5836 = vmul.f32 %v261, %v5835
        %v5837 = vmul.f32 %v262, %v5835
        %v5840 = vrot.slane %v5836, 2
        %v5841 = vrot.slane %v5837, 2
        %v5842 = vsel %vm349, %v5840, %v5841
        %5843 = vrot.lane.b32.xlu0 %v5842, 126
        %v5844 = vpop.permute.xlu0 %5843
        %5845 = vrot.lane.b32.xlu0 %v5841, 126
        %v5846 = vpop.permute.xlu0 %5845
        %v5849 = vadd.f32 %v5832, %v5844
        %v5850 = vadd.f32 %v5833, %v5846
        %s5851 = sld [smem:[#allocation9 + $0x1a]]
        %v5852 = vstv %s5851
        %v5853 = vadd.f32 %v5849, %v5852
        %v5854 = vadd.f32 %v5850, %v5852
        %v5855 = vmax.f32 %v5853, 0.0
        %v5856 = vmax.f32 %v5854, 0.0
        %s5857 = sld [smem:[#allocation10 + $0x1a]]
        %v5858 = vstv %s5857
        %v5859 = vmul.f32 %v5855, %v5858
        %v5860 = vadd.f32 %v5672, %v5859
        %s5861 = sld [smem:[#allocation10 + $0x19a]]
        %v5862 = vstv %s5861
        %v5863 = vmul.f32 %v5855, %v5862
        %v5864 = vmul.f32 %v5856, %v5862
        %v5867 = vrot.slane %v5863, 1
        %v5868 = vrot.slane %v5864, 1
        %v5869 = vsel %vm301, %v5867, %v5868
        %v5871 = vadd.f32 %v5860, %v5869
        %s5872 = sld [smem:[#allocation10 + $0x31a]]
        %v5873 = vstv %s5872
        %v5874 = vmul.f32 %v5855, %v5873
        %v5875 = vmul.f32 %v5856, %v5873
        %v5878 = vrot.slane %v5874, 2
        %v5879 = vrot.slane %v5875, 2
        %v5880 = vsel %vm349, %v5878, %v5879
        %v5882 = vadd.f32 %v5871, %v5880
        %s5883 = sld [smem:[#allocation10 + $0x9a]]
        %v5884 = vstv %s5883
        %v5885 = vmul.f32 %v5855, %v5884
        %v5886 = vadd.f32 %v5698, %v5885
        %s5887 = sld [smem:[#allocation10 + $0x21a]]
        %v5888 = vstv %s5887
        %v5889 = vmul.f32 %v5855, %v5888
        %v5890 = vmul.f32 %v5856, %v5888
        %v5893 = vrot.slane %v5889, 1
        %v5894 = vrot.slane %v5890, 1
        %v5895 = vsel %vm301, %v5893, %v5894
        %v5897 = vadd.f32 %v5886, %v5895
        %s5898 = sld [smem:[#allocation10 + $0x39a]]
        %v5899 = vstv %s5898
        %v5900 = vmul.f32 %v5855, %v5899
        %v5901 = vmul.f32 %v5856, %v5899
        %v5904 = vrot.slane %v5900, 2
        %v5905 = vrot.slane %v5901, 2
        %v5906 = vsel %vm349, %v5904, %v5905
        %v5908 = vadd.f32 %v5897, %v5906
        %s5909 = sld [smem:[#allocation10 + $0x11a]]
        %v5910 = vstv %s5909
        %v5911 = vmul.f32 %v5855, %v5910
        %v5912 = vadd.f32 %v5724, %v5911
        %s5913 = sld [smem:[#allocation10 + $0x29a]]
        %v5914 = vstv %s5913
        %v5915 = vmul.f32 %v5855, %v5914
        %v5916 = vmul.f32 %v5856, %v5914
        %v5919 = vrot.slane %v5915, 1
        %v5920 = vrot.slane %v5916, 1
        %v5921 = vsel %vm301, %v5919, %v5920
        %v5923 = vadd.f32 %v5912, %v5921
        %s5924 = sld [smem:[#allocation10 + $0x41a]]
        %v5925 = vstv %s5924
        %v5926 = vmul.f32 %v5855, %v5925
        %v5927 = vmul.f32 %v5856, %v5925
        %v5930 = vrot.slane %v5926, 2
        %v5931 = vrot.slane %v5927, 2
        %v5932 = vsel %vm349, %v5930, %v5931
        %v5934 = vadd.f32 %v5923, %v5932
        %s5935 = sld [smem:[#allocation8 + $0x1b]]
        %v5936 = vstv %s5935
        %v5937 = vmul.f32 %v261, %v5936
        %v5938 = vmul.f32 %v262, %v5936
        %s5939 = sld [smem:[#allocation8 + $0x9b]]
        %v5940 = vstv %s5939
        %v5941 = vmul.f32 %v261, %v5940
        %v5942 = vmul.f32 %v262, %v5940
        %5945 = vrot.lane.b32.xlu0 %v5941, 127
        %v5946 = vpop.permute.xlu0 %5945
        %5947 = vrot.lane.b32.xlu0 %v5942, 127
        %v5948 = vpop.permute.xlu0 %5947
        %v5951 = vadd.f32 %v5937, %v5946
        %v5952 = vadd.f32 %v5938, %v5948
        %s5953 = sld [smem:[#allocation8 + $0x11b]]
        %v5954 = vstv %s5953
        %v5955 = vmul.f32 %v261, %v5954
        %v5956 = vmul.f32 %v262, %v5954
        %5959 = vrot.lane.b32.xlu0 %v5955, 126
        %v5960 = vpop.permute.xlu0 %5959
        %5961 = vrot.lane.b32.xlu0 %v5956, 126
        %v5962 = vpop.permute.xlu0 %5961
        %v5965 = vadd.f32 %v5951, %v5960
        %v5966 = vadd.f32 %v5952, %v5962
        %s5967 = sld [smem:[#allocation8 + $0x19b]]
        %v5968 = vstv %s5967
        %v5969 = vmul.f32 %v261, %v5968
        %v5970 = vmul.f32 %v262, %v5968
        %v5973 = vrot.slane %v5969, 1
        %v5974 = vrot.slane %v5970, 1
        %v5975 = vsel %vm301, %v5973, %v5974
        %v5978 = vadd.f32 %v5965, %v5975
        %v5979 = vadd.f32 %v5966, %v5974
        %s5980 = sld [smem:[#allocation8 + $0x21b]]
        %v5981 = vstv %s5980
        %v5982 = vmul.f32 %v261, %v5981
        %v5983 = vmul.f32 %v262, %v5981
        %v5986 = vrot.slane %v5982, 1
        %v5987 = vrot.slane %v5983, 1
        %v5988 = vsel %vm301, %v5986, %v5987
        %5989 = vrot.lane.b32.xlu0 %v5988, 127
        %v5990 = vpop.permute.xlu0 %5989
        %5991 = vrot.lane.b32.xlu0 %v5987, 127
        %v5992 = vpop.permute.xlu0 %5991
        %v5995 = vadd.f32 %v5978, %v5990
        %v5996 = vadd.f32 %v5979, %v5992
        %s5997 = sld [smem:[#allocation8 + $0x29b]]
        %v5998 = vstv %s5997
        %v5999 = vmul.f32 %v261, %v5998
        %v6000 = vmul.f32 %v262, %v5998
        %v6003 = vrot.slane %v5999, 1
        %v6004 = vrot.slane %v6000, 1
        %v6005 = vsel %vm301, %v6003, %v6004
        %6006 = vrot.lane.b32.xlu0 %v6005, 126
        %v6007 = vpop.permute.xlu0 %6006
        %6008 = vrot.lane.b32.xlu0 %v6004, 126
        %v6009 = vpop.permute.xlu0 %6008
        %v6012 = vadd.f32 %v5995, %v6007
        %v6013 = vadd.f32 %v5996, %v6009
        %s6014 = sld [smem:[#allocation8 + $0x31b]]
        %v6015 = vstv %s6014
        %v6016 = vmul.f32 %v261, %v6015
        %v6017 = vmul.f32 %v262, %v6015
        %v6020 = vrot.slane %v6016, 2
        %v6021 = vrot.slane %v6017, 2
        %v6022 = vsel %vm349, %v6020, %v6021
        %v6025 = vadd.f32 %v6012, %v6022
        %v6026 = vadd.f32 %v6013, %v6021
        %s6027 = sld [smem:[#allocation8 + $0x39b]]
        %v6028 = vstv %s6027
        %v6029 = vmul.f32 %v261, %v6028
        %v6030 = vmul.f32 %v262, %v6028
        %v6033 = vrot.slane %v6029, 2
        %v6034 = vrot.slane %v6030, 2
        %v6035 = vsel %vm349, %v6033, %v6034
        %6036 = vrot.lane.b32.xlu0 %v6035, 127
        %v6037 = vpop.permute.xlu0 %6036
        %6038 = vrot.lane.b32.xlu0 %v6034, 127
        %v6039 = vpop.permute.xlu0 %6038
        %v6042 = vadd.f32 %v6025, %v6037
        %v6043 = vadd.f32 %v6026, %v6039
        %s6044 = sld [smem:[#allocation8 + $0x41b]]
        %v6045 = vstv %s6044
        %v6046 = vmul.f32 %v261, %v6045
        %v6047 = vmul.f32 %v262, %v6045
        %v6050 = vrot.slane %v6046, 2
        %v6051 = vrot.slane %v6047, 2
        %v6052 = vsel %vm349, %v6050, %v6051
        %6053 = vrot.lane.b32.xlu0 %v6052, 126
        %v6054 = vpop.permute.xlu0 %6053
        %6055 = vrot.lane.b32.xlu0 %v6051, 126
        %v6056 = vpop.permute.xlu0 %6055
        %v6059 = vadd.f32 %v6042, %v6054
        %v6060 = vadd.f32 %v6043, %v6056
        %s6061 = sld [smem:[#allocation9 + $0x1b]]
        %v6062 = vstv %s6061
        %v6063 = vadd.f32 %v6059, %v6062
        %v6064 = vadd.f32 %v6060, %v6062
        %v6065 = vmax.f32 %v6063, 0.0
        %v6066 = vmax.f32 %v6064, 0.0
        %s6067 = sld [smem:[#allocation10 + $0x1b]]
        %v6068 = vstv %s6067
        %v6069 = vmul.f32 %v6065, %v6068
        %v6070 = vadd.f32 %v5882, %v6069
        %s6071 = sld [smem:[#allocation10 + $0x19b]]
        %v6072 = vstv %s6071
        %v6073 = vmul.f32 %v6065, %v6072
        %v6074 = vmul.f32 %v6066, %v6072
        %v6077 = vrot.slane %v6073, 1
        %v6078 = vrot.slane %v6074, 1
        %v6079 = vsel %vm301, %v6077, %v6078
        %v6081 = vadd.f32 %v6070, %v6079
        %s6082 = sld [smem:[#allocation10 + $0x31b]]
        %v6083 = vstv %s6082
        %v6084 = vmul.f32 %v6065, %v6083
        %v6085 = vmul.f32 %v6066, %v6083
        %v6088 = vrot.slane %v6084, 2
        %v6089 = vrot.slane %v6085, 2
        %v6090 = vsel %vm349, %v6088, %v6089
        %v6092 = vadd.f32 %v6081, %v6090
        %s6093 = sld [smem:[#allocation10 + $0x9b]]
        %v6094 = vstv %s6093
        %v6095 = vmul.f32 %v6065, %v6094
        %v6096 = vadd.f32 %v5908, %v6095
        %s6097 = sld [smem:[#allocation10 + $0x21b]]
        %v6098 = vstv %s6097
        %v6099 = vmul.f32 %v6065, %v6098
        %v6100 = vmul.f32 %v6066, %v6098
        %v6103 = vrot.slane %v6099, 1
        %v6104 = vrot.slane %v6100, 1
        %v6105 = vsel %vm301, %v6103, %v6104
        %v6107 = vadd.f32 %v6096, %v6105
        %s6108 = sld [smem:[#allocation10 + $0x39b]]
        %v6109 = vstv %s6108
        %v6110 = vmul.f32 %v6065, %v6109
        %v6111 = vmul.f32 %v6066, %v6109
        %v6114 = vrot.slane %v6110, 2
        %v6115 = vrot.slane %v6111, 2
        %v6116 = vsel %vm349, %v6114, %v6115
        %v6118 = vadd.f32 %v6107, %v6116
        %s6119 = sld [smem:[#allocation10 + $0x11b]]
        %v6120 = vstv %s6119
        %v6121 = vmul.f32 %v6065, %v6120
        %v6122 = vadd.f32 %v5934, %v6121
        %s6123 = sld [smem:[#allocation10 + $0x29b]]
        %v6124 = vstv %s6123
        %v6125 = vmul.f32 %v6065, %v6124
        %v6126 = vmul.f32 %v6066, %v6124
        %v6129 = vrot.slane %v6125, 1
        %v6130 = vrot.slane %v6126, 1
        %v6131 = vsel %vm301, %v6129, %v6130
        %v6133 = vadd.f32 %v6122, %v6131
        %s6134 = sld [smem:[#allocation10 + $0x41b]]
        %v6135 = vstv %s6134
        %v6136 = vmul.f32 %v6065, %v6135
        %v6137 = vmul.f32 %v6066, %v6135
        %v6140 = vrot.slane %v6136, 2
        %v6141 = vrot.slane %v6137, 2
        %v6142 = vsel %vm349, %v6140, %v6141
        %v6144 = vadd.f32 %v6133, %v6142
        %s6145 = sld [smem:[#allocation8 + $0x1c]]
        %v6146 = vstv %s6145
        %v6147 = vmul.f32 %v261, %v6146
        %v6148 = vmul.f32 %v262, %v6146
        %s6149 = sld [smem:[#allocation8 + $0x9c]]
        %v6150 = vstv %s6149
        %v6151 = vmul.f32 %v261, %v6150
        %v6152 = vmul.f32 %v262, %v6150
        %6155 = vrot.lane.b32.xlu0 %v6151, 127
        %v6156 = vpop.permute.xlu0 %6155
        %6157 = vrot.lane.b32.xlu0 %v6152, 127
        %v6158 = vpop.permute.xlu0 %6157
        %v6161 = vadd.f32 %v6147, %v6156
        %v6162 = vadd.f32 %v6148, %v6158
        %s6163 = sld [smem:[#allocation8 + $0x11c]]
        %v6164 = vstv %s6163
        %v6165 = vmul.f32 %v261, %v6164
        %v6166 = vmul.f32 %v262, %v6164
        %6169 = vrot.lane.b32.xlu0 %v6165, 126
        %v6170 = vpop.permute.xlu0 %6169
        %6171 = vrot.lane.b32.xlu0 %v6166, 126
        %v6172 = vpop.permute.xlu0 %6171
        %v6175 = vadd.f32 %v6161, %v6170
        %v6176 = vadd.f32 %v6162, %v6172
        %s6177 = sld [smem:[#allocation8 + $0x19c]]
        %v6178 = vstv %s6177
        %v6179 = vmul.f32 %v261, %v6178
        %v6180 = vmul.f32 %v262, %v6178
        %v6183 = vrot.slane %v6179, 1
        %v6184 = vrot.slane %v6180, 1
        %v6185 = vsel %vm301, %v6183, %v6184
        %v6188 = vadd.f32 %v6175, %v6185
        %v6189 = vadd.f32 %v6176, %v6184
        %s6190 = sld [smem:[#allocation8 + $0x21c]]
        %v6191 = vstv %s6190
        %v6192 = vmul.f32 %v261, %v6191
        %v6193 = vmul.f32 %v262, %v6191
        %v6196 = vrot.slane %v6192, 1
        %v6197 = vrot.slane %v6193, 1
        %v6198 = vsel %vm301, %v6196, %v6197
        %6199 = vrot.lane.b32.xlu0 %v6198, 127
        %v6200 = vpop.permute.xlu0 %6199
        %6201 = vrot.lane.b32.xlu0 %v6197, 127
        %v6202 = vpop.permute.xlu0 %6201
        %v6205 = vadd.f32 %v6188, %v6200
        %v6206 = vadd.f32 %v6189, %v6202
        %s6207 = sld [smem:[#allocation8 + $0x29c]]
        %v6208 = vstv %s6207
        %v6209 = vmul.f32 %v261, %v6208
        %v6210 = vmul.f32 %v262, %v6208
        %v6213 = vrot.slane %v6209, 1
        %v6214 = vrot.slane %v6210, 1
        %v6215 = vsel %vm301, %v6213, %v6214
        %6216 = vrot.lane.b32.xlu0 %v6215, 126
        %v6217 = vpop.permute.xlu0 %6216
        %6218 = vrot.lane.b32.xlu0 %v6214, 126
        %v6219 = vpop.permute.xlu0 %6218
        %v6222 = vadd.f32 %v6205, %v6217
        %v6223 = vadd.f32 %v6206, %v6219
        %s6224 = sld [smem:[#allocation8 + $0x31c]]
        %v6225 = vstv %s6224
        %v6226 = vmul.f32 %v261, %v6225
        %v6227 = vmul.f32 %v262, %v6225
        %v6230 = vrot.slane %v6226, 2
        %v6231 = vrot.slane %v6227, 2
        %v6232 = vsel %vm349, %v6230, %v6231
        %v6235 = vadd.f32 %v6222, %v6232
        %v6236 = vadd.f32 %v6223, %v6231
        %s6237 = sld [smem:[#allocation8 + $0x39c]]
        %v6238 = vstv %s6237
        %v6239 = vmul.f32 %v261, %v6238
        %v6240 = vmul.f32 %v262, %v6238
        %v6243 = vrot.slane %v6239, 2
        %v6244 = vrot.slane %v6240, 2
        %v6245 = vsel %vm349, %v6243, %v6244
        %6246 = vrot.lane.b32.xlu0 %v6245, 127
        %v6247 = vpop.permute.xlu0 %6246
        %6248 = vrot.lane.b32.xlu0 %v6244, 127
        %v6249 = vpop.permute.xlu0 %6248
        %v6252 = vadd.f32 %v6235, %v6247
        %v6253 = vadd.f32 %v6236, %v6249
        %s6254 = sld [smem:[#allocation8 + $0x41c]]
        %v6255 = vstv %s6254
        %v6256 = vmul.f32 %v261, %v6255
        %v6257 = vmul.f32 %v262, %v6255
        %v6260 = vrot.slane %v6256, 2
        %v6261 = vrot.slane %v6257, 2
        %v6262 = vsel %vm349, %v6260, %v6261
        %6263 = vrot.lane.b32.xlu0 %v6262, 126
        %v6264 = vpop.permute.xlu0 %6263
        %6265 = vrot.lane.b32.xlu0 %v6261, 126
        %v6266 = vpop.permute.xlu0 %6265
        %v6269 = vadd.f32 %v6252, %v6264
        %v6270 = vadd.f32 %v6253, %v6266
        %s6271 = sld [smem:[#allocation9 + $0x1c]]
        %v6272 = vstv %s6271
        %v6273 = vadd.f32 %v6269, %v6272
        %v6274 = vadd.f32 %v6270, %v6272
        %v6275 = vmax.f32 %v6273, 0.0
        %v6276 = vmax.f32 %v6274, 0.0
        %s6277 = sld [smem:[#allocation10 + $0x1c]]
        %v6278 = vstv %s6277
        %v6279 = vmul.f32 %v6275, %v6278
        %v6280 = vadd.f32 %v6092, %v6279
        %s6281 = sld [smem:[#allocation10 + $0x19c]]
        %v6282 = vstv %s6281
        %v6283 = vmul.f32 %v6275, %v6282
        %v6284 = vmul.f32 %v6276, %v6282
        %v6287 = vrot.slane %v6283, 1
        %v6288 = vrot.slane %v6284, 1
        %v6289 = vsel %vm301, %v6287, %v6288
        %v6291 = vadd.f32 %v6280, %v6289
        %s6292 = sld [smem:[#allocation10 + $0x31c]]
        %v6293 = vstv %s6292
        %v6294 = vmul.f32 %v6275, %v6293
        %v6295 = vmul.f32 %v6276, %v6293
        %v6298 = vrot.slane %v6294, 2
        %v6299 = vrot.slane %v6295, 2
        %v6300 = vsel %vm349, %v6298, %v6299
        %v6302 = vadd.f32 %v6291, %v6300
        %s6303 = sld [smem:[#allocation10 + $0x9c]]
        %v6304 = vstv %s6303
        %v6305 = vmul.f32 %v6275, %v6304
        %v6306 = vadd.f32 %v6118, %v6305
        %s6307 = sld [smem:[#allocation10 + $0x21c]]
        %v6308 = vstv %s6307
        %v6309 = vmul.f32 %v6275, %v6308
        %v6310 = vmul.f32 %v6276, %v6308
        %v6313 = vrot.slane %v6309, 1
        %v6314 = vrot.slane %v6310, 1
        %v6315 = vsel %vm301, %v6313, %v6314
        %v6317 = vadd.f32 %v6306, %v6315
        %s6318 = sld [smem:[#allocation10 + $0x39c]]
        %v6319 = vstv %s6318
        %v6320 = vmul.f32 %v6275, %v6319
        %v6321 = vmul.f32 %v6276, %v6319
        %v6324 = vrot.slane %v6320, 2
        %v6325 = vrot.slane %v6321, 2
        %v6326 = vsel %vm349, %v6324, %v6325
        %v6328 = vadd.f32 %v6317, %v6326
        %s6329 = sld [smem:[#allocation10 + $0x11c]]
        %v6330 = vstv %s6329
        %v6331 = vmul.f32 %v6275, %v6330
        %v6332 = vadd.f32 %v6144, %v6331
        %s6333 = sld [smem:[#allocation10 + $0x29c]]
        %v6334 = vstv %s6333
        %v6335 = vmul.f32 %v6275, %v6334
        %v6336 = vmul.f32 %v6276, %v6334
        %v6339 = vrot.slane %v6335, 1
        %v6340 = vrot.slane %v6336, 1
        %v6341 = vsel %vm301, %v6339, %v6340
        %v6343 = vadd.f32 %v6332, %v6341
        %s6344 = sld [smem:[#allocation10 + $0x41c]]
        %v6345 = vstv %s6344
        %v6346 = vmul.f32 %v6275, %v6345
        %v6347 = vmul.f32 %v6276, %v6345
        %v6350 = vrot.slane %v6346, 2
        %v6351 = vrot.slane %v6347, 2
        %v6352 = vsel %vm349, %v6350, %v6351
        %v6354 = vadd.f32 %v6343, %v6352
        %s6355 = sld [smem:[#allocation8 + $0x1d]]
        %v6356 = vstv %s6355
        %v6357 = vmul.f32 %v261, %v6356
        %v6358 = vmul.f32 %v262, %v6356
        %s6359 = sld [smem:[#allocation8 + $0x9d]]
        %v6360 = vstv %s6359
        %v6361 = vmul.f32 %v261, %v6360
        %v6362 = vmul.f32 %v262, %v6360
        %6365 = vrot.lane.b32.xlu0 %v6361, 127
        %v6366 = vpop.permute.xlu0 %6365
        %6367 = vrot.lane.b32.xlu0 %v6362, 127
        %v6368 = vpop.permute.xlu0 %6367
        %v6371 = vadd.f32 %v6357, %v6366
        %v6372 = vadd.f32 %v6358, %v6368
        %s6373 = sld [smem:[#allocation8 + $0x11d]]
        %v6374 = vstv %s6373
        %v6375 = vmul.f32 %v261, %v6374
        %v6376 = vmul.f32 %v262, %v6374
        %6379 = vrot.lane.b32.xlu0 %v6375, 126
        %v6380 = vpop.permute.xlu0 %6379
        %6381 = vrot.lane.b32.xlu0 %v6376, 126
        %v6382 = vpop.permute.xlu0 %6381
        %v6385 = vadd.f32 %v6371, %v6380
        %v6386 = vadd.f32 %v6372, %v6382
        %s6387 = sld [smem:[#allocation8 + $0x19d]]
        %v6388 = vstv %s6387
        %v6389 = vmul.f32 %v261, %v6388
        %v6390 = vmul.f32 %v262, %v6388
        %v6393 = vrot.slane %v6389, 1
        %v6394 = vrot.slane %v6390, 1
        %v6395 = vsel %vm301, %v6393, %v6394
        %v6398 = vadd.f32 %v6385, %v6395
        %v6399 = vadd.f32 %v6386, %v6394
        %s6400 = sld [smem:[#allocation8 + $0x21d]]
        %v6401 = vstv %s6400
        %v6402 = vmul.f32 %v261, %v6401
        %v6403 = vmul.f32 %v262, %v6401
        %v6406 = vrot.slane %v6402, 1
        %v6407 = vrot.slane %v6403, 1
        %v6408 = vsel %vm301, %v6406, %v6407
        %6409 = vrot.lane.b32.xlu0 %v6408, 127
        %v6410 = vpop.permute.xlu0 %6409
        %6411 = vrot.lane.b32.xlu0 %v6407, 127
        %v6412 = vpop.permute.xlu0 %6411
        %v6415 = vadd.f32 %v6398, %v6410
        %v6416 = vadd.f32 %v6399, %v6412
        %s6417 = sld [smem:[#allocation8 + $0x29d]]
        %v6418 = vstv %s6417
        %v6419 = vmul.f32 %v261, %v6418
        %v6420 = vmul.f32 %v262, %v6418
        %v6423 = vrot.slane %v6419, 1
        %v6424 = vrot.slane %v6420, 1
        %v6425 = vsel %vm301, %v6423, %v6424
        %6426 = vrot.lane.b32.xlu0 %v6425, 126
        %v6427 = vpop.permute.xlu0 %6426
        %6428 = vrot.lane.b32.xlu0 %v6424, 126
        %v6429 = vpop.permute.xlu0 %6428
        %v6432 = vadd.f32 %v6415, %v6427
        %v6433 = vadd.f32 %v6416, %v6429
        %s6434 = sld [smem:[#allocation8 + $0x31d]]
        %v6435 = vstv %s6434
        %v6436 = vmul.f32 %v261, %v6435
        %v6437 = vmul.f32 %v262, %v6435
        %v6440 = vrot.slane %v6436, 2
        %v6441 = vrot.slane %v6437, 2
        %v6442 = vsel %vm349, %v6440, %v6441
        %v6445 = vadd.f32 %v6432, %v6442
        %v6446 = vadd.f32 %v6433, %v6441
        %s6447 = sld [smem:[#allocation8 + $0x39d]]
        %v6448 = vstv %s6447
        %v6449 = vmul.f32 %v261, %v6448
        %v6450 = vmul.f32 %v262, %v6448
        %v6453 = vrot.slane %v6449, 2
        %v6454 = vrot.slane %v6450, 2
        %v6455 = vsel %vm349, %v6453, %v6454
        %6456 = vrot.lane.b32.xlu0 %v6455, 127
        %v6457 = vpop.permute.xlu0 %6456
        %6458 = vrot.lane.b32.xlu0 %v6454, 127
        %v6459 = vpop.permute.xlu0 %6458
        %v6462 = vadd.f32 %v6445, %v6457
        %v6463 = vadd.f32 %v6446, %v6459
        %s6464 = sld [smem:[#allocation8 + $0x41d]]
        %v6465 = vstv %s6464
        %v6466 = vmul.f32 %v261, %v6465
        %v6467 = vmul.f32 %v262, %v6465
        %v6470 = vrot.slane %v6466, 2
        %v6471 = vrot.slane %v6467, 2
        %v6472 = vsel %vm349, %v6470, %v6471
        %6473 = vrot.lane.b32.xlu0 %v6472, 126
        %v6474 = vpop.permute.xlu0 %6473
        %6475 = vrot.lane.b32.xlu0 %v6471, 126
        %v6476 = vpop.permute.xlu0 %6475
        %v6479 = vadd.f32 %v6462, %v6474
        %v6480 = vadd.f32 %v6463, %v6476
        %s6481 = sld [smem:[#allocation9 + $0x1d]]
        %v6482 = vstv %s6481
        %v6483 = vadd.f32 %v6479, %v6482
        %v6484 = vadd.f32 %v6480, %v6482
        %v6485 = vmax.f32 %v6483, 0.0
        %v6486 = vmax.f32 %v6484, 0.0
        %s6487 = sld [smem:[#allocation10 + $0x1d]]
        %v6488 = vstv %s6487
        %v6489 = vmul.f32 %v6485, %v6488
        %v6490 = vadd.f32 %v6302, %v6489
        %s6491 = sld [smem:[#allocation10 + $0x19d]]
        %v6492 = vstv %s6491
        %v6493 = vmul.f32 %v6485, %v6492
        %v6494 = vmul.f32 %v6486, %v6492
        %v6497 = vrot.slane %v6493, 1
        %v6498 = vrot.slane %v6494, 1
        %v6499 = vsel %vm301, %v6497, %v6498
        %v6501 = vadd.f32 %v6490, %v6499
        %s6502 = sld [smem:[#allocation10 + $0x31d]]
        %v6503 = vstv %s6502
        %v6504 = vmul.f32 %v6485, %v6503
        %v6505 = vmul.f32 %v6486, %v6503
        %v6508 = vrot.slane %v6504, 2
        %v6509 = vrot.slane %v6505, 2
        %v6510 = vsel %vm349, %v6508, %v6509
        %v6512 = vadd.f32 %v6501, %v6510
        %s6513 = sld [smem:[#allocation10 + $0x9d]]
        %v6514 = vstv %s6513
        %v6515 = vmul.f32 %v6485, %v6514
        %v6516 = vadd.f32 %v6328, %v6515
        %s6517 = sld [smem:[#allocation10 + $0x21d]]
        %v6518 = vstv %s6517
        %v6519 = vmul.f32 %v6485, %v6518
        %v6520 = vmul.f32 %v6486, %v6518
        %v6523 = vrot.slane %v6519, 1
        %v6524 = vrot.slane %v6520, 1
        %v6525 = vsel %vm301, %v6523, %v6524
        %v6527 = vadd.f32 %v6516, %v6525
        %s6528 = sld [smem:[#allocation10 + $0x39d]]
        %v6529 = vstv %s6528
        %v6530 = vmul.f32 %v6485, %v6529
        %v6531 = vmul.f32 %v6486, %v6529
        %v6534 = vrot.slane %v6530, 2
        %v6535 = vrot.slane %v6531, 2
        %v6536 = vsel %vm349, %v6534, %v6535
        %v6538 = vadd.f32 %v6527, %v6536
        %s6539 = sld [smem:[#allocation10 + $0x11d]]
        %v6540 = vstv %s6539
        %v6541 = vmul.f32 %v6485, %v6540
        %v6542 = vadd.f32 %v6354, %v6541
        %s6543 = sld [smem:[#allocation10 + $0x29d]]
        %v6544 = vstv %s6543
        %v6545 = vmul.f32 %v6485, %v6544
        %v6546 = vmul.f32 %v6486, %v6544
        %v6549 = vrot.slane %v6545, 1
        %v6550 = vrot.slane %v6546, 1
        %v6551 = vsel %vm301, %v6549, %v6550
        %v6553 = vadd.f32 %v6542, %v6551
        %s6554 = sld [smem:[#allocation10 + $0x41d]]
        %v6555 = vstv %s6554
        %v6556 = vmul.f32 %v6485, %v6555
        %v6557 = vmul.f32 %v6486, %v6555
        %v6560 = vrot.slane %v6556, 2
        %v6561 = vrot.slane %v6557, 2
        %v6562 = vsel %vm349, %v6560, %v6561
        %v6564 = vadd.f32 %v6553, %v6562
        %s6565 = sld [smem:[#allocation8 + $0x1e]]
        %v6566 = vstv %s6565
        %v6567 = vmul.f32 %v261, %v6566
        %v6568 = vmul.f32 %v262, %v6566
        %s6569 = sld [smem:[#allocation8 + $0x9e]]
        %v6570 = vstv %s6569
        %v6571 = vmul.f32 %v261, %v6570
        %v6572 = vmul.f32 %v262, %v6570
        %6575 = vrot.lane.b32.xlu0 %v6571, 127
        %v6576 = vpop.permute.xlu0 %6575
        %6577 = vrot.lane.b32.xlu0 %v6572, 127
        %v6578 = vpop.permute.xlu0 %6577
        %v6581 = vadd.f32 %v6567, %v6576
        %v6582 = vadd.f32 %v6568, %v6578
        %s6583 = sld [smem:[#allocation8 + $0x11e]]
        %v6584 = vstv %s6583
        %v6585 = vmul.f32 %v261, %v6584
        %v6586 = vmul.f32 %v262, %v6584
        %6589 = vrot.lane.b32.xlu0 %v6585, 126
        %v6590 = vpop.permute.xlu0 %6589
        %6591 = vrot.lane.b32.xlu0 %v6586, 126
        %v6592 = vpop.permute.xlu0 %6591
        %v6595 = vadd.f32 %v6581, %v6590
        %v6596 = vadd.f32 %v6582, %v6592
        %s6597 = sld [smem:[#allocation8 + $0x19e]]
        %v6598 = vstv %s6597
        %v6599 = vmul.f32 %v261, %v6598
        %v6600 = vmul.f32 %v262, %v6598
        %v6603 = vrot.slane %v6599, 1
        %v6604 = vrot.slane %v6600, 1
        %v6605 = vsel %vm301, %v6603, %v6604
        %v6608 = vadd.f32 %v6595, %v6605
        %v6609 = vadd.f32 %v6596, %v6604
        %s6610 = sld [smem:[#allocation8 + $0x21e]]
        %v6611 = vstv %s6610
        %v6612 = vmul.f32 %v261, %v6611
        %v6613 = vmul.f32 %v262, %v6611
        %v6616 = vrot.slane %v6612, 1
        %v6617 = vrot.slane %v6613, 1
        %v6618 = vsel %vm301, %v6616, %v6617
        %6619 = vrot.lane.b32.xlu0 %v6618, 127
        %v6620 = vpop.permute.xlu0 %6619
        %6621 = vrot.lane.b32.xlu0 %v6617, 127
        %v6622 = vpop.permute.xlu0 %6621
        %v6625 = vadd.f32 %v6608, %v6620
        %v6626 = vadd.f32 %v6609, %v6622
        %s6627 = sld [smem:[#allocation8 + $0x29e]]
        %v6628 = vstv %s6627
        %v6629 = vmul.f32 %v261, %v6628
        %v6630 = vmul.f32 %v262, %v6628
        %v6633 = vrot.slane %v6629, 1
        %v6634 = vrot.slane %v6630, 1
        %v6635 = vsel %vm301, %v6633, %v6634
        %6636 = vrot.lane.b32.xlu0 %v6635, 126
        %v6637 = vpop.permute.xlu0 %6636
        %6638 = vrot.lane.b32.xlu0 %v6634, 126
        %v6639 = vpop.permute.xlu0 %6638
        %v6642 = vadd.f32 %v6625, %v6637
        %v6643 = vadd.f32 %v6626, %v6639
        %s6644 = sld [smem:[#allocation8 + $0x31e]]
        %v6645 = vstv %s6644
        %v6646 = vmul.f32 %v261, %v6645
        %v6647 = vmul.f32 %v262, %v6645
        %v6650 = vrot.slane %v6646, 2
        %v6651 = vrot.slane %v6647, 2
        %v6652 = vsel %vm349, %v6650, %v6651
        %v6655 = vadd.f32 %v6642, %v6652
        %v6656 = vadd.f32 %v6643, %v6651
        %s6657 = sld [smem:[#allocation8 + $0x39e]]
        %v6658 = vstv %s6657
        %v6659 = vmul.f32 %v261, %v6658
        %v6660 = vmul.f32 %v262, %v6658
        %v6663 = vrot.slane %v6659, 2
        %v6664 = vrot.slane %v6660, 2
        %v6665 = vsel %vm349, %v6663, %v6664
        %6666 = vrot.lane.b32.xlu0 %v6665, 127
        %v6667 = vpop.permute.xlu0 %6666
        %6668 = vrot.lane.b32.xlu0 %v6664, 127
        %v6669 = vpop.permute.xlu0 %6668
        %v6672 = vadd.f32 %v6655, %v6667
        %v6673 = vadd.f32 %v6656, %v6669
        %s6674 = sld [smem:[#allocation8 + $0x41e]]
        %v6675 = vstv %s6674
        %v6676 = vmul.f32 %v261, %v6675
        %v6677 = vmul.f32 %v262, %v6675
        %v6680 = vrot.slane %v6676, 2
        %v6681 = vrot.slane %v6677, 2
        %v6682 = vsel %vm349, %v6680, %v6681
        %6683 = vrot.lane.b32.xlu0 %v6682, 126
        %v6684 = vpop.permute.xlu0 %6683
        %6685 = vrot.lane.b32.xlu0 %v6681, 126
        %v6686 = vpop.permute.xlu0 %6685
        %v6689 = vadd.f32 %v6672, %v6684
        %v6690 = vadd.f32 %v6673, %v6686
        %s6691 = sld [smem:[#allocation9 + $0x1e]]
        %v6692 = vstv %s6691
        %v6693 = vadd.f32 %v6689, %v6692
        %v6694 = vadd.f32 %v6690, %v6692
        %v6695 = vmax.f32 %v6693, 0.0
        %v6696 = vmax.f32 %v6694, 0.0
        %s6697 = sld [smem:[#allocation10 + $0x1e]]
        %v6698 = vstv %s6697
        %v6699 = vmul.f32 %v6695, %v6698
        %v6700 = vadd.f32 %v6512, %v6699
        %s6701 = sld [smem:[#allocation10 + $0x19e]]
        %v6702 = vstv %s6701
        %v6703 = vmul.f32 %v6695, %v6702
        %v6704 = vmul.f32 %v6696, %v6702
        %v6707 = vrot.slane %v6703, 1
        %v6708 = vrot.slane %v6704, 1
        %v6709 = vsel %vm301, %v6707, %v6708
        %v6711 = vadd.f32 %v6700, %v6709
        %s6712 = sld [smem:[#allocation10 + $0x31e]]
        %v6713 = vstv %s6712
        %v6714 = vmul.f32 %v6695, %v6713
        %v6715 = vmul.f32 %v6696, %v6713
        %v6718 = vrot.slane %v6714, 2
        %v6719 = vrot.slane %v6715, 2
        %v6720 = vsel %vm349, %v6718, %v6719
        %v6722 = vadd.f32 %v6711, %v6720
        %s6723 = sld [smem:[#allocation10 + $0x9e]]
        %v6724 = vstv %s6723
        %v6725 = vmul.f32 %v6695, %v6724
        %v6726 = vadd.f32 %v6538, %v6725
        %s6727 = sld [smem:[#allocation10 + $0x21e]]
        %v6728 = vstv %s6727
        %v6729 = vmul.f32 %v6695, %v6728
        %v6730 = vmul.f32 %v6696, %v6728
        %v6733 = vrot.slane %v6729, 1
        %v6734 = vrot.slane %v6730, 1
        %v6735 = vsel %vm301, %v6733, %v6734
        %v6737 = vadd.f32 %v6726, %v6735
        %s6738 = sld [smem:[#allocation10 + $0x39e]]
        %v6739 = vstv %s6738
        %v6740 = vmul.f32 %v6695, %v6739
        %v6741 = vmul.f32 %v6696, %v6739
        %v6744 = vrot.slane %v6740, 2
        %v6745 = vrot.slane %v6741, 2
        %v6746 = vsel %vm349, %v6744, %v6745
        %v6748 = vadd.f32 %v6737, %v6746
        %s6749 = sld [smem:[#allocation10 + $0x11e]]
        %v6750 = vstv %s6749
        %v6751 = vmul.f32 %v6695, %v6750
        %v6752 = vadd.f32 %v6564, %v6751
        %s6753 = sld [smem:[#allocation10 + $0x29e]]
        %v6754 = vstv %s6753
        %v6755 = vmul.f32 %v6695, %v6754
        %v6756 = vmul.f32 %v6696, %v6754
        %v6759 = vrot.slane %v6755, 1
        %v6760 = vrot.slane %v6756, 1
        %v6761 = vsel %vm301, %v6759, %v6760
        %v6763 = vadd.f32 %v6752, %v6761
        %s6764 = sld [smem:[#allocation10 + $0x41e]]
        %v6765 = vstv %s6764
        %v6766 = vmul.f32 %v6695, %v6765
        %v6767 = vmul.f32 %v6696, %v6765
        %v6770 = vrot.slane %v6766, 2
        %v6771 = vrot.slane %v6767, 2
        %v6772 = vsel %vm349, %v6770, %v6771
        %v6774 = vadd.f32 %v6763, %v6772
        %s6775 = sld [smem:[#allocation8 + $0x1f]]
        %v6776 = vstv %s6775
        %v6777 = vmul.f32 %v261, %v6776
        %v6778 = vmul.f32 %v262, %v6776
        %s6779 = sld [smem:[#allocation8 + $0x9f]]
        %v6780 = vstv %s6779
        %v6781 = vmul.f32 %v261, %v6780
        %v6782 = vmul.f32 %v262, %v6780
        %6785 = vrot.lane.b32.xlu0 %v6781, 127
        %v6786 = vpop.permute.xlu0 %6785
        %6787 = vrot.lane.b32.xlu0 %v6782, 127
        %v6788 = vpop.permute.xlu0 %6787
        %v6791 = vadd.f32 %v6777, %v6786
        %v6792 = vadd.f32 %v6778, %v6788
        %s6793 = sld [smem:[#allocation8 + $0x11f]]
        %v6794 = vstv %s6793
        %v6795 = vmul.f32 %v261, %v6794
        %v6796 = vmul.f32 %v262, %v6794
        %6799 = vrot.lane.b32.xlu0 %v6795, 126
        %v6800 = vpop.permute.xlu0 %6799
        %6801 = vrot.lane.b32.xlu0 %v6796, 126
        %v6802 = vpop.permute.xlu0 %6801
        %v6805 = vadd.f32 %v6791, %v6800
        %v6806 = vadd.f32 %v6792, %v6802
        %s6807 = sld [smem:[#allocation8 + $0x19f]]
        %v6808 = vstv %s6807
        %v6809 = vmul.f32 %v261, %v6808
        %v6810 = vmul.f32 %v262, %v6808
        %v6813 = vrot.slane %v6809, 1
        %v6814 = vrot.slane %v6810, 1
        %v6815 = vsel %vm301, %v6813, %v6814
        %v6818 = vadd.f32 %v6805, %v6815
        %v6819 = vadd.f32 %v6806, %v6814
        %s6820 = sld [smem:[#allocation8 + $0x21f]]
        %v6821 = vstv %s6820
        %v6822 = vmul.f32 %v261, %v6821
        %v6823 = vmul.f32 %v262, %v6821
        %v6826 = vrot.slane %v6822, 1
        %v6827 = vrot.slane %v6823, 1
        %v6828 = vsel %vm301, %v6826, %v6827
        %6829 = vrot.lane.b32.xlu0 %v6828, 127
        %v6830 = vpop.permute.xlu0 %6829
        %6831 = vrot.lane.b32.xlu0 %v6827, 127
        %v6832 = vpop.permute.xlu0 %6831
        %v6835 = vadd.f32 %v6818, %v6830
        %v6836 = vadd.f32 %v6819, %v6832
        %s6837 = sld [smem:[#allocation8 + $0x29f]]
        %v6838 = vstv %s6837
        %v6839 = vmul.f32 %v261, %v6838
        %v6840 = vmul.f32 %v262, %v6838
        %v6843 = vrot.slane %v6839, 1
        %v6844 = vrot.slane %v6840, 1
        %v6845 = vsel %vm301, %v6843, %v6844
        %6846 = vrot.lane.b32.xlu0 %v6845, 126
        %v6847 = vpop.permute.xlu0 %6846
        %6848 = vrot.lane.b32.xlu0 %v6844, 126
        %v6849 = vpop.permute.xlu0 %6848
        %v6852 = vadd.f32 %v6835, %v6847
        %v6853 = vadd.f32 %v6836, %v6849
        %s6854 = sld [smem:[#allocation8 + $0x31f]]
        %v6855 = vstv %s6854
        %v6856 = vmul.f32 %v261, %v6855
        %v6857 = vmul.f32 %v262, %v6855
        %v6860 = vrot.slane %v6856, 2
        %v6861 = vrot.slane %v6857, 2
        %v6862 = vsel %vm349, %v6860, %v6861
        %v6865 = vadd.f32 %v6852, %v6862
        %v6866 = vadd.f32 %v6853, %v6861
        %s6867 = sld [smem:[#allocation8 + $0x39f]]
        %v6868 = vstv %s6867
        %v6869 = vmul.f32 %v261, %v6868
        %v6870 = vmul.f32 %v262, %v6868
        %v6873 = vrot.slane %v6869, 2
        %v6874 = vrot.slane %v6870, 2
        %v6875 = vsel %vm349, %v6873, %v6874
        %6876 = vrot.lane.b32.xlu0 %v6875, 127
        %v6877 = vpop.permute.xlu0 %6876
        %6878 = vrot.lane.b32.xlu0 %v6874, 127
        %v6879 = vpop.permute.xlu0 %6878
        %v6882 = vadd.f32 %v6865, %v6877
        %v6883 = vadd.f32 %v6866, %v6879
        %s6884 = sld [smem:[#allocation8 + $0x41f]]
        %v6885 = vstv %s6884
        %v6886 = vmul.f32 %v261, %v6885
        %v6887 = vmul.f32 %v262, %v6885
        %v6890 = vrot.slane %v6886, 2
        %v6891 = vrot.slane %v6887, 2
        %v6892 = vsel %vm349, %v6890, %v6891
        %6893 = vrot.lane.b32.xlu0 %v6892, 126
        %v6894 = vpop.permute.xlu0 %6893
        %6895 = vrot.lane.b32.xlu0 %v6891, 126
        %v6896 = vpop.permute.xlu0 %6895
        %v6899 = vadd.f32 %v6882, %v6894
        %v6900 = vadd.f32 %v6883, %v6896
        %s6901 = sld [smem:[#allocation9 + $0x1f]]
        %v6902 = vstv %s6901
        %v6903 = vadd.f32 %v6899, %v6902
        %v6904 = vadd.f32 %v6900, %v6902
        %v6905 = vmax.f32 %v6903, 0.0
        %v6906 = vmax.f32 %v6904, 0.0
        %s6907 = sld [smem:[#allocation10 + $0x1f]]
        %v6908 = vstv %s6907
        %v6909 = vmul.f32 %v6905, %v6908
        %v6910 = vadd.f32 %v6722, %v6909
        %s6911 = sld [smem:[#allocation10 + $0x19f]]
        %v6912 = vstv %s6911
        %v6913 = vmul.f32 %v6905, %v6912
        %v6914 = vmul.f32 %v6906, %v6912
        %v6917 = vrot.slane %v6913, 1
        %v6918 = vrot.slane %v6914, 1
        %v6919 = vsel %vm301, %v6917, %v6918
        %v6921 = vadd.f32 %v6910, %v6919
        %s6922 = sld [smem:[#allocation10 + $0x31f]]
        %v6923 = vstv %s6922
        %v6924 = vmul.f32 %v6905, %v6923
        %v6925 = vmul.f32 %v6906, %v6923
        %v6928 = vrot.slane %v6924, 2
        %v6929 = vrot.slane %v6925, 2
        %v6930 = vsel %vm349, %v6928, %v6929
        %v6932 = vadd.f32 %v6921, %v6930
        %s6933 = sld [smem:[#allocation10 + $0x9f]]
        %v6934 = vstv %s6933
        %v6935 = vmul.f32 %v6905, %v6934
        %v6936 = vadd.f32 %v6748, %v6935
        %s6937 = sld [smem:[#allocation10 + $0x21f]]
        %v6938 = vstv %s6937
        %v6939 = vmul.f32 %v6905, %v6938
        %v6940 = vmul.f32 %v6906, %v6938
        %v6943 = vrot.slane %v6939, 1
        %v6944 = vrot.slane %v6940, 1
        %v6945 = vsel %vm301, %v6943, %v6944
        %v6947 = vadd.f32 %v6936, %v6945
        %s6948 = sld [smem:[#allocation10 + $0x39f]]
        %v6949 = vstv %s6948
        %v6950 = vmul.f32 %v6905, %v6949
        %v6951 = vmul.f32 %v6906, %v6949
        %v6954 = vrot.slane %v6950, 2
        %v6955 = vrot.slane %v6951, 2
        %v6956 = vsel %vm349, %v6954, %v6955
        %v6958 = vadd.f32 %v6947, %v6956
        %s6959 = sld [smem:[#allocation10 + $0x11f]]
        %v6960 = vstv %s6959
        %v6961 = vmul.f32 %v6905, %v6960
        %v6962 = vadd.f32 %v6774, %v6961
        %s6963 = sld [smem:[#allocation10 + $0x29f]]
        %v6964 = vstv %s6963
        %v6965 = vmul.f32 %v6905, %v6964
        %v6966 = vmul.f32 %v6906, %v6964
        %v6969 = vrot.slane %v6965, 1
        %v6970 = vrot.slane %v6966, 1
        %v6971 = vsel %vm301, %v6969, %v6970
        %v6973 = vadd.f32 %v6962, %v6971
        %s6974 = sld [smem:[#allocation10 + $0x41f]]
        %v6975 = vstv %s6974
        %v6976 = vmul.f32 %v6905, %v6975
        %v6977 = vmul.f32 %v6906, %v6975
        %v6980 = vrot.slane %v6976, 2
        %v6981 = vrot.slane %v6977, 2
        %v6982 = vsel %vm349, %v6980, %v6981
        %v6984 = vadd.f32 %v6973, %v6982
        %6986 = vrot.lane.b32.xlu0 %v6958, 127
        %v6987 = vpop.permute.xlu0 %6986
        %v6989 = vadd.f32 %v6932, %v6987
        %6991 = vrot.lane.b32.xlu0 %v6984, 126
        %v6992 = vpop.permute.xlu0 %6991
        %v6994 = vadd.f32 %v6989, %v6992
        %s6995 = sld [smem:[#allocation2]]
        %v6996 = vstv %s6995
        %v6997 = vadd.f32 %v6994, %v6996
        %v6998 = vlaneseq
        %v6999 = vshrl.u32 %v6998, 7
        %v7000 = vstv %s259
        %v7001 = vadd.s32 %v7000, %v6999
        %v7002 = vlaneseq
        %v7003 = vand.u32 %v7002, 127
        %vm7004 = vcmp.lt.s32.totalorder %v7001, 24
        %vm7005 = vcmp.lt.s32.totalorder %v7003, 24
        %vm7006 = vmand %vm7004, %vm7005
        %v7007 = vsel %vm7006, %v6997, -inf
        %vm7008 = vcmask 261120
        %7009 = vst.msk [vmem:[%s258] sm:$0xff] %vm7008, %v7007
        %s7010 = sand.u32 %s137, 1
        %s7011 = scalar_lea.sflag [#allocation5], %s7010
        %s7012 = sand.u32 %s137, 1
        %s7013 = smul.addr %s7012, 8
        %s7014 = scalar_lea.vmem [#allocation12], %s7013
        // Predicated region
        $region57: #{tpu_custom_call.1} parent=39 // pred_check
          %p7015 = pneg %p147
        $region58: #{tpu_custom_call.1} parent=39 // pred_check_branch
          %7017 = sbr.rel (%p7015) target = $region60
        $region59: #{tpu_custom_call.1} parent=39 // pred_region
          %s7019 = ssub.s32 128, 128
          %7020 = vsyncadd %s7011, %s7019
          %s7021 = smul.addr %s24, 128
          %s7022 = scalar_lea.hbm %s5, %s7021
          %s7024 = sshll.u32 %s7014, 4
          %s7025 = int_to_ptr.vmem [resolvable:$true] %s7024
          %7027 = dma.vmem_to_hbm [thread:$0]  %s7025, 128, %s7022, %s7011
        $region60: #{tpu_custom_call.1} parent=39 // pred_fallthru
          _
      $region40: #{tpu_custom_call.1} parent=5 // pred_fallthru
        _
      %p7028 = scmp.le.s32.totalorder 2, %s19
      // Predicated region
      $region61: #{tpu_custom_call.1} parent=5 // pred_check
        %p7029 = pneg %p7028
      $region62: #{tpu_custom_call.1} parent=5 // pred_check_branch
        %7031 = sbr.rel (%p7029) target = $region64
      $region63: #{tpu_custom_call.1} parent=5 // pred_region
        %s7032 = ssub.s32 %s19, 2
        // Predicated region
        $region65: #{tpu_custom_call.1} parent=63 // pred_check
          %p7033 = pneg %p153
        $region66: #{tpu_custom_call.1} parent=63 // pred_check_branch
          %7035 = sbr.rel (%p7033) target = $region68
        $region67: #{tpu_custom_call.1} parent=63 // pred_region
          %s7036 = sand.u32 %s138, 1
          %s7037 = scalar_lea.sflag [#allocation5], %s7036
          %s7038 = sand.u32 %s138, 1
          %s7039 = smul.addr %s7038, 8
          %s7040 = scalar_lea.vmem [#allocation12], %s7039
          %7041 = dma.done %s7037, 128
        $region68: #{tpu_custom_call.1} parent=63 // pred_fallthru
          _
      $region64: #{tpu_custom_call.1} parent=5 // pred_fallthru
        _
    $region6: #{tpu_custom_call.1} parent=1 // loop_footer
      %s23 = sadd.s32 1, %s19
    $region7: #{tpu_custom_call.1} parent=1 // loop_footer_branch
      %18 = sbr.rel target = $region3
    $region8: #{tpu_custom_call.1} parent=1 // loop_exit
      _
    %7042 = vsyncpa [#allocation4], 1
    %s7043 = scalar_lea.sflag [#allocation4], 1
    %7044 = vsyncpa %s7043, 1
    %7045 = vsyncpa [#allocation5], 1
    %s7046 = scalar_lea.sflag [#allocation5], 1
    %7047 = vsyncpa %s7046, 1
    %7048 = vsyncpa [#allocation6], 1
    %s7049 = scalar_lea.sflag [#allocation6], 1
    %7050 = vsyncpa %s7049, 1
    %7051 = vsyncpa [#allocation11], 1
    %7052 = vsyncpa [#allocation7], 1
    %s7053 = scalar_lea.sflag [#allocation7], 1
    %7054 = vsyncpa %s7053, 1

</llo_original>
